<compile_context>
chip_gen: v7x
topology: tpu7x:2x2x1
jax: 0.10.0
libtpu: 0.0.40
codegen_flags: <defaults>
</compile_context>

<pallas_src>
import functools

import jax
import jax.numpy as jnp
from jax import lax
from jax.experimental import pallas as pl
from jax.experimental.pallas import tpu as pltpu

MXU_DTYPE = jnp.bfloat16   # matmul operand dtype (f32 accumulation is always used)


# ----------------------------------------------------------------------------
# Fused conv3x3 (+ optional residual / BN-affine / ReLU on the input) kernel
# ----------------------------------------------------------------------------
def _conv_core(inp, w_ref, b_ref, z_out, sum_ref, ssq_ref, pad_ref, acc_ref):
    """inp: (H, W, Cp) conv input for this image.  Writes:
         z_out[0]   = conv3x3(inp) + bias                (pre-BN activation)
         sum_ref[0] = per-channel sum of z over H*W
         ssq_ref[0] = per-channel sum of z^2 over H*W
    """
    h, w, cp = inp.shape

    # Spatial zero-padding done entirely in VMEM scratch (no HBM pad pass).
    pad_ref[...] = jnp.zeros_like(pad_ref)
    pad_ref[1:h + 1, 1:w + 1, :] = inp.astype(pad_ref.dtype)

    # 3x3 conv as 9 shifted-window GEMMs accumulated in f32.
    for k in range(9):
        di, dj = divmod(k, 3)
        win = pad_ref[di:di + h, dj:dj + w, :].reshape(h * w, cp)
        contrib = jnp.dot(win.astype(w_ref.dtype), w_ref[k],
                          preferred_element_type=jnp.float32)
        if k == 0:
            acc_ref[...] = contrib
        else:
            acc_ref[...] += contrib

    z = acc_ref[...] + b_ref[...]                      # (H*W, Cp) + (1, Cp)
    z_out[0] = z.reshape(h, w, cp).astype(z_out.dtype)
    sum_ref[0] = jnp.sum(z, axis=0, keepdims=True)     # BN batch statistics
    ssq_ref[0] = jnp.sum(z * z, axis=0, keepdims=True)


def _conv_first_kernel(x_ref, w_ref, b_ref,
                       z_out, sum_ref, ssq_ref, pad_ref, acc_ref):
    # First application: conv input is x itself.
    _conv_core(x_ref[0], w_ref, b_ref, z_out, sum_ref, ssq_ref, pad_ref, acc_ref)


def _conv_recur_kernel(x_ref, z_ref, scale_ref, shift_ref, w_ref, b_ref,
                       z_out, sum_ref, ssq_ref, pad_ref, acc_ref):
    # Fused epilogue of the previous step: ReLU(BN(z_prev)) + residual add of x.
    y_prev = jnp.maximum(z_ref[0] * scale_ref[...] + shift_ref[...], 0.0)
    _conv_core(x_ref[0] + y_prev, w_ref, b_ref,
               z_out, sum_ref, ssq_ref, pad_ref, acc_ref)


def rec_conv_step(x, w9, bias, z_prev=None, scale=None, shift=None):
    """One conv application.  x, z_prev: (N, H, W, Cp) f32 NHWC (Cp lane-dense).
       Returns (z, sum, sumsq) with z: (N, H, W, Cp), stats: (N, Cp)."""
    n, h, w, cp = x.shape

    img_spec = pl.BlockSpec((1, h, w, cp), lambda i: (i, 0, 0, 0))
    row_spec = pl.BlockSpec((1, cp), lambda i: (0, 0))
    w_spec = pl.BlockSpec(w9.shape, lambda i: (0, 0, 0))
    stat_spec = pl.BlockSpec((1, 1, cp), lambda i: (i, 0, 0))

    if z_prev is None:
        kernel = _conv_first_kernel
        operands = (x, w9, bias)
        in_specs = [img_spec, w_spec, row_spec]
    else:
        kernel = _conv_recur_kernel
        operands = (x, z_prev, scale, shift, w9, bias)
        in_specs = [img_spec, img_spec, row_spec, row_spec, w_spec, row_spec]

    z, s, ss = pl.pallas_call(
        kernel,
        grid=(n,),
        in_specs=in_specs,
        out_specs=[img_spec, stat_spec, stat_spec],
        out_shape=[
            jax.ShapeDtypeStruct((n, h, w, cp), jnp.float32),
            jax.ShapeDtypeStruct((n, 1, cp), jnp.float32),
            jax.ShapeDtypeStruct((n, 1, cp), jnp.float32),
        ],
        scratch_shapes=[
            pltpu.VMEM((h + 2, w + 2, cp), jnp.float32),   # zero-padded input
            pltpu.VMEM((h * w, cp), jnp.float32),          # f32 accumulator
        ],
        compiler_params=pltpu.CompilerParams(
            dimension_semantics=("parallel",),
            vmem_limit_bytes=32 * 1024 * 1024,
        ),
    )(*operands)
    return z, s.reshape(n, cp), ss.reshape(n, cp)


# ----------------------------------------------------------------------------
# Final BN-affine + ReLU epilogue (lane-dense, M-tiled, parallel)
# ----------------------------------------------------------------------------
def _bn_relu_kernel(z_ref, scale_ref, shift_ref, o_ref):
    o_ref[...] = jnp.maximum(z_ref[...] * scale_ref[...] + shift_ref[...],
                             0.0).astype(o_ref.dtype)


def bn_relu(z_flat, scale, shift, *, tm=512):
    m, cp = z_flat.shape
    tm = min(tm, m)
    return pl.pallas_call(
        _bn_relu_kernel,
        grid=(pl.cdiv(m, tm),),
        in_specs=[pl.BlockSpec((tm, cp), lambda i: (i, 0)),
                  pl.BlockSpec((1, cp), lambda i: (0, 0)),
                  pl.BlockSpec((1, cp), lambda i: (0, 0))],
        out_specs=pl.BlockSpec((tm, cp), lambda i: (i, 0)),
        out_shape=jax.ShapeDtypeStruct((m, cp), jnp.float32),
        compiler_params=pltpu.CompilerParams(
            dimension_semantics=("parallel",),
            vmem_limit_bytes=32 * 1024 * 1024,
        ),
    )(z_flat, scale, shift)


# ----------------------------------------------------------------------------
# Tiny plain-JAX glue: fold batch statistics into a per-channel affine
# ----------------------------------------------------------------------------
def _bn_affine(sum_nc, ssq_nc, gamma, beta, count, eps):
    total = jnp.sum(sum_nc, axis=0)
    total_sq = jnp.sum(ssq_nc, axis=0)
    mean = total / count
    var = jnp.maximum(total_sq / count - mean * mean, 0.0)   # biased variance
    scale = gamma * lax.rsqrt(var + eps)
    shift = beta - mean * scale
    return scale.reshape(1, -1), shift.reshape(1, -1)


# ----------------------------------------------------------------------------
# Forward pass (mirrors Recurrent_block.forward, training-mode BN)
# ----------------------------------------------------------------------------
def recurrent_block_forward(x_nchw, params, *, t=2, eps=1e-5):
    n, c, h, w = x_nchw.shape
    w9, bias = params["w9"], params["bias"]
    gamma, beta = params["gamma"], params["beta"]
    cp = w9.shape[-1]
    count = float(n * h * w)

    # NCHW -> NHWC once; zero-pad channels to a lane-dense multiple of 128.
    x = jnp.transpose(x_nchw, (0, 2, 3, 1))
    x = jnp.pad(x, ((0, 0), (0, 0), (0, 0), (0, cp - c)))

    # x1 = conv(x)
    z, s, ss = rec_conv_step(x, w9, bias)
    scale, shift = _bn_affine(s, ss, gamma, beta, count, eps)

    # t times: x1 = conv(x + x1)   (previous BN+ReLU fused into this conv's input)
    for _ in range(t):
        z, s, ss = rec_conv_step(x, w9, bias, z_prev=z, scale=scale, shift=shift)
        scale, shift = _bn_affine(s, ss, gamma, beta, count, eps)

    # Final BN + ReLU on the last conv output.
    out = bn_relu(z.reshape(n * h * w, cp), scale, shift).reshape(n, h, w, cp)
    out = out[:, :, :, :c]
    return jnp.transpose(out, (0, 3, 1, 2))       # back to NCHW at the boundary


# ----------------------------------------------------------------------------
# Parameter construction (deterministic, PyTorch layouts converted once)
# ----------------------------------------------------------------------------
def make_params(key, ch, cp):
    kw, kb, kg, kbe = jax.random.split(key, 4)
    w = 0.1 * jax.random.normal(kw, (ch, ch, 3, 3), jnp.float32)   # [Cout,Cin,kh,kw]
    b = 0.1 * jax.random.normal(kb, (ch,), jnp.float32)
    gamma = 1.0 + 0.1 * jax.random.normal(kg, (ch,), jnp.float32)
    beta = 0.1 * jax.random.normal(kbe, (ch,), jnp.float32)

    # [Cout,Cin,kh,kw] -> [kh*kw, Cin, Cout], zero-padded to lane-dense Cp.
    w9 = jnp.transpose(w, (2, 3, 1, 0)).reshape(9, ch, ch)
    w9 = jnp.pad(w9, ((0, 0), (0, cp - ch), (0, cp - ch))).astype(MXU_DTYPE)
    bias = jnp.pad(b, (0, cp - ch)).reshape(1, cp)
    gamma_p = jnp.pad(gamma, (0, cp - ch), constant_values=1.0)   # keeps padded ch = 0
    beta_p = jnp.pad(beta, (0, cp - ch))
    return {"w9": w9, "bias": bias, "gamma": gamma_p, "beta": beta_p}


# ----------------------------------------------------------------------------
if __name__ == "__main__":
    batch, ch, spatial, t = 2, 4, 16, 2
    cp = ((ch + 127) // 128) * 128

    key = jax.random.PRNGKey(0)
    kx, kp = jax.random.split(key)
    x = jax.random.normal(kx, (batch, ch, spatial, spatial), jnp.float32)
    params = make_params(kp, ch, cp)

    fwd = jax.jit(functools.partial(recurrent_block_forward, t=t))
    out = jax.block_until_ready(fwd(x, params))

    assert out.shape == (batch, ch, spatial, spatial), out.shape
    assert bool(jnp.all(out >= 0.0))            # ReLU output is non-negative
    assert bool(jnp.all(jnp.isfinite(out)))
    print("KERNEL_OK")
</pallas_src>

<mosaic_0001>
module attributes {stable_mosaic.version = 11 : i64} {
  func.func @_conv_first_kernel(%arg0: i32, %arg1: memref<1x16x16x128xf32, #tpu.memory_space<vmem>>, %arg2: memref<9x128x128xbf16, #tpu.memory_space<vmem>>, %arg3: memref<1x128xf32, #tpu.memory_space<vmem>>, %arg4: memref<1x16x16x128xf32, #tpu.memory_space<vmem>>, %arg5: memref<1x1x128xf32, #tpu.memory_space<vmem>>, %arg6: memref<1x1x128xf32, #tpu.memory_space<vmem>>, %arg7: memref<18x18x128xf32, #tpu.memory_space<vmem>>, %arg8: memref<256x128xf32, #tpu.memory_space<vmem>>) attributes {dimension_semantics = [#tpu.dimension_semantics<parallel>], iteration_bounds = array<i64: 2>, scalar_prefetch = 0 : i64, scratch_operands = 2 : i64, tpu.core_type = #tpu.core_type<tc>, window_params = [{transform_indices = @transform_0, window_bounds = array<i64: 1, 16, 16, 128>}, {pipeline_mode = #tpu.pipeline_mode<synchronous>, transform_indices = @transform_1, window_bounds = array<i64: 9, 128, 128>}, {pipeline_mode = #tpu.pipeline_mode<synchronous>, transform_indices = @transform_2, window_bounds = array<i64: 1, 128>}, {transform_indices = @transform_3, window_bounds = array<i64: 1, 16, 16, 128>}, {transform_indices = @transform_4, window_bounds = array<i64: 1, 1, 128>}, {transform_indices = @transform_5, window_bounds = array<i64: 1, 1, 128>}]} {
    %c0 = arith.constant 0 : index
    %c0_0 = arith.constant 0 : index
    %c0_1 = arith.constant 0 : index
    %c0_2 = arith.constant 0 : index
    %0 = vector.load %arg1[%c0, %c0_0, %c0_1, %c0_2] : memref<1x16x16x128xf32, #tpu.memory_space<vmem>>, vector<1x16x16x128xf32>
    %1 = vector.shape_cast %0 : vector<1x16x16x128xf32> to vector<16x16x128xf32>
    %cst = arith.constant 0.000000e+00 : f32
    %2 = vector.broadcast %cst : f32 to vector<18x18x128xf32>
    %c0_3 = arith.constant 0 : index
    %c0_4 = arith.constant 0 : index
    %c0_5 = arith.constant 0 : index
    %3 = vector.load %arg7[%c0_3, %c0_4, %c0_5] : memref<18x18x128xf32, #tpu.memory_space<vmem>>, vector<18x18x128xf32>
    tpu.vector_store %arg7[%c0_3, %c0_4, %c0_5], %2 {strides = array<i32>} : memref<18x18x128xf32, #tpu.memory_space<vmem>>, vector<18x18x128xf32>,
    %c1 = arith.constant 1 : index
    %c1_6 = arith.constant 1 : index
    %c0_7 = arith.constant 0 : index
    %4 = vector.load %arg7[%c1, %c1_6, %c0_7] : memref<18x18x128xf32, #tpu.memory_space<vmem>>, vector<16x16x128xf32>
    tpu.vector_store %arg7[%c1, %c1_6, %c0_7], %1 {strides = array<i32>} : memref<18x18x128xf32, #tpu.memory_space<vmem>>, vector<16x16x128xf32>,
    %c0_8 = arith.constant 0 : index
    %c0_9 = arith.constant 0 : index
    %c0_10 = arith.constant 0 : index
    %5 = vector.load %arg7[%c0_8, %c0_9, %c0_10] : memref<18x18x128xf32, #tpu.memory_space<vmem>>, vector<16x16x128xf32>
    %6 = vector.shape_cast %5 : vector<16x16x128xf32> to vector<256x128xf32>
    %7 = arith.truncf %6 : vector<256x128xf32> to vector<256x128xbf16>
    %c0_11 = arith.constant 0 : index
    %c0_12 = arith.constant 0 : index
    %c0_13 = arith.constant 0 : index
    %8 = vector.load %arg2[%c0_11, %c0_12, %c0_13] : memref<9x128x128xbf16, #tpu.memory_space<vmem>>, vector<1x128x128xbf16>
    %9 = vector.shape_cast %8 : vector<1x128x128xbf16> to vector<128x128xbf16>
    %cst_14 = arith.constant dense<0.000000e+00> : vector<256x128xf32>
    %10 = tpu.matmul %7, %9, %cst_14 {dimension_numbers = #tpu.dot_dimension_numbers<[1], [0], [0], [1], [0, 0, 1, 1], [], []>} : vector<256x128xbf16>, vector<128x128xbf16>, vector<256x128xf32> -> vector<256x128xf32>
    %c0_15 = arith.constant 0 : index
    %c0_16 = arith.constant 0 : index
    %11 = vector.load %arg8[%c0_15, %c0_16] : memref<256x128xf32, #tpu.memory_space<vmem>>, vector<256x128xf32>
    tpu.vector_store %arg8[%c0_15, %c0_16], %10 {strides = array<i32>} : memref<256x128xf32, #tpu.memory_space<vmem>>, vector<256x128xf32>,
    %c0_17 = arith.constant 0 : index
    %c1_18 = arith.constant 1 : index
    %c0_19 = arith.constant 0 : index
    %12 = vector.load %arg7[%c0_17, %c1_18, %c0_19] : memref<18x18x128xf32, #tpu.memory_space<vmem>>, vector<16x16x128xf32>
    %13 = vector.shape_cast %12 : vector<16x16x128xf32> to vector<256x128xf32>
    %14 = arith.truncf %13 : vector<256x128xf32> to vector<256x128xbf16>
    %c1_20 = arith.constant 1 : index
    %c0_21 = arith.constant 0 : index
    %c0_22 = arith.constant 0 : index
    %15 = vector.load %arg2[%c1_20, %c0_21, %c0_22] : memref<9x128x128xbf16, #tpu.memory_space<vmem>>, vector<1x128x128xbf16>
    %16 = vector.shape_cast %15 : vector<1x128x128xbf16> to vector<128x128xbf16>
    %cst_23 = arith.constant dense<0.000000e+00> : vector<256x128xf32>
    %17 = tpu.matmul %14, %16, %cst_23 {dimension_numbers = #tpu.dot_dimension_numbers<[1], [0], [0], [1], [0, 0, 1, 1], [], []>} : vector<256x128xbf16>, vector<128x128xbf16>, vector<256x128xf32> -> vector<256x128xf32>
    %c0_24 = arith.constant 0 : index
    %c0_25 = arith.constant 0 : index
    %18 = vector.load %arg8[%c0_24, %c0_25] : memref<256x128xf32, #tpu.memory_space<vmem>>, vector<256x128xf32>
    %19 = arith.addf %18, %17 : vector<256x128xf32>
    %c0_26 = arith.constant 0 : index
    %c0_27 = arith.constant 0 : index
    %20 = vector.load %arg8[%c0_26, %c0_27] : memref<256x128xf32, #tpu.memory_space<vmem>>, vector<256x128xf32>
    tpu.vector_store %arg8[%c0_26, %c0_27], %19 {strides = array<i32>} : memref<256x128xf32, #tpu.memory_space<vmem>>, vector<256x128xf32>,
    %c0_28 = arith.constant 0 : index
    %c2 = arith.constant 2 : index
    %c0_29 = arith.constant 0 : index
    %21 = vector.load %arg7[%c0_28, %c2, %c0_29] : memref<18x18x128xf32, #tpu.memory_space<vmem>>, vector<16x16x128xf32>
    %22 = vector.shape_cast %21 : vector<16x16x128xf32> to vector<256x128xf32>
    %23 = arith.truncf %22 : vector<256x128xf32> to vector<256x128xbf16>
    %c2_30 = arith.constant 2 : index
    %c0_31 = arith.constant 0 : index
    %c0_32 = arith.constant 0 : index
    %24 = vector.load %arg2[%c2_30, %c0_31, %c0_32] : memref<9x128x128xbf16, #tpu.memory_space<vmem>>, vector<1x128x128xbf16>
    %25 = vector.shape_cast %24 : vector<1x128x128xbf16> to vector<128x128xbf16>
    %cst_33 = arith.constant dense<0.000000e+00> : vector<256x128xf32>
    %26 = tpu.matmul %23, %25, %cst_33 {dimension_numbers = #tpu.dot_dimension_numbers<[1], [0], [0], [1], [0, 0, 1, 1], [], []>} : vector<256x128xbf16>, vector<128x128xbf16>, vector<256x128xf32> -> vector<256x128xf32>
    %c0_34 = arith.constant 0 : index
    %c0_35 = arith.constant 0 : index
    %27 = vector.load %arg8[%c0_34, %c0_35] : memref<256x128xf32, #tpu.memory_space<vmem>>, vector<256x128xf32>
    %28 = arith.addf %27, %26 : vector<256x128xf32>
    %c0_36 = arith.constant 0 : index
    %c0_37 = arith.constant 0 : index
    %29 = vector.load %arg8[%c0_36, %c0_37] : memref<256x128xf32, #tpu.memory_space<vmem>>, vector<256x128xf32>
    tpu.vector_store %arg8[%c0_36, %c0_37], %28 {strides = array<i32>} : memref<256x128xf32, #tpu.memory_space<vmem>>, vector<256x128xf32>,
    %c1_38 = arith.constant 1 : index
    %c0_39 = arith.constant 0 : index
    %c0_40 = arith.constant 0 : index
    %30 = vector.load %arg7[%c1_38, %c0_39, %c0_40] : memref<18x18x128xf32, #tpu.memory_space<vmem>>, vector<16x16x128xf32>
    %31 = vector.shape_cast %30 : vector<16x16x128xf32> to vector<256x128xf32>
    %32 = arith.truncf %31 : vector<256x128xf32> to vector<256x128xbf16>
    %c3 = arith.constant 3 : index
    %c0_41 = arith.constant 0 : index
    %c0_42 = arith.constant 0 : index
    %33 = vector.load %arg2[%c3, %c0_41, %c0_42] : memref<9x128x128xbf16, #tpu.memory_space<vmem>>, vector<1x128x128xbf16>
    %34 = vector.shape_cast %33 : vector<1x128x128xbf16> to vector<128x128xbf16>
    %cst_43 = arith.constant dense<0.000000e+00> : vector<256x128xf32>
    %35 = tpu.matmul %32, %34, %cst_43 {dimension_numbers = #tpu.dot_dimension_numbers<[1], [0], [0], [1], [0, 0, 1, 1], [], []>} : vector<256x128xbf16>, vector<128x128xbf16>, vector<256x128xf32> -> vector<256x128xf32>
    %c0_44 = arith.constant 0 : index
    %c0_45 = arith.constant 0 : index
    %36 = vector.load %arg8[%c0_44, %c0_45] : memref<256x128xf32, #tpu.memory_space<vmem>>, vector<256x128xf32>
    %37 = arith.addf %36, %35 : vector<256x128xf32>
    %c0_46 = arith.constant 0 : index
    %c0_47 = arith.constant 0 : index
    %38 = vector.load %arg8[%c0_46, %c0_47] : memref<256x128xf32, #tpu.memory_space<vmem>>, vector<256x128xf32>
    tpu.vector_store %arg8[%c0_46, %c0_47], %37 {strides = array<i32>} : memref<256x128xf32, #tpu.memory_space<vmem>>, vector<256x128xf32>,
    %c1_48 = arith.constant 1 : index
    %c1_49 = arith.constant 1 : index
    %c0_50 = arith.constant 0 : index
    %39 = vector.load %arg7[%c1_48, %c1_49, %c0_50] : memref<18x18x128xf32, #tpu.memory_space<vmem>>, vector<16x16x128xf32>
    %40 = vector.shape_cast %39 : vector<16x16x128xf32> to vector<256x128xf32>
    %41 = arith.truncf %40 : vector<256x128xf32> to vector<256x128xbf16>
    %c4 = arith.constant 4 : index
    %c0_51 = arith.constant 0 : index
    %c0_52 = arith.constant 0 : index
    %42 = vector.load %arg2[%c4, %c0_51, %c0_52] : memref<9x128x128xbf16, #tpu.memory_space<vmem>>, vector<1x128x128xbf16>
    %43 = vector.shape_cast %42 : vector<1x128x128xbf16> to vector<128x128xbf16>
    %cst_53 = arith.constant dense<0.000000e+00> : vector<256x128xf32>
    %44 = tpu.matmul %41, %43, %cst_53 {dimension_numbers = #tpu.dot_dimension_numbers<[1], [0], [0], [1], [0, 0, 1, 1], [], []>} : vector<256x128xbf16>, vector<128x128xbf16>, vector<256x128xf32> -> vector<256x128xf32>
    %c0_54 = arith.constant 0 : index
    %c0_55 = arith.constant 0 : index
    %45 = vector.load %arg8[%c0_54, %c0_55] : memref<256x128xf32, #tpu.memory_space<vmem>>, vector<256x128xf32>
    %46 = arith.addf %45, %44 : vector<256x128xf32>
    %c0_56 = arith.constant 0 : index
    %c0_57 = arith.constant 0 : index
    %47 = vector.load %arg8[%c0_56, %c0_57] : memref<256x128xf32, #tpu.memory_space<vmem>>, vector<256x128xf32>
    tpu.vector_store %arg8[%c0_56, %c0_57], %46 {strides = array<i32>} : memref<256x128xf32, #tpu.memory_space<vmem>>, vector<256x128xf32>,
    %c1_58 = arith.constant 1 : index
    %c2_59 = arith.constant 2 : index
    %c0_60 = arith.constant 0 : index
    %48 = vector.load %arg7[%c1_58, %c2_59, %c0_60] : memref<18x18x128xf32, #tpu.memory_space<vmem>>, vector<16x16x128xf32>
    %49 = vector.shape_cast %48 : vector<16x16x128xf32> to vector<256x128xf32>
    %50 = arith.truncf %49 : vector<256x128xf32> to vector<256x128xbf16>
    %c5 = arith.constant 5 : index
    %c0_61 = arith.constant 0 : index
    %c0_62 = arith.constant 0 : index
    %51 = vector.load %arg2[%c5, %c0_61, %c0_62] : memref<9x128x128xbf16, #tpu.memory_space<vmem>>, vector<1x128x128xbf16>
    %52 = vector.shape_cast %51 : vector<1x128x128xbf16> to vector<128x128xbf16>
    %cst_63 = arith.constant dense<0.000000e+00> : vector<256x128xf32>
    %53 = tpu.matmul %50, %52, %cst_63 {dimension_numbers = #tpu.dot_dimension_numbers<[1], [0], [0], [1], [0, 0, 1, 1], [], []>} : vector<256x128xbf16>, vector<128x128xbf16>, vector<256x128xf32> -> vector<256x128xf32>
    %c0_64 = arith.constant 0 : index
    %c0_65 = arith.constant 0 : index
    %54 = vector.load %arg8[%c0_64, %c0_65] : memref<256x128xf32, #tpu.memory_space<vmem>>, vector<256x128xf32>
    %55 = arith.addf %54, %53 : vector<256x128xf32>
    %c0_66 = arith.constant 0 : index
    %c0_67 = arith.constant 0 : index
    %56 = vector.load %arg8[%c0_66, %c0_67] : memref<256x128xf32, #tpu.memory_space<vmem>>, vector<256x128xf32>
    tpu.vector_store %arg8[%c0_66, %c0_67], %55 {strides = array<i32>} : memref<256x128xf32, #tpu.memory_space<vmem>>, vector<256x128xf32>,
    %c2_68 = arith.constant 2 : index
    %c0_69 = arith.constant 0 : index
    %c0_70 = arith.constant 0 : index
    %57 = vector.load %arg7[%c2_68, %c0_69, %c0_70] : memref<18x18x128xf32, #tpu.memory_space<vmem>>, vector<16x16x128xf32>
    %58 = vector.shape_cast %57 : vector<16x16x128xf32> to vector<256x128xf32>
    %59 = arith.truncf %58 : vector<256x128xf32> to vector<256x128xbf16>
    %c6 = arith.constant 6 : index
    %c0_71 = arith.constant 0 : index
    %c0_72 = arith.constant 0 : index
    %60 = vector.load %arg2[%c6, %c0_71, %c0_72] : memref<9x128x128xbf16, #tpu.memory_space<vmem>>, vector<1x128x128xbf16>
    %61 = vector.shape_cast %60 : vector<1x128x128xbf16> to vector<128x128xbf16>
    %cst_73 = arith.constant dense<0.000000e+00> : vector<256x128xf32>
    %62 = tpu.matmul %59, %61, %cst_73 {dimension_numbers = #tpu.dot_dimension_numbers<[1], [0], [0], [1], [0, 0, 1, 1], [], []>} : vector<256x128xbf16>, vector<128x128xbf16>, vector<256x128xf32> -> vector<256x128xf32>
    %c0_74 = arith.constant 0 : index
    %c0_75 = arith.constant 0 : index
    %63 = vector.load %arg8[%c0_74, %c0_75] : memref<256x128xf32, #tpu.memory_space<vmem>>, vector<256x128xf32>
    %64 = arith.addf %63, %62 : vector<256x128xf32>
    %c0_76 = arith.constant 0 : index
    %c0_77 = arith.constant 0 : index
    %65 = vector.load %arg8[%c0_76, %c0_77] : memref<256x128xf32, #tpu.memory_space<vmem>>, vector<256x128xf32>
    tpu.vector_store %arg8[%c0_76, %c0_77], %64 {strides = array<i32>} : memref<256x128xf32, #tpu.memory_space<vmem>>, vector<256x128xf32>,
    %c2_78 = arith.constant 2 : index
    %c1_79 = arith.constant 1 : index
    %c0_80 = arith.constant 0 : index
    %66 = vector.load %arg7[%c2_78, %c1_79, %c0_80] : memref<18x18x128xf32, #tpu.memory_space<vmem>>, vector<16x16x128xf32>
    %67 = vector.shape_cast %66 : vector<16x16x128xf32> to vector<256x128xf32>
    %68 = arith.truncf %67 : vector<256x128xf32> to vector<256x128xbf16>
    %c7 = arith.constant 7 : index
    %c0_81 = arith.constant 0 : index
    %c0_82 = arith.constant 0 : index
    %69 = vector.load %arg2[%c7, %c0_81, %c0_82] : memref<9x128x128xbf16, #tpu.memory_space<vmem>>, vector<1x128x128xbf16>
    %70 = vector.shape_cast %69 : vector<1x128x128xbf16> to vector<128x128xbf16>
    %cst_83 = arith.constant dense<0.000000e+00> : vector<256x128xf32>
    %71 = tpu.matmul %68, %70, %cst_83 {dimension_numbers = #tpu.dot_dimension_numbers<[1], [0], [0], [1], [0, 0, 1, 1], [], []>} : vector<256x128xbf16>, vector<128x128xbf16>, vector<256x128xf32> -> vector<256x128xf32>
    %c0_84 = arith.constant 0 : index
    %c0_85 = arith.constant 0 : index
    %72 = vector.load %arg8[%c0_84, %c0_85] : memref<256x128xf32, #tpu.memory_space<vmem>>, vector<256x128xf32>
    %73 = arith.addf %72, %71 : vector<256x128xf32>
    %c0_86 = arith.constant 0 : index
    %c0_87 = arith.constant 0 : index
    %74 = vector.load %arg8[%c0_86, %c0_87] : memref<256x128xf32, #tpu.memory_space<vmem>>, vector<256x128xf32>
    tpu.vector_store %arg8[%c0_86, %c0_87], %73 {strides = array<i32>} : memref<256x128xf32, #tpu.memory_space<vmem>>, vector<256x128xf32>,
    %c2_88 = arith.constant 2 : index
    %c2_89 = arith.constant 2 : index
    %c0_90 = arith.constant 0 : index
    %75 = vector.load %arg7[%c2_88, %c2_89, %c0_90] : memref<18x18x128xf32, #tpu.memory_space<vmem>>, vector<16x16x128xf32>
    %76 = vector.shape_cast %75 : vector<16x16x128xf32> to vector<256x128xf32>
    %77 = arith.truncf %76 : vector<256x128xf32> to vector<256x128xbf16>
    %c8 = arith.constant 8 : index
    %c0_91 = arith.constant 0 : index
    %c0_92 = arith.constant 0 : index
    %78 = vector.load %arg2[%c8, %c0_91, %c0_92] : memref<9x128x128xbf16, #tpu.memory_space<vmem>>, vector<1x128x128xbf16>
    %79 = vector.shape_cast %78 : vector<1x128x128xbf16> to vector<128x128xbf16>
    %cst_93 = arith.constant dense<0.000000e+00> : vector<256x128xf32>
    %80 = tpu.matmul %77, %79, %cst_93 {dimension_numbers = #tpu.dot_dimension_numbers<[1], [0], [0], [1], [0, 0, 1, 1], [], []>} : vector<256x128xbf16>, vector<128x128xbf16>, vector<256x128xf32> -> vector<256x128xf32>
    %c0_94 = arith.constant 0 : index
    %c0_95 = arith.constant 0 : index
    %81 = vector.load %arg8[%c0_94, %c0_95] : memref<256x128xf32, #tpu.memory_space<vmem>>, vector<256x128xf32>
    %82 = arith.addf %81, %80 : vector<256x128xf32>
    %c0_96 = arith.constant 0 : index
    %c0_97 = arith.constant 0 : index
    %83 = vector.load %arg8[%c0_96, %c0_97] : memref<256x128xf32, #tpu.memory_space<vmem>>, vector<256x128xf32>
    tpu.vector_store %arg8[%c0_96, %c0_97], %82 {strides = array<i32>} : memref<256x128xf32, #tpu.memory_space<vmem>>, vector<256x128xf32>,
    %c0_98 = arith.constant 0 : index
    %c0_99 = arith.constant 0 : index
    %84 = vector.load %arg8[%c0_98, %c0_99] : memref<256x128xf32, #tpu.memory_space<vmem>>, vector<256x128xf32>
    %c0_100 = arith.constant 0 : index
    %c0_101 = arith.constant 0 : index
    %85 = vector.load %arg3[%c0_100, %c0_101] : memref<1x128xf32, #tpu.memory_space<vmem>>, vector<1x128xf32>
    %86 = vector.broadcast %85 : vector<1x128xf32> to vector<256x128xf32>
    %87 = arith.addf %84, %86 : vector<256x128xf32>
    %88 = vector.shape_cast %87 : vector<256x128xf32> to vector<16x16x128xf32>
    %c0_102 = arith.constant 0 : index
    %c0_103 = arith.constant 0 : index
    %c0_104 = arith.constant 0 : index
    %c0_105 = arith.constant 0 : index
    %89 = vector.load %arg4[%c0_102, %c0_103, %c0_104, %c0_105] : memref<1x16x16x128xf32, #tpu.memory_space<vmem>>, vector<1x16x16x128xf32>
    %90 = vector.shape_cast %89 : vector<1x16x16x128xf32> to vector<16x16x128xf32>
    %91 = vector.shape_cast %88 : vector<16x16x128xf32> to vector<1x16x16x128xf32>
    tpu.vector_store %arg4[%c0_102, %c0_103, %c0_104, %c0_105], %91 {strides = array<i32>} : memref<1x16x16x128xf32, #tpu.memory_space<vmem>>, vector<1x16x16x128xf32>,
    %cst_106 = arith.constant dense<0.000000e+00> : vector<128xf32>
    %92 = vector.multi_reduction <add>, %87, %cst_106 [0] : vector<256x128xf32> to vector<128xf32>
    %93 = vector.shape_cast %92 : vector<128xf32> to vector<1x128xf32>
    %c0_107 = arith.constant 0 : index
    %c0_108 = arith.constant 0 : index
    %c0_109 = arith.constant 0 : index
    %94 = vector.load %arg5[%c0_107, %c0_108, %c0_109] : memref<1x1x128xf32, #tpu.memory_space<vmem>>, vector<1x1x128xf32>
    %95 = vector.shape_cast %94 : vector<1x1x128xf32> to vector<1x128xf32>
    %96 = vector.shape_cast %93 : vector<1x128xf32> to vector<1x1x128xf32>
    tpu.vector_store %arg5[%c0_107, %c0_108, %c0_109], %96 {strides = array<i32>} : memref<1x1x128xf32, #tpu.memory_space<vmem>>, vector<1x1x128xf32>,
    %97 = arith.mulf %87, %87 : vector<256x128xf32>
    %cst_110 = arith.constant dense<0.000000e+00> : vector<128xf32>
    %98 = vector.multi_reduction <add>, %97, %cst_110 [0] : vector<256x128xf32> to vector<128xf32>
    %99 = vector.shape_cast %98 : vector<128xf32> to vector<1x128xf32>
    %c0_111 = arith.constant 0 : index
    %c0_112 = arith.constant 0 : index
    %c0_113 = arith.constant 0 : index
    %100 = vector.load %arg6[%c0_111, %c0_112, %c0_113] : memref<1x1x128xf32, #tpu.memory_space<vmem>>, vector<1x1x128xf32>
    %101 = vector.shape_cast %100 : vector<1x1x128xf32> to vector<1x128xf32>
    %102 = vector.shape_cast %99 : vector<1x128xf32> to vector<1x1x128xf32>
    tpu.vector_store %arg6[%c0_111, %c0_112, %c0_113], %102 {strides = array<i32>} : memref<1x1x128xf32, #tpu.memory_space<vmem>>, vector<1x1x128xf32>,
    return
  }
  func.func @transform_0(%arg0: i32) -> (i32, i32, i32, i32) {
    %c0_i32 = arith.constant 0 : i32
    %c0_i32_0 = arith.constant 0 : i32
    %c0_i32_1 = arith.constant 0 : i32
    %c0_i32_2 = arith.constant 0 : i32
    return %arg0, %c0_i32, %c0_i32_0, %c0_i32_1 : i32, i32, i32, i32
  }
  func.func @transform_1(%arg0: i32) -> (i32, i32, i32) {
    %c0_i32 = arith.constant 0 : i32
    %c0_i32_0 = arith.constant 0 : i32
    %c0_i32_1 = arith.constant 0 : i32
    %c0_i32_2 = arith.constant 0 : i32
    return %c0_i32, %c0_i32_0, %c0_i32_1 : i32, i32, i32
  }
  func.func @transform_2(%arg0: i32) -> (i32, i32) {
    %c0_i32 = arith.constant 0 : i32
    %c0_i32_0 = arith.constant 0 : i32
    %c0_i32_1 = arith.constant 0 : i32
    return %c0_i32, %c0_i32_0 : i32, i32
  }
  func.func @transform_3(%arg0: i32) -> (i32, i32, i32, i32) {
    %c0_i32 = arith.constant 0 : i32
    %c0_i32_0 = arith.constant 0 : i32
    %c0_i32_1 = arith.constant 0 : i32
    %c0_i32_2 = arith.constant 0 : i32
    return %arg0, %c0_i32, %c0_i32_0, %c0_i32_1 : i32, i32, i32, i32
  }
  func.func @transform_4(%arg0: i32) -> (i32, i32, i32) {
    %c0_i32 = arith.constant 0 : i32
    %c0_i32_0 = arith.constant 0 : i32
    %c0_i32_1 = arith.constant 0 : i32
    return %arg0, %c0_i32, %c0_i32_0 : i32, i32, i32
  }
  func.func @transform_5(%arg0: i32) -> (i32, i32, i32) {
    %c0_i32 = arith.constant 0 : i32
    %c0_i32_0 = arith.constant 0 : i32
    %c0_i32_1 = arith.constant 0 : i32
    return %arg0, %c0_i32, %c0_i32_0 : i32, i32, i32
  }
}

module attributes {stable_mosaic.version = 11 : i64} {
  func.func @_bn_relu_kernel(%arg0: i32, %arg1: memref<512x128xf32, #tpu.memory_space<vmem>>, %arg2: memref<1x128xf32, #tpu.memory_space<vmem>>, %arg3: memref<1x128xf32, #tpu.memory_space<vmem>>, %arg4: memref<512x128xf32, #tpu.memory_space<vmem>>) attributes {dimension_semantics = [#tpu.dimension_semantics<parallel>], iteration_bounds = array<i64: 1>, scalar_prefetch = 0 : i64, scratch_operands = 0 : i64, tpu.core_type = #tpu.core_type<tc>, window_params = [{transform_indices = @transform_0, window_bounds = array<i64: 512, 128>}, {pipeline_mode = #tpu.pipeline_mode<synchronous>, transform_indices = @transform_1, window_bounds = array<i64: 1, 128>}, {pipeline_mode = #tpu.pipeline_mode<synchronous>, transform_indices = @transform_2, window_bounds = array<i64: 1, 128>}, {transform_indices = @transform_3, window_bounds = array<i64: 512, 128>}]} {
    %c0 = arith.constant 0 : index
    %c0_0 = arith.constant 0 : index
    %0 = vector.load %arg1[%c0, %c0_0] : memref<512x128xf32, #tpu.memory_space<vmem>>, vector<512x128xf32>
    %c0_1 = arith.constant 0 : index
    %c0_2 = arith.constant 0 : index
    %1 = vector.load %arg2[%c0_1, %c0_2] : memref<1x128xf32, #tpu.memory_space<vmem>>, vector<1x128xf32>
    %2 = vector.broadcast %1 : vector<1x128xf32> to vector<512x128xf32>
    %3 = arith.mulf %0, %2 : vector<512x128xf32>
    %c0_3 = arith.constant 0 : index
    %c0_4 = arith.constant 0 : index
    %4 = vector.load %arg3[%c0_3, %c0_4] : memref<1x128xf32, #tpu.memory_space<vmem>>, vector<1x128xf32>
    %5 = vector.broadcast %4 : vector<1x128xf32> to vector<512x128xf32>
    %6 = arith.addf %3, %5 : vector<512x128xf32>
    %cst = arith.constant 0.000000e+00 : f32
    %7 = vector.broadcast %cst : f32 to vector<512x128xf32>
    %8 = arith.maximumf %6, %7 : vector<512x128xf32>
    %c0_5 = arith.constant 0 : index
    %c0_6 = arith.constant 0 : index
    %9 = vector.load %arg4[%c0_5, %c0_6] : memref<512x128xf32, #tpu.memory_space<vmem>>, vector<512x128xf32>
    tpu.vector_store %arg4[%c0_5, %c0_6], %8 {strides = array<i32>} : memref<512x128xf32, #tpu.memory_space<vmem>>, vector<512x128xf32>,
    return
  }
  func.func @transform_0(%arg0: i32) -> (i32, i32) {
    %c0_i32 = arith.constant 0 : i32
    %c0_i32_0 = arith.constant 0 : i32
    return %arg0, %c0_i32 : i32, i32
  }
  func.func @transform_1(%arg0: i32) -> (i32, i32) {
    %c0_i32 = arith.constant 0 : i32
    %c0_i32_0 = arith.constant 0 : i32
    %c0_i32_1 = arith.constant 0 : i32
    return %c0_i32, %c0_i32_0 : i32, i32
  }
  func.func @transform_2(%arg0: i32) -> (i32, i32) {
    %c0_i32 = arith.constant 0 : i32
    %c0_i32_0 = arith.constant 0 : i32
    %c0_i32_1 = arith.constant 0 : i32
    return %c0_i32, %c0_i32_0 : i32, i32
  }
  func.func @transform_3(%arg0: i32) -> (i32, i32) {
    %c0_i32 = arith.constant 0 : i32
    %c0_i32_0 = arith.constant 0 : i32
    return %arg0, %c0_i32 : i32, i32
  }
}

module attributes {stable_mosaic.version = 11 : i64} {
  func.func @_conv_recur_kernel(%arg0: i32, %arg1: memref<1x16x16x128xf32, #tpu.memory_space<vmem>>, %arg2: memref<1x16x16x128xf32, #tpu.memory_space<vmem>>, %arg3: memref<1x128xf32, #tpu.memory_space<vmem>>, %arg4: memref<1x128xf32, #tpu.memory_space<vmem>>, %arg5: memref<9x128x128xbf16, #tpu.memory_space<vmem>>, %arg6: memref<1x128xf32, #tpu.memory_space<vmem>>, %arg7: memref<1x16x16x128xf32, #tpu.memory_space<vmem>>, %arg8: memref<1x1x128xf32, #tpu.memory_space<vmem>>, %arg9: memref<1x1x128xf32, #tpu.memory_space<vmem>>, %arg10: memref<18x18x128xf32, #tpu.memory_space<vmem>>, %arg11: memref<256x128xf32, #tpu.memory_space<vmem>>) attributes {dimension_semantics = [#tpu.dimension_semantics<parallel>], iteration_bounds = array<i64: 2>, scalar_prefetch = 0 : i64, scratch_operands = 2 : i64, tpu.core_type = #tpu.core_type<tc>, window_params = [{transform_indices = @transform_0, window_bounds = array<i64: 1, 16, 16, 128>}, {transform_indices = @transform_1, window_bounds = array<i64: 1, 16, 16, 128>}, {pipeline_mode = #tpu.pipeline_mode<synchronous>, transform_indices = @transform_2, window_bounds = array<i64: 1, 128>}, {pipeline_mode = #tpu.pipeline_mode<synchronous>, transform_indices = @transform_3, window_bounds = array<i64: 1, 128>}, {pipeline_mode = #tpu.pipeline_mode<synchronous>, transform_indices = @transform_4, window_bounds = array<i64: 9, 128, 128>}, {pipeline_mode = #tpu.pipeline_mode<synchronous>, transform_indices = @transform_5, window_bounds = array<i64: 1, 128>}, {transform_indices = @transform_6, window_bounds = array<i64: 1, 16, 16, 128>}, {transform_indices = @transform_7, window_bounds = array<i64: 1, 1, 128>}, {transform_indices = @transform_8, window_bounds = array<i64: 1, 1, 128>}]} {
    %c0 = arith.constant 0 : index
    %c0_0 = arith.constant 0 : index
    %c0_1 = arith.constant 0 : index
    %c0_2 = arith.constant 0 : index
    %0 = vector.load %arg2[%c0, %c0_0, %c0_1, %c0_2] : memref<1x16x16x128xf32, #tpu.memory_space<vmem>>, vector<1x16x16x128xf32>
    %1 = vector.shape_cast %0 : vector<1x16x16x128xf32> to vector<16x16x128xf32>
    %c0_3 = arith.constant 0 : index
    %c0_4 = arith.constant 0 : index
    %2 = vector.load %arg3[%c0_3, %c0_4] : memref<1x128xf32, #tpu.memory_space<vmem>>, vector<1x128xf32>
    %3 = vector.shape_cast %2 : vector<1x128xf32> to vector<1x1x128xf32>
    %4 = vector.broadcast %3 : vector<1x1x128xf32> to vector<16x16x128xf32>
    %5 = arith.mulf %1, %4 : vector<16x16x128xf32>
    %c0_5 = arith.constant 0 : index
    %c0_6 = arith.constant 0 : index
    %6 = vector.load %arg4[%c0_5, %c0_6] : memref<1x128xf32, #tpu.memory_space<vmem>>, vector<1x128xf32>
    %7 = vector.shape_cast %6 : vector<1x128xf32> to vector<1x1x128xf32>
    %8 = vector.broadcast %7 : vector<1x1x128xf32> to vector<16x16x128xf32>
    %9 = arith.addf %5, %8 : vector<16x16x128xf32>
    %cst = arith.constant 0.000000e+00 : f32
    %10 = vector.broadcast %cst : f32 to vector<16x16x128xf32>
    %11 = arith.maximumf %9, %10 : vector<16x16x128xf32>
    %c0_7 = arith.constant 0 : index
    %c0_8 = arith.constant 0 : index
    %c0_9 = arith.constant 0 : index
    %c0_10 = arith.constant 0 : index
    %12 = vector.load %arg1[%c0_7, %c0_8, %c0_9, %c0_10] : memref<1x16x16x128xf32, #tpu.memory_space<vmem>>, vector<1x16x16x128xf32>
    %13 = vector.shape_cast %12 : vector<1x16x16x128xf32> to vector<16x16x128xf32>
    %14 = arith.addf %13, %11 : vector<16x16x128xf32>
    %cst_11 = arith.constant 0.000000e+00 : f32
    %15 = vector.broadcast %cst_11 : f32 to vector<18x18x128xf32>
    %c0_12 = arith.constant 0 : index
    %c0_13 = arith.constant 0 : index
    %c0_14 = arith.constant 0 : index
    %16 = vector.load %arg10[%c0_12, %c0_13, %c0_14] : memref<18x18x128xf32, #tpu.memory_space<vmem>>, vector<18x18x128xf32>
    tpu.vector_store %arg10[%c0_12, %c0_13, %c0_14], %15 {strides = array<i32>} : memref<18x18x128xf32, #tpu.memory_space<vmem>>, vector<18x18x128xf32>,
    %c1 = arith.constant 1 : index
    %c1_15 = arith.constant 1 : index
    %c0_16 = arith.constant 0 : index
    %17 = vector.load %arg10[%c1, %c1_15, %c0_16] : memref<18x18x128xf32, #tpu.memory_space<vmem>>, vector<16x16x128xf32>
    tpu.vector_store %arg10[%c1, %c1_15, %c0_16], %14 {strides = array<i32>} : memref<18x18x128xf32, #tpu.memory_space<vmem>>, vector<16x16x128xf32>,
    %c0_17 = arith.constant 0 : index
    %c0_18 = arith.constant 0 : index
    %c0_19 = arith.constant 0 : index
    %18 = vector.load %arg10[%c0_17, %c0_18, %c0_19] : memref<18x18x128xf32, #tpu.memory_space<vmem>>, vector<16x16x128xf32>
    %19 = vector.shape_cast %18 : vector<16x16x128xf32> to vector<256x128xf32>
    %20 = arith.truncf %19 : vector<256x128xf32> to vector<256x128xbf16>
    %c0_20 = arith.constant 0 : index
    %c0_21 = arith.constant 0 : index
    %c0_22 = arith.constant 0 : index
    %21 = vector.load %arg5[%c0_20, %c0_21, %c0_22] : memref<9x128x128xbf16, #tpu.memory_space<vmem>>, vector<1x128x128xbf16>
    %22 = vector.shape_cast %21 : vector<1x128x128xbf16> to vector<128x128xbf16>
    %cst_23 = arith.constant dense<0.000000e+00> : vector<256x128xf32>
    %23 = tpu.matmul %20, %22, %cst_23 {dimension_numbers = #tpu.dot_dimension_numbers<[1], [0], [0], [1], [0, 0, 1, 1], [], []>} : vector<256x128xbf16>, vector<128x128xbf16>, vector<256x128xf32> -> vector<256x128xf32>
    %c0_24 = arith.constant 0 : index
    %c0_25 = arith.constant 0 : index
    %24 = vector.load %arg11[%c0_24, %c0_25] : memref<256x128xf32, #tpu.memory_space<vmem>>, vector<256x128xf32>
    tpu.vector_store %arg11[%c0_24, %c0_25], %23 {strides = array<i32>} : memref<256x128xf32, #tpu.memory_space<vmem>>, vector<256x128xf32>,
    %c0_26 = arith.constant 0 : index
    %c1_27 = arith.constant 1 : index
    %c0_28 = arith.constant 0 : index
    %25 = vector.load %arg10[%c0_26, %c1_27, %c0_28] : memref<18x18x128xf32, #tpu.memory_space<vmem>>, vector<16x16x128xf32>
    %26 = vector.shape_cast %25 : vector<16x16x128xf32> to vector<256x128xf32>
    %27 = arith.truncf %26 : vector<256x128xf32> to vector<256x128xbf16>
    %c1_29 = arith.constant 1 : index
    %c0_30 = arith.constant 0 : index
    %c0_31 = arith.constant 0 : index
    %28 = vector.load %arg5[%c1_29, %c0_30, %c0_31] : memref<9x128x128xbf16, #tpu.memory_space<vmem>>, vector<1x128x128xbf16>
    %29 = vector.shape_cast %28 : vector<1x128x128xbf16> to vector<128x128xbf16>
    %cst_32 = arith.constant dense<0.000000e+00> : vector<256x128xf32>
    %30 = tpu.matmul %27, %29, %cst_32 {dimension_numbers = #tpu.dot_dimension_numbers<[1], [0], [0], [1], [0, 0, 1, 1], [], []>} : vector<256x128xbf16>, vector<128x128xbf16>, vector<256x128xf32> -> vector<256x128xf32>
    %c0_33 = arith.constant 0 : index
    %c0_34 = arith.constant 0 : index
    %31 = vector.load %arg11[%c0_33, %c0_34] : memref<256x128xf32, #tpu.memory_space<vmem>>, vector<256x128xf32>
    %32 = arith.addf %31, %30 : vector<256x128xf32>
    %c0_35 = arith.constant 0 : index
    %c0_36 = arith.constant 0 : index
    %33 = vector.load %arg11[%c0_35, %c0_36] : memref<256x128xf32, #tpu.memory_space<vmem>>, vector<256x128xf32>
    tpu.vector_store %arg11[%c0_35, %c0_36], %32 {strides = array<i32>} : memref<256x128xf32, #tpu.memory_space<vmem>>, vector<256x128xf32>,
    %c0_37 = arith.constant 0 : index
    %c2 = arith.constant 2 : index
    %c0_38 = arith.constant 0 : index
    %34 = vector.load %arg10[%c0_37, %c2, %c0_38] : memref<18x18x128xf32, #tpu.memory_space<vmem>>, vector<16x16x128xf32>
    %35 = vector.shape_cast %34 : vector<16x16x128xf32> to vector<256x128xf32>
    %36 = arith.truncf %35 : vector<256x128xf32> to vector<256x128xbf16>
    %c2_39 = arith.constant 2 : index
    %c0_40 = arith.constant 0 : index
    %c0_41 = arith.constant 0 : index
    %37 = vector.load %arg5[%c2_39, %c0_40, %c0_41] : memref<9x128x128xbf16, #tpu.memory_space<vmem>>, vector<1x128x128xbf16>
    %38 = vector.shape_cast %37 : vector<1x128x128xbf16> to vector<128x128xbf16>
    %cst_42 = arith.constant dense<0.000000e+00> : vector<256x128xf32>
    %39 = tpu.matmul %36, %38, %cst_42 {dimension_numbers = #tpu.dot_dimension_numbers<[1], [0], [0], [1], [0, 0, 1, 1], [], []>} : vector<256x128xbf16>, vector<128x128xbf16>, vector<256x128xf32> -> vector<256x128xf32>
    %c0_43 = arith.constant 0 : index
    %c0_44 = arith.constant 0 : index
    %40 = vector.load %arg11[%c0_43, %c0_44] : memref<256x128xf32, #tpu.memory_space<vmem>>, vector<256x128xf32>
    %41 = arith.addf %40, %39 : vector<256x128xf32>
    %c0_45 = arith.constant 0 : index
    %c0_46 = arith.constant 0 : index
    %42 = vector.load %arg11[%c0_45, %c0_46] : memref<256x128xf32, #tpu.memory_space<vmem>>, vector<256x128xf32>
    tpu.vector_store %arg11[%c0_45, %c0_46], %41 {strides = array<i32>} : memref<256x128xf32, #tpu.memory_space<vmem>>, vector<256x128xf32>,
    %c1_47 = arith.constant 1 : index
    %c0_48 = arith.constant 0 : index
    %c0_49 = arith.constant 0 : index
    %43 = vector.load %arg10[%c1_47, %c0_48, %c0_49] : memref<18x18x128xf32, #tpu.memory_space<vmem>>, vector<16x16x128xf32>
    %44 = vector.shape_cast %43 : vector<16x16x128xf32> to vector<256x128xf32>
    %45 = arith.truncf %44 : vector<256x128xf32> to vector<256x128xbf16>
    %c3 = arith.constant 3 : index
    %c0_50 = arith.constant 0 : index
    %c0_51 = arith.constant 0 : index
    %46 = vector.load %arg5[%c3, %c0_50, %c0_51] : memref<9x128x128xbf16, #tpu.memory_space<vmem>>, vector<1x128x128xbf16>
    %47 = vector.shape_cast %46 : vector<1x128x128xbf16> to vector<128x128xbf16>
    %cst_52 = arith.constant dense<0.000000e+00> : vector<256x128xf32>
    %48 = tpu.matmul %45, %47, %cst_52 {dimension_numbers = #tpu.dot_dimension_numbers<[1], [0], [0], [1], [0, 0, 1, 1], [], []>} : vector<256x128xbf16>, vector<128x128xbf16>, vector<256x128xf32> -> vector<256x128xf32>
    %c0_53 = arith.constant 0 : index
    %c0_54 = arith.constant 0 : index
    %49 = vector.load %arg11[%c0_53, %c0_54] : memref<256x128xf32, #tpu.memory_space<vmem>>, vector<256x128xf32>
    %50 = arith.addf %49, %48 : vector<256x128xf32>
    %c0_55 = arith.constant 0 : index
    %c0_56 = arith.constant 0 : index
    %51 = vector.load %arg11[%c0_55, %c0_56] : memref<256x128xf32, #tpu.memory_space<vmem>>, vector<256x128xf32>
    tpu.vector_store %arg11[%c0_55, %c0_56], %50 {strides = array<i32>} : memref<256x128xf32, #tpu.memory_space<vmem>>, vector<256x128xf32>,
    %c1_57 = arith.constant 1 : index
    %c1_58 = arith.constant 1 : index
    %c0_59 = arith.constant 0 : index
    %52 = vector.load %arg10[%c1_57, %c1_58, %c0_59] : memref<18x18x128xf32, #tpu.memory_space<vmem>>, vector<16x16x128xf32>
    %53 = vector.shape_cast %52 : vector<16x16x128xf32> to vector<256x128xf32>
    %54 = arith.truncf %53 : vector<256x128xf32> to vector<256x128xbf16>
    %c4 = arith.constant 4 : index
    %c0_60 = arith.constant 0 : index
    %c0_61 = arith.constant 0 : index
    %55 = vector.load %arg5[%c4, %c0_60, %c0_61] : memref<9x128x128xbf16, #tpu.memory_space<vmem>>, vector<1x128x128xbf16>
    %56 = vector.shape_cast %55 : vector<1x128x128xbf16> to vector<128x128xbf16>
    %cst_62 = arith.constant dense<0.000000e+00> : vector<256x128xf32>
    %57 = tpu.matmul %54, %56, %cst_62 {dimension_numbers = #tpu.dot_dimension_numbers<[1], [0], [0], [1], [0, 0, 1, 1], [], []>} : vector<256x128xbf16>, vector<128x128xbf16>, vector<256x128xf32> -> vector<256x128xf32>
    %c0_63 = arith.constant 0 : index
    %c0_64 = arith.constant 0 : index
    %58 = vector.load %arg11[%c0_63, %c0_64] : memref<256x128xf32, #tpu.memory_space<vmem>>, vector<256x128xf32>
    %59 = arith.addf %58, %57 : vector<256x128xf32>
    %c0_65 = arith.constant 0 : index
    %c0_66 = arith.constant 0 : index
    %60 = vector.load %arg11[%c0_65, %c0_66] : memref<256x128xf32, #tpu.memory_space<vmem>>, vector<256x128xf32>
    tpu.vector_store %arg11[%c0_65, %c0_66], %59 {strides = array<i32>} : memref<256x128xf32, #tpu.memory_space<vmem>>, vector<256x128xf32>,
    %c1_67 = arith.constant 1 : index
    %c2_68 = arith.constant 2 : index
    %c0_69 = arith.constant 0 : index
    %61 = vector.load %arg10[%c1_67, %c2_68, %c0_69] : memref<18x18x128xf32, #tpu.memory_space<vmem>>, vector<16x16x128xf32>
    %62 = vector.shape_cast %61 : vector<16x16x128xf32> to vector<256x128xf32>
    %63 = arith.truncf %62 : vector<256x128xf32> to vector<256x128xbf16>
    %c5 = arith.constant 5 : index
    %c0_70 = arith.constant 0 : index
    %c0_71 = arith.constant 0 : index
    %64 = vector.load %arg5[%c5, %c0_70, %c0_71] : memref<9x128x128xbf16, #tpu.memory_space<vmem>>, vector<1x128x128xbf16>
    %65 = vector.shape_cast %64 : vector<1x128x128xbf16> to vector<128x128xbf16>
    %cst_72 = arith.constant dense<0.000000e+00> : vector<256x128xf32>
    %66 = tpu.matmul %63, %65, %cst_72 {dimension_numbers = #tpu.dot_dimension_numbers<[1], [0], [0], [1], [0, 0, 1, 1], [], []>} : vector<256x128xbf16>, vector<128x128xbf16>, vector<256x128xf32> -> vector<256x128xf32>
    %c0_73 = arith.constant 0 : index
    %c0_74 = arith.constant 0 : index
    %67 = vector.load %arg11[%c0_73, %c0_74] : memref<256x128xf32, #tpu.memory_space<vmem>>, vector<256x128xf32>
    %68 = arith.addf %67, %66 : vector<256x128xf32>
    %c0_75 = arith.constant 0 : index
    %c0_76 = arith.constant 0 : index
    %69 = vector.load %arg11[%c0_75, %c0_76] : memref<256x128xf32, #tpu.memory_space<vmem>>, vector<256x128xf32>
    tpu.vector_store %arg11[%c0_75, %c0_76], %68 {strides = array<i32>} : memref<256x128xf32, #tpu.memory_space<vmem>>, vector<256x128xf32>,
    %c2_77 = arith.constant 2 : index
    %c0_78 = arith.constant 0 : index
    %c0_79 = arith.constant 0 : index
    %70 = vector.load %arg10[%c2_77, %c0_78, %c0_79] : memref<18x18x128xf32, #tpu.memory_space<vmem>>, vector<16x16x128xf32>
    %71 = vector.shape_cast %70 : vector<16x16x128xf32> to vector<256x128xf32>
    %72 = arith.truncf %71 : vector<256x128xf32> to vector<256x128xbf16>
    %c6 = arith.constant 6 : index
    %c0_80 = arith.constant 0 : index
    %c0_81 = arith.constant 0 : index
    %73 = vector.load %arg5[%c6, %c0_80, %c0_81] : memref<9x128x128xbf16, #tpu.memory_space<vmem>>, vector<1x128x128xbf16>
    %74 = vector.shape_cast %73 : vector<1x128x128xbf16> to vector<128x128xbf16>
    %cst_82 = arith.constant dense<0.000000e+00> : vector<256x128xf32>
    %75 = tpu.matmul %72, %74, %cst_82 {dimension_numbers = #tpu.dot_dimension_numbers<[1], [0], [0], [1], [0, 0, 1, 1], [], []>} : vector<256x128xbf16>, vector<128x128xbf16>, vector<256x128xf32> -> vector<256x128xf32>
    %c0_83 = arith.constant 0 : index
    %c0_84 = arith.constant 0 : index
    %76 = vector.load %arg11[%c0_83, %c0_84] : memref<256x128xf32, #tpu.memory_space<vmem>>, vector<256x128xf32>
    %77 = arith.addf %76, %75 : vector<256x128xf32>
    %c0_85 = arith.constant 0 : index
    %c0_86 = arith.constant 0 : index
    %78 = vector.load %arg11[%c0_85, %c0_86] : memref<256x128xf32, #tpu.memory_space<vmem>>, vector<256x128xf32>
    tpu.vector_store %arg11[%c0_85, %c0_86], %77 {strides = array<i32>} : memref<256x128xf32, #tpu.memory_space<vmem>>, vector<256x128xf32>,
    %c2_87 = arith.constant 2 : index
    %c1_88 = arith.constant 1 : index
    %c0_89 = arith.constant 0 : index
    %79 = vector.load %arg10[%c2_87, %c1_88, %c0_89] : memref<18x18x128xf32, #tpu.memory_space<vmem>>, vector<16x16x128xf32>
    %80 = vector.shape_cast %79 : vector<16x16x128xf32> to vector<256x128xf32>
    %81 = arith.truncf %80 : vector<256x128xf32> to vector<256x128xbf16>
    %c7 = arith.constant 7 : index
    %c0_90 = arith.constant 0 : index
    %c0_91 = arith.constant 0 : index
    %82 = vector.load %arg5[%c7, %c0_90, %c0_91] : memref<9x128x128xbf16, #tpu.memory_space<vmem>>, vector<1x128x128xbf16>
    %83 = vector.shape_cast %82 : vector<1x128x128xbf16> to vector<128x128xbf16>
    %cst_92 = arith.constant dense<0.000000e+00> : vector<256x128xf32>
    %84 = tpu.matmul %81, %83, %cst_92 {dimension_numbers = #tpu.dot_dimension_numbers<[1], [0], [0], [1], [0, 0, 1, 1], [], []>} : vector<256x128xbf16>, vector<128x128xbf16>, vector<256x128xf32> -> vector<256x128xf32>
    %c0_93 = arith.constant 0 : index
    %c0_94 = arith.constant 0 : index
    %85 = vector.load %arg11[%c0_93, %c0_94] : memref<256x128xf32, #tpu.memory_space<vmem>>, vector<256x128xf32>
    %86 = arith.addf %85, %84 : vector<256x128xf32>
    %c0_95 = arith.constant 0 : index
    %c0_96 = arith.constant 0 : index
    %87 = vector.load %arg11[%c0_95, %c0_96] : memref<256x128xf32, #tpu.memory_space<vmem>>, vector<256x128xf32>
    tpu.vector_store %arg11[%c0_95, %c0_96], %86 {strides = array<i32>} : memref<256x128xf32, #tpu.memory_space<vmem>>, vector<256x128xf32>,
    %c2_97 = arith.constant 2 : index
    %c2_98 = arith.constant 2 : index
    %c0_99 = arith.constant 0 : index
    %88 = vector.load %arg10[%c2_97, %c2_98, %c0_99] : memref<18x18x128xf32, #tpu.memory_space<vmem>>, vector<16x16x128xf32>
    %89 = vector.shape_cast %88 : vector<16x16x128xf32> to vector<256x128xf32>
    %90 = arith.truncf %89 : vector<256x128xf32> to vector<256x128xbf16>
    %c8 = arith.constant 8 : index
    %c0_100 = arith.constant 0 : index
    %c0_101 = arith.constant 0 : index
    %91 = vector.load %arg5[%c8, %c0_100, %c0_101] : memref<9x128x128xbf16, #tpu.memory_space<vmem>>, vector<1x128x128xbf16>
    %92 = vector.shape_cast %91 : vector<1x128x128xbf16> to vector<128x128xbf16>
    %cst_102 = arith.constant dense<0.000000e+00> : vector<256x128xf32>
    %93 = tpu.matmul %90, %92, %cst_102 {dimension_numbers = #tpu.dot_dimension_numbers<[1], [0], [0], [1], [0, 0, 1, 1], [], []>} : vector<256x128xbf16>, vector<128x128xbf16>, vector<256x128xf32> -> vector<256x128xf32>
    %c0_103 = arith.constant 0 : index
    %c0_104 = arith.constant 0 : index
    %94 = vector.load %arg11[%c0_103, %c0_104] : memref<256x128xf32, #tpu.memory_space<vmem>>, vector<256x128xf32>
    %95 = arith.addf %94, %93 : vector<256x128xf32>
    %c0_105 = arith.constant 0 : index
    %c0_106 = arith.constant 0 : index
    %96 = vector.load %arg11[%c0_105, %c0_106] : memref<256x128xf32, #tpu.memory_space<vmem>>, vector<256x128xf32>
    tpu.vector_store %arg11[%c0_105, %c0_106], %95 {strides = array<i32>} : memref<256x128xf32, #tpu.memory_space<vmem>>, vector<256x128xf32>,
    %c0_107 = arith.constant 0 : index
    %c0_108 = arith.constant 0 : index
    %97 = vector.load %arg11[%c0_107, %c0_108] : memref<256x128xf32, #tpu.memory_space<vmem>>, vector<256x128xf32>
    %c0_109 = arith.constant 0 : index
    %c0_110 = arith.constant 0 : index
    %98 = vector.load %arg6[%c0_109, %c0_110] : memref<1x128xf32, #tpu.memory_space<vmem>>, vector<1x128xf32>
    %99 = vector.broadcast %98 : vector<1x128xf32> to vector<256x128xf32>
    %100 = arith.addf %97, %99 : vector<256x128xf32>
    %101 = vector.shape_cast %100 : vector<256x128xf32> to vector<16x16x128xf32>
    %c0_111 = arith.constant 0 : index
    %c0_112 = arith.constant 0 : index
    %c0_113 = arith.constant 0 : index
    %c0_114 = arith.constant 0 : index
    %102 = vector.load %arg7[%c0_111, %c0_112, %c0_113, %c0_114] : memref<1x16x16x128xf32, #tpu.memory_space<vmem>>, vector<1x16x16x128xf32>
    %103 = vector.shape_cast %102 : vector<1x16x16x128xf32> to vector<16x16x128xf32>
    %104 = vector.shape_cast %101 : vector<16x16x128xf32> to vector<1x16x16x128xf32>
    tpu.vector_store %arg7[%c0_111, %c0_112, %c0_113, %c0_114], %104 {strides = array<i32>} : memref<1x16x16x128xf32, #tpu.memory_space<vmem>>, vector<1x16x16x128xf32>,
    %cst_115 = arith.constant dense<0.000000e+00> : vector<128xf32>
    %105 = vector.multi_reduction <add>, %100, %cst_115 [0] : vector<256x128xf32> to vector<128xf32>
    %106 = vector.shape_cast %105 : vector<128xf32> to vector<1x128xf32>
    %c0_116 = arith.constant 0 : index
    %c0_117 = arith.constant 0 : index
    %c0_118 = arith.constant 0 : index
    %107 = vector.load %arg8[%c0_116, %c0_117, %c0_118] : memref<1x1x128xf32, #tpu.memory_space<vmem>>, vector<1x1x128xf32>
    %108 = vector.shape_cast %107 : vector<1x1x128xf32> to vector<1x128xf32>
    %109 = vector.shape_cast %106 : vector<1x128xf32> to vector<1x1x128xf32>
    tpu.vector_store %arg8[%c0_116, %c0_117, %c0_118], %109 {strides = array<i32>} : memref<1x1x128xf32, #tpu.memory_space<vmem>>, vector<1x1x128xf32>,
    %110 = arith.mulf %100, %100 : vector<256x128xf32>
    %cst_119 = arith.constant dense<0.000000e+00> : vector<128xf32>
    %111 = vector.multi_reduction <add>, %110, %cst_119 [0] : vector<256x128xf32> to vector<128xf32>
    %112 = vector.shape_cast %111 : vector<128xf32> to vector<1x128xf32>
    %c0_120 = arith.constant 0 : index
    %c0_121 = arith.constant 0 : index
    %c0_122 = arith.constant 0 : index
    %113 = vector.load %arg9[%c0_120, %c0_121, %c0_122] : memref<1x1x128xf32, #tpu.memory_space<vmem>>, vector<1x1x128xf32>
    %114 = vector.shape_cast %113 : vector<1x1x128xf32> to vector<1x128xf32>
    %115 = vector.shape_cast %112 : vector<1x128xf32> to vector<1x1x128xf32>
    tpu.vector_store %arg9[%c0_120, %c0_121, %c0_122], %115 {strides = array<i32>} : memref<1x1x128xf32, #tpu.memory_space<vmem>>, vector<1x1x128xf32>,
    return
  }
  func.func @transform_0(%arg0: i32) -> (i32, i32, i32, i32) {
    %c0_i32 = arith.constant 0 : i32
    %c0_i32_0 = arith.constant 0 : i32
    %c0_i32_1 = arith.constant 0 : i32
    %c0_i32_2 = arith.constant 0 : i32
    return %arg0, %c0_i32, %c0_i32_0, %c0_i32_1 : i32, i32, i32, i32
  }
  func.func @transform_1(%arg0: i32) -> (i32, i32, i32, i32) {
    %c0_i32 = arith.constant 0 : i32
    %c0_i32_0 = arith.constant 0 : i32
    %c0_i32_1 = arith.constant 0 : i32
    %c0_i32_2 = arith.constant 0 : i32
    return %arg0, %c0_i32, %c0_i32_0, %c0_i32_1 : i32, i32, i32, i32
  }
  func.func @transform_2(%arg0: i32) -> (i32, i32) {
    %c0_i32 = arith.constant 0 : i32
    %c0_i32_0 = arith.constant 0 : i32
    %c0_i32_1 = arith.constant 0 : i32
    return %c0_i32, %c0_i32_0 : i32, i32
  }
  func.func @transform_3(%arg0: i32) -> (i32, i32) {
    %c0_i32 = arith.constant 0 : i32
    %c0_i32_0 = arith.constant 0 : i32
    %c0_i32_1 = arith.constant 0 : i32
    return %c0_i32, %c0_i32_0 : i32, i32
  }
  func.func @transform_4(%arg0: i32) -> (i32, i32, i32) {
    %c0_i32 = arith.constant 0 : i32
    %c0_i32_0 = arith.constant 0 : i32
    %c0_i32_1 = arith.constant 0 : i32
    %c0_i32_2 = arith.constant 0 : i32
    return %c0_i32, %c0_i32_0, %c0_i32_1 : i32, i32, i32
  }
  func.func @transform_5(%arg0: i32) -> (i32, i32) {
    %c0_i32 = arith.constant 0 : i32
    %c0_i32_0 = arith.constant 0 : i32
    %c0_i32_1 = arith.constant 0 : i32
    return %c0_i32, %c0_i32_0 : i32, i32
  }
  func.func @transform_6(%arg0: i32) -> (i32, i32, i32, i32) {
    %c0_i32 = arith.constant 0 : i32
    %c0_i32_0 = arith.constant 0 : i32
    %c0_i32_1 = arith.constant 0 : i32
    %c0_i32_2 = arith.constant 0 : i32
    return %arg0, %c0_i32, %c0_i32_0, %c0_i32_1 : i32, i32, i32, i32
  }
  func.func @transform_7(%arg0: i32) -> (i32, i32, i32) {
    %c0_i32 = arith.constant 0 : i32
    %c0_i32_0 = arith.constant 0 : i32
    %c0_i32_1 = arith.constant 0 : i32
    return %arg0, %c0_i32, %c0_i32_0 : i32, i32, i32
  }
  func.func @transform_8(%arg0: i32) -> (i32, i32, i32) {
    %c0_i32 = arith.constant 0 : i32
    %c0_i32_0 = arith.constant 0 : i32
    %c0_i32_1 = arith.constant 0 : i32
    return %arg0, %c0_i32, %c0_i32_0 : i32, i32, i32
  }
}

</mosaic_0001>

<llo_original>
// kernel: recurrent_block_forward.7
$region0: #{recurrent_block_forward.7}
  #allocation0 [shape = 'u32[]', space=smem, size = 0x4, offset = 0x4, fixed_abs, tag = 'smem constant byte address 0x4 - core index']
  #allocation1 [shape = 'u32[144,128]{1,0:T(1,128)}', space=vmem, size = 0x12000, scoped, tag = 'internal scratch']
  %s0 = inlined_call_operand.vmem [shape: f32[512,128], index: 0, kind: input, shape index: {}]
  %s1 = inlined_call_operand.vmem [shape: f32[1,128], index: 1, kind: input, shape index: {}]
  %s2 = inlined_call_operand.vmem [shape: f32[1,128], index: 2, kind: input, shape index: {}]
  %s3 = inlined_call_operand.vmem [shape: f32[512,128], index: 3, kind: output, shape index: {}]
  %s4 = sld [smem:[#allocation0]]
  $region22: #{recurrent_block_forward.7} parent=0
    _
  %s6 = ssub.s32 1, %s4
  %s7 = scalar_select 0, %s6, %s4
  // Predicated region
  $region2: #{recurrent_block_forward.7} parent=0 // pred_check
    _
  $region3: #{recurrent_block_forward.7} parent=0 // pred_check_branch
    %9 = sbr.rel (0) target = $region5
  $region4: #{recurrent_block_forward.7} parent=0 // pred_region
    _
  $region5: #{recurrent_block_forward.7} parent=0 // pred_fallthru
    _
  // Predicated region
  $region6: #{recurrent_block_forward.7} parent=0 // pred_check
    _
  $region7: #{recurrent_block_forward.7} parent=0 // pred_check_branch
    %11 = sbr.rel (0) target = $region9
  $region8: #{recurrent_block_forward.7} parent=0 // pred_region
    _
  $region9: #{recurrent_block_forward.7} parent=0 // pred_fallthru
    _
  // Predicated region
  $region10: #{recurrent_block_forward.7} parent=0 // pred_check
    _
  $region11: #{recurrent_block_forward.7} parent=0 // pred_check_branch
    %13 = sbr.rel (0) target = $region13
  $region12: #{recurrent_block_forward.7} parent=0 // pred_region
    _
  $region13: #{recurrent_block_forward.7} parent=0 // pred_fallthru
    _
  %v14 = vld [vmem:[%s0] sm:$0xff]
  %v15 = vld [vmem:[%s0 + $0x8] sm:$0xff]
  %v16 = vld [vmem:[%s0 + $0x10] sm:$0xff]
  %v17 = vld [vmem:[%s0 + $0x18] sm:$0xff]
  %v18 = vld [vmem:[%s0 + $0x20] sm:$0xff]
  %v19 = vld [vmem:[%s0 + $0x28] sm:$0xff]
  %v20 = vld [vmem:[%s0 + $0x30] sm:$0xff]
  %v21 = vld [vmem:[%s0 + $0x38] sm:$0xff]
  %v22 = vld [vmem:[%s0 + $0x40] sm:$0xff]
  %v23 = vld [vmem:[%s0 + $0x48] sm:$0xff]
  %v24 = vld [vmem:[%s0 + $0x50] sm:$0xff]
  %v25 = vld [vmem:[%s0 + $0x58] sm:$0xff]
  %v26 = vld [vmem:[%s0 + $0x60] sm:$0xff]
  %v27 = vld [vmem:[%s0 + $0x68] sm:$0xff]
  %v28 = vld [vmem:[%s0 + $0x70] sm:$0xff]
  %v29 = vld [vmem:[%s0 + $0x78] sm:$0xff]
  %v30 = vld [vmem:[%s0 + $0x80] sm:$0xff]
  %v31 = vld [vmem:[%s0 + $0x88] sm:$0xff]
  %v32 = vld [vmem:[%s0 + $0x90] sm:$0xff]
  %v33 = vld [vmem:[%s0 + $0x98] sm:$0xff]
  %v34 = vld [vmem:[%s0 + $0xa0] sm:$0xff]
  %v35 = vld [vmem:[%s0 + $0xa8] sm:$0xff]
  %v36 = vld [vmem:[%s0 + $0xb0] sm:$0xff]
  %v37 = vld [vmem:[%s0 + $0xb8] sm:$0xff]
  %v38 = vld [vmem:[%s0 + $0xc0] sm:$0xff]
  %v39 = vld [vmem:[%s0 + $0xc8] sm:$0xff]
  %v40 = vld [vmem:[%s0 + $0xd0] sm:$0xff]
  %v41 = vld [vmem:[%s0 + $0xd8] sm:$0xff]
  %v42 = vld [vmem:[%s0 + $0xe0] sm:$0xff]
  %v43 = vld [vmem:[%s0 + $0xe8] sm:$0xff]
  %v44 = vld [vmem:[%s0 + $0xf0] sm:$0xff]
  %v45 = vld [vmem:[%s0 + $0xf8] sm:$0xff]
  %v46 = vld [vmem:[%s0 + $0x100] sm:$0xff]
  %v47 = vld [vmem:[%s0 + $0x108] sm:$0xff]
  %v48 = vld [vmem:[%s0 + $0x110] sm:$0xff]
  %v49 = vld [vmem:[%s0 + $0x118] sm:$0xff]
  %v50 = vld [vmem:[%s0 + $0x120] sm:$0xff]
  %v51 = vld [vmem:[%s0 + $0x128] sm:$0xff]
  %v52 = vld [vmem:[%s0 + $0x130] sm:$0xff]
  %v53 = vld [vmem:[%s0 + $0x138] sm:$0xff]
  %v54 = vld [vmem:[%s0 + $0x140] sm:$0xff]
  %v55 = vld [vmem:[%s0 + $0x148] sm:$0xff]
  %v56 = vld [vmem:[%s0 + $0x150] sm:$0xff]
  %v57 = vld [vmem:[%s0 + $0x158] sm:$0xff]
  %v58 = vld [vmem:[%s0 + $0x160] sm:$0xff]
  %v59 = vld [vmem:[%s0 + $0x168] sm:$0xff]
  %v60 = vld [vmem:[%s0 + $0x170] sm:$0xff]
  %v61 = vld [vmem:[%s0 + $0x178] sm:$0xff]
  %v62 = vld [vmem:[%s0 + $0x180] sm:$0xff]
  %v63 = vld [vmem:[%s0 + $0x188] sm:$0xff]
  %v64 = vld [vmem:[%s0 + $0x190] sm:$0xff]
  %v65 = vld [vmem:[%s0 + $0x198] sm:$0xff]
  %v66 = vld [vmem:[%s0 + $0x1a0] sm:$0xff]
  %v67 = vld [vmem:[%s0 + $0x1a8] sm:$0xff]
  %v68 = vld [vmem:[%s0 + $0x1b0] sm:$0xff]
  %v69 = vld [vmem:[%s0 + $0x1b8] sm:$0xff]
  %v70 = vld [vmem:[%s0 + $0x1c0] sm:$0xff]
  %v71 = vld [vmem:[%s0 + $0x1c8] sm:$0xff]
  %v72 = vld [vmem:[%s0 + $0x1d0] sm:$0xff]
  %v73 = vld [vmem:[%s0 + $0x1d8] sm:$0xff]
  %v74 = vld [vmem:[%s0 + $0x1e0] sm:$0xff]
  %v75 = vld [vmem:[%s0 + $0x1e8] sm:$0xff]
  %v76 = vld [vmem:[%s0 + $0x1f0] sm:$0xff]
  %v77 = vld [vmem:[%s0 + $0x1f8] sm:$0xff]
  %v78 = vld [vmem:[%s1] sm:$0x1]
  %v80 = vlaneseq
  %v81 = vshrl.u32 %v80, 7
  %v82 = vsub.s32 0, %v81
  %v83 = vrot.slane %v78, %v82
  %v85 = vmul.f32 %v14, %v83
  %v86 = vmul.f32 %v15, %v83
  %v87 = vmul.f32 %v16, %v83
  %v88 = vmul.f32 %v17, %v83
  %v89 = vmul.f32 %v18, %v83
  %v90 = vmul.f32 %v19, %v83
  %v91 = vmul.f32 %v20, %v83
  %v92 = vmul.f32 %v21, %v83
  %v93 = vmul.f32 %v22, %v83
  %v94 = vmul.f32 %v23, %v83
  %v95 = vmul.f32 %v24, %v83
  %v96 = vmul.f32 %v25, %v83
  %v97 = vmul.f32 %v26, %v83
  %v98 = vmul.f32 %v27, %v83
  %v99 = vmul.f32 %v28, %v83
  %v100 = vmul.f32 %v29, %v83
  %v101 = vmul.f32 %v30, %v83
  %v102 = vmul.f32 %v31, %v83
  %v103 = vmul.f32 %v32, %v83
  %v104 = vmul.f32 %v33, %v83
  %v105 = vmul.f32 %v34, %v83
  %v106 = vmul.f32 %v35, %v83
  %v107 = vmul.f32 %v36, %v83
  %v108 = vmul.f32 %v37, %v83
  %v109 = vmul.f32 %v38, %v83
  %v110 = vmul.f32 %v39, %v83
  %v111 = vmul.f32 %v40, %v83
  %v112 = vmul.f32 %v41, %v83
  %v113 = vmul.f32 %v42, %v83
  %v114 = vmul.f32 %v43, %v83
  %v115 = vmul.f32 %v44, %v83
  %v116 = vmul.f32 %v45, %v83
  %v117 = vmul.f32 %v46, %v83
  %v118 = vmul.f32 %v47, %v83
  %v119 = vmul.f32 %v48, %v83
  %v120 = vmul.f32 %v49, %v83
  %v121 = vmul.f32 %v50, %v83
  %v122 = vmul.f32 %v51, %v83
  %v123 = vmul.f32 %v52, %v83
  %v124 = vmul.f32 %v53, %v83
  %v125 = vmul.f32 %v54, %v83
  %v126 = vmul.f32 %v55, %v83
  %v127 = vmul.f32 %v56, %v83
  %v128 = vmul.f32 %v57, %v83
  %v129 = vmul.f32 %v58, %v83
  %v130 = vmul.f32 %v59, %v83
  %v131 = vmul.f32 %v60, %v83
  %v132 = vmul.f32 %v61, %v83
  %v133 = vmul.f32 %v62, %v83
  %v134 = vmul.f32 %v63, %v83
  %v135 = vmul.f32 %v64, %v83
  %v136 = vmul.f32 %v65, %v83
  %v137 = vmul.f32 %v66, %v83
  %v138 = vmul.f32 %v67, %v83
  %v139 = vmul.f32 %v68, %v83
  %v140 = vmul.f32 %v69, %v83
  %v141 = vmul.f32 %v70, %v83
  %v142 = vmul.f32 %v71, %v83
  %v143 = vmul.f32 %v72, %v83
  %v144 = vmul.f32 %v73, %v83
  %v145 = vmul.f32 %v74, %v83
  %v146 = vmul.f32 %v75, %v83
  %v147 = vmul.f32 %v76, %v83
  %v148 = vmul.f32 %v77, %v83
  %v149 = vld [vmem:[%s2] sm:$0x1]
  %v151 = vlaneseq
  %v152 = vshrl.u32 %v151, 7
  %v153 = vsub.s32 0, %v152
  %v154 = vrot.slane %v149, %v153
  %v156 = vadd.f32 %v85, %v154
  %v157 = vadd.f32 %v86, %v154
  %v158 = vadd.f32 %v87, %v154
  %v159 = vadd.f32 %v88, %v154
  %v160 = vadd.f32 %v89, %v154
  %v161 = vadd.f32 %v90, %v154
  %v162 = vadd.f32 %v91, %v154
  %v163 = vadd.f32 %v92, %v154
  %v164 = vadd.f32 %v93, %v154
  %v165 = vadd.f32 %v94, %v154
  %v166 = vadd.f32 %v95, %v154
  %v167 = vadd.f32 %v96, %v154
  %v168 = vadd.f32 %v97, %v154
  %v169 = vadd.f32 %v98, %v154
  %v170 = vadd.f32 %v99, %v154
  %v171 = vadd.f32 %v100, %v154
  %v172 = vadd.f32 %v101, %v154
  %v173 = vadd.f32 %v102, %v154
  %v174 = vadd.f32 %v103, %v154
  %v175 = vadd.f32 %v104, %v154
  %v176 = vadd.f32 %v105, %v154
  %v177 = vadd.f32 %v106, %v154
  %v178 = vadd.f32 %v107, %v154
  %v179 = vadd.f32 %v108, %v154
  %v180 = vadd.f32 %v109, %v154
  %v181 = vadd.f32 %v110, %v154
  %v182 = vadd.f32 %v111, %v154
  %v183 = vadd.f32 %v112, %v154
  %v184 = vadd.f32 %v113, %v154
  %v185 = vadd.f32 %v114, %v154
  %v186 = vadd.f32 %v115, %v154
  %v187 = vadd.f32 %v116, %v154
  %v188 = vadd.f32 %v117, %v154
  %v189 = vadd.f32 %v118, %v154
  %v190 = vadd.f32 %v119, %v154
  %v191 = vadd.f32 %v120, %v154
  %v192 = vadd.f32 %v121, %v154
  %v193 = vadd.f32 %v122, %v154
  %v194 = vadd.f32 %v123, %v154
  %v195 = vadd.f32 %v124, %v154
  %v196 = vadd.f32 %v125, %v154
  %v197 = vadd.f32 %v126, %v154
  %v198 = vadd.f32 %v127, %v154
  %v199 = vadd.f32 %v128, %v154
  %v200 = vadd.f32 %v129, %v154
  %v201 = vadd.f32 %v130, %v154
  %v202 = vadd.f32 %v131, %v154
  %v203 = vadd.f32 %v132, %v154
  %v204 = vadd.f32 %v133, %v154
  %v205 = vadd.f32 %v134, %v154
  %v206 = vadd.f32 %v135, %v154
  %v207 = vadd.f32 %v136, %v154
  %v208 = vadd.f32 %v137, %v154
  %v209 = vadd.f32 %v138, %v154
  %v210 = vadd.f32 %v139, %v154
  %v211 = vadd.f32 %v140, %v154
  %v212 = vadd.f32 %v141, %v154
  %v213 = vadd.f32 %v142, %v154
  %v214 = vadd.f32 %v143, %v154
  %v215 = vadd.f32 %v144, %v154
  %v216 = vadd.f32 %v145, %v154
  %v217 = vadd.f32 %v146, %v154
  %v218 = vadd.f32 %v147, %v154
  %v219 = vadd.f32 %v148, %v154
  %v220 = vmax.f32 %v156, 0.0
  %v221 = vmax.f32 %v157, 0.0
  %v222 = vmax.f32 %v158, 0.0
  %v223 = vmax.f32 %v159, 0.0
  %v224 = vmax.f32 %v160, 0.0
  %v225 = vmax.f32 %v161, 0.0
  %v226 = vmax.f32 %v162, 0.0
  %v227 = vmax.f32 %v163, 0.0
  %v228 = vmax.f32 %v164, 0.0
  %v229 = vmax.f32 %v165, 0.0
  %v230 = vmax.f32 %v166, 0.0
  %v231 = vmax.f32 %v167, 0.0
  %v232 = vmax.f32 %v168, 0.0
  %v233 = vmax.f32 %v169, 0.0
  %v234 = vmax.f32 %v170, 0.0
  %v235 = vmax.f32 %v171, 0.0
  %v236 = vmax.f32 %v172, 0.0
  %v237 = vmax.f32 %v173, 0.0
  %v238 = vmax.f32 %v174, 0.0
  %v239 = vmax.f32 %v175, 0.0
  %v240 = vmax.f32 %v176, 0.0
  %v241 = vmax.f32 %v177, 0.0
  %v242 = vmax.f32 %v178, 0.0
  %v243 = vmax.f32 %v179, 0.0
  %v244 = vmax.f32 %v180, 0.0
  %v245 = vmax.f32 %v181, 0.0
  %v246 = vmax.f32 %v182, 0.0
  %v247 = vmax.f32 %v183, 0.0
  %v248 = vmax.f32 %v184, 0.0
  %v249 = vmax.f32 %v185, 0.0
  %v250 = vmax.f32 %v186, 0.0
  %v251 = vmax.f32 %v187, 0.0
  %v252 = vmax.f32 %v188, 0.0
  %v253 = vmax.f32 %v189, 0.0
  %v254 = vmax.f32 %v190, 0.0
  %v255 = vmax.f32 %v191, 0.0
  %v256 = vmax.f32 %v192, 0.0
  %v257 = vmax.f32 %v193, 0.0
  %v258 = vmax.f32 %v194, 0.0
  %v259 = vmax.f32 %v195, 0.0
  %v260 = vmax.f32 %v196, 0.0
  %v261 = vmax.f32 %v197, 0.0
  %v262 = vmax.f32 %v198, 0.0
  %v263 = vmax.f32 %v199, 0.0
  %v264 = vmax.f32 %v200, 0.0
  %v265 = vmax.f32 %v201, 0.0
  %v266 = vmax.f32 %v202, 0.0
  %v267 = vmax.f32 %v203, 0.0
  %v268 = vmax.f32 %v204, 0.0
  %v269 = vmax.f32 %v205, 0.0
  %v270 = vmax.f32 %v206, 0.0
  %v271 = vmax.f32 %v207, 0.0
  %v272 = vmax.f32 %v208, 0.0
  %v273 = vmax.f32 %v209, 0.0
  %v274 = vmax.f32 %v210, 0.0
  %v275 = vmax.f32 %v211, 0.0
  %v276 = vmax.f32 %v212, 0.0
  %v277 = vmax.f32 %v213, 0.0
  %v278 = vmax.f32 %v214, 0.0
  %v279 = vmax.f32 %v215, 0.0
  %v280 = vmax.f32 %v216, 0.0
  %v281 = vmax.f32 %v217, 0.0
  %v282 = vmax.f32 %v218, 0.0
  %v283 = vmax.f32 %v219, 0.0
  %284 = vst [vmem:[%s3] sm:$0xff] %v220
  %285 = vst [vmem:[%s3 + $0x8] sm:$0xff] %v221
  %286 = vst [vmem:[%s3 + $0x10] sm:$0xff] %v222
  %287 = vst [vmem:[%s3 + $0x18] sm:$0xff] %v223
  %288 = vst [vmem:[%s3 + $0x20] sm:$0xff] %v224
  %289 = vst [vmem:[%s3 + $0x28] sm:$0xff] %v225
  %290 = vst [vmem:[%s3 + $0x30] sm:$0xff] %v226
  %291 = vst [vmem:[%s3 + $0x38] sm:$0xff] %v227
  %292 = vst [vmem:[%s3 + $0x40] sm:$0xff] %v228
  %293 = vst [vmem:[%s3 + $0x48] sm:$0xff] %v229
  %294 = vst [vmem:[%s3 + $0x50] sm:$0xff] %v230
  %295 = vst [vmem:[%s3 + $0x58] sm:$0xff] %v231
  %296 = vst [vmem:[%s3 + $0x60] sm:$0xff] %v232
  %297 = vst [vmem:[%s3 + $0x68] sm:$0xff] %v233
  %298 = vst [vmem:[%s3 + $0x70] sm:$0xff] %v234
  %299 = vst [vmem:[%s3 + $0x78] sm:$0xff] %v235
  %300 = vst [vmem:[%s3 + $0x80] sm:$0xff] %v236
  %301 = vst [vmem:[%s3 + $0x88] sm:$0xff] %v237
  %302 = vst [vmem:[%s3 + $0x90] sm:$0xff] %v238
  %303 = vst [vmem:[%s3 + $0x98] sm:$0xff] %v239
  %304 = vst [vmem:[%s3 + $0xa0] sm:$0xff] %v240
  %305 = vst [vmem:[%s3 + $0xa8] sm:$0xff] %v241
  %306 = vst [vmem:[%s3 + $0xb0] sm:$0xff] %v242
  %307 = vst [vmem:[%s3 + $0xb8] sm:$0xff] %v243
  %308 = vst [vmem:[%s3 + $0xc0] sm:$0xff] %v244
  %309 = vst [vmem:[%s3 + $0xc8] sm:$0xff] %v245
  %310 = vst [vmem:[%s3 + $0xd0] sm:$0xff] %v246
  %311 = vst [vmem:[%s3 + $0xd8] sm:$0xff] %v247
  %312 = vst [vmem:[%s3 + $0xe0] sm:$0xff] %v248
  %313 = vst [vmem:[%s3 + $0xe8] sm:$0xff] %v249
  %314 = vst [vmem:[%s3 + $0xf0] sm:$0xff] %v250
  %315 = vst [vmem:[%s3 + $0xf8] sm:$0xff] %v251
  %316 = vst [vmem:[%s3 + $0x100] sm:$0xff] %v252
  %317 = vst [vmem:[%s3 + $0x108] sm:$0xff] %v253
  %318 = vst [vmem:[%s3 + $0x110] sm:$0xff] %v254
  %319 = vst [vmem:[%s3 + $0x118] sm:$0xff] %v255
  %320 = vst [vmem:[%s3 + $0x120] sm:$0xff] %v256
  %321 = vst [vmem:[%s3 + $0x128] sm:$0xff] %v257
  %322 = vst [vmem:[%s3 + $0x130] sm:$0xff] %v258
  %323 = vst [vmem:[%s3 + $0x138] sm:$0xff] %v259
  %324 = vst [vmem:[%s3 + $0x140] sm:$0xff] %v260
  %325 = vst [vmem:[%s3 + $0x148] sm:$0xff] %v261
  %326 = vst [vmem:[%s3 + $0x150] sm:$0xff] %v262
  %327 = vst [vmem:[%s3 + $0x158] sm:$0xff] %v263
  %328 = vst [vmem:[%s3 + $0x160] sm:$0xff] %v264
  %329 = vst [vmem:[%s3 + $0x168] sm:$0xff] %v265
  %330 = vst [vmem:[%s3 + $0x170] sm:$0xff] %v266
  %331 = vst [vmem:[%s3 + $0x178] sm:$0xff] %v267
  %332 = vst [vmem:[%s3 + $0x180] sm:$0xff] %v268
  %333 = vst [vmem:[%s3 + $0x188] sm:$0xff] %v269
  %334 = vst [vmem:[%s3 + $0x190] sm:$0xff] %v270
  %335 = vst [vmem:[%s3 + $0x198] sm:$0xff] %v271
  %336 = vst [vmem:[%s3 + $0x1a0] sm:$0xff] %v272
  %337 = vst [vmem:[%s3 + $0x1a8] sm:$0xff] %v273
  %338 = vst [vmem:[%s3 + $0x1b0] sm:$0xff] %v274
  %339 = vst [vmem:[%s3 + $0x1b8] sm:$0xff] %v275
  %340 = vst [vmem:[%s3 + $0x1c0] sm:$0xff] %v276
  %341 = vst [vmem:[%s3 + $0x1c8] sm:$0xff] %v277
  %342 = vst [vmem:[%s3 + $0x1d0] sm:$0xff] %v278
  %343 = vst [vmem:[%s3 + $0x1d8] sm:$0xff] %v279
  %344 = vst [vmem:[%s3 + $0x1e0] sm:$0xff] %v280
  %345 = vst [vmem:[%s3 + $0x1e8] sm:$0xff] %v281
  %346 = vst [vmem:[%s3 + $0x1f0] sm:$0xff] %v282
  %347 = vst [vmem:[%s3 + $0x1f8] sm:$0xff] %v283
  // Predicated region
  $region14: #{recurrent_block_forward.7} parent=0 // pred_check
    _
  $region15: #{recurrent_block_forward.7} parent=0 // pred_check_branch
    %349 = sbr.rel (0) target = $region17
  $region16: #{recurrent_block_forward.7} parent=0 // pred_region
    _
  $region17: #{recurrent_block_forward.7} parent=0 // pred_fallthru
    _
  // Predicated region
  $region18: #{recurrent_block_forward.7} parent=0 // pred_check
    _
  $region19: #{recurrent_block_forward.7} parent=0 // pred_check_branch
    %351 = sbr.rel (0) target = $region21
  $region20: #{recurrent_block_forward.7} parent=0 // pred_region
    _
  $region21: #{recurrent_block_forward.7} parent=0 // pred_fallthru
    _

// kernel: recurrent_block_forward.4
$region0: #{recurrent_block_forward.4}
  #allocation0 [shape = 'u32[]', space=smem, size = 0x4, offset = 0x4, fixed_abs, tag = 'smem constant byte address 0x4 - core index']
  #allocation1 [shape = 'u32[144,128]{1,0:T(1,128)}', space=vmem, size = 0x12000, scoped, tag = 'internal scratch']
  #allocation2 [shape = 'f32[18,18,128]{2,1,0:T(8,128)}', space=vmem, size = 0x36000, scoped, tag = 'scratch operand']
  #allocation3 [shape = 'f32[256,128]{1,0:T(8,128)}', space=vmem, size = 0x20000, scoped, tag = 'scratch operand']
  %s0 = inlined_call_operand.vmem [shape: f32[2,16,16,128], index: 0, kind: input, shape index: {}]
  %s1 = inlined_call_operand.vmem [shape: bf16[9,128,128], index: 1, kind: input, shape index: {}]
  %s2 = inlined_call_operand.vmem [shape: f32[1,128], index: 2, kind: input, shape index: {}]
  %s3 = inlined_call_operand.vmem [shape: f32[2,16,16,128], index: 3, kind: output, shape index: {0}]
  %s4 = inlined_call_operand.vmem [shape: f32[2,1,128], index: 4, kind: output, shape index: {1}]
  %s5 = inlined_call_operand.vmem [shape: f32[2,1,128], index: 5, kind: output, shape index: {2}]
  %6 = xla_tuple %s3, %s4, %s5
  %s7 = sld [smem:[#allocation0]]
  $region61: #{recurrent_block_forward.4} parent=0
    _
  %s9 = ssub.s32 1, %s7
  %s10 = scalar_select 0, %s9, %s7
  loop: start=0, step=1, limit=4
  $region2: #{recurrent_block_forward.4} parent=0 // loop_pre_header
    _
  $region3: #{recurrent_block_forward.4} parent=0 // loop_header
    %s12 = sphi 0, %s16
    %p13 = scmp.ge.s32.totalorder %s12, 4
    %s22 = sphi 0, %s24
    %s25 = sphi 0, %s22
    %s26 = sphi 0, %s25
    %s42 = sphi 0, %s26
    %s46 = sphi 0, %s46
    %s48 = sphi 0, %s46
    %s49 = sphi 0, %s48
    %s63 = sphi 0, %s49
    %s67 = sphi 0, %s67
    %s69 = sphi 0, %s67
    %s70 = sphi 0, %s69
    %s84 = sphi 0, %s70
    %s90 = sphi 0, %s92
    %s93 = sphi 0, %s90
    %s94 = sphi 0, %s93
    %s110 = sphi 0, %s94
    %s116 = sphi 0, %s118
    %s119 = sphi 0, %s116
    %s120 = sphi 0, %s119
    %s136 = sphi 0, %s120
    %s142 = sphi 0, %s144
    %s145 = sphi 0, %s142
    %s146 = sphi 0, %s145
    %s162 = sphi 0, %s146
  $region4: #{recurrent_block_forward.4} parent=0 // loop_header_branch
    %15 = sbr.rel (%p13) target = $region8
  $region5: #{recurrent_block_forward.4} parent=0 // loop_body
    %s17 = ssub.s32 %s12, 1
    %s18 = ssub.s32 %s12, 2
    %s19 = sadd.s32 %s12, 1
    %s20 = ssub.s32 %s12, %s19
    %p21 = scmp.eq.s32.totalorder %s20, 0
    %s23 = sadd.s32 %s22, 1
    %s24 = scalar_select %p21, %s22, %s23
    %p27 = pneg %p21
    %p28 = scmp.eq.s32.totalorder %s12, 1
    %p29 = por %p27, %p28
    %p30 = scmp.ne.s32.totalorder %s22, %s25
    %p31 = scmp.eq.s32.totalorder %s12, 0
    %p32 = por %p30, %p31
    %p33 = scmp.ne.s32.totalorder %s22, %s25
    %p34 = scmp.eq.s32.totalorder %s17, 1
    %p35 = por %p33, %p34
    %p36 = scmp.ne.s32.totalorder %s25, %s26
    %p37 = scmp.eq.s32.totalorder %s17, 0
    %p38 = por %p36, %p37
    %p39 = scmp.ne.s32.totalorder %s25, %s26
    %p40 = scmp.eq.s32.totalorder %s18, 1
    %p41 = por %p39, %p40
    %p43 = scmp.ne.s32.totalorder %s26, %s42
    %p44 = scmp.eq.s32.totalorder %s18, 0
    %p45 = por %p43, %p44
    %s47 = sadd.s32 %s46, 1
    %p50 = scmp.eq.s32.totalorder %s12, 1
    %p51 = scmp.ne.s32.totalorder %s46, %s48
    %p52 = scmp.eq.s32.totalorder %s12, 0
    %p53 = por %p51, %p52
    %p54 = scmp.ne.s32.totalorder %s46, %s48
    %p55 = scmp.eq.s32.totalorder %s17, 1
    %p56 = por %p54, %p55
    %p57 = scmp.ne.s32.totalorder %s48, %s49
    %p58 = scmp.eq.s32.totalorder %s17, 0
    %p59 = por %p57, %p58
    %p60 = scmp.ne.s32.totalorder %s48, %s49
    %p61 = scmp.eq.s32.totalorder %s18, 1
    %p62 = por %p60, %p61
    %p64 = scmp.ne.s32.totalorder %s49, %s63
    %p65 = scmp.eq.s32.totalorder %s18, 0
    %p66 = por %p64, %p65
    %s68 = sadd.s32 %s67, 1
    %p71 = scmp.eq.s32.totalorder %s12, 1
    %p72 = scmp.ne.s32.totalorder %s67, %s69
    %p73 = scmp.eq.s32.totalorder %s12, 0
    %p74 = por %p72, %p73
    %p75 = scmp.ne.s32.totalorder %s67, %s69
    %p76 = scmp.eq.s32.totalorder %s17, 1
    %p77 = por %p75, %p76
    %p78 = scmp.ne.s32.totalorder %s69, %s70
    %p79 = scmp.eq.s32.totalorder %s17, 0
    %p80 = por %p78, %p79
    %p81 = scmp.ne.s32.totalorder %s69, %s70
    %p82 = scmp.eq.s32.totalorder %s18, 1
    %p83 = por %p81, %p82
    %p85 = scmp.ne.s32.totalorder %s70, %s84
    %p86 = scmp.eq.s32.totalorder %s18, 0
    %p87 = por %p85, %p86
    %s88 = ssub.s32 %s12, %s19
    %p89 = scmp.eq.s32.totalorder %s88, 0
    %s91 = sadd.s32 %s90, 1
    %s92 = scalar_select %p89, %s90, %s91
    %p95 = pneg %p89
    %p96 = scmp.eq.s32.totalorder %s12, 1
    %p97 = por %p95, %p96
    %p98 = scmp.ne.s32.totalorder %s90, %s93
    %p99 = scmp.eq.s32.totalorder %s12, 0
    %p100 = por %p98, %p99
    %p101 = scmp.ne.s32.totalorder %s90, %s93
    %p102 = scmp.eq.s32.totalorder %s17, 1
    %p103 = por %p101, %p102
    %p104 = scmp.ne.s32.totalorder %s93, %s94
    %p105 = scmp.eq.s32.totalorder %s17, 0
    %p106 = por %p104, %p105
    %p107 = scmp.ne.s32.totalorder %s93, %s94
    %p108 = scmp.eq.s32.totalorder %s18, 1
    %p109 = por %p107, %p108
    %p111 = scmp.ne.s32.totalorder %s94, %s110
    %p112 = scmp.eq.s32.totalorder %s18, 0
    %p113 = por %p111, %p112
    %s114 = ssub.s32 %s12, %s19
    %p115 = scmp.eq.s32.totalorder %s114, 0
    %s117 = sadd.s32 %s116, 1
    %s118 = scalar_select %p115, %s116, %s117
    %p121 = pneg %p115
    %p122 = scmp.eq.s32.totalorder %s12, 1
    %p123 = por %p121, %p122
    %p124 = scmp.ne.s32.totalorder %s116, %s119
    %p125 = scmp.eq.s32.totalorder %s12, 0
    %p126 = por %p124, %p125
    %p127 = scmp.ne.s32.totalorder %s116, %s119
    %p128 = scmp.eq.s32.totalorder %s17, 1
    %p129 = por %p127, %p128
    %p130 = scmp.ne.s32.totalorder %s119, %s120
    %p131 = scmp.eq.s32.totalorder %s17, 0
    %p132 = por %p130, %p131
    %p133 = scmp.ne.s32.totalorder %s119, %s120
    %p134 = scmp.eq.s32.totalorder %s18, 1
    %p135 = por %p133, %p134
    %p137 = scmp.ne.s32.totalorder %s120, %s136
    %p138 = scmp.eq.s32.totalorder %s18, 0
    %p139 = por %p137, %p138
    %s140 = ssub.s32 %s12, %s19
    %p141 = scmp.eq.s32.totalorder %s140, 0
    %s143 = sadd.s32 %s142, 1
    %s144 = scalar_select %p141, %s142, %s143
    %p147 = pneg %p141
    %p148 = scmp.eq.s32.totalorder %s12, 1
    %p149 = por %p147, %p148
    %p150 = scmp.ne.s32.totalorder %s142, %s145
    %p151 = scmp.eq.s32.totalorder %s12, 0
    %p152 = por %p150, %p151
    %p153 = scmp.ne.s32.totalorder %s142, %s145
    %p154 = scmp.eq.s32.totalorder %s17, 1
    %p155 = por %p153, %p154
    %p156 = scmp.ne.s32.totalorder %s145, %s146
    %p157 = scmp.eq.s32.totalorder %s17, 0
    %p158 = por %p156, %p157
    %p159 = scmp.ne.s32.totalorder %s145, %s146
    %p160 = scmp.eq.s32.totalorder %s18, 1
    %p161 = por %p159, %p160
    %p163 = scmp.ne.s32.totalorder %s146, %s162
    %p164 = scmp.eq.s32.totalorder %s18, 0
    %p165 = por %p163, %p164
    %p166 = scmp.le.s32.totalorder 1, %s12
    %p167 = scmp.lt.s32.totalorder %s12, 3
    %p168 = pnand %p166, %p167
    %p169 = pneg %p168
    // Predicated region
    $region9: #{recurrent_block_forward.4} parent=5 // pred_check
      _
    $region10: #{recurrent_block_forward.4} parent=5 // pred_check_branch
      %171 = sbr.rel (%p168) target = $region12
    $region11: #{recurrent_block_forward.4} parent=5 // pred_region
      %s172 = ssub.s32 %s12, 1
      // Predicated region
      $region13: #{recurrent_block_forward.4} parent=11 // pred_check
        %p173 = pneg %p59
      $region14: #{recurrent_block_forward.4} parent=11 // pred_check_branch
        %175 = sbr.rel (%p173) target = $region16
      $region15: #{recurrent_block_forward.4} parent=11 // pred_region
        _
      $region16: #{recurrent_block_forward.4} parent=11 // pred_fallthru
        _
      // Predicated region
      $region17: #{recurrent_block_forward.4} parent=11 // pred_check
        %p176 = pneg %p80
      $region18: #{recurrent_block_forward.4} parent=11 // pred_check_branch
        %178 = sbr.rel (%p176) target = $region20
      $region19: #{recurrent_block_forward.4} parent=11 // pred_region
        _
      $region20: #{recurrent_block_forward.4} parent=11 // pred_fallthru
        _
    $region12: #{recurrent_block_forward.4} parent=5 // pred_fallthru
      _
    %p179 = scmp.lt.s32.totalorder %s12, 2
    // Predicated region
    $region21: #{recurrent_block_forward.4} parent=5 // pred_check
      %p180 = pneg %p179
    $region22: #{recurrent_block_forward.4} parent=5 // pred_check_branch
      %182 = sbr.rel (%p180) target = $region24
    $region23: #{recurrent_block_forward.4} parent=5 // pred_region
      // Predicated region
      $region25: #{recurrent_block_forward.4} parent=23 // pred_check
        %p183 = pneg %p32
      $region26: #{recurrent_block_forward.4} parent=23 // pred_check_branch
        %185 = sbr.rel (%p183) target = $region28
      $region27: #{recurrent_block_forward.4} parent=23 // pred_region
        %p186 = scmp.lt.s32.totalorder %s12, 1
        %s187 = scalar_select %p186, %s12, 1
        %s188 = smul.addr %s187, 32
        %s189 = smul.addr %s188, 8
        %s190 = scalar_lea.vmem %s0, %s189
      $region28: #{recurrent_block_forward.4} parent=23 // pred_fallthru
        _
    $region24: #{recurrent_block_forward.4} parent=5 // pred_fallthru
      _
    %p191 = scmp.le.s32.totalorder 1, %s12
    %p192 = scmp.lt.s32.totalorder %s12, 3
    %p193 = pnand %p191, %p192
    %p194 = pneg %p193
    // Predicated region
    $region29: #{recurrent_block_forward.4} parent=5 // pred_check
      _
    $region30: #{recurrent_block_forward.4} parent=5 // pred_check_branch
      %196 = sbr.rel (%p193) target = $region32
    $region31: #{recurrent_block_forward.4} parent=5 // pred_region
      %s197 = ssub.s32 %s12, 1
      %p198 = scmp.lt.s32.totalorder %s17, 1
      %s199 = scalar_select %p198, %s17, 1
      %s200 = smul.addr %s199, 32
      %s201 = smul.addr %s200, 8
      %s202 = scalar_lea.vmem %s0, %s201
      %p203 = pneg %p38
      %p204 = pneg %p35
      %p205 = pneg %p59
      %p206 = pneg %p56
      %p207 = pneg %p80
      %p208 = pneg %p77
      %p209 = pneg %p106
      %p210 = pneg %p103
      %p211 = scmp.lt.s32.totalorder %s17, 1
      %s212 = scalar_select %p211, %s17, 1
      %s213 = smul.addr %s212, 32
      %s214 = smul.addr %s213, 8
      %s215 = scalar_lea.vmem %s3, %s214
      %p216 = pneg %p132
      %p217 = pneg %p129
      %p218 = scmp.lt.s32.totalorder %s17, 1
      %s219 = scalar_select %p218, %s17, 1
      %s220 = scalar_lea.vmem %s4, %s219
      %p221 = pneg %p158
      %p222 = pneg %p155
      %p223 = scmp.lt.s32.totalorder %s17, 1
      %s224 = scalar_select %p223, %s17, 1
      %s225 = scalar_lea.vmem %s5, %s224
      %p226 = scmp.lt.s32.totalorder %s17, 1
      %s227 = scalar_select %p226, %s17, 1
      %s228 = smul.addr %s227, 32
      %s229 = smul.addr %s228, 8
      %s230 = scalar_lea.vmem %s0, %s229
      %p231 = scmp.lt.s32.totalorder %s17, 1
      %s232 = scalar_select %p231, %s17, 1
      %s233 = smul.addr %s232, 32
      %s234 = smul.addr %s233, 8
      %s235 = scalar_lea.vmem %s3, %s234
      %p236 = scmp.lt.s32.totalorder %s17, 1
      %s237 = scalar_select %p236, %s17, 1
      %s238 = scalar_lea.vmem %s4, %s237
      %p239 = scmp.lt.s32.totalorder %s17, 1
      %s240 = scalar_select %p239, %s17, 1
      %s241 = scalar_lea.vmem %s5, %s240
      %v243 = vld [vmem:[%s230] sm:$0xff]
      %v244 = vld [vmem:[%s230 + $0x8] sm:$0xff]
      %v245 = vld [vmem:[%s230 + $0x10] sm:$0xff]
      %v246 = vld [vmem:[%s230 + $0x18] sm:$0xff]
      %v247 = vld [vmem:[%s230 + $0x20] sm:$0xff]
      %v248 = vld [vmem:[%s230 + $0x28] sm:$0xff]
      %v249 = vld [vmem:[%s230 + $0x30] sm:$0xff]
      %v250 = vld [vmem:[%s230 + $0x38] sm:$0xff]
      %v251 = vld [vmem:[%s230 + $0x40] sm:$0xff]
      %v252 = vld [vmem:[%s230 + $0x48] sm:$0xff]
      %v253 = vld [vmem:[%s230 + $0x50] sm:$0xff]
      %v254 = vld [vmem:[%s230 + $0x58] sm:$0xff]
      %v255 = vld [vmem:[%s230 + $0x60] sm:$0xff]
      %v256 = vld [vmem:[%s230 + $0x68] sm:$0xff]
      %v257 = vld [vmem:[%s230 + $0x70] sm:$0xff]
      %v258 = vld [vmem:[%s230 + $0x78] sm:$0xff]
      %v259 = vld [vmem:[%s230 + $0x80] sm:$0xff]
      %v260 = vld [vmem:[%s230 + $0x88] sm:$0xff]
      %v261 = vld [vmem:[%s230 + $0x90] sm:$0xff]
      %v262 = vld [vmem:[%s230 + $0x98] sm:$0xff]
      %v263 = vld [vmem:[%s230 + $0xa0] sm:$0xff]
      %v264 = vld [vmem:[%s230 + $0xa8] sm:$0xff]
      %v265 = vld [vmem:[%s230 + $0xb0] sm:$0xff]
      %v266 = vld [vmem:[%s230 + $0xb8] sm:$0xff]
      %v267 = vld [vmem:[%s230 + $0xc0] sm:$0xff]
      %v268 = vld [vmem:[%s230 + $0xc8] sm:$0xff]
      %v269 = vld [vmem:[%s230 + $0xd0] sm:$0xff]
      %v270 = vld [vmem:[%s230 + $0xd8] sm:$0xff]
      %v271 = vld [vmem:[%s230 + $0xe0] sm:$0xff]
      %v272 = vld [vmem:[%s230 + $0xe8] sm:$0xff]
      %v273 = vld [vmem:[%s230 + $0xf0] sm:$0xff]
      %v274 = vld [vmem:[%s230 + $0xf8] sm:$0xff]
      %275 = vst [vmem:[#allocation2] sm:$0xff] 0.0
      %276 = vst [vmem:[#allocation2 + $0x8] sm:$0xff] 0.0
      %277 = vst [vmem:[#allocation2 + $0x10] sm:$0x3] 0.0
      %278 = vst [vmem:[#allocation2 + $0x18] sm:$0xff] 0.0
      %279 = vst [vmem:[#allocation2 + $0x20] sm:$0xff] 0.0
      %280 = vst [vmem:[#allocation2 + $0x28] sm:$0x3] 0.0
      %281 = vst [vmem:[#allocation2 + $0x30] sm:$0xff] 0.0
      %282 = vst [vmem:[#allocation2 + $0x38] sm:$0xff] 0.0
      %283 = vst [vmem:[#allocation2 + $0x40] sm:$0x3] 0.0
      %284 = vst [vmem:[#allocation2 + $0x48] sm:$0xff] 0.0
      %285 = vst [vmem:[#allocation2 + $0x50] sm:$0xff] 0.0
      %286 = vst [vmem:[#allocation2 + $0x58] sm:$0x3] 0.0
      %287 = vst [vmem:[#allocation2 + $0x60] sm:$0xff] 0.0
      %288 = vst [vmem:[#allocation2 + $0x68] sm:$0xff] 0.0
      %289 = vst [vmem:[#allocation2 + $0x70] sm:$0x3] 0.0
      %290 = vst [vmem:[#allocation2 + $0x78] sm:$0xff] 0.0
      %291 = vst [vmem:[#allocation2 + $0x80] sm:$0xff] 0.0
      %292 = vst [vmem:[#allocation2 + $0x88] sm:$0x3] 0.0
      %293 = vst [vmem:[#allocation2 + $0x90] sm:$0xff] 0.0
      %294 = vst [vmem:[#allocation2 + $0x98] sm:$0xff] 0.0
      %295 = vst [vmem:[#allocation2 + $0xa0] sm:$0x3] 0.0
      %296 = vst [vmem:[#allocation2 + $0xa8] sm:$0xff] 0.0
      %297 = vst [vmem:[#allocation2 + $0xb0] sm:$0xff] 0.0
      %298 = vst [vmem:[#allocation2 + $0xb8] sm:$0x3] 0.0
      %299 = vst [vmem:[#allocation2 + $0xc0] sm:$0xff] 0.0
      %300 = vst [vmem:[#allocation2 + $0xc8] sm:$0xff] 0.0
      %301 = vst [vmem:[#allocation2 + $0xd0] sm:$0x3] 0.0
      %302 = vst [vmem:[#allocation2 + $0xd8] sm:$0xff] 0.0
      %303 = vst [vmem:[#allocation2 + $0xe0] sm:$0xff] 0.0
      %304 = vst [vmem:[#allocation2 + $0xe8] sm:$0x3] 0.0
      %305 = vst [vmem:[#allocation2 + $0xf0] sm:$0xff] 0.0
      %306 = vst [vmem:[#allocation2 + $0xf8] sm:$0xff] 0.0
      %307 = vst [vmem:[#allocation2 + $0x100] sm:$0x3] 0.0
      %308 = vst [vmem:[#allocation2 + $0x108] sm:$0xff] 0.0
      %309 = vst [vmem:[#allocation2 + $0x110] sm:$0xff] 0.0
      %310 = vst [vmem:[#allocation2 + $0x118] sm:$0x3] 0.0
      %311 = vst [vmem:[#allocation2 + $0x120] sm:$0xff] 0.0
      %312 = vst [vmem:[#allocation2 + $0x128] sm:$0xff] 0.0
      %313 = vst [vmem:[#allocation2 + $0x130] sm:$0x3] 0.0
      %314 = vst [vmem:[#allocation2 + $0x138] sm:$0xff] 0.0
      %315 = vst [vmem:[#allocation2 + $0x140] sm:$0xff] 0.0
      %316 = vst [vmem:[#allocation2 + $0x148] sm:$0x3] 0.0
      %317 = vst [vmem:[#allocation2 + $0x150] sm:$0xff] 0.0
      %318 = vst [vmem:[#allocation2 + $0x158] sm:$0xff] 0.0
      %319 = vst [vmem:[#allocation2 + $0x160] sm:$0x3] 0.0
      %320 = vst [vmem:[#allocation2 + $0x168] sm:$0xff] 0.0
      %321 = vst [vmem:[#allocation2 + $0x170] sm:$0xff] 0.0
      %322 = vst [vmem:[#allocation2 + $0x178] sm:$0x3] 0.0
      %323 = vst [vmem:[#allocation2 + $0x180] sm:$0xff] 0.0
      %324 = vst [vmem:[#allocation2 + $0x188] sm:$0xff] 0.0
      %325 = vst [vmem:[#allocation2 + $0x190] sm:$0x3] 0.0
      %326 = vst [vmem:[#allocation2 + $0x198] sm:$0xff] 0.0
      %327 = vst [vmem:[#allocation2 + $0x1a0] sm:$0xff] 0.0
      %328 = vst [vmem:[#allocation2 + $0x1a8] sm:$0x3] 0.0
      %s329 = scalar_lea.vmem [#allocation2], 24
      %330 = vst [vmem:[%s329 + $0x1] sm:$0xff] %v243
      %331 = vst [vmem:[%s329 + $0x9] sm:$0xff] %v244
      %332 = vst [vmem:[%s329 + $0x19] sm:$0xff] %v245
      %333 = vst [vmem:[%s329 + $0x21] sm:$0xff] %v246
      %334 = vst [vmem:[%s329 + $0x31] sm:$0xff] %v247
      %335 = vst [vmem:[%s329 + $0x39] sm:$0xff] %v248
      %336 = vst [vmem:[%s329 + $0x49] sm:$0xff] %v249
      %337 = vst [vmem:[%s329 + $0x51] sm:$0xff] %v250
      %338 = vst [vmem:[%s329 + $0x61] sm:$0xff] %v251
      %339 = vst [vmem:[%s329 + $0x69] sm:$0xff] %v252
      %340 = vst [vmem:[%s329 + $0x79] sm:$0xff] %v253
      %341 = vst [vmem:[%s329 + $0x81] sm:$0xff] %v254
      %342 = vst [vmem:[%s329 + $0x91] sm:$0xff] %v255
      %343 = vst [vmem:[%s329 + $0x99] sm:$0xff] %v256
      %344 = vst [vmem:[%s329 + $0xa9] sm:$0xff] %v257
      %345 = vst [vmem:[%s329 + $0xb1] sm:$0xff] %v258
      %346 = vst [vmem:[%s329 + $0xc1] sm:$0xff] %v259
      %347 = vst [vmem:[%s329 + $0xc9] sm:$0xff] %v260
      %348 = vst [vmem:[%s329 + $0xd9] sm:$0xff] %v261
      %349 = vst [vmem:[%s329 + $0xe1] sm:$0xff] %v262
      %350 = vst [vmem:[%s329 + $0xf1] sm:$0xff] %v263
      %351 = vst [vmem:[%s329 + $0xf9] sm:$0xff] %v264
      %352 = vst [vmem:[%s329 + $0x109] sm:$0xff] %v265
      %353 = vst [vmem:[%s329 + $0x111] sm:$0xff] %v266
      %354 = vst [vmem:[%s329 + $0x121] sm:$0xff] %v267
      %355 = vst [vmem:[%s329 + $0x129] sm:$0xff] %v268
      %356 = vst [vmem:[%s329 + $0x139] sm:$0xff] %v269
      %357 = vst [vmem:[%s329 + $0x141] sm:$0xff] %v270
      %358 = vst [vmem:[%s329 + $0x151] sm:$0xff] %v271
      %359 = vst [vmem:[%s329 + $0x159] sm:$0xff] %v272
      %360 = vst [vmem:[%s329 + $0x169] sm:$0xff] %v273
      %361 = vst [vmem:[%s329 + $0x171] sm:$0xff] %v274
      %v362 = vld [vmem:[#allocation2] sm:$0xff]
      %v363 = vld [vmem:[#allocation2 + $0x8] sm:$0xff]
      %v364 = vld [vmem:[#allocation2 + $0x18] sm:$0xff]
      %v365 = vld [vmem:[#allocation2 + $0x20] sm:$0xff]
      %v366 = vld [vmem:[#allocation2 + $0x30] sm:$0xff]
      %v367 = vld [vmem:[#allocation2 + $0x38] sm:$0xff]
      %v368 = vld [vmem:[#allocation2 + $0x48] sm:$0xff]
      %v369 = vld [vmem:[#allocation2 + $0x50] sm:$0xff]
      %v370 = vld [vmem:[#allocation2 + $0x60] sm:$0xff]
      %v371 = vld [vmem:[#allocation2 + $0x68] sm:$0xff]
      %v372 = vld [vmem:[#allocation2 + $0x78] sm:$0xff]
      %v373 = vld [vmem:[#allocation2 + $0x80] sm:$0xff]
      %v374 = vld [vmem:[#allocation2 + $0x90] sm:$0xff]
      %v375 = vld [vmem:[#allocation2 + $0x98] sm:$0xff]
      %v376 = vld [vmem:[#allocation2 + $0xa8] sm:$0xff]
      %v377 = vld [vmem:[#allocation2 + $0xb0] sm:$0xff]
      %v378 = vld [vmem:[#allocation2 + $0xc0] sm:$0xff]
      %v379 = vld [vmem:[#allocation2 + $0xc8] sm:$0xff]
      %v380 = vld [vmem:[#allocation2 + $0xd8] sm:$0xff]
      %v381 = vld [vmem:[#allocation2 + $0xe0] sm:$0xff]
      %v382 = vld [vmem:[#allocation2 + $0xf0] sm:$0xff]
      %v383 = vld [vmem:[#allocation2 + $0xf8] sm:$0xff]
      %v384 = vld [vmem:[#allocation2 + $0x108] sm:$0xff]
      %v385 = vld [vmem:[#allocation2 + $0x110] sm:$0xff]
      %v386 = vld [vmem:[#allocation2 + $0x120] sm:$0xff]
      %v387 = vld [vmem:[#allocation2 + $0x128] sm:$0xff]
      %v388 = vld [vmem:[#allocation2 + $0x138] sm:$0xff]
      %v389 = vld [vmem:[#allocation2 + $0x140] sm:$0xff]
      %v390 = vld [vmem:[#allocation2 + $0x150] sm:$0xff]
      %v391 = vld [vmem:[#allocation2 + $0x158] sm:$0xff]
      %v392 = vld [vmem:[#allocation2 + $0x168] sm:$0xff]
      %v393 = vld [vmem:[#allocation2 + $0x170] sm:$0xff]
      %v394 = vpack.c.bf16 %v363, %v362
      %v395 = vpack.c.bf16 %v365, %v364
      %v396 = vpack.c.bf16 %v367, %v366
      %v397 = vpack.c.bf16 %v369, %v368
      %v398 = vpack.c.bf16 %v371, %v370
      %v399 = vpack.c.bf16 %v373, %v372
      %v400 = vpack.c.bf16 %v375, %v374
      %v401 = vpack.c.bf16 %v377, %v376
      %v402 = vpack.c.bf16 %v379, %v378
      %v403 = vpack.c.bf16 %v381, %v380
      %v404 = vpack.c.bf16 %v383, %v382
      %v405 = vpack.c.bf16 %v385, %v384
      %v406 = vpack.c.bf16 %v387, %v386
      %v407 = vpack.c.bf16 %v389, %v388
      %v408 = vpack.c.bf16 %v391, %v390
      %v409 = vpack.c.bf16 %v393, %v392
      %v410 = vld [vmem:[%s1] sm:$0xf]
      %v411 = vld [vmem:[%s1 + $0x4] sm:$0xf]
      %v412 = vld [vmem:[%s1 + $0x8] sm:$0xf]
      %v413 = vld [vmem:[%s1 + $0xc] sm:$0xf]
      %v414 = vld [vmem:[%s1 + $0x10] sm:$0xf]
      %v415 = vld [vmem:[%s1 + $0x14] sm:$0xf]
      %v416 = vld [vmem:[%s1 + $0x18] sm:$0xf]
      %v417 = vld [vmem:[%s1 + $0x1c] sm:$0xf]
      %v418 = vld [vmem:[%s1 + $0x20] sm:$0xf]
      %v419 = vld [vmem:[%s1 + $0x24] sm:$0xf]
      %v420 = vld [vmem:[%s1 + $0x28] sm:$0xf]
      %v421 = vld [vmem:[%s1 + $0x2c] sm:$0xf]
      %v422 = vld [vmem:[%s1 + $0x30] sm:$0xf]
      %v423 = vld [vmem:[%s1 + $0x34] sm:$0xf]
      %v424 = vld [vmem:[%s1 + $0x38] sm:$0xf]
      %v425 = vld [vmem:[%s1 + $0x3c] sm:$0xf]
      %v442 = vunpack.c.l.b16 %v410
      %v443 = vunpack.c.l.b16 %v411
      %v444 = vunpack.c.l.b16 %v412
      %v445 = vunpack.c.l.b16 %v413
      %v446 = vunpack.c.l.b16 %v414
      %v447 = vunpack.c.l.b16 %v415
      %v448 = vunpack.c.l.b16 %v416
      %v449 = vunpack.c.l.b16 %v417
      %v450 = vunpack.c.l.b16 %v418
      %v451 = vunpack.c.l.b16 %v419
      %v452 = vunpack.c.l.b16 %v420
      %v453 = vunpack.c.l.b16 %v421
      %v454 = vunpack.c.l.b16 %v422
      %v455 = vunpack.c.l.b16 %v423
      %v456 = vunpack.c.l.b16 %v424
      %v457 = vunpack.c.l.b16 %v425
      %v458 = vpack.c.b16 %v443, %v442
      %v459 = vpack.c.b16 %v445, %v444
      %v460 = vpack.c.b16 %v447, %v446
      %v461 = vpack.c.b16 %v449, %v448
      %v462 = vpack.c.b16 %v451, %v450
      %v463 = vpack.c.b16 %v453, %v452
      %v464 = vpack.c.b16 %v455, %v454
      %v465 = vpack.c.b16 %v457, %v456
      %474 = vmatprep.subr.bf16.mxu0 0
      %475 = vmatpush1.bf16.msra.mxu0 %v458
      %476 = vmatprep.subr.bf16.mxu0 0
      %477 = vmatpush1.bf16.msra.mxu0 %v459
      %478 = vmatprep.subr.bf16.mxu0 0
      %479 = vmatpush1.bf16.msra.mxu0 %v460
      %480 = vmatprep.subr.bf16.mxu0 0
      %481 = vmatpush1.bf16.msra.mxu0 %v461
      %482 = vmatprep.subr.bf16.mxu0 0
      %483 = vmatpush1.bf16.msra.mxu0 %v462
      %484 = vmatprep.subr.bf16.mxu0 0
      %485 = vmatpush1.bf16.msra.mxu0 %v463
      %486 = vmatprep.subr.bf16.mxu0 0
      %487 = vmatpush1.bf16.msra.mxu0 %v464
      %488 = vmatprep.subr.bf16.mxu0 0
      %489 = vmatpush1.bf16.msra.mxu0 %v465
      %490 = vmatprep.subr.bf16.mxu0 0
      %491 = vmatpush1.bf16.msra.mxu0 0
      %492 = vmatprep.subr.bf16.mxu0 0
      %493 = vmatpush1.bf16.msra.mxu0 0
      %494 = vmatprep.subr.bf16.mxu0 0
      %495 = vmatpush1.bf16.msra.mxu0 0
      %496 = vmatprep.subr.bf16.mxu0 0
      %497 = vmatpush1.bf16.msra.mxu0 0
      %498 = vmatprep.subr.bf16.mxu0 0
      %499 = vmatpush1.bf16.msra.mxu0 0
      %500 = vmatprep.subr.bf16.mxu0 0
      %501 = vmatpush1.bf16.msra.mxu0 0
      %502 = vmatprep.subr.bf16.mxu0 0
      %503 = vmatpush1.bf16.msra.mxu0 0
      %504 = vmatprep.subr.bf16.mxu0 0
      %505 = vmatpush1.bf16.msra.mxu0 0
      %506 = vmatprep.mubr.bf16.mxu0 0
      %507 = vmatmul.mubr.bf16.gmra.mrb[0].mxu0 %v394
      %v508 = vpop.f32.mrb[0].mxu0
      %v509 = vadd.f32 0.0, %v508
      %v510 = vpop.f32.mrb[0].mxu0
      %v511 = vpop.f32.mrb[0].mxu0
      %v512 = vadd.f32 0.0, %v511
      %v513 = vpop.f32.mrb[0].mxu0
      %514 = vmatprep.mubr.bf16.mxu0 0
      %515 = vmatmul.mubr.bf16.gmra.mrb[0].mxu0 %v395
      %v516 = vpop.f32.mrb[0].mxu0
      %v517 = vadd.f32 0.0, %v516
      %v518 = vpop.f32.mrb[0].mxu0
      %v519 = vpop.f32.mrb[0].mxu0
      %v520 = vadd.f32 0.0, %v519
      %v521 = vpop.f32.mrb[0].mxu0
      %522 = vmatprep.mubr.bf16.mxu0 0
      %523 = vmatmul.mubr.bf16.gmra.mrb[0].mxu0 %v396
      %v524 = vpop.f32.mrb[0].mxu0
      %v525 = vadd.f32 0.0, %v524
      %v526 = vpop.f32.mrb[0].mxu0
      %v527 = vpop.f32.mrb[0].mxu0
      %v528 = vadd.f32 0.0, %v527
      %v529 = vpop.f32.mrb[0].mxu0
      %530 = vmatprep.mubr.bf16.mxu0 0
      %531 = vmatmul.mubr.bf16.gmra.mrb[0].mxu0 %v397
      %v532 = vpop.f32.mrb[0].mxu0
      %v533 = vadd.f32 0.0, %v532
      %v534 = vpop.f32.mrb[0].mxu0
      %v535 = vpop.f32.mrb[0].mxu0
      %v536 = vadd.f32 0.0, %v535
      %v537 = vpop.f32.mrb[0].mxu0
      %538 = vmatprep.mubr.bf16.mxu0 0
      %539 = vmatmul.mubr.bf16.gmra.mrb[0].mxu0 %v398
      %v540 = vpop.f32.mrb[0].mxu0
      %v541 = vadd.f32 0.0, %v540
      %v542 = vpop.f32.mrb[0].mxu0
      %v543 = vpop.f32.mrb[0].mxu0
      %v544 = vadd.f32 0.0, %v543
      %v545 = vpop.f32.mrb[0].mxu0
      %546 = vmatprep.mubr.bf16.mxu0 0
      %547 = vmatmul.mubr.bf16.gmra.mrb[0].mxu0 %v399
      %v548 = vpop.f32.mrb[0].mxu0
      %v549 = vadd.f32 0.0, %v548
      %v550 = vpop.f32.mrb[0].mxu0
      %v551 = vpop.f32.mrb[0].mxu0
      %v552 = vadd.f32 0.0, %v551
      %v553 = vpop.f32.mrb[0].mxu0
      %554 = vmatprep.mubr.bf16.mxu0 0
      %555 = vmatmul.mubr.bf16.gmra.mrb[0].mxu0 %v400
      %v556 = vpop.f32.mrb[0].mxu0
      %v557 = vadd.f32 0.0, %v556
      %v558 = vpop.f32.mrb[0].mxu0
      %v559 = vpop.f32.mrb[0].mxu0
      %v560 = vadd.f32 0.0, %v559
      %v561 = vpop.f32.mrb[0].mxu0
      %562 = vmatprep.mubr.bf16.mxu0 0
      %563 = vmatmul.mubr.bf16.gmra.mrb[0].mxu0 %v401
      %v564 = vpop.f32.mrb[0].mxu0
      %v565 = vadd.f32 0.0, %v564
      %v566 = vpop.f32.mrb[0].mxu0
      %v567 = vpop.f32.mrb[0].mxu0
      %v568 = vadd.f32 0.0, %v567
      %v569 = vpop.f32.mrb[0].mxu0
      %570 = vmatprep.mubr.bf16.mxu0 0
      %571 = vmatmul.mubr.bf16.gmra.mrb[0].mxu0 %v402
      %v572 = vpop.f32.mrb[0].mxu0
      %v573 = vadd.f32 0.0, %v572
      %v574 = vpop.f32.mrb[0].mxu0
      %v575 = vpop.f32.mrb[0].mxu0
      %v576 = vadd.f32 0.0, %v575
      %v577 = vpop.f32.mrb[0].mxu0
      %578 = vmatprep.mubr.bf16.mxu0 0
      %579 = vmatmul.mubr.bf16.gmra.mrb[0].mxu0 %v403
      %v580 = vpop.f32.mrb[0].mxu0
      %v581 = vadd.f32 0.0, %v580
      %v582 = vpop.f32.mrb[0].mxu0
      %v583 = vpop.f32.mrb[0].mxu0
      %v584 = vadd.f32 0.0, %v583
      %v585 = vpop.f32.mrb[0].mxu0
      %586 = vmatprep.mubr.bf16.mxu0 0
      %587 = vmatmul.mubr.bf16.gmra.mrb[0].mxu0 %v404
      %v588 = vpop.f32.mrb[0].mxu0
      %v589 = vadd.f32 0.0, %v588
      %v590 = vpop.f32.mrb[0].mxu0
      %v591 = vpop.f32.mrb[0].mxu0
      %v592 = vadd.f32 0.0, %v591
      %v593 = vpop.f32.mrb[0].mxu0
      %594 = vmatprep.mubr.bf16.mxu0 0
      %595 = vmatmul.mubr.bf16.gmra.mrb[0].mxu0 %v405
      %v596 = vpop.f32.mrb[0].mxu0
      %v597 = vadd.f32 0.0, %v596
      %v598 = vpop.f32.mrb[0].mxu0
      %v599 = vpop.f32.mrb[0].mxu0
      %v600 = vadd.f32 0.0, %v599
      %v601 = vpop.f32.mrb[0].mxu0
      %602 = vmatprep.mubr.bf16.mxu0 0
      %603 = vmatmul.mubr.bf16.gmra.mrb[0].mxu0 %v406
      %v604 = vpop.f32.mrb[0].mxu0
      %v605 = vadd.f32 0.0, %v604
      %v606 = vpop.f32.mrb[0].mxu0
      %v607 = vpop.f32.mrb[0].mxu0
      %v608 = vadd.f32 0.0, %v607
      %v609 = vpop.f32.mrb[0].mxu0
      %610 = vmatprep.mubr.bf16.mxu0 0
      %611 = vmatmul.mubr.bf16.gmra.mrb[0].mxu0 %v407
      %v612 = vpop.f32.mrb[0].mxu0
      %v613 = vadd.f32 0.0, %v612
      %v614 = vpop.f32.mrb[0].mxu0
      %v615 = vpop.f32.mrb[0].mxu0
      %v616 = vadd.f32 0.0, %v615
      %v617 = vpop.f32.mrb[0].mxu0
      %618 = vmatprep.mubr.bf16.mxu0 0
      %619 = vmatmul.mubr.bf16.gmra.mrb[0].mxu0 %v408
      %v620 = vpop.f32.mrb[0].mxu0
      %v621 = vadd.f32 0.0, %v620
      %v622 = vpop.f32.mrb[0].mxu0
      %v623 = vpop.f32.mrb[0].mxu0
      %v624 = vadd.f32 0.0, %v623
      %v625 = vpop.f32.mrb[0].mxu0
      %626 = vmatprep.mubr.bf16.mxu0 0
      %627 = vmatmul.mubr.bf16.gmra.mrb[0].mxu0 %v409
      %v628 = vpop.f32.mrb[0].mxu0
      %v629 = vadd.f32 0.0, %v628
      %v630 = vpop.f32.mrb[0].mxu0
      %v631 = vpop.f32.mrb[0].mxu0
      %v632 = vadd.f32 0.0, %v631
      %v633 = vpop.f32.mrb[0].mxu0
      %634 = vdwg.mxu0
      %635 = vst [vmem:[#allocation3] sm:$0xff] %v509
      %636 = vst [vmem:[#allocation3 + $0x8] sm:$0xff] %v512
      %637 = vst [vmem:[#allocation3 + $0x10] sm:$0xff] %v517
      %638 = vst [vmem:[#allocation3 + $0x18] sm:$0xff] %v520
      %639 = vst [vmem:[#allocation3 + $0x20] sm:$0xff] %v525
      %640 = vst [vmem:[#allocation3 + $0x28] sm:$0xff] %v528
      %641 = vst [vmem:[#allocation3 + $0x30] sm:$0xff] %v533
      %642 = vst [vmem:[#allocation3 + $0x38] sm:$0xff] %v536
      %643 = vst [vmem:[#allocation3 + $0x40] sm:$0xff] %v541
      %644 = vst [vmem:[#allocation3 + $0x48] sm:$0xff] %v544
      %645 = vst [vmem:[#allocation3 + $0x50] sm:$0xff] %v549
      %646 = vst [vmem:[#allocation3 + $0x58] sm:$0xff] %v552
      %647 = vst [vmem:[#allocation3 + $0x60] sm:$0xff] %v557
      %648 = vst [vmem:[#allocation3 + $0x68] sm:$0xff] %v560
      %649 = vst [vmem:[#allocation3 + $0x70] sm:$0xff] %v565
      %650 = vst [vmem:[#allocation3 + $0x78] sm:$0xff] %v568
      %651 = vst [vmem:[#allocation3 + $0x80] sm:$0xff] %v573
      %652 = vst [vmem:[#allocation3 + $0x88] sm:$0xff] %v576
      %653 = vst [vmem:[#allocation3 + $0x90] sm:$0xff] %v581
      %654 = vst [vmem:[#allocation3 + $0x98] sm:$0xff] %v584
      %655 = vst [vmem:[#allocation3 + $0xa0] sm:$0xff] %v589
      %656 = vst [vmem:[#allocation3 + $0xa8] sm:$0xff] %v592
      %657 = vst [vmem:[#allocation3 + $0xb0] sm:$0xff] %v597
      %658 = vst [vmem:[#allocation3 + $0xb8] sm:$0xff] %v600
      %659 = vst [vmem:[#allocation3 + $0xc0] sm:$0xff] %v605
      %660 = vst [vmem:[#allocation3 + $0xc8] sm:$0xff] %v608
      %661 = vst [vmem:[#allocation3 + $0xd0] sm:$0xff] %v613
      %662 = vst [vmem:[#allocation3 + $0xd8] sm:$0xff] %v616
      %663 = vst [vmem:[#allocation3 + $0xe0] sm:$0xff] %v621
      %664 = vst [vmem:[#allocation3 + $0xe8] sm:$0xff] %v624
      %665 = vst [vmem:[#allocation3 + $0xf0] sm:$0xff] %v629
      %666 = vst [vmem:[#allocation3 + $0xf8] sm:$0xff] %v632
      %v667 = vld [vmem:[#allocation2 + $0x1] sm:$0xff]
      %v668 = vld [vmem:[#allocation2 + $0x9] sm:$0xff]
      %v669 = vld [vmem:[#allocation2 + $0x19] sm:$0xff]
      %v670 = vld [vmem:[#allocation2 + $0x21] sm:$0xff]
      %v671 = vld [vmem:[#allocation2 + $0x31] sm:$0xff]
      %v672 = vld [vmem:[#allocation2 + $0x39] sm:$0xff]
      %v673 = vld [vmem:[#allocation2 + $0x49] sm:$0xff]
      %v674 = vld [vmem:[#allocation2 + $0x51] sm:$0xff]
      %v675 = vld [vmem:[#allocation2 + $0x61] sm:$0xff]
      %v676 = vld [vmem:[#allocation2 + $0x69] sm:$0xff]
      %v677 = vld [vmem:[#allocation2 + $0x79] sm:$0xff]
      %v678 = vld [vmem:[#allocation2 + $0x81] sm:$0xff]
      %v679 = vld [vmem:[#allocation2 + $0x91] sm:$0xff]
      %v680 = vld [vmem:[#allocation2 + $0x99] sm:$0xff]
      %v681 = vld [vmem:[#allocation2 + $0xa9] sm:$0xff]
      %v682 = vld [vmem:[#allocation2 + $0xb1] sm:$0xff]
      %v683 = vld [vmem:[#allocation2 + $0xc1] sm:$0xff]
      %v684 = vld [vmem:[#allocation2 + $0xc9] sm:$0xff]
      %v685 = vld [vmem:[#allocation2 + $0xd9] sm:$0xff]
      %v686 = vld [vmem:[#allocation2 + $0xe1] sm:$0xff]
      %v687 = vld [vmem:[#allocation2 + $0xf1] sm:$0xff]
      %v688 = vld [vmem:[#allocation2 + $0xf9] sm:$0xff]
      %v689 = vld [vmem:[#allocation2 + $0x109] sm:$0xff]
      %v690 = vld [vmem:[#allocation2 + $0x111] sm:$0xff]
      %v691 = vld [vmem:[#allocation2 + $0x121] sm:$0xff]
      %v692 = vld [vmem:[#allocation2 + $0x129] sm:$0xff]
      %v693 = vld [vmem:[#allocation2 + $0x139] sm:$0xff]
      %v694 = vld [vmem:[#allocation2 + $0x141] sm:$0xff]
      %v695 = vld [vmem:[#allocation2 + $0x151] sm:$0xff]
      %v696 = vld [vmem:[#allocation2 + $0x159] sm:$0xff]
      %v697 = vld [vmem:[#allocation2 + $0x169] sm:$0xff]
      %v698 = vld [vmem:[#allocation2 + $0x171] sm:$0xff]
      %v699 = vpack.c.bf16 %v668, %v667
      %v700 = vpack.c.bf16 %v670, %v669
      %v701 = vpack.c.bf16 %v672, %v671
      %v702 = vpack.c.bf16 %v674, %v673
      %v703 = vpack.c.bf16 %v676, %v675
      %v704 = vpack.c.bf16 %v678, %v677
      %v705 = vpack.c.bf16 %v680, %v679
      %v706 = vpack.c.bf16 %v682, %v681
      %v707 = vpack.c.bf16 %v684, %v683
      %v708 = vpack.c.bf16 %v686, %v685
      %v709 = vpack.c.bf16 %v688, %v687
      %v710 = vpack.c.bf16 %v690, %v689
      %v711 = vpack.c.bf16 %v692, %v691
      %v712 = vpack.c.bf16 %v694, %v693
      %v713 = vpack.c.bf16 %v696, %v695
      %v714 = vpack.c.bf16 %v698, %v697
      %s715 = scalar_lea.vmem %s1, 64
      %v716 = vld [vmem:[%s715] sm:$0xf]
      %v717 = vld [vmem:[%s715 + $0x4] sm:$0xf]
      %v718 = vld [vmem:[%s715 + $0x8] sm:$0xf]
      %v719 = vld [vmem:[%s715 + $0xc] sm:$0xf]
      %v720 = vld [vmem:[%s715 + $0x10] sm:$0xf]
      %v721 = vld [vmem:[%s715 + $0x14] sm:$0xf]
      %v722 = vld [vmem:[%s715 + $0x18] sm:$0xf]
      %v723 = vld [vmem:[%s715 + $0x1c] sm:$0xf]
      %v724 = vld [vmem:[%s715 + $0x20] sm:$0xf]
      %v725 = vld [vmem:[%s715 + $0x24] sm:$0xf]
      %v726 = vld [vmem:[%s715 + $0x28] sm:$0xf]
      %v727 = vld [vmem:[%s715 + $0x2c] sm:$0xf]
      %v728 = vld [vmem:[%s715 + $0x30] sm:$0xf]
      %v729 = vld [vmem:[%s715 + $0x34] sm:$0xf]
      %v730 = vld [vmem:[%s715 + $0x38] sm:$0xf]
      %v731 = vld [vmem:[%s715 + $0x3c] sm:$0xf]
      %v748 = vunpack.c.l.b16 %v716
      %v749 = vunpack.c.l.b16 %v717
      %v750 = vunpack.c.l.b16 %v718
      %v751 = vunpack.c.l.b16 %v719
      %v752 = vunpack.c.l.b16 %v720
      %v753 = vunpack.c.l.b16 %v721
      %v754 = vunpack.c.l.b16 %v722
      %v755 = vunpack.c.l.b16 %v723
      %v756 = vunpack.c.l.b16 %v724
      %v757 = vunpack.c.l.b16 %v725
      %v758 = vunpack.c.l.b16 %v726
      %v759 = vunpack.c.l.b16 %v727
      %v760 = vunpack.c.l.b16 %v728
      %v761 = vunpack.c.l.b16 %v729
      %v762 = vunpack.c.l.b16 %v730
      %v763 = vunpack.c.l.b16 %v731
      %v764 = vpack.c.b16 %v749, %v748
      %v765 = vpack.c.b16 %v751, %v750
      %v766 = vpack.c.b16 %v753, %v752
      %v767 = vpack.c.b16 %v755, %v754
      %v768 = vpack.c.b16 %v757, %v756
      %v769 = vpack.c.b16 %v759, %v758
      %v770 = vpack.c.b16 %v761, %v760
      %v771 = vpack.c.b16 %v763, %v762
      %780 = vmatprep.subr.bf16.mxu0 0
      %781 = vmatpush1.bf16.msra.mxu0 %v764
      %782 = vmatprep.subr.bf16.mxu0 0
      %783 = vmatpush1.bf16.msra.mxu0 %v765
      %784 = vmatprep.subr.bf16.mxu0 0
      %785 = vmatpush1.bf16.msra.mxu0 %v766
      %786 = vmatprep.subr.bf16.mxu0 0
      %787 = vmatpush1.bf16.msra.mxu0 %v767
      %788 = vmatprep.subr.bf16.mxu0 0
      %789 = vmatpush1.bf16.msra.mxu0 %v768
      %790 = vmatprep.subr.bf16.mxu0 0
      %791 = vmatpush1.bf16.msra.mxu0 %v769
      %792 = vmatprep.subr.bf16.mxu0 0
      %793 = vmatpush1.bf16.msra.mxu0 %v770
      %794 = vmatprep.subr.bf16.mxu0 0
      %795 = vmatpush1.bf16.msra.mxu0 %v771
      %796 = vmatprep.subr.bf16.mxu0 0
      %797 = vmatpush1.bf16.msra.mxu0 0
      %798 = vmatprep.subr.bf16.mxu0 0
      %799 = vmatpush1.bf16.msra.mxu0 0
      %800 = vmatprep.subr.bf16.mxu0 0
      %801 = vmatpush1.bf16.msra.mxu0 0
      %802 = vmatprep.subr.bf16.mxu0 0
      %803 = vmatpush1.bf16.msra.mxu0 0
      %804 = vmatprep.subr.bf16.mxu0 0
      %805 = vmatpush1.bf16.msra.mxu0 0
      %806 = vmatprep.subr.bf16.mxu0 0
      %807 = vmatpush1.bf16.msra.mxu0 0
      %808 = vmatprep.subr.bf16.mxu0 0
      %809 = vmatpush1.bf16.msra.mxu0 0
      %810 = vmatprep.subr.bf16.mxu0 0
      %811 = vmatpush1.bf16.msra.mxu0 0
      %812 = vmatprep.mubr.bf16.mxu0 0
      %813 = vmatmul.mubr.bf16.gmra.mrb[0].mxu0 %v699
      %v814 = vpop.f32.mrb[0].mxu0
      %v815 = vadd.f32 0.0, %v814
      %v816 = vpop.f32.mrb[0].mxu0
      %v817 = vpop.f32.mrb[0].mxu0
      %v818 = vadd.f32 0.0, %v817
      %v819 = vpop.f32.mrb[0].mxu0
      %820 = vmatprep.mubr.bf16.mxu0 0
      %821 = vmatmul.mubr.bf16.gmra.mrb[0].mxu0 %v700
      %v822 = vpop.f32.mrb[0].mxu0
      %v823 = vadd.f32 0.0, %v822
      %v824 = vpop.f32.mrb[0].mxu0
      %v825 = vpop.f32.mrb[0].mxu0
      %v826 = vadd.f32 0.0, %v825
      %v827 = vpop.f32.mrb[0].mxu0
      %828 = vmatprep.mubr.bf16.mxu0 0
      %829 = vmatmul.mubr.bf16.gmra.mrb[0].mxu0 %v701
      %v830 = vpop.f32.mrb[0].mxu0
      %v831 = vadd.f32 0.0, %v830
      %v832 = vpop.f32.mrb[0].mxu0
      %v833 = vpop.f32.mrb[0].mxu0
      %v834 = vadd.f32 0.0, %v833
      %v835 = vpop.f32.mrb[0].mxu0
      %836 = vmatprep.mubr.bf16.mxu0 0
      %837 = vmatmul.mubr.bf16.gmra.mrb[0].mxu0 %v702
      %v838 = vpop.f32.mrb[0].mxu0
      %v839 = vadd.f32 0.0, %v838
      %v840 = vpop.f32.mrb[0].mxu0
      %v841 = vpop.f32.mrb[0].mxu0
      %v842 = vadd.f32 0.0, %v841
      %v843 = vpop.f32.mrb[0].mxu0
      %844 = vmatprep.mubr.bf16.mxu0 0
      %845 = vmatmul.mubr.bf16.gmra.mrb[0].mxu0 %v703
      %v846 = vpop.f32.mrb[0].mxu0
      %v847 = vadd.f32 0.0, %v846
      %v848 = vpop.f32.mrb[0].mxu0
      %v849 = vpop.f32.mrb[0].mxu0
      %v850 = vadd.f32 0.0, %v849
      %v851 = vpop.f32.mrb[0].mxu0
      %852 = vmatprep.mubr.bf16.mxu0 0
      %853 = vmatmul.mubr.bf16.gmra.mrb[0].mxu0 %v704
      %v854 = vpop.f32.mrb[0].mxu0
      %v855 = vadd.f32 0.0, %v854
      %v856 = vpop.f32.mrb[0].mxu0
      %v857 = vpop.f32.mrb[0].mxu0
      %v858 = vadd.f32 0.0, %v857
      %v859 = vpop.f32.mrb[0].mxu0
      %860 = vmatprep.mubr.bf16.mxu0 0
      %861 = vmatmul.mubr.bf16.gmra.mrb[0].mxu0 %v705
      %v862 = vpop.f32.mrb[0].mxu0
      %v863 = vadd.f32 0.0, %v862
      %v864 = vpop.f32.mrb[0].mxu0
      %v865 = vpop.f32.mrb[0].mxu0
      %v866 = vadd.f32 0.0, %v865
      %v867 = vpop.f32.mrb[0].mxu0
      %868 = vmatprep.mubr.bf16.mxu0 0
      %869 = vmatmul.mubr.bf16.gmra.mrb[0].mxu0 %v706
      %v870 = vpop.f32.mrb[0].mxu0
      %v871 = vadd.f32 0.0, %v870
      %v872 = vpop.f32.mrb[0].mxu0
      %v873 = vpop.f32.mrb[0].mxu0
      %v874 = vadd.f32 0.0, %v873
      %v875 = vpop.f32.mrb[0].mxu0
      %876 = vmatprep.mubr.bf16.mxu0 0
      %877 = vmatmul.mubr.bf16.gmra.mrb[0].mxu0 %v707
      %v878 = vpop.f32.mrb[0].mxu0
      %v879 = vadd.f32 0.0, %v878
      %v880 = vpop.f32.mrb[0].mxu0
      %v881 = vpop.f32.mrb[0].mxu0
      %v882 = vadd.f32 0.0, %v881
      %v883 = vpop.f32.mrb[0].mxu0
      %884 = vmatprep.mubr.bf16.mxu0 0
      %885 = vmatmul.mubr.bf16.gmra.mrb[0].mxu0 %v708
      %v886 = vpop.f32.mrb[0].mxu0
      %v887 = vadd.f32 0.0, %v886
      %v888 = vpop.f32.mrb[0].mxu0
      %v889 = vpop.f32.mrb[0].mxu0
      %v890 = vadd.f32 0.0, %v889
      %v891 = vpop.f32.mrb[0].mxu0
      %892 = vmatprep.mubr.bf16.mxu0 0
      %893 = vmatmul.mubr.bf16.gmra.mrb[0].mxu0 %v709
      %v894 = vpop.f32.mrb[0].mxu0
      %v895 = vadd.f32 0.0, %v894
      %v896 = vpop.f32.mrb[0].mxu0
      %v897 = vpop.f32.mrb[0].mxu0
      %v898 = vadd.f32 0.0, %v897
      %v899 = vpop.f32.mrb[0].mxu0
      %900 = vmatprep.mubr.bf16.mxu0 0
      %901 = vmatmul.mubr.bf16.gmra.mrb[0].mxu0 %v710
      %v902 = vpop.f32.mrb[0].mxu0
      %v903 = vadd.f32 0.0, %v902
      %v904 = vpop.f32.mrb[0].mxu0
      %v905 = vpop.f32.mrb[0].mxu0
      %v906 = vadd.f32 0.0, %v905
      %v907 = vpop.f32.mrb[0].mxu0
      %908 = vmatprep.mubr.bf16.mxu0 0
      %909 = vmatmul.mubr.bf16.gmra.mrb[0].mxu0 %v711
      %v910 = vpop.f32.mrb[0].mxu0
      %v911 = vadd.f32 0.0, %v910
      %v912 = vpop.f32.mrb[0].mxu0
      %v913 = vpop.f32.mrb[0].mxu0
      %v914 = vadd.f32 0.0, %v913
      %v915 = vpop.f32.mrb[0].mxu0
      %916 = vmatprep.mubr.bf16.mxu0 0
      %917 = vmatmul.mubr.bf16.gmra.mrb[0].mxu0 %v712
      %v918 = vpop.f32.mrb[0].mxu0
      %v919 = vadd.f32 0.0, %v918
      %v920 = vpop.f32.mrb[0].mxu0
      %v921 = vpop.f32.mrb[0].mxu0
      %v922 = vadd.f32 0.0, %v921
      %v923 = vpop.f32.mrb[0].mxu0
      %924 = vmatprep.mubr.bf16.mxu0 0
      %925 = vmatmul.mubr.bf16.gmra.mrb[0].mxu0 %v713
      %v926 = vpop.f32.mrb[0].mxu0
      %v927 = vadd.f32 0.0, %v926
      %v928 = vpop.f32.mrb[0].mxu0
      %v929 = vpop.f32.mrb[0].mxu0
      %v930 = vadd.f32 0.0, %v929
      %v931 = vpop.f32.mrb[0].mxu0
      %932 = vmatprep.mubr.bf16.mxu0 0
      %933 = vmatmul.mubr.bf16.gmra.mrb[0].mxu0 %v714
      %v934 = vpop.f32.mrb[0].mxu0
      %v935 = vadd.f32 0.0, %v934
      %v936 = vpop.f32.mrb[0].mxu0
      %v937 = vpop.f32.mrb[0].mxu0
      %v938 = vadd.f32 0.0, %v937
      %v939 = vpop.f32.mrb[0].mxu0
      %940 = vdwg.mxu0
      %v941 = vld [vmem:[#allocation3] sm:$0xff]
      %v942 = vld [vmem:[#allocation3 + $0x8] sm:$0xff]
      %v943 = vld [vmem:[#allocation3 + $0x10] sm:$0xff]
      %v944 = vld [vmem:[#allocation3 + $0x18] sm:$0xff]
      %v945 = vld [vmem:[#allocation3 + $0x20] sm:$0xff]
      %v946 = vld [vmem:[#allocation3 + $0x28] sm:$0xff]
      %v947 = vld [vmem:[#allocation3 + $0x30] sm:$0xff]
      %v948 = vld [vmem:[#allocation3 + $0x38] sm:$0xff]
      %v949 = vld [vmem:[#allocation3 + $0x40] sm:$0xff]
      %v950 = vld [vmem:[#allocation3 + $0x48] sm:$0xff]
      %v951 = vld [vmem:[#allocation3 + $0x50] sm:$0xff]
      %v952 = vld [vmem:[#allocation3 + $0x58] sm:$0xff]
      %v953 = vld [vmem:[#allocation3 + $0x60] sm:$0xff]
      %v954 = vld [vmem:[#allocation3 + $0x68] sm:$0xff]
      %v955 = vld [vmem:[#allocation3 + $0x70] sm:$0xff]
      %v956 = vld [vmem:[#allocation3 + $0x78] sm:$0xff]
      %v957 = vld [vmem:[#allocation3 + $0x80] sm:$0xff]
      %v958 = vld [vmem:[#allocation3 + $0x88] sm:$0xff]
      %v959 = vld [vmem:[#allocation3 + $0x90] sm:$0xff]
      %v960 = vld [vmem:[#allocation3 + $0x98] sm:$0xff]
      %v961 = vld [vmem:[#allocation3 + $0xa0] sm:$0xff]
      %v962 = vld [vmem:[#allocation3 + $0xa8] sm:$0xff]
      %v963 = vld [vmem:[#allocation3 + $0xb0] sm:$0xff]
      %v964 = vld [vmem:[#allocation3 + $0xb8] sm:$0xff]
      %v965 = vld [vmem:[#allocation3 + $0xc0] sm:$0xff]
      %v966 = vld [vmem:[#allocation3 + $0xc8] sm:$0xff]
      %v967 = vld [vmem:[#allocation3 + $0xd0] sm:$0xff]
      %v968 = vld [vmem:[#allocation3 + $0xd8] sm:$0xff]
      %v969 = vld [vmem:[#allocation3 + $0xe0] sm:$0xff]
      %v970 = vld [vmem:[#allocation3 + $0xe8] sm:$0xff]
      %v971 = vld [vmem:[#allocation3 + $0xf0] sm:$0xff]
      %v972 = vld [vmem:[#allocation3 + $0xf8] sm:$0xff]
      %v973 = vadd.f32 %v941, %v815
      %v974 = vadd.f32 %v942, %v818
      %v975 = vadd.f32 %v943, %v823
      %v976 = vadd.f32 %v944, %v826
      %v977 = vadd.f32 %v945, %v831
      %v978 = vadd.f32 %v946, %v834
      %v979 = vadd.f32 %v947, %v839
      %v980 = vadd.f32 %v948, %v842
      %v981 = vadd.f32 %v949, %v847
      %v982 = vadd.f32 %v950, %v850
      %v983 = vadd.f32 %v951, %v855
      %v984 = vadd.f32 %v952, %v858
      %v985 = vadd.f32 %v953, %v863
      %v986 = vadd.f32 %v954, %v866
      %v987 = vadd.f32 %v955, %v871
      %v988 = vadd.f32 %v956, %v874
      %v989 = vadd.f32 %v957, %v879
      %v990 = vadd.f32 %v958, %v882
      %v991 = vadd.f32 %v959, %v887
      %v992 = vadd.f32 %v960, %v890
      %v993 = vadd.f32 %v961, %v895
      %v994 = vadd.f32 %v962, %v898
      %v995 = vadd.f32 %v963, %v903
      %v996 = vadd.f32 %v964, %v906
      %v997 = vadd.f32 %v965, %v911
      %v998 = vadd.f32 %v966, %v914
      %v999 = vadd.f32 %v967, %v919
      %v1000 = vadd.f32 %v968, %v922
      %v1001 = vadd.f32 %v969, %v927
      %v1002 = vadd.f32 %v970, %v930
      %v1003 = vadd.f32 %v971, %v935
      %v1004 = vadd.f32 %v972, %v938
      %1005 = vst [vmem:[#allocation3] sm:$0xff] %v973
      %1006 = vst [vmem:[#allocation3 + $0x8] sm:$0xff] %v974
      %1007 = vst [vmem:[#allocation3 + $0x10] sm:$0xff] %v975
      %1008 = vst [vmem:[#allocation3 + $0x18] sm:$0xff] %v976
      %1009 = vst [vmem:[#allocation3 + $0x20] sm:$0xff] %v977
      %1010 = vst [vmem:[#allocation3 + $0x28] sm:$0xff] %v978
      %1011 = vst [vmem:[#allocation3 + $0x30] sm:$0xff] %v979
      %1012 = vst [vmem:[#allocation3 + $0x38] sm:$0xff] %v980
      %1013 = vst [vmem:[#allocation3 + $0x40] sm:$0xff] %v981
      %1014 = vst [vmem:[#allocation3 + $0x48] sm:$0xff] %v982
      %1015 = vst [vmem:[#allocation3 + $0x50] sm:$0xff] %v983
      %1016 = vst [vmem:[#allocation3 + $0x58] sm:$0xff] %v984
      %1017 = vst [vmem:[#allocation3 + $0x60] sm:$0xff] %v985
      %1018 = vst [vmem:[#allocation3 + $0x68] sm:$0xff] %v986
      %1019 = vst [vmem:[#allocation3 + $0x70] sm:$0xff] %v987
      %1020 = vst [vmem:[#allocation3 + $0x78] sm:$0xff] %v988
      %1021 = vst [vmem:[#allocation3 + $0x80] sm:$0xff] %v989
      %1022 = vst [vmem:[#allocation3 + $0x88] sm:$0xff] %v990
      %1023 = vst [vmem:[#allocation3 + $0x90] sm:$0xff] %v991
      %1024 = vst [vmem:[#allocation3 + $0x98] sm:$0xff] %v992
      %1025 = vst [vmem:[#allocation3 + $0xa0] sm:$0xff] %v993
      %1026 = vst [vmem:[#allocation3 + $0xa8] sm:$0xff] %v994
      %1027 = vst [vmem:[#allocation3 + $0xb0] sm:$0xff] %v995
      %1028 = vst [vmem:[#allocation3 + $0xb8] sm:$0xff] %v996
      %1029 = vst [vmem:[#allocation3 + $0xc0] sm:$0xff] %v997
      %1030 = vst [vmem:[#allocation3 + $0xc8] sm:$0xff] %v998
      %1031 = vst [vmem:[#allocation3 + $0xd0] sm:$0xff] %v999
      %1032 = vst [vmem:[#allocation3 + $0xd8] sm:$0xff] %v1000
      %1033 = vst [vmem:[#allocation3 + $0xe0] sm:$0xff] %v1001
      %1034 = vst [vmem:[#allocation3 + $0xe8] sm:$0xff] %v1002
      %1035 = vst [vmem:[#allocation3 + $0xf0] sm:$0xff] %v1003
      %1036 = vst [vmem:[#allocation3 + $0xf8] sm:$0xff] %v1004
      %v1037 = vld [vmem:[#allocation2 + $0x2] sm:$0xff]
      %v1038 = vld [vmem:[#allocation2 + $0xa] sm:$0xff]
      %v1039 = vld [vmem:[#allocation2 + $0x1a] sm:$0xff]
      %v1040 = vld [vmem:[#allocation2 + $0x22] sm:$0xff]
      %v1041 = vld [vmem:[#allocation2 + $0x32] sm:$0xff]
      %v1042 = vld [vmem:[#allocation2 + $0x3a] sm:$0xff]
      %v1043 = vld [vmem:[#allocation2 + $0x4a] sm:$0xff]
      %v1044 = vld [vmem:[#allocation2 + $0x52] sm:$0xff]
      %v1045 = vld [vmem:[#allocation2 + $0x62] sm:$0xff]
      %v1046 = vld [vmem:[#allocation2 + $0x6a] sm:$0xff]
      %v1047 = vld [vmem:[#allocation2 + $0x7a] sm:$0xff]
      %v1048 = vld [vmem:[#allocation2 + $0x82] sm:$0xff]
      %v1049 = vld [vmem:[#allocation2 + $0x92] sm:$0xff]
      %v1050 = vld [vmem:[#allocation2 + $0x9a] sm:$0xff]
      %v1051 = vld [vmem:[#allocation2 + $0xaa] sm:$0xff]
      %v1052 = vld [vmem:[#allocation2 + $0xb2] sm:$0xff]
      %v1053 = vld [vmem:[#allocation2 + $0xc2] sm:$0xff]
      %v1054 = vld [vmem:[#allocation2 + $0xca] sm:$0xff]
      %v1055 = vld [vmem:[#allocation2 + $0xda] sm:$0xff]
      %v1056 = vld [vmem:[#allocation2 + $0xe2] sm:$0xff]
      %v1057 = vld [vmem:[#allocation2 + $0xf2] sm:$0xff]
      %v1058 = vld [vmem:[#allocation2 + $0xfa] sm:$0xff]
      %v1059 = vld [vmem:[#allocation2 + $0x10a] sm:$0xff]
      %v1060 = vld [vmem:[#allocation2 + $0x112] sm:$0xff]
      %v1061 = vld [vmem:[#allocation2 + $0x122] sm:$0xff]
      %v1062 = vld [vmem:[#allocation2 + $0x12a] sm:$0xff]
      %v1063 = vld [vmem:[#allocation2 + $0x13a] sm:$0xff]
      %v1064 = vld [vmem:[#allocation2 + $0x142] sm:$0xff]
      %v1065 = vld [vmem:[#allocation2 + $0x152] sm:$0xff]
      %v1066 = vld [vmem:[#allocation2 + $0x15a] sm:$0xff]
      %v1067 = vld [vmem:[#allocation2 + $0x16a] sm:$0xff]
      %v1068 = vld [vmem:[#allocation2 + $0x172] sm:$0xff]
      %v1069 = vpack.c.bf16 %v1038, %v1037
      %v1070 = vpack.c.bf16 %v1040, %v1039
      %v1071 = vpack.c.bf16 %v1042, %v1041
      %v1072 = vpack.c.bf16 %v1044, %v1043
      %v1073 = vpack.c.bf16 %v1046, %v1045
      %v1074 = vpack.c.bf16 %v1048, %v1047
      %v1075 = vpack.c.bf16 %v1050, %v1049
      %v1076 = vpack.c.bf16 %v1052, %v1051
      %v1077 = vpack.c.bf16 %v1054, %v1053
      %v1078 = vpack.c.bf16 %v1056, %v1055
      %v1079 = vpack.c.bf16 %v1058, %v1057
      %v1080 = vpack.c.bf16 %v1060, %v1059
      %v1081 = vpack.c.bf16 %v1062, %v1061
      %v1082 = vpack.c.bf16 %v1064, %v1063
      %v1083 = vpack.c.bf16 %v1066, %v1065
      %v1084 = vpack.c.bf16 %v1068, %v1067
      %s1085 = scalar_lea.vmem %s1, 128
      %v1086 = vld [vmem:[%s1085] sm:$0xf]
      %v1087 = vld [vmem:[%s1085 + $0x4] sm:$0xf]
      %v1088 = vld [vmem:[%s1085 + $0x8] sm:$0xf]
      %v1089 = vld [vmem:[%s1085 + $0xc] sm:$0xf]
      %v1090 = vld [vmem:[%s1085 + $0x10] sm:$0xf]
      %v1091 = vld [vmem:[%s1085 + $0x14] sm:$0xf]
      %v1092 = vld [vmem:[%s1085 + $0x18] sm:$0xf]
      %v1093 = vld [vmem:[%s1085 + $0x1c] sm:$0xf]
      %v1094 = vld [vmem:[%s1085 + $0x20] sm:$0xf]
      %v1095 = vld [vmem:[%s1085 + $0x24] sm:$0xf]
      %v1096 = vld [vmem:[%s1085 + $0x28] sm:$0xf]
      %v1097 = vld [vmem:[%s1085 + $0x2c] sm:$0xf]
      %v1098 = vld [vmem:[%s1085 + $0x30] sm:$0xf]
      %v1099 = vld [vmem:[%s1085 + $0x34] sm:$0xf]
      %v1100 = vld [vmem:[%s1085 + $0x38] sm:$0xf]
      %v1101 = vld [vmem:[%s1085 + $0x3c] sm:$0xf]
      %v1118 = vunpack.c.l.b16 %v1086
      %v1119 = vunpack.c.l.b16 %v1087
      %v1120 = vunpack.c.l.b16 %v1088
      %v1121 = vunpack.c.l.b16 %v1089
      %v1122 = vunpack.c.l.b16 %v1090
      %v1123 = vunpack.c.l.b16 %v1091
      %v1124 = vunpack.c.l.b16 %v1092
      %v1125 = vunpack.c.l.b16 %v1093
      %v1126 = vunpack.c.l.b16 %v1094
      %v1127 = vunpack.c.l.b16 %v1095
      %v1128 = vunpack.c.l.b16 %v1096
      %v1129 = vunpack.c.l.b16 %v1097
      %v1130 = vunpack.c.l.b16 %v1098
      %v1131 = vunpack.c.l.b16 %v1099
      %v1132 = vunpack.c.l.b16 %v1100
      %v1133 = vunpack.c.l.b16 %v1101
      %v1134 = vpack.c.b16 %v1119, %v1118
      %v1135 = vpack.c.b16 %v1121, %v1120
      %v1136 = vpack.c.b16 %v1123, %v1122
      %v1137 = vpack.c.b16 %v1125, %v1124
      %v1138 = vpack.c.b16 %v1127, %v1126
      %v1139 = vpack.c.b16 %v1129, %v1128
      %v1140 = vpack.c.b16 %v1131, %v1130
      %v1141 = vpack.c.b16 %v1133, %v1132
      %1150 = vmatprep.subr.bf16.mxu0 0
      %1151 = vmatpush1.bf16.msra.mxu0 %v1134
      %1152 = vmatprep.subr.bf16.mxu0 0
      %1153 = vmatpush1.bf16.msra.mxu0 %v1135
      %1154 = vmatprep.subr.bf16.mxu0 0
      %1155 = vmatpush1.bf16.msra.mxu0 %v1136
      %1156 = vmatprep.subr.bf16.mxu0 0
      %1157 = vmatpush1.bf16.msra.mxu0 %v1137
      %1158 = vmatprep.subr.bf16.mxu0 0
      %1159 = vmatpush1.bf16.msra.mxu0 %v1138
      %1160 = vmatprep.subr.bf16.mxu0 0
      %1161 = vmatpush1.bf16.msra.mxu0 %v1139
      %1162 = vmatprep.subr.bf16.mxu0 0
      %1163 = vmatpush1.bf16.msra.mxu0 %v1140
      %1164 = vmatprep.subr.bf16.mxu0 0
      %1165 = vmatpush1.bf16.msra.mxu0 %v1141
      %1166 = vmatprep.subr.bf16.mxu0 0
      %1167 = vmatpush1.bf16.msra.mxu0 0
      %1168 = vmatprep.subr.bf16.mxu0 0
      %1169 = vmatpush1.bf16.msra.mxu0 0
      %1170 = vmatprep.subr.bf16.mxu0 0
      %1171 = vmatpush1.bf16.msra.mxu0 0
      %1172 = vmatprep.subr.bf16.mxu0 0
      %1173 = vmatpush1.bf16.msra.mxu0 0
      %1174 = vmatprep.subr.bf16.mxu0 0
      %1175 = vmatpush1.bf16.msra.mxu0 0
      %1176 = vmatprep.subr.bf16.mxu0 0
      %1177 = vmatpush1.bf16.msra.mxu0 0
      %1178 = vmatprep.subr.bf16.mxu0 0
      %1179 = vmatpush1.bf16.msra.mxu0 0
      %1180 = vmatprep.subr.bf16.mxu0 0
      %1181 = vmatpush1.bf16.msra.mxu0 0
      %1182 = vmatprep.mubr.bf16.mxu0 0
      %1183 = vmatmul.mubr.bf16.gmra.mrb[0].mxu0 %v1069
      %v1184 = vpop.f32.mrb[0].mxu0
      %v1185 = vadd.f32 0.0, %v1184
      %v1186 = vpop.f32.mrb[0].mxu0
      %v1187 = vpop.f32.mrb[0].mxu0
      %v1188 = vadd.f32 0.0, %v1187
      %v1189 = vpop.f32.mrb[0].mxu0
      %1190 = vmatprep.mubr.bf16.mxu0 0
      %1191 = vmatmul.mubr.bf16.gmra.mrb[0].mxu0 %v1070
      %v1192 = vpop.f32.mrb[0].mxu0
      %v1193 = vadd.f32 0.0, %v1192
      %v1194 = vpop.f32.mrb[0].mxu0
      %v1195 = vpop.f32.mrb[0].mxu0
      %v1196 = vadd.f32 0.0, %v1195
      %v1197 = vpop.f32.mrb[0].mxu0
      %1198 = vmatprep.mubr.bf16.mxu0 0
      %1199 = vmatmul.mubr.bf16.gmra.mrb[0].mxu0 %v1071
      %v1200 = vpop.f32.mrb[0].mxu0
      %v1201 = vadd.f32 0.0, %v1200
      %v1202 = vpop.f32.mrb[0].mxu0
      %v1203 = vpop.f32.mrb[0].mxu0
      %v1204 = vadd.f32 0.0, %v1203
      %v1205 = vpop.f32.mrb[0].mxu0
      %1206 = vmatprep.mubr.bf16.mxu0 0
      %1207 = vmatmul.mubr.bf16.gmra.mrb[0].mxu0 %v1072
      %v1208 = vpop.f32.mrb[0].mxu0
      %v1209 = vadd.f32 0.0, %v1208
      %v1210 = vpop.f32.mrb[0].mxu0
      %v1211 = vpop.f32.mrb[0].mxu0
      %v1212 = vadd.f32 0.0, %v1211
      %v1213 = vpop.f32.mrb[0].mxu0
      %1214 = vmatprep.mubr.bf16.mxu0 0
      %1215 = vmatmul.mubr.bf16.gmra.mrb[0].mxu0 %v1073
      %v1216 = vpop.f32.mrb[0].mxu0
      %v1217 = vadd.f32 0.0, %v1216
      %v1218 = vpop.f32.mrb[0].mxu0
      %v1219 = vpop.f32.mrb[0].mxu0
      %v1220 = vadd.f32 0.0, %v1219
      %v1221 = vpop.f32.mrb[0].mxu0
      %1222 = vmatprep.mubr.bf16.mxu0 0
      %1223 = vmatmul.mubr.bf16.gmra.mrb[0].mxu0 %v1074
      %v1224 = vpop.f32.mrb[0].mxu0
      %v1225 = vadd.f32 0.0, %v1224
      %v1226 = vpop.f32.mrb[0].mxu0
      %v1227 = vpop.f32.mrb[0].mxu0
      %v1228 = vadd.f32 0.0, %v1227
      %v1229 = vpop.f32.mrb[0].mxu0
      %1230 = vmatprep.mubr.bf16.mxu0 0
      %1231 = vmatmul.mubr.bf16.gmra.mrb[0].mxu0 %v1075
      %v1232 = vpop.f32.mrb[0].mxu0
      %v1233 = vadd.f32 0.0, %v1232
      %v1234 = vpop.f32.mrb[0].mxu0
      %v1235 = vpop.f32.mrb[0].mxu0
      %v1236 = vadd.f32 0.0, %v1235
      %v1237 = vpop.f32.mrb[0].mxu0
      %1238 = vmatprep.mubr.bf16.mxu0 0
      %1239 = vmatmul.mubr.bf16.gmra.mrb[0].mxu0 %v1076
      %v1240 = vpop.f32.mrb[0].mxu0
      %v1241 = vadd.f32 0.0, %v1240
      %v1242 = vpop.f32.mrb[0].mxu0
      %v1243 = vpop.f32.mrb[0].mxu0
      %v1244 = vadd.f32 0.0, %v1243
      %v1245 = vpop.f32.mrb[0].mxu0
      %1246 = vmatprep.mubr.bf16.mxu0 0
      %1247 = vmatmul.mubr.bf16.gmra.mrb[0].mxu0 %v1077
      %v1248 = vpop.f32.mrb[0].mxu0
      %v1249 = vadd.f32 0.0, %v1248
      %v1250 = vpop.f32.mrb[0].mxu0
      %v1251 = vpop.f32.mrb[0].mxu0
      %v1252 = vadd.f32 0.0, %v1251
      %v1253 = vpop.f32.mrb[0].mxu0
      %1254 = vmatprep.mubr.bf16.mxu0 0
      %1255 = vmatmul.mubr.bf16.gmra.mrb[0].mxu0 %v1078
      %v1256 = vpop.f32.mrb[0].mxu0
      %v1257 = vadd.f32 0.0, %v1256
      %v1258 = vpop.f32.mrb[0].mxu0
      %v1259 = vpop.f32.mrb[0].mxu0
      %v1260 = vadd.f32 0.0, %v1259
      %v1261 = vpop.f32.mrb[0].mxu0
      %1262 = vmatprep.mubr.bf16.mxu0 0
      %1263 = vmatmul.mubr.bf16.gmra.mrb[0].mxu0 %v1079
      %v1264 = vpop.f32.mrb[0].mxu0
      %v1265 = vadd.f32 0.0, %v1264
      %v1266 = vpop.f32.mrb[0].mxu0
      %v1267 = vpop.f32.mrb[0].mxu0
      %v1268 = vadd.f32 0.0, %v1267
      %v1269 = vpop.f32.mrb[0].mxu0
      %1270 = vmatprep.mubr.bf16.mxu0 0
      %1271 = vmatmul.mubr.bf16.gmra.mrb[0].mxu0 %v1080
      %v1272 = vpop.f32.mrb[0].mxu0
      %v1273 = vadd.f32 0.0, %v1272
      %v1274 = vpop.f32.mrb[0].mxu0
      %v1275 = vpop.f32.mrb[0].mxu0
      %v1276 = vadd.f32 0.0, %v1275
      %v1277 = vpop.f32.mrb[0].mxu0
      %1278 = vmatprep.mubr.bf16.mxu0 0
      %1279 = vmatmul.mubr.bf16.gmra.mrb[0].mxu0 %v1081
      %v1280 = vpop.f32.mrb[0].mxu0
      %v1281 = vadd.f32 0.0, %v1280
      %v1282 = vpop.f32.mrb[0].mxu0
      %v1283 = vpop.f32.mrb[0].mxu0
      %v1284 = vadd.f32 0.0, %v1283
      %v1285 = vpop.f32.mrb[0].mxu0
      %1286 = vmatprep.mubr.bf16.mxu0 0
      %1287 = vmatmul.mubr.bf16.gmra.mrb[0].mxu0 %v1082
      %v1288 = vpop.f32.mrb[0].mxu0
      %v1289 = vadd.f32 0.0, %v1288
      %v1290 = vpop.f32.mrb[0].mxu0
      %v1291 = vpop.f32.mrb[0].mxu0
      %v1292 = vadd.f32 0.0, %v1291
      %v1293 = vpop.f32.mrb[0].mxu0
      %1294 = vmatprep.mubr.bf16.mxu0 0
      %1295 = vmatmul.mubr.bf16.gmra.mrb[0].mxu0 %v1083
      %v1296 = vpop.f32.mrb[0].mxu0
      %v1297 = vadd.f32 0.0, %v1296
      %v1298 = vpop.f32.mrb[0].mxu0
      %v1299 = vpop.f32.mrb[0].mxu0
      %v1300 = vadd.f32 0.0, %v1299
      %v1301 = vpop.f32.mrb[0].mxu0
      %1302 = vmatprep.mubr.bf16.mxu0 0
      %1303 = vmatmul.mubr.bf16.gmra.mrb[0].mxu0 %v1084
      %v1304 = vpop.f32.mrb[0].mxu0
      %v1305 = vadd.f32 0.0, %v1304
      %v1306 = vpop.f32.mrb[0].mxu0
      %v1307 = vpop.f32.mrb[0].mxu0
      %v1308 = vadd.f32 0.0, %v1307
      %v1309 = vpop.f32.mrb[0].mxu0
      %1310 = vdwg.mxu0
      %v1311 = vld [vmem:[#allocation3] sm:$0xff]
      %v1312 = vld [vmem:[#allocation3 + $0x8] sm:$0xff]
      %v1313 = vld [vmem:[#allocation3 + $0x10] sm:$0xff]
      %v1314 = vld [vmem:[#allocation3 + $0x18] sm:$0xff]
      %v1315 = vld [vmem:[#allocation3 + $0x20] sm:$0xff]
      %v1316 = vld [vmem:[#allocation3 + $0x28] sm:$0xff]
      %v1317 = vld [vmem:[#allocation3 + $0x30] sm:$0xff]
      %v1318 = vld [vmem:[#allocation3 + $0x38] sm:$0xff]
      %v1319 = vld [vmem:[#allocation3 + $0x40] sm:$0xff]
      %v1320 = vld [vmem:[#allocation3 + $0x48] sm:$0xff]
      %v1321 = vld [vmem:[#allocation3 + $0x50] sm:$0xff]
      %v1322 = vld [vmem:[#allocation3 + $0x58] sm:$0xff]
      %v1323 = vld [vmem:[#allocation3 + $0x60] sm:$0xff]
      %v1324 = vld [vmem:[#allocation3 + $0x68] sm:$0xff]
      %v1325 = vld [vmem:[#allocation3 + $0x70] sm:$0xff]
      %v1326 = vld [vmem:[#allocation3 + $0x78] sm:$0xff]
      %v1327 = vld [vmem:[#allocation3 + $0x80] sm:$0xff]
      %v1328 = vld [vmem:[#allocation3 + $0x88] sm:$0xff]
      %v1329 = vld [vmem:[#allocation3 + $0x90] sm:$0xff]
      %v1330 = vld [vmem:[#allocation3 + $0x98] sm:$0xff]
      %v1331 = vld [vmem:[#allocation3 + $0xa0] sm:$0xff]
      %v1332 = vld [vmem:[#allocation3 + $0xa8] sm:$0xff]
      %v1333 = vld [vmem:[#allocation3 + $0xb0] sm:$0xff]
      %v1334 = vld [vmem:[#allocation3 + $0xb8] sm:$0xff]
      %v1335 = vld [vmem:[#allocation3 + $0xc0] sm:$0xff]
      %v1336 = vld [vmem:[#allocation3 + $0xc8] sm:$0xff]
      %v1337 = vld [vmem:[#allocation3 + $0xd0] sm:$0xff]
      %v1338 = vld [vmem:[#allocation3 + $0xd8] sm:$0xff]
      %v1339 = vld [vmem:[#allocation3 + $0xe0] sm:$0xff]
      %v1340 = vld [vmem:[#allocation3 + $0xe8] sm:$0xff]
      %v1341 = vld [vmem:[#allocation3 + $0xf0] sm:$0xff]
      %v1342 = vld [vmem:[#allocation3 + $0xf8] sm:$0xff]
      %v1343 = vadd.f32 %v1311, %v1185
      %v1344 = vadd.f32 %v1312, %v1188
      %v1345 = vadd.f32 %v1313, %v1193
      %v1346 = vadd.f32 %v1314, %v1196
      %v1347 = vadd.f32 %v1315, %v1201
      %v1348 = vadd.f32 %v1316, %v1204
      %v1349 = vadd.f32 %v1317, %v1209
      %v1350 = vadd.f32 %v1318, %v1212
      %v1351 = vadd.f32 %v1319, %v1217
      %v1352 = vadd.f32 %v1320, %v1220
      %v1353 = vadd.f32 %v1321, %v1225
      %v1354 = vadd.f32 %v1322, %v1228
      %v1355 = vadd.f32 %v1323, %v1233
      %v1356 = vadd.f32 %v1324, %v1236
      %v1357 = vadd.f32 %v1325, %v1241
      %v1358 = vadd.f32 %v1326, %v1244
      %v1359 = vadd.f32 %v1327, %v1249
      %v1360 = vadd.f32 %v1328, %v1252
      %v1361 = vadd.f32 %v1329, %v1257
      %v1362 = vadd.f32 %v1330, %v1260
      %v1363 = vadd.f32 %v1331, %v1265
      %v1364 = vadd.f32 %v1332, %v1268
      %v1365 = vadd.f32 %v1333, %v1273
      %v1366 = vadd.f32 %v1334, %v1276
      %v1367 = vadd.f32 %v1335, %v1281
      %v1368 = vadd.f32 %v1336, %v1284
      %v1369 = vadd.f32 %v1337, %v1289
      %v1370 = vadd.f32 %v1338, %v1292
      %v1371 = vadd.f32 %v1339, %v1297
      %v1372 = vadd.f32 %v1340, %v1300
      %v1373 = vadd.f32 %v1341, %v1305
      %v1374 = vadd.f32 %v1342, %v1308
      %1375 = vst [vmem:[#allocation3] sm:$0xff] %v1343
      %1376 = vst [vmem:[#allocation3 + $0x8] sm:$0xff] %v1344
      %1377 = vst [vmem:[#allocation3 + $0x10] sm:$0xff] %v1345
      %1378 = vst [vmem:[#allocation3 + $0x18] sm:$0xff] %v1346
      %1379 = vst [vmem:[#allocation3 + $0x20] sm:$0xff] %v1347
      %1380 = vst [vmem:[#allocation3 + $0x28] sm:$0xff] %v1348
      %1381 = vst [vmem:[#allocation3 + $0x30] sm:$0xff] %v1349
      %1382 = vst [vmem:[#allocation3 + $0x38] sm:$0xff] %v1350
      %1383 = vst [vmem:[#allocation3 + $0x40] sm:$0xff] %v1351
      %1384 = vst [vmem:[#allocation3 + $0x48] sm:$0xff] %v1352
      %1385 = vst [vmem:[#allocation3 + $0x50] sm:$0xff] %v1353
      %1386 = vst [vmem:[#allocation3 + $0x58] sm:$0xff] %v1354
      %1387 = vst [vmem:[#allocation3 + $0x60] sm:$0xff] %v1355
      %1388 = vst [vmem:[#allocation3 + $0x68] sm:$0xff] %v1356
      %1389 = vst [vmem:[#allocation3 + $0x70] sm:$0xff] %v1357
      %1390 = vst [vmem:[#allocation3 + $0x78] sm:$0xff] %v1358
      %1391 = vst [vmem:[#allocation3 + $0x80] sm:$0xff] %v1359
      %1392 = vst [vmem:[#allocation3 + $0x88] sm:$0xff] %v1360
      %1393 = vst [vmem:[#allocation3 + $0x90] sm:$0xff] %v1361
      %1394 = vst [vmem:[#allocation3 + $0x98] sm:$0xff] %v1362
      %1395 = vst [vmem:[#allocation3 + $0xa0] sm:$0xff] %v1363
      %1396 = vst [vmem:[#allocation3 + $0xa8] sm:$0xff] %v1364
      %1397 = vst [vmem:[#allocation3 + $0xb0] sm:$0xff] %v1365
      %1398 = vst [vmem:[#allocation3 + $0xb8] sm:$0xff] %v1366
      %1399 = vst [vmem:[#allocation3 + $0xc0] sm:$0xff] %v1367
      %1400 = vst [vmem:[#allocation3 + $0xc8] sm:$0xff] %v1368
      %1401 = vst [vmem:[#allocation3 + $0xd0] sm:$0xff] %v1369
      %1402 = vst [vmem:[#allocation3 + $0xd8] sm:$0xff] %v1370
      %1403 = vst [vmem:[#allocation3 + $0xe0] sm:$0xff] %v1371
      %1404 = vst [vmem:[#allocation3 + $0xe8] sm:$0xff] %v1372
      %1405 = vst [vmem:[#allocation3 + $0xf0] sm:$0xff] %v1373
      %1406 = vst [vmem:[#allocation3 + $0xf8] sm:$0xff] %v1374
      %v1407 = vld [vmem:[%s329] sm:$0xff]
      %v1408 = vld [vmem:[%s329 + $0x8] sm:$0xff]
      %v1409 = vld [vmem:[%s329 + $0x18] sm:$0xff]
      %v1410 = vld [vmem:[%s329 + $0x20] sm:$0xff]
      %v1411 = vld [vmem:[%s329 + $0x30] sm:$0xff]
      %v1412 = vld [vmem:[%s329 + $0x38] sm:$0xff]
      %v1413 = vld [vmem:[%s329 + $0x48] sm:$0xff]
      %v1414 = vld [vmem:[%s329 + $0x50] sm:$0xff]
      %v1415 = vld [vmem:[%s329 + $0x60] sm:$0xff]
      %v1416 = vld [vmem:[%s329 + $0x68] sm:$0xff]
      %v1417 = vld [vmem:[%s329 + $0x78] sm:$0xff]
      %v1418 = vld [vmem:[%s329 + $0x80] sm:$0xff]
      %v1419 = vld [vmem:[%s329 + $0x90] sm:$0xff]
      %v1420 = vld [vmem:[%s329 + $0x98] sm:$0xff]
      %v1421 = vld [vmem:[%s329 + $0xa8] sm:$0xff]
      %v1422 = vld [vmem:[%s329 + $0xb0] sm:$0xff]
      %v1423 = vld [vmem:[%s329 + $0xc0] sm:$0xff]
      %v1424 = vld [vmem:[%s329 + $0xc8] sm:$0xff]
      %v1425 = vld [vmem:[%s329 + $0xd8] sm:$0xff]
      %v1426 = vld [vmem:[%s329 + $0xe0] sm:$0xff]
      %v1427 = vld [vmem:[%s329 + $0xf0] sm:$0xff]
      %v1428 = vld [vmem:[%s329 + $0xf8] sm:$0xff]
      %v1429 = vld [vmem:[%s329 + $0x108] sm:$0xff]
      %v1430 = vld [vmem:[%s329 + $0x110] sm:$0xff]
      %v1431 = vld [vmem:[%s329 + $0x120] sm:$0xff]
      %v1432 = vld [vmem:[%s329 + $0x128] sm:$0xff]
      %v1433 = vld [vmem:[%s329 + $0x138] sm:$0xff]
      %v1434 = vld [vmem:[%s329 + $0x140] sm:$0xff]
      %v1435 = vld [vmem:[%s329 + $0x150] sm:$0xff]
      %v1436 = vld [vmem:[%s329 + $0x158] sm:$0xff]
      %v1437 = vld [vmem:[%s329 + $0x168] sm:$0xff]
      %v1438 = vld [vmem:[%s329 + $0x170] sm:$0xff]
      %v1439 = vpack.c.bf16 %v1408, %v1407
      %v1440 = vpack.c.bf16 %v1410, %v1409
      %v1441 = vpack.c.bf16 %v1412, %v1411
      %v1442 = vpack.c.bf16 %v1414, %v1413
      %v1443 = vpack.c.bf16 %v1416, %v1415
      %v1444 = vpack.c.bf16 %v1418, %v1417
      %v1445 = vpack.c.bf16 %v1420, %v1419
      %v1446 = vpack.c.bf16 %v1422, %v1421
      %v1447 = vpack.c.bf16 %v1424, %v1423
      %v1448 = vpack.c.bf16 %v1426, %v1425
      %v1449 = vpack.c.bf16 %v1428, %v1427
      %v1450 = vpack.c.bf16 %v1430, %v1429
      %v1451 = vpack.c.bf16 %v1432, %v1431
      %v1452 = vpack.c.bf16 %v1434, %v1433
      %v1453 = vpack.c.bf16 %v1436, %v1435
      %v1454 = vpack.c.bf16 %v1438, %v1437
      %s1455 = scalar_lea.vmem %s1, 192
      %v1456 = vld [vmem:[%s1455] sm:$0xf]
      %v1457 = vld [vmem:[%s1455 + $0x4] sm:$0xf]
      %v1458 = vld [vmem:[%s1455 + $0x8] sm:$0xf]
      %v1459 = vld [vmem:[%s1455 + $0xc] sm:$0xf]
      %v1460 = vld [vmem:[%s1455 + $0x10] sm:$0xf]
      %v1461 = vld [vmem:[%s1455 + $0x14] sm:$0xf]
      %v1462 = vld [vmem:[%s1455 + $0x18] sm:$0xf]
      %v1463 = vld [vmem:[%s1455 + $0x1c] sm:$0xf]
      %v1464 = vld [vmem:[%s1455 + $0x20] sm:$0xf]
      %v1465 = vld [vmem:[%s1455 + $0x24] sm:$0xf]
      %v1466 = vld [vmem:[%s1455 + $0x28] sm:$0xf]
      %v1467 = vld [vmem:[%s1455 + $0x2c] sm:$0xf]
      %v1468 = vld [vmem:[%s1455 + $0x30] sm:$0xf]
      %v1469 = vld [vmem:[%s1455 + $0x34] sm:$0xf]
      %v1470 = vld [vmem:[%s1455 + $0x38] sm:$0xf]
      %v1471 = vld [vmem:[%s1455 + $0x3c] sm:$0xf]
      %v1488 = vunpack.c.l.b16 %v1456
      %v1489 = vunpack.c.l.b16 %v1457
      %v1490 = vunpack.c.l.b16 %v1458
      %v1491 = vunpack.c.l.b16 %v1459
      %v1492 = vunpack.c.l.b16 %v1460
      %v1493 = vunpack.c.l.b16 %v1461
      %v1494 = vunpack.c.l.b16 %v1462
      %v1495 = vunpack.c.l.b16 %v1463
      %v1496 = vunpack.c.l.b16 %v1464
      %v1497 = vunpack.c.l.b16 %v1465
      %v1498 = vunpack.c.l.b16 %v1466
      %v1499 = vunpack.c.l.b16 %v1467
      %v1500 = vunpack.c.l.b16 %v1468
      %v1501 = vunpack.c.l.b16 %v1469
      %v1502 = vunpack.c.l.b16 %v1470
      %v1503 = vunpack.c.l.b16 %v1471
      %v1504 = vpack.c.b16 %v1489, %v1488
      %v1505 = vpack.c.b16 %v1491, %v1490
      %v1506 = vpack.c.b16 %v1493, %v1492
      %v1507 = vpack.c.b16 %v1495, %v1494
      %v1508 = vpack.c.b16 %v1497, %v1496
      %v1509 = vpack.c.b16 %v1499, %v1498
      %v1510 = vpack.c.b16 %v1501, %v1500
      %v1511 = vpack.c.b16 %v1503, %v1502
      %1520 = vmatprep.subr.bf16.mxu0 0
      %1521 = vmatpush1.bf16.msra.mxu0 %v1504
      %1522 = vmatprep.subr.bf16.mxu0 0
      %1523 = vmatpush1.bf16.msra.mxu0 %v1505
      %1524 = vmatprep.subr.bf16.mxu0 0
      %1525 = vmatpush1.bf16.msra.mxu0 %v1506
      %1526 = vmatprep.subr.bf16.mxu0 0
      %1527 = vmatpush1.bf16.msra.mxu0 %v1507
      %1528 = vmatprep.subr.bf16.mxu0 0
      %1529 = vmatpush1.bf16.msra.mxu0 %v1508
      %1530 = vmatprep.subr.bf16.mxu0 0
      %1531 = vmatpush1.bf16.msra.mxu0 %v1509
      %1532 = vmatprep.subr.bf16.mxu0 0
      %1533 = vmatpush1.bf16.msra.mxu0 %v1510
      %1534 = vmatprep.subr.bf16.mxu0 0
      %1535 = vmatpush1.bf16.msra.mxu0 %v1511
      %1536 = vmatprep.subr.bf16.mxu0 0
      %1537 = vmatpush1.bf16.msra.mxu0 0
      %1538 = vmatprep.subr.bf16.mxu0 0
      %1539 = vmatpush1.bf16.msra.mxu0 0
      %1540 = vmatprep.subr.bf16.mxu0 0
      %1541 = vmatpush1.bf16.msra.mxu0 0
      %1542 = vmatprep.subr.bf16.mxu0 0
      %1543 = vmatpush1.bf16.msra.mxu0 0
      %1544 = vmatprep.subr.bf16.mxu0 0
      %1545 = vmatpush1.bf16.msra.mxu0 0
      %1546 = vmatprep.subr.bf16.mxu0 0
      %1547 = vmatpush1.bf16.msra.mxu0 0
      %1548 = vmatprep.subr.bf16.mxu0 0
      %1549 = vmatpush1.bf16.msra.mxu0 0
      %1550 = vmatprep.subr.bf16.mxu0 0
      %1551 = vmatpush1.bf16.msra.mxu0 0
      %1552 = vmatprep.mubr.bf16.mxu0 0
      %1553 = vmatmul.mubr.bf16.gmra.mrb[0].mxu0 %v1439
      %v1554 = vpop.f32.mrb[0].mxu0
      %v1555 = vadd.f32 0.0, %v1554
      %v1556 = vpop.f32.mrb[0].mxu0
      %v1557 = vpop.f32.mrb[0].mxu0
      %v1558 = vadd.f32 0.0, %v1557
      %v1559 = vpop.f32.mrb[0].mxu0
      %1560 = vmatprep.mubr.bf16.mxu0 0
      %1561 = vmatmul.mubr.bf16.gmra.mrb[0].mxu0 %v1440
      %v1562 = vpop.f32.mrb[0].mxu0
      %v1563 = vadd.f32 0.0, %v1562
      %v1564 = vpop.f32.mrb[0].mxu0
      %v1565 = vpop.f32.mrb[0].mxu0
      %v1566 = vadd.f32 0.0, %v1565
      %v1567 = vpop.f32.mrb[0].mxu0
      %1568 = vmatprep.mubr.bf16.mxu0 0
      %1569 = vmatmul.mubr.bf16.gmra.mrb[0].mxu0 %v1441
      %v1570 = vpop.f32.mrb[0].mxu0
      %v1571 = vadd.f32 0.0, %v1570
      %v1572 = vpop.f32.mrb[0].mxu0
      %v1573 = vpop.f32.mrb[0].mxu0
      %v1574 = vadd.f32 0.0, %v1573
      %v1575 = vpop.f32.mrb[0].mxu0
      %1576 = vmatprep.mubr.bf16.mxu0 0
      %1577 = vmatmul.mubr.bf16.gmra.mrb[0].mxu0 %v1442
      %v1578 = vpop.f32.mrb[0].mxu0
      %v1579 = vadd.f32 0.0, %v1578
      %v1580 = vpop.f32.mrb[0].mxu0
      %v1581 = vpop.f32.mrb[0].mxu0
      %v1582 = vadd.f32 0.0, %v1581
      %v1583 = vpop.f32.mrb[0].mxu0
      %1584 = vmatprep.mubr.bf16.mxu0 0
      %1585 = vmatmul.mubr.bf16.gmra.mrb[0].mxu0 %v1443
      %v1586 = vpop.f32.mrb[0].mxu0
      %v1587 = vadd.f32 0.0, %v1586
      %v1588 = vpop.f32.mrb[0].mxu0
      %v1589 = vpop.f32.mrb[0].mxu0
      %v1590 = vadd.f32 0.0, %v1589
      %v1591 = vpop.f32.mrb[0].mxu0
      %1592 = vmatprep.mubr.bf16.mxu0 0
      %1593 = vmatmul.mubr.bf16.gmra.mrb[0].mxu0 %v1444
      %v1594 = vpop.f32.mrb[0].mxu0
      %v1595 = vadd.f32 0.0, %v1594
      %v1596 = vpop.f32.mrb[0].mxu0
      %v1597 = vpop.f32.mrb[0].mxu0
      %v1598 = vadd.f32 0.0, %v1597
      %v1599 = vpop.f32.mrb[0].mxu0
      %1600 = vmatprep.mubr.bf16.mxu0 0
      %1601 = vmatmul.mubr.bf16.gmra.mrb[0].mxu0 %v1445
      %v1602 = vpop.f32.mrb[0].mxu0
      %v1603 = vadd.f32 0.0, %v1602
      %v1604 = vpop.f32.mrb[0].mxu0
      %v1605 = vpop.f32.mrb[0].mxu0
      %v1606 = vadd.f32 0.0, %v1605
      %v1607 = vpop.f32.mrb[0].mxu0
      %1608 = vmatprep.mubr.bf16.mxu0 0
      %1609 = vmatmul.mubr.bf16.gmra.mrb[0].mxu0 %v1446
      %v1610 = vpop.f32.mrb[0].mxu0
      %v1611 = vadd.f32 0.0, %v1610
      %v1612 = vpop.f32.mrb[0].mxu0
      %v1613 = vpop.f32.mrb[0].mxu0
      %v1614 = vadd.f32 0.0, %v1613
      %v1615 = vpop.f32.mrb[0].mxu0
      %1616 = vmatprep.mubr.bf16.mxu0 0
      %1617 = vmatmul.mubr.bf16.gmra.mrb[0].mxu0 %v1447
      %v1618 = vpop.f32.mrb[0].mxu0
      %v1619 = vadd.f32 0.0, %v1618
      %v1620 = vpop.f32.mrb[0].mxu0
      %v1621 = vpop.f32.mrb[0].mxu0
      %v1622 = vadd.f32 0.0, %v1621
      %v1623 = vpop.f32.mrb[0].mxu0
      %1624 = vmatprep.mubr.bf16.mxu0 0
      %1625 = vmatmul.mubr.bf16.gmra.mrb[0].mxu0 %v1448
      %v1626 = vpop.f32.mrb[0].mxu0
      %v1627 = vadd.f32 0.0, %v1626
      %v1628 = vpop.f32.mrb[0].mxu0
      %v1629 = vpop.f32.mrb[0].mxu0
      %v1630 = vadd.f32 0.0, %v1629
      %v1631 = vpop.f32.mrb[0].mxu0
      %1632 = vmatprep.mubr.bf16.mxu0 0
      %1633 = vmatmul.mubr.bf16.gmra.mrb[0].mxu0 %v1449
      %v1634 = vpop.f32.mrb[0].mxu0
      %v1635 = vadd.f32 0.0, %v1634
      %v1636 = vpop.f32.mrb[0].mxu0
      %v1637 = vpop.f32.mrb[0].mxu0
      %v1638 = vadd.f32 0.0, %v1637
      %v1639 = vpop.f32.mrb[0].mxu0
      %1640 = vmatprep.mubr.bf16.mxu0 0
      %1641 = vmatmul.mubr.bf16.gmra.mrb[0].mxu0 %v1450
      %v1642 = vpop.f32.mrb[0].mxu0
      %v1643 = vadd.f32 0.0, %v1642
      %v1644 = vpop.f32.mrb[0].mxu0
      %v1645 = vpop.f32.mrb[0].mxu0
      %v1646 = vadd.f32 0.0, %v1645
      %v1647 = vpop.f32.mrb[0].mxu0
      %1648 = vmatprep.mubr.bf16.mxu0 0
      %1649 = vmatmul.mubr.bf16.gmra.mrb[0].mxu0 %v1451
      %v1650 = vpop.f32.mrb[0].mxu0
      %v1651 = vadd.f32 0.0, %v1650
      %v1652 = vpop.f32.mrb[0].mxu0
      %v1653 = vpop.f32.mrb[0].mxu0
      %v1654 = vadd.f32 0.0, %v1653
      %v1655 = vpop.f32.mrb[0].mxu0
      %1656 = vmatprep.mubr.bf16.mxu0 0
      %1657 = vmatmul.mubr.bf16.gmra.mrb[0].mxu0 %v1452
      %v1658 = vpop.f32.mrb[0].mxu0
      %v1659 = vadd.f32 0.0, %v1658
      %v1660 = vpop.f32.mrb[0].mxu0
      %v1661 = vpop.f32.mrb[0].mxu0
      %v1662 = vadd.f32 0.0, %v1661
      %v1663 = vpop.f32.mrb[0].mxu0
      %1664 = vmatprep.mubr.bf16.mxu0 0
      %1665 = vmatmul.mubr.bf16.gmra.mrb[0].mxu0 %v1453
      %v1666 = vpop.f32.mrb[0].mxu0
      %v1667 = vadd.f32 0.0, %v1666
      %v1668 = vpop.f32.mrb[0].mxu0
      %v1669 = vpop.f32.mrb[0].mxu0
      %v1670 = vadd.f32 0.0, %v1669
      %v1671 = vpop.f32.mrb[0].mxu0
      %1672 = vmatprep.mubr.bf16.mxu0 0
      %1673 = vmatmul.mubr.bf16.gmra.mrb[0].mxu0 %v1454
      %v1674 = vpop.f32.mrb[0].mxu0
      %v1675 = vadd.f32 0.0, %v1674
      %v1676 = vpop.f32.mrb[0].mxu0
      %v1677 = vpop.f32.mrb[0].mxu0
      %v1678 = vadd.f32 0.0, %v1677
      %v1679 = vpop.f32.mrb[0].mxu0
      %1680 = vdwg.mxu0
      %v1681 = vld [vmem:[#allocation3] sm:$0xff]
      %v1682 = vld [vmem:[#allocation3 + $0x8] sm:$0xff]
      %v1683 = vld [vmem:[#allocation3 + $0x10] sm:$0xff]
      %v1684 = vld [vmem:[#allocation3 + $0x18] sm:$0xff]
      %v1685 = vld [vmem:[#allocation3 + $0x20] sm:$0xff]
      %v1686 = vld [vmem:[#allocation3 + $0x28] sm:$0xff]
      %v1687 = vld [vmem:[#allocation3 + $0x30] sm:$0xff]
      %v1688 = vld [vmem:[#allocation3 + $0x38] sm:$0xff]
      %v1689 = vld [vmem:[#allocation3 + $0x40] sm:$0xff]
      %v1690 = vld [vmem:[#allocation3 + $0x48] sm:$0xff]
      %v1691 = vld [vmem:[#allocation3 + $0x50] sm:$0xff]
      %v1692 = vld [vmem:[#allocation3 + $0x58] sm:$0xff]
      %v1693 = vld [vmem:[#allocation3 + $0x60] sm:$0xff]
      %v1694 = vld [vmem:[#allocation3 + $0x68] sm:$0xff]
      %v1695 = vld [vmem:[#allocation3 + $0x70] sm:$0xff]
      %v1696 = vld [vmem:[#allocation3 + $0x78] sm:$0xff]
      %v1697 = vld [vmem:[#allocation3 + $0x80] sm:$0xff]
      %v1698 = vld [vmem:[#allocation3 + $0x88] sm:$0xff]
      %v1699 = vld [vmem:[#allocation3 + $0x90] sm:$0xff]
      %v1700 = vld [vmem:[#allocation3 + $0x98] sm:$0xff]
      %v1701 = vld [vmem:[#allocation3 + $0xa0] sm:$0xff]
      %v1702 = vld [vmem:[#allocation3 + $0xa8] sm:$0xff]
      %v1703 = vld [vmem:[#allocation3 + $0xb0] sm:$0xff]
      %v1704 = vld [vmem:[#allocation3 + $0xb8] sm:$0xff]
      %v1705 = vld [vmem:[#allocation3 + $0xc0] sm:$0xff]
      %v1706 = vld [vmem:[#allocation3 + $0xc8] sm:$0xff]
      %v1707 = vld [vmem:[#allocation3 + $0xd0] sm:$0xff]
      %v1708 = vld [vmem:[#allocation3 + $0xd8] sm:$0xff]
      %v1709 = vld [vmem:[#allocation3 + $0xe0] sm:$0xff]
      %v1710 = vld [vmem:[#allocation3 + $0xe8] sm:$0xff]
      %v1711 = vld [vmem:[#allocation3 + $0xf0] sm:$0xff]
      %v1712 = vld [vmem:[#allocation3 + $0xf8] sm:$0xff]
      %v1713 = vadd.f32 %v1681, %v1555
      %v1714 = vadd.f32 %v1682, %v1558
      %v1715 = vadd.f32 %v1683, %v1563
      %v1716 = vadd.f32 %v1684, %v1566
      %v1717 = vadd.f32 %v1685, %v1571
      %v1718 = vadd.f32 %v1686, %v1574
      %v1719 = vadd.f32 %v1687, %v1579
      %v1720 = vadd.f32 %v1688, %v1582
      %v1721 = vadd.f32 %v1689, %v1587
      %v1722 = vadd.f32 %v1690, %v1590
      %v1723 = vadd.f32 %v1691, %v1595
      %v1724 = vadd.f32 %v1692, %v1598
      %v1725 = vadd.f32 %v1693, %v1603
      %v1726 = vadd.f32 %v1694, %v1606
      %v1727 = vadd.f32 %v1695, %v1611
      %v1728 = vadd.f32 %v1696, %v1614
      %v1729 = vadd.f32 %v1697, %v1619
      %v1730 = vadd.f32 %v1698, %v1622
      %v1731 = vadd.f32 %v1699, %v1627
      %v1732 = vadd.f32 %v1700, %v1630
      %v1733 = vadd.f32 %v1701, %v1635
      %v1734 = vadd.f32 %v1702, %v1638
      %v1735 = vadd.f32 %v1703, %v1643
      %v1736 = vadd.f32 %v1704, %v1646
      %v1737 = vadd.f32 %v1705, %v1651
      %v1738 = vadd.f32 %v1706, %v1654
      %v1739 = vadd.f32 %v1707, %v1659
      %v1740 = vadd.f32 %v1708, %v1662
      %v1741 = vadd.f32 %v1709, %v1667
      %v1742 = vadd.f32 %v1710, %v1670
      %v1743 = vadd.f32 %v1711, %v1675
      %v1744 = vadd.f32 %v1712, %v1678
      %1745 = vst [vmem:[#allocation3] sm:$0xff] %v1713
      %1746 = vst [vmem:[#allocation3 + $0x8] sm:$0xff] %v1714
      %1747 = vst [vmem:[#allocation3 + $0x10] sm:$0xff] %v1715
      %1748 = vst [vmem:[#allocation3 + $0x18] sm:$0xff] %v1716
      %1749 = vst [vmem:[#allocation3 + $0x20] sm:$0xff] %v1717
      %1750 = vst [vmem:[#allocation3 + $0x28] sm:$0xff] %v1718
      %1751 = vst [vmem:[#allocation3 + $0x30] sm:$0xff] %v1719
      %1752 = vst [vmem:[#allocation3 + $0x38] sm:$0xff] %v1720
      %1753 = vst [vmem:[#allocation3 + $0x40] sm:$0xff] %v1721
      %1754 = vst [vmem:[#allocation3 + $0x48] sm:$0xff] %v1722
      %1755 = vst [vmem:[#allocation3 + $0x50] sm:$0xff] %v1723
      %1756 = vst [vmem:[#allocation3 + $0x58] sm:$0xff] %v1724
      %1757 = vst [vmem:[#allocation3 + $0x60] sm:$0xff] %v1725
      %1758 = vst [vmem:[#allocation3 + $0x68] sm:$0xff] %v1726
      %1759 = vst [vmem:[#allocation3 + $0x70] sm:$0xff] %v1727
      %1760 = vst [vmem:[#allocation3 + $0x78] sm:$0xff] %v1728
      %1761 = vst [vmem:[#allocation3 + $0x80] sm:$0xff] %v1729
      %1762 = vst [vmem:[#allocation3 + $0x88] sm:$0xff] %v1730
      %1763 = vst [vmem:[#allocation3 + $0x90] sm:$0xff] %v1731
      %1764 = vst [vmem:[#allocation3 + $0x98] sm:$0xff] %v1732
      %1765 = vst [vmem:[#allocation3 + $0xa0] sm:$0xff] %v1733
      %1766 = vst [vmem:[#allocation3 + $0xa8] sm:$0xff] %v1734
      %1767 = vst [vmem:[#allocation3 + $0xb0] sm:$0xff] %v1735
      %1768 = vst [vmem:[#allocation3 + $0xb8] sm:$0xff] %v1736
      %1769 = vst [vmem:[#allocation3 + $0xc0] sm:$0xff] %v1737
      %1770 = vst [vmem:[#allocation3 + $0xc8] sm:$0xff] %v1738
      %1771 = vst [vmem:[#allocation3 + $0xd0] sm:$0xff] %v1739
      %1772 = vst [vmem:[#allocation3 + $0xd8] sm:$0xff] %v1740
      %1773 = vst [vmem:[#allocation3 + $0xe0] sm:$0xff] %v1741
      %1774 = vst [vmem:[#allocation3 + $0xe8] sm:$0xff] %v1742
      %1775 = vst [vmem:[#allocation3 + $0xf0] sm:$0xff] %v1743
      %1776 = vst [vmem:[#allocation3 + $0xf8] sm:$0xff] %v1744
      %v1777 = vld [vmem:[%s329 + $0x1] sm:$0xff]
      %v1778 = vld [vmem:[%s329 + $0x9] sm:$0xff]
      %v1779 = vld [vmem:[%s329 + $0x19] sm:$0xff]
      %v1780 = vld [vmem:[%s329 + $0x21] sm:$0xff]
      %v1781 = vld [vmem:[%s329 + $0x31] sm:$0xff]
      %v1782 = vld [vmem:[%s329 + $0x39] sm:$0xff]
      %v1783 = vld [vmem:[%s329 + $0x49] sm:$0xff]
      %v1784 = vld [vmem:[%s329 + $0x51] sm:$0xff]
      %v1785 = vld [vmem:[%s329 + $0x61] sm:$0xff]
      %v1786 = vld [vmem:[%s329 + $0x69] sm:$0xff]
      %v1787 = vld [vmem:[%s329 + $0x79] sm:$0xff]
      %v1788 = vld [vmem:[%s329 + $0x81] sm:$0xff]
      %v1789 = vld [vmem:[%s329 + $0x91] sm:$0xff]
      %v1790 = vld [vmem:[%s329 + $0x99] sm:$0xff]
      %v1791 = vld [vmem:[%s329 + $0xa9] sm:$0xff]
      %v1792 = vld [vmem:[%s329 + $0xb1] sm:$0xff]
      %v1793 = vld [vmem:[%s329 + $0xc1] sm:$0xff]
      %v1794 = vld [vmem:[%s329 + $0xc9] sm:$0xff]
      %v1795 = vld [vmem:[%s329 + $0xd9] sm:$0xff]
      %v1796 = vld [vmem:[%s329 + $0xe1] sm:$0xff]
      %v1797 = vld [vmem:[%s329 + $0xf1] sm:$0xff]
      %v1798 = vld [vmem:[%s329 + $0xf9] sm:$0xff]
      %v1799 = vld [vmem:[%s329 + $0x109] sm:$0xff]
      %v1800 = vld [vmem:[%s329 + $0x111] sm:$0xff]
      %v1801 = vld [vmem:[%s329 + $0x121] sm:$0xff]
      %v1802 = vld [vmem:[%s329 + $0x129] sm:$0xff]
      %v1803 = vld [vmem:[%s329 + $0x139] sm:$0xff]
      %v1804 = vld [vmem:[%s329 + $0x141] sm:$0xff]
      %v1805 = vld [vmem:[%s329 + $0x151] sm:$0xff]
      %v1806 = vld [vmem:[%s329 + $0x159] sm:$0xff]
      %v1807 = vld [vmem:[%s329 + $0x169] sm:$0xff]
      %v1808 = vld [vmem:[%s329 + $0x171] sm:$0xff]
      %v1809 = vpack.c.bf16 %v1778, %v1777
      %v1810 = vpack.c.bf16 %v1780, %v1779
      %v1811 = vpack.c.bf16 %v1782, %v1781
      %v1812 = vpack.c.bf16 %v1784, %v1783
      %v1813 = vpack.c.bf16 %v1786, %v1785
      %v1814 = vpack.c.bf16 %v1788, %v1787
      %v1815 = vpack.c.bf16 %v1790, %v1789
      %v1816 = vpack.c.bf16 %v1792, %v1791
      %v1817 = vpack.c.bf16 %v1794, %v1793
      %v1818 = vpack.c.bf16 %v1796, %v1795
      %v1819 = vpack.c.bf16 %v1798, %v1797
      %v1820 = vpack.c.bf16 %v1800, %v1799
      %v1821 = vpack.c.bf16 %v1802, %v1801
      %v1822 = vpack.c.bf16 %v1804, %v1803
      %v1823 = vpack.c.bf16 %v1806, %v1805
      %v1824 = vpack.c.bf16 %v1808, %v1807
      %s1825 = scalar_lea.vmem %s1, 256
      %v1826 = vld [vmem:[%s1825] sm:$0xf]
      %v1827 = vld [vmem:[%s1825 + $0x4] sm:$0xf]
      %v1828 = vld [vmem:[%s1825 + $0x8] sm:$0xf]
      %v1829 = vld [vmem:[%s1825 + $0xc] sm:$0xf]
      %v1830 = vld [vmem:[%s1825 + $0x10] sm:$0xf]
      %v1831 = vld [vmem:[%s1825 + $0x14] sm:$0xf]
      %v1832 = vld [vmem:[%s1825 + $0x18] sm:$0xf]
      %v1833 = vld [vmem:[%s1825 + $0x1c] sm:$0xf]
      %v1834 = vld [vmem:[%s1825 + $0x20] sm:$0xf]
      %v1835 = vld [vmem:[%s1825 + $0x24] sm:$0xf]
      %v1836 = vld [vmem:[%s1825 + $0x28] sm:$0xf]
      %v1837 = vld [vmem:[%s1825 + $0x2c] sm:$0xf]
      %v1838 = vld [vmem:[%s1825 + $0x30] sm:$0xf]
      %v1839 = vld [vmem:[%s1825 + $0x34] sm:$0xf]
      %v1840 = vld [vmem:[%s1825 + $0x38] sm:$0xf]
      %v1841 = vld [vmem:[%s1825 + $0x3c] sm:$0xf]
      %v1858 = vunpack.c.l.b16 %v1826
      %v1859 = vunpack.c.l.b16 %v1827
      %v1860 = vunpack.c.l.b16 %v1828
      %v1861 = vunpack.c.l.b16 %v1829
      %v1862 = vunpack.c.l.b16 %v1830
      %v1863 = vunpack.c.l.b16 %v1831
      %v1864 = vunpack.c.l.b16 %v1832
      %v1865 = vunpack.c.l.b16 %v1833
      %v1866 = vunpack.c.l.b16 %v1834
      %v1867 = vunpack.c.l.b16 %v1835
      %v1868 = vunpack.c.l.b16 %v1836
      %v1869 = vunpack.c.l.b16 %v1837
      %v1870 = vunpack.c.l.b16 %v1838
      %v1871 = vunpack.c.l.b16 %v1839
      %v1872 = vunpack.c.l.b16 %v1840
      %v1873 = vunpack.c.l.b16 %v1841
      %v1874 = vpack.c.b16 %v1859, %v1858
      %v1875 = vpack.c.b16 %v1861, %v1860
      %v1876 = vpack.c.b16 %v1863, %v1862
      %v1877 = vpack.c.b16 %v1865, %v1864
      %v1878 = vpack.c.b16 %v1867, %v1866
      %v1879 = vpack.c.b16 %v1869, %v1868
      %v1880 = vpack.c.b16 %v1871, %v1870
      %v1881 = vpack.c.b16 %v1873, %v1872
      %1890 = vmatprep.subr.bf16.mxu0 0
      %1891 = vmatpush1.bf16.msra.mxu0 %v1874
      %1892 = vmatprep.subr.bf16.mxu0 0
      %1893 = vmatpush1.bf16.msra.mxu0 %v1875
      %1894 = vmatprep.subr.bf16.mxu0 0
      %1895 = vmatpush1.bf16.msra.mxu0 %v1876
      %1896 = vmatprep.subr.bf16.mxu0 0
      %1897 = vmatpush1.bf16.msra.mxu0 %v1877
      %1898 = vmatprep.subr.bf16.mxu0 0
      %1899 = vmatpush1.bf16.msra.mxu0 %v1878
      %1900 = vmatprep.subr.bf16.mxu0 0
      %1901 = vmatpush1.bf16.msra.mxu0 %v1879
      %1902 = vmatprep.subr.bf16.mxu0 0
      %1903 = vmatpush1.bf16.msra.mxu0 %v1880
      %1904 = vmatprep.subr.bf16.mxu0 0
      %1905 = vmatpush1.bf16.msra.mxu0 %v1881
      %1906 = vmatprep.subr.bf16.mxu0 0
      %1907 = vmatpush1.bf16.msra.mxu0 0
      %1908 = vmatprep.subr.bf16.mxu0 0
      %1909 = vmatpush1.bf16.msra.mxu0 0
      %1910 = vmatprep.subr.bf16.mxu0 0
      %1911 = vmatpush1.bf16.msra.mxu0 0
      %1912 = vmatprep.subr.bf16.mxu0 0
      %1913 = vmatpush1.bf16.msra.mxu0 0
      %1914 = vmatprep.subr.bf16.mxu0 0
      %1915 = vmatpush1.bf16.msra.mxu0 0
      %1916 = vmatprep.subr.bf16.mxu0 0
      %1917 = vmatpush1.bf16.msra.mxu0 0
      %1918 = vmatprep.subr.bf16.mxu0 0
      %1919 = vmatpush1.bf16.msra.mxu0 0
      %1920 = vmatprep.subr.bf16.mxu0 0
      %1921 = vmatpush1.bf16.msra.mxu0 0
      %1922 = vmatprep.mubr.bf16.mxu0 0
      %1923 = vmatmul.mubr.bf16.gmra.mrb[0].mxu0 %v1809
      %v1924 = vpop.f32.mrb[0].mxu0
      %v1925 = vadd.f32 0.0, %v1924
      %v1926 = vpop.f32.mrb[0].mxu0
      %v1927 = vpop.f32.mrb[0].mxu0
      %v1928 = vadd.f32 0.0, %v1927
      %v1929 = vpop.f32.mrb[0].mxu0
      %1930 = vmatprep.mubr.bf16.mxu0 0
      %1931 = vmatmul.mubr.bf16.gmra.mrb[0].mxu0 %v1810
      %v1932 = vpop.f32.mrb[0].mxu0
      %v1933 = vadd.f32 0.0, %v1932
      %v1934 = vpop.f32.mrb[0].mxu0
      %v1935 = vpop.f32.mrb[0].mxu0
      %v1936 = vadd.f32 0.0, %v1935
      %v1937 = vpop.f32.mrb[0].mxu0
      %1938 = vmatprep.mubr.bf16.mxu0 0
      %1939 = vmatmul.mubr.bf16.gmra.mrb[0].mxu0 %v1811
      %v1940 = vpop.f32.mrb[0].mxu0
      %v1941 = vadd.f32 0.0, %v1940
      %v1942 = vpop.f32.mrb[0].mxu0
      %v1943 = vpop.f32.mrb[0].mxu0
      %v1944 = vadd.f32 0.0, %v1943
      %v1945 = vpop.f32.mrb[0].mxu0
      %1946 = vmatprep.mubr.bf16.mxu0 0
      %1947 = vmatmul.mubr.bf16.gmra.mrb[0].mxu0 %v1812
      %v1948 = vpop.f32.mrb[0].mxu0
      %v1949 = vadd.f32 0.0, %v1948
      %v1950 = vpop.f32.mrb[0].mxu0
      %v1951 = vpop.f32.mrb[0].mxu0
      %v1952 = vadd.f32 0.0, %v1951
      %v1953 = vpop.f32.mrb[0].mxu0
      %1954 = vmatprep.mubr.bf16.mxu0 0
      %1955 = vmatmul.mubr.bf16.gmra.mrb[0].mxu0 %v1813
      %v1956 = vpop.f32.mrb[0].mxu0
      %v1957 = vadd.f32 0.0, %v1956
      %v1958 = vpop.f32.mrb[0].mxu0
      %v1959 = vpop.f32.mrb[0].mxu0
      %v1960 = vadd.f32 0.0, %v1959
      %v1961 = vpop.f32.mrb[0].mxu0
      %1962 = vmatprep.mubr.bf16.mxu0 0
      %1963 = vmatmul.mubr.bf16.gmra.mrb[0].mxu0 %v1814
      %v1964 = vpop.f32.mrb[0].mxu0
      %v1965 = vadd.f32 0.0, %v1964
      %v1966 = vpop.f32.mrb[0].mxu0
      %v1967 = vpop.f32.mrb[0].mxu0
      %v1968 = vadd.f32 0.0, %v1967
      %v1969 = vpop.f32.mrb[0].mxu0
      %1970 = vmatprep.mubr.bf16.mxu0 0
      %1971 = vmatmul.mubr.bf16.gmra.mrb[0].mxu0 %v1815
      %v1972 = vpop.f32.mrb[0].mxu0
      %v1973 = vadd.f32 0.0, %v1972
      %v1974 = vpop.f32.mrb[0].mxu0
      %v1975 = vpop.f32.mrb[0].mxu0
      %v1976 = vadd.f32 0.0, %v1975
      %v1977 = vpop.f32.mrb[0].mxu0
      %1978 = vmatprep.mubr.bf16.mxu0 0
      %1979 = vmatmul.mubr.bf16.gmra.mrb[0].mxu0 %v1816
      %v1980 = vpop.f32.mrb[0].mxu0
      %v1981 = vadd.f32 0.0, %v1980
      %v1982 = vpop.f32.mrb[0].mxu0
      %v1983 = vpop.f32.mrb[0].mxu0
      %v1984 = vadd.f32 0.0, %v1983
      %v1985 = vpop.f32.mrb[0].mxu0
      %1986 = vmatprep.mubr.bf16.mxu0 0
      %1987 = vmatmul.mubr.bf16.gmra.mrb[0].mxu0 %v1817
      %v1988 = vpop.f32.mrb[0].mxu0
      %v1989 = vadd.f32 0.0, %v1988
      %v1990 = vpop.f32.mrb[0].mxu0
      %v1991 = vpop.f32.mrb[0].mxu0
      %v1992 = vadd.f32 0.0, %v1991
      %v1993 = vpop.f32.mrb[0].mxu0
      %1994 = vmatprep.mubr.bf16.mxu0 0
      %1995 = vmatmul.mubr.bf16.gmra.mrb[0].mxu0 %v1818
      %v1996 = vpop.f32.mrb[0].mxu0
      %v1997 = vadd.f32 0.0, %v1996
      %v1998 = vpop.f32.mrb[0].mxu0
      %v1999 = vpop.f32.mrb[0].mxu0
      %v2000 = vadd.f32 0.0, %v1999
      %v2001 = vpop.f32.mrb[0].mxu0
      %2002 = vmatprep.mubr.bf16.mxu0 0
      %2003 = vmatmul.mubr.bf16.gmra.mrb[0].mxu0 %v1819
      %v2004 = vpop.f32.mrb[0].mxu0
      %v2005 = vadd.f32 0.0, %v2004
      %v2006 = vpop.f32.mrb[0].mxu0
      %v2007 = vpop.f32.mrb[0].mxu0
      %v2008 = vadd.f32 0.0, %v2007
      %v2009 = vpop.f32.mrb[0].mxu0
      %2010 = vmatprep.mubr.bf16.mxu0 0
      %2011 = vmatmul.mubr.bf16.gmra.mrb[0].mxu0 %v1820
      %v2012 = vpop.f32.mrb[0].mxu0
      %v2013 = vadd.f32 0.0, %v2012
      %v2014 = vpop.f32.mrb[0].mxu0
      %v2015 = vpop.f32.mrb[0].mxu0
      %v2016 = vadd.f32 0.0, %v2015
      %v2017 = vpop.f32.mrb[0].mxu0
      %2018 = vmatprep.mubr.bf16.mxu0 0
      %2019 = vmatmul.mubr.bf16.gmra.mrb[0].mxu0 %v1821
      %v2020 = vpop.f32.mrb[0].mxu0
      %v2021 = vadd.f32 0.0, %v2020
      %v2022 = vpop.f32.mrb[0].mxu0
      %v2023 = vpop.f32.mrb[0].mxu0
      %v2024 = vadd.f32 0.0, %v2023
      %v2025 = vpop.f32.mrb[0].mxu0
      %2026 = vmatprep.mubr.bf16.mxu0 0
      %2027 = vmatmul.mubr.bf16.gmra.mrb[0].mxu0 %v1822
      %v2028 = vpop.f32.mrb[0].mxu0
      %v2029 = vadd.f32 0.0, %v2028
      %v2030 = vpop.f32.mrb[0].mxu0
      %v2031 = vpop.f32.mrb[0].mxu0
      %v2032 = vadd.f32 0.0, %v2031
      %v2033 = vpop.f32.mrb[0].mxu0
      %2034 = vmatprep.mubr.bf16.mxu0 0
      %2035 = vmatmul.mubr.bf16.gmra.mrb[0].mxu0 %v1823
      %v2036 = vpop.f32.mrb[0].mxu0
      %v2037 = vadd.f32 0.0, %v2036
      %v2038 = vpop.f32.mrb[0].mxu0
      %v2039 = vpop.f32.mrb[0].mxu0
      %v2040 = vadd.f32 0.0, %v2039
      %v2041 = vpop.f32.mrb[0].mxu0
      %2042 = vmatprep.mubr.bf16.mxu0 0
      %2043 = vmatmul.mubr.bf16.gmra.mrb[0].mxu0 %v1824
      %v2044 = vpop.f32.mrb[0].mxu0
      %v2045 = vadd.f32 0.0, %v2044
      %v2046 = vpop.f32.mrb[0].mxu0
      %v2047 = vpop.f32.mrb[0].mxu0
      %v2048 = vadd.f32 0.0, %v2047
      %v2049 = vpop.f32.mrb[0].mxu0
      %2050 = vdwg.mxu0
      %v2051 = vld [vmem:[#allocation3] sm:$0xff]
      %v2052 = vld [vmem:[#allocation3 + $0x8] sm:$0xff]
      %v2053 = vld [vmem:[#allocation3 + $0x10] sm:$0xff]
      %v2054 = vld [vmem:[#allocation3 + $0x18] sm:$0xff]
      %v2055 = vld [vmem:[#allocation3 + $0x20] sm:$0xff]
      %v2056 = vld [vmem:[#allocation3 + $0x28] sm:$0xff]
      %v2057 = vld [vmem:[#allocation3 + $0x30] sm:$0xff]
      %v2058 = vld [vmem:[#allocation3 + $0x38] sm:$0xff]
      %v2059 = vld [vmem:[#allocation3 + $0x40] sm:$0xff]
      %v2060 = vld [vmem:[#allocation3 + $0x48] sm:$0xff]
      %v2061 = vld [vmem:[#allocation3 + $0x50] sm:$0xff]
      %v2062 = vld [vmem:[#allocation3 + $0x58] sm:$0xff]
      %v2063 = vld [vmem:[#allocation3 + $0x60] sm:$0xff]
      %v2064 = vld [vmem:[#allocation3 + $0x68] sm:$0xff]
      %v2065 = vld [vmem:[#allocation3 + $0x70] sm:$0xff]
      %v2066 = vld [vmem:[#allocation3 + $0x78] sm:$0xff]
      %v2067 = vld [vmem:[#allocation3 + $0x80] sm:$0xff]
      %v2068 = vld [vmem:[#allocation3 + $0x88] sm:$0xff]
      %v2069 = vld [vmem:[#allocation3 + $0x90] sm:$0xff]
      %v2070 = vld [vmem:[#allocation3 + $0x98] sm:$0xff]
      %v2071 = vld [vmem:[#allocation3 + $0xa0] sm:$0xff]
      %v2072 = vld [vmem:[#allocation3 + $0xa8] sm:$0xff]
      %v2073 = vld [vmem:[#allocation3 + $0xb0] sm:$0xff]
      %v2074 = vld [vmem:[#allocation3 + $0xb8] sm:$0xff]
      %v2075 = vld [vmem:[#allocation3 + $0xc0] sm:$0xff]
      %v2076 = vld [vmem:[#allocation3 + $0xc8] sm:$0xff]
      %v2077 = vld [vmem:[#allocation3 + $0xd0] sm:$0xff]
      %v2078 = vld [vmem:[#allocation3 + $0xd8] sm:$0xff]
      %v2079 = vld [vmem:[#allocation3 + $0xe0] sm:$0xff]
      %v2080 = vld [vmem:[#allocation3 + $0xe8] sm:$0xff]
      %v2081 = vld [vmem:[#allocation3 + $0xf0] sm:$0xff]
      %v2082 = vld [vmem:[#allocation3 + $0xf8] sm:$0xff]
      %v2083 = vadd.f32 %v2051, %v1925
      %v2084 = vadd.f32 %v2052, %v1928
      %v2085 = vadd.f32 %v2053, %v1933
      %v2086 = vadd.f32 %v2054, %v1936
      %v2087 = vadd.f32 %v2055, %v1941
      %v2088 = vadd.f32 %v2056, %v1944
      %v2089 = vadd.f32 %v2057, %v1949
      %v2090 = vadd.f32 %v2058, %v1952
      %v2091 = vadd.f32 %v2059, %v1957
      %v2092 = vadd.f32 %v2060, %v1960
      %v2093 = vadd.f32 %v2061, %v1965
      %v2094 = vadd.f32 %v2062, %v1968
      %v2095 = vadd.f32 %v2063, %v1973
      %v2096 = vadd.f32 %v2064, %v1976
      %v2097 = vadd.f32 %v2065, %v1981
      %v2098 = vadd.f32 %v2066, %v1984
      %v2099 = vadd.f32 %v2067, %v1989
      %v2100 = vadd.f32 %v2068, %v1992
      %v2101 = vadd.f32 %v2069, %v1997
      %v2102 = vadd.f32 %v2070, %v2000
      %v2103 = vadd.f32 %v2071, %v2005
      %v2104 = vadd.f32 %v2072, %v2008
      %v2105 = vadd.f32 %v2073, %v2013
      %v2106 = vadd.f32 %v2074, %v2016
      %v2107 = vadd.f32 %v2075, %v2021
      %v2108 = vadd.f32 %v2076, %v2024
      %v2109 = vadd.f32 %v2077, %v2029
      %v2110 = vadd.f32 %v2078, %v2032
      %v2111 = vadd.f32 %v2079, %v2037
      %v2112 = vadd.f32 %v2080, %v2040
      %v2113 = vadd.f32 %v2081, %v2045
      %v2114 = vadd.f32 %v2082, %v2048
      %2115 = vst [vmem:[#allocation3] sm:$0xff] %v2083
      %2116 = vst [vmem:[#allocation3 + $0x8] sm:$0xff] %v2084
      %2117 = vst [vmem:[#allocation3 + $0x10] sm:$0xff] %v2085
      %2118 = vst [vmem:[#allocation3 + $0x18] sm:$0xff] %v2086
      %2119 = vst [vmem:[#allocation3 + $0x20] sm:$0xff] %v2087
      %2120 = vst [vmem:[#allocation3 + $0x28] sm:$0xff] %v2088
      %2121 = vst [vmem:[#allocation3 + $0x30] sm:$0xff] %v2089
      %2122 = vst [vmem:[#allocation3 + $0x38] sm:$0xff] %v2090
      %2123 = vst [vmem:[#allocation3 + $0x40] sm:$0xff] %v2091
      %2124 = vst [vmem:[#allocation3 + $0x48] sm:$0xff] %v2092
      %2125 = vst [vmem:[#allocation3 + $0x50] sm:$0xff] %v2093
      %2126 = vst [vmem:[#allocation3 + $0x58] sm:$0xff] %v2094
      %2127 = vst [vmem:[#allocation3 + $0x60] sm:$0xff] %v2095
      %2128 = vst [vmem:[#allocation3 + $0x68] sm:$0xff] %v2096
      %2129 = vst [vmem:[#allocation3 + $0x70] sm:$0xff] %v2097
      %2130 = vst [vmem:[#allocation3 + $0x78] sm:$0xff] %v2098
      %2131 = vst [vmem:[#allocation3 + $0x80] sm:$0xff] %v2099
      %2132 = vst [vmem:[#allocation3 + $0x88] sm:$0xff] %v2100
      %2133 = vst [vmem:[#allocation3 + $0x90] sm:$0xff] %v2101
      %2134 = vst [vmem:[#allocation3 + $0x98] sm:$0xff] %v2102
      %2135 = vst [vmem:[#allocation3 + $0xa0] sm:$0xff] %v2103
      %2136 = vst [vmem:[#allocation3 + $0xa8] sm:$0xff] %v2104
      %2137 = vst [vmem:[#allocation3 + $0xb0] sm:$0xff] %v2105
      %2138 = vst [vmem:[#allocation3 + $0xb8] sm:$0xff] %v2106
      %2139 = vst [vmem:[#allocation3 + $0xc0] sm:$0xff] %v2107
      %2140 = vst [vmem:[#allocation3 + $0xc8] sm:$0xff] %v2108
      %2141 = vst [vmem:[#allocation3 + $0xd0] sm:$0xff] %v2109
      %2142 = vst [vmem:[#allocation3 + $0xd8] sm:$0xff] %v2110
      %2143 = vst [vmem:[#allocation3 + $0xe0] sm:$0xff] %v2111
      %2144 = vst [vmem:[#allocation3 + $0xe8] sm:$0xff] %v2112
      %2145 = vst [vmem:[#allocation3 + $0xf0] sm:$0xff] %v2113
      %2146 = vst [vmem:[#allocation3 + $0xf8] sm:$0xff] %v2114
      %v2147 = vld [vmem:[%s329 + $0x2] sm:$0xff]
      %v2148 = vld [vmem:[%s329 + $0xa] sm:$0xff]
      %v2149 = vld [vmem:[%s329 + $0x1a] sm:$0xff]
      %v2150 = vld [vmem:[%s329 + $0x22] sm:$0xff]
      %v2151 = vld [vmem:[%s329 + $0x32] sm:$0xff]
      %v2152 = vld [vmem:[%s329 + $0x3a] sm:$0xff]
      %v2153 = vld [vmem:[%s329 + $0x4a] sm:$0xff]
      %v2154 = vld [vmem:[%s329 + $0x52] sm:$0xff]
      %v2155 = vld [vmem:[%s329 + $0x62] sm:$0xff]
      %v2156 = vld [vmem:[%s329 + $0x6a] sm:$0xff]
      %v2157 = vld [vmem:[%s329 + $0x7a] sm:$0xff]
      %v2158 = vld [vmem:[%s329 + $0x82] sm:$0xff]
      %v2159 = vld [vmem:[%s329 + $0x92] sm:$0xff]
      %v2160 = vld [vmem:[%s329 + $0x9a] sm:$0xff]
      %v2161 = vld [vmem:[%s329 + $0xaa] sm:$0xff]
      %v2162 = vld [vmem:[%s329 + $0xb2] sm:$0xff]
      %v2163 = vld [vmem:[%s329 + $0xc2] sm:$0xff]
      %v2164 = vld [vmem:[%s329 + $0xca] sm:$0xff]
      %v2165 = vld [vmem:[%s329 + $0xda] sm:$0xff]
      %v2166 = vld [vmem:[%s329 + $0xe2] sm:$0xff]
      %v2167 = vld [vmem:[%s329 + $0xf2] sm:$0xff]
      %v2168 = vld [vmem:[%s329 + $0xfa] sm:$0xff]
      %v2169 = vld [vmem:[%s329 + $0x10a] sm:$0xff]
      %v2170 = vld [vmem:[%s329 + $0x112] sm:$0xff]
      %v2171 = vld [vmem:[%s329 + $0x122] sm:$0xff]
      %v2172 = vld [vmem:[%s329 + $0x12a] sm:$0xff]
      %v2173 = vld [vmem:[%s329 + $0x13a] sm:$0xff]
      %v2174 = vld [vmem:[%s329 + $0x142] sm:$0xff]
      %v2175 = vld [vmem:[%s329 + $0x152] sm:$0xff]
      %v2176 = vld [vmem:[%s329 + $0x15a] sm:$0xff]
      %v2177 = vld [vmem:[%s329 + $0x16a] sm:$0xff]
      %v2178 = vld [vmem:[%s329 + $0x172] sm:$0xff]
      %v2179 = vpack.c.bf16 %v2148, %v2147
      %v2180 = vpack.c.bf16 %v2150, %v2149
      %v2181 = vpack.c.bf16 %v2152, %v2151
      %v2182 = vpack.c.bf16 %v2154, %v2153
      %v2183 = vpack.c.bf16 %v2156, %v2155
      %v2184 = vpack.c.bf16 %v2158, %v2157
      %v2185 = vpack.c.bf16 %v2160, %v2159
      %v2186 = vpack.c.bf16 %v2162, %v2161
      %v2187 = vpack.c.bf16 %v2164, %v2163
      %v2188 = vpack.c.bf16 %v2166, %v2165
      %v2189 = vpack.c.bf16 %v2168, %v2167
      %v2190 = vpack.c.bf16 %v2170, %v2169
      %v2191 = vpack.c.bf16 %v2172, %v2171
      %v2192 = vpack.c.bf16 %v2174, %v2173
      %v2193 = vpack.c.bf16 %v2176, %v2175
      %v2194 = vpack.c.bf16 %v2178, %v2177
      %s2195 = scalar_lea.vmem %s1, 320
      %v2196 = vld [vmem:[%s2195] sm:$0xf]
      %v2197 = vld [vmem:[%s2195 + $0x4] sm:$0xf]
      %v2198 = vld [vmem:[%s2195 + $0x8] sm:$0xf]
      %v2199 = vld [vmem:[%s2195 + $0xc] sm:$0xf]
      %v2200 = vld [vmem:[%s2195 + $0x10] sm:$0xf]
      %v2201 = vld [vmem:[%s2195 + $0x14] sm:$0xf]
      %v2202 = vld [vmem:[%s2195 + $0x18] sm:$0xf]
      %v2203 = vld [vmem:[%s2195 + $0x1c] sm:$0xf]
      %v2204 = vld [vmem:[%s2195 + $0x20] sm:$0xf]
      %v2205 = vld [vmem:[%s2195 + $0x24] sm:$0xf]
      %v2206 = vld [vmem:[%s2195 + $0x28] sm:$0xf]
      %v2207 = vld [vmem:[%s2195 + $0x2c] sm:$0xf]
      %v2208 = vld [vmem:[%s2195 + $0x30] sm:$0xf]
      %v2209 = vld [vmem:[%s2195 + $0x34] sm:$0xf]
      %v2210 = vld [vmem:[%s2195 + $0x38] sm:$0xf]
      %v2211 = vld [vmem:[%s2195 + $0x3c] sm:$0xf]
      %v2228 = vunpack.c.l.b16 %v2196
      %v2229 = vunpack.c.l.b16 %v2197
      %v2230 = vunpack.c.l.b16 %v2198
      %v2231 = vunpack.c.l.b16 %v2199
      %v2232 = vunpack.c.l.b16 %v2200
      %v2233 = vunpack.c.l.b16 %v2201
      %v2234 = vunpack.c.l.b16 %v2202
      %v2235 = vunpack.c.l.b16 %v2203
      %v2236 = vunpack.c.l.b16 %v2204
      %v2237 = vunpack.c.l.b16 %v2205
      %v2238 = vunpack.c.l.b16 %v2206
      %v2239 = vunpack.c.l.b16 %v2207
      %v2240 = vunpack.c.l.b16 %v2208
      %v2241 = vunpack.c.l.b16 %v2209
      %v2242 = vunpack.c.l.b16 %v2210
      %v2243 = vunpack.c.l.b16 %v2211
      %v2244 = vpack.c.b16 %v2229, %v2228
      %v2245 = vpack.c.b16 %v2231, %v2230
      %v2246 = vpack.c.b16 %v2233, %v2232
      %v2247 = vpack.c.b16 %v2235, %v2234
      %v2248 = vpack.c.b16 %v2237, %v2236
      %v2249 = vpack.c.b16 %v2239, %v2238
      %v2250 = vpack.c.b16 %v2241, %v2240
      %v2251 = vpack.c.b16 %v2243, %v2242
      %2260 = vmatprep.subr.bf16.mxu0 0
      %2261 = vmatpush1.bf16.msra.mxu0 %v2244
      %2262 = vmatprep.subr.bf16.mxu0 0
      %2263 = vmatpush1.bf16.msra.mxu0 %v2245
      %2264 = vmatprep.subr.bf16.mxu0 0
      %2265 = vmatpush1.bf16.msra.mxu0 %v2246
      %2266 = vmatprep.subr.bf16.mxu0 0
      %2267 = vmatpush1.bf16.msra.mxu0 %v2247
      %2268 = vmatprep.subr.bf16.mxu0 0
      %2269 = vmatpush1.bf16.msra.mxu0 %v2248
      %2270 = vmatprep.subr.bf16.mxu0 0
      %2271 = vmatpush1.bf16.msra.mxu0 %v2249
      %2272 = vmatprep.subr.bf16.mxu0 0
      %2273 = vmatpush1.bf16.msra.mxu0 %v2250
      %2274 = vmatprep.subr.bf16.mxu0 0
      %2275 = vmatpush1.bf16.msra.mxu0 %v2251
      %2276 = vmatprep.subr.bf16.mxu0 0
      %2277 = vmatpush1.bf16.msra.mxu0 0
      %2278 = vmatprep.subr.bf16.mxu0 0
      %2279 = vmatpush1.bf16.msra.mxu0 0
      %2280 = vmatprep.subr.bf16.mxu0 0
      %2281 = vmatpush1.bf16.msra.mxu0 0
      %2282 = vmatprep.subr.bf16.mxu0 0
      %2283 = vmatpush1.bf16.msra.mxu0 0
      %2284 = vmatprep.subr.bf16.mxu0 0
      %2285 = vmatpush1.bf16.msra.mxu0 0
      %2286 = vmatprep.subr.bf16.mxu0 0
      %2287 = vmatpush1.bf16.msra.mxu0 0
      %2288 = vmatprep.subr.bf16.mxu0 0
      %2289 = vmatpush1.bf16.msra.mxu0 0
      %2290 = vmatprep.subr.bf16.mxu0 0
      %2291 = vmatpush1.bf16.msra.mxu0 0
      %2292 = vmatprep.mubr.bf16.mxu0 0
      %2293 = vmatmul.mubr.bf16.gmra.mrb[0].mxu0 %v2179
      %v2294 = vpop.f32.mrb[0].mxu0
      %v2295 = vadd.f32 0.0, %v2294
      %v2296 = vpop.f32.mrb[0].mxu0
      %v2297 = vpop.f32.mrb[0].mxu0
      %v2298 = vadd.f32 0.0, %v2297
      %v2299 = vpop.f32.mrb[0].mxu0
      %2300 = vmatprep.mubr.bf16.mxu0 0
      %2301 = vmatmul.mubr.bf16.gmra.mrb[0].mxu0 %v2180
      %v2302 = vpop.f32.mrb[0].mxu0
      %v2303 = vadd.f32 0.0, %v2302
      %v2304 = vpop.f32.mrb[0].mxu0
      %v2305 = vpop.f32.mrb[0].mxu0
      %v2306 = vadd.f32 0.0, %v2305
      %v2307 = vpop.f32.mrb[0].mxu0
      %2308 = vmatprep.mubr.bf16.mxu0 0
      %2309 = vmatmul.mubr.bf16.gmra.mrb[0].mxu0 %v2181
      %v2310 = vpop.f32.mrb[0].mxu0
      %v2311 = vadd.f32 0.0, %v2310
      %v2312 = vpop.f32.mrb[0].mxu0
      %v2313 = vpop.f32.mrb[0].mxu0
      %v2314 = vadd.f32 0.0, %v2313
      %v2315 = vpop.f32.mrb[0].mxu0
      %2316 = vmatprep.mubr.bf16.mxu0 0
      %2317 = vmatmul.mubr.bf16.gmra.mrb[0].mxu0 %v2182
      %v2318 = vpop.f32.mrb[0].mxu0
      %v2319 = vadd.f32 0.0, %v2318
      %v2320 = vpop.f32.mrb[0].mxu0
      %v2321 = vpop.f32.mrb[0].mxu0
      %v2322 = vadd.f32 0.0, %v2321
      %v2323 = vpop.f32.mrb[0].mxu0
      %2324 = vmatprep.mubr.bf16.mxu0 0
      %2325 = vmatmul.mubr.bf16.gmra.mrb[0].mxu0 %v2183
      %v2326 = vpop.f32.mrb[0].mxu0
      %v2327 = vadd.f32 0.0, %v2326
      %v2328 = vpop.f32.mrb[0].mxu0
      %v2329 = vpop.f32.mrb[0].mxu0
      %v2330 = vadd.f32 0.0, %v2329
      %v2331 = vpop.f32.mrb[0].mxu0
      %2332 = vmatprep.mubr.bf16.mxu0 0
      %2333 = vmatmul.mubr.bf16.gmra.mrb[0].mxu0 %v2184
      %v2334 = vpop.f32.mrb[0].mxu0
      %v2335 = vadd.f32 0.0, %v2334
      %v2336 = vpop.f32.mrb[0].mxu0
      %v2337 = vpop.f32.mrb[0].mxu0
      %v2338 = vadd.f32 0.0, %v2337
      %v2339 = vpop.f32.mrb[0].mxu0
      %2340 = vmatprep.mubr.bf16.mxu0 0
      %2341 = vmatmul.mubr.bf16.gmra.mrb[0].mxu0 %v2185
      %v2342 = vpop.f32.mrb[0].mxu0
      %v2343 = vadd.f32 0.0, %v2342
      %v2344 = vpop.f32.mrb[0].mxu0
      %v2345 = vpop.f32.mrb[0].mxu0
      %v2346 = vadd.f32 0.0, %v2345
      %v2347 = vpop.f32.mrb[0].mxu0
      %2348 = vmatprep.mubr.bf16.mxu0 0
      %2349 = vmatmul.mubr.bf16.gmra.mrb[0].mxu0 %v2186
      %v2350 = vpop.f32.mrb[0].mxu0
      %v2351 = vadd.f32 0.0, %v2350
      %v2352 = vpop.f32.mrb[0].mxu0
      %v2353 = vpop.f32.mrb[0].mxu0
      %v2354 = vadd.f32 0.0, %v2353
      %v2355 = vpop.f32.mrb[0].mxu0
      %2356 = vmatprep.mubr.bf16.mxu0 0
      %2357 = vmatmul.mubr.bf16.gmra.mrb[0].mxu0 %v2187
      %v2358 = vpop.f32.mrb[0].mxu0
      %v2359 = vadd.f32 0.0, %v2358
      %v2360 = vpop.f32.mrb[0].mxu0
      %v2361 = vpop.f32.mrb[0].mxu0
      %v2362 = vadd.f32 0.0, %v2361
      %v2363 = vpop.f32.mrb[0].mxu0
      %2364 = vmatprep.mubr.bf16.mxu0 0
      %2365 = vmatmul.mubr.bf16.gmra.mrb[0].mxu0 %v2188
      %v2366 = vpop.f32.mrb[0].mxu0
      %v2367 = vadd.f32 0.0, %v2366
      %v2368 = vpop.f32.mrb[0].mxu0
      %v2369 = vpop.f32.mrb[0].mxu0
      %v2370 = vadd.f32 0.0, %v2369
      %v2371 = vpop.f32.mrb[0].mxu0
      %2372 = vmatprep.mubr.bf16.mxu0 0
      %2373 = vmatmul.mubr.bf16.gmra.mrb[0].mxu0 %v2189
      %v2374 = vpop.f32.mrb[0].mxu0
      %v2375 = vadd.f32 0.0, %v2374
      %v2376 = vpop.f32.mrb[0].mxu0
      %v2377 = vpop.f32.mrb[0].mxu0
      %v2378 = vadd.f32 0.0, %v2377
      %v2379 = vpop.f32.mrb[0].mxu0
      %2380 = vmatprep.mubr.bf16.mxu0 0
      %2381 = vmatmul.mubr.bf16.gmra.mrb[0].mxu0 %v2190
      %v2382 = vpop.f32.mrb[0].mxu0
      %v2383 = vadd.f32 0.0, %v2382
      %v2384 = vpop.f32.mrb[0].mxu0
      %v2385 = vpop.f32.mrb[0].mxu0
      %v2386 = vadd.f32 0.0, %v2385
      %v2387 = vpop.f32.mrb[0].mxu0
      %2388 = vmatprep.mubr.bf16.mxu0 0
      %2389 = vmatmul.mubr.bf16.gmra.mrb[0].mxu0 %v2191
      %v2390 = vpop.f32.mrb[0].mxu0
      %v2391 = vadd.f32 0.0, %v2390
      %v2392 = vpop.f32.mrb[0].mxu0
      %v2393 = vpop.f32.mrb[0].mxu0
      %v2394 = vadd.f32 0.0, %v2393
      %v2395 = vpop.f32.mrb[0].mxu0
      %2396 = vmatprep.mubr.bf16.mxu0 0
      %2397 = vmatmul.mubr.bf16.gmra.mrb[0].mxu0 %v2192
      %v2398 = vpop.f32.mrb[0].mxu0
      %v2399 = vadd.f32 0.0, %v2398
      %v2400 = vpop.f32.mrb[0].mxu0
      %v2401 = vpop.f32.mrb[0].mxu0
      %v2402 = vadd.f32 0.0, %v2401
      %v2403 = vpop.f32.mrb[0].mxu0
      %2404 = vmatprep.mubr.bf16.mxu0 0
      %2405 = vmatmul.mubr.bf16.gmra.mrb[0].mxu0 %v2193
      %v2406 = vpop.f32.mrb[0].mxu0
      %v2407 = vadd.f32 0.0, %v2406
      %v2408 = vpop.f32.mrb[0].mxu0
      %v2409 = vpop.f32.mrb[0].mxu0
      %v2410 = vadd.f32 0.0, %v2409
      %v2411 = vpop.f32.mrb[0].mxu0
      %2412 = vmatprep.mubr.bf16.mxu0 0
      %2413 = vmatmul.mubr.bf16.gmra.mrb[0].mxu0 %v2194
      %v2414 = vpop.f32.mrb[0].mxu0
      %v2415 = vadd.f32 0.0, %v2414
      %v2416 = vpop.f32.mrb[0].mxu0
      %v2417 = vpop.f32.mrb[0].mxu0
      %v2418 = vadd.f32 0.0, %v2417
      %v2419 = vpop.f32.mrb[0].mxu0
      %2420 = vdwg.mxu0
      %v2421 = vld [vmem:[#allocation3] sm:$0xff]
      %v2422 = vld [vmem:[#allocation3 + $0x8] sm:$0xff]
      %v2423 = vld [vmem:[#allocation3 + $0x10] sm:$0xff]
      %v2424 = vld [vmem:[#allocation3 + $0x18] sm:$0xff]
      %v2425 = vld [vmem:[#allocation3 + $0x20] sm:$0xff]
      %v2426 = vld [vmem:[#allocation3 + $0x28] sm:$0xff]
      %v2427 = vld [vmem:[#allocation3 + $0x30] sm:$0xff]
      %v2428 = vld [vmem:[#allocation3 + $0x38] sm:$0xff]
      %v2429 = vld [vmem:[#allocation3 + $0x40] sm:$0xff]
      %v2430 = vld [vmem:[#allocation3 + $0x48] sm:$0xff]
      %v2431 = vld [vmem:[#allocation3 + $0x50] sm:$0xff]
      %v2432 = vld [vmem:[#allocation3 + $0x58] sm:$0xff]
      %v2433 = vld [vmem:[#allocation3 + $0x60] sm:$0xff]
      %v2434 = vld [vmem:[#allocation3 + $0x68] sm:$0xff]
      %v2435 = vld [vmem:[#allocation3 + $0x70] sm:$0xff]
      %v2436 = vld [vmem:[#allocation3 + $0x78] sm:$0xff]
      %v2437 = vld [vmem:[#allocation3 + $0x80] sm:$0xff]
      %v2438 = vld [vmem:[#allocation3 + $0x88] sm:$0xff]
      %v2439 = vld [vmem:[#allocation3 + $0x90] sm:$0xff]
      %v2440 = vld [vmem:[#allocation3 + $0x98] sm:$0xff]
      %v2441 = vld [vmem:[#allocation3 + $0xa0] sm:$0xff]
      %v2442 = vld [vmem:[#allocation3 + $0xa8] sm:$0xff]
      %v2443 = vld [vmem:[#allocation3 + $0xb0] sm:$0xff]
      %v2444 = vld [vmem:[#allocation3 + $0xb8] sm:$0xff]
      %v2445 = vld [vmem:[#allocation3 + $0xc0] sm:$0xff]
      %v2446 = vld [vmem:[#allocation3 + $0xc8] sm:$0xff]
      %v2447 = vld [vmem:[#allocation3 + $0xd0] sm:$0xff]
      %v2448 = vld [vmem:[#allocation3 + $0xd8] sm:$0xff]
      %v2449 = vld [vmem:[#allocation3 + $0xe0] sm:$0xff]
      %v2450 = vld [vmem:[#allocation3 + $0xe8] sm:$0xff]
      %v2451 = vld [vmem:[#allocation3 + $0xf0] sm:$0xff]
      %v2452 = vld [vmem:[#allocation3 + $0xf8] sm:$0xff]
      %v2453 = vadd.f32 %v2421, %v2295
      %v2454 = vadd.f32 %v2422, %v2298
      %v2455 = vadd.f32 %v2423, %v2303
      %v2456 = vadd.f32 %v2424, %v2306
      %v2457 = vadd.f32 %v2425, %v2311
      %v2458 = vadd.f32 %v2426, %v2314
      %v2459 = vadd.f32 %v2427, %v2319
      %v2460 = vadd.f32 %v2428, %v2322
      %v2461 = vadd.f32 %v2429, %v2327
      %v2462 = vadd.f32 %v2430, %v2330
      %v2463 = vadd.f32 %v2431, %v2335
      %v2464 = vadd.f32 %v2432, %v2338
      %v2465 = vadd.f32 %v2433, %v2343
      %v2466 = vadd.f32 %v2434, %v2346
      %v2467 = vadd.f32 %v2435, %v2351
      %v2468 = vadd.f32 %v2436, %v2354
      %v2469 = vadd.f32 %v2437, %v2359
      %v2470 = vadd.f32 %v2438, %v2362
      %v2471 = vadd.f32 %v2439, %v2367
      %v2472 = vadd.f32 %v2440, %v2370
      %v2473 = vadd.f32 %v2441, %v2375
      %v2474 = vadd.f32 %v2442, %v2378
      %v2475 = vadd.f32 %v2443, %v2383
      %v2476 = vadd.f32 %v2444, %v2386
      %v2477 = vadd.f32 %v2445, %v2391
      %v2478 = vadd.f32 %v2446, %v2394
      %v2479 = vadd.f32 %v2447, %v2399
      %v2480 = vadd.f32 %v2448, %v2402
      %v2481 = vadd.f32 %v2449, %v2407
      %v2482 = vadd.f32 %v2450, %v2410
      %v2483 = vadd.f32 %v2451, %v2415
      %v2484 = vadd.f32 %v2452, %v2418
      %2485 = vst [vmem:[#allocation3] sm:$0xff] %v2453
      %2486 = vst [vmem:[#allocation3 + $0x8] sm:$0xff] %v2454
      %2487 = vst [vmem:[#allocation3 + $0x10] sm:$0xff] %v2455
      %2488 = vst [vmem:[#allocation3 + $0x18] sm:$0xff] %v2456
      %2489 = vst [vmem:[#allocation3 + $0x20] sm:$0xff] %v2457
      %2490 = vst [vmem:[#allocation3 + $0x28] sm:$0xff] %v2458
      %2491 = vst [vmem:[#allocation3 + $0x30] sm:$0xff] %v2459
      %2492 = vst [vmem:[#allocation3 + $0x38] sm:$0xff] %v2460
      %2493 = vst [vmem:[#allocation3 + $0x40] sm:$0xff] %v2461
      %2494 = vst [vmem:[#allocation3 + $0x48] sm:$0xff] %v2462
      %2495 = vst [vmem:[#allocation3 + $0x50] sm:$0xff] %v2463
      %2496 = vst [vmem:[#allocation3 + $0x58] sm:$0xff] %v2464
      %2497 = vst [vmem:[#allocation3 + $0x60] sm:$0xff] %v2465
      %2498 = vst [vmem:[#allocation3 + $0x68] sm:$0xff] %v2466
      %2499 = vst [vmem:[#allocation3 + $0x70] sm:$0xff] %v2467
      %2500 = vst [vmem:[#allocation3 + $0x78] sm:$0xff] %v2468
      %2501 = vst [vmem:[#allocation3 + $0x80] sm:$0xff] %v2469
      %2502 = vst [vmem:[#allocation3 + $0x88] sm:$0xff] %v2470
      %2503 = vst [vmem:[#allocation3 + $0x90] sm:$0xff] %v2471
      %2504 = vst [vmem:[#allocation3 + $0x98] sm:$0xff] %v2472
      %2505 = vst [vmem:[#allocation3 + $0xa0] sm:$0xff] %v2473
      %2506 = vst [vmem:[#allocation3 + $0xa8] sm:$0xff] %v2474
      %2507 = vst [vmem:[#allocation3 + $0xb0] sm:$0xff] %v2475
      %2508 = vst [vmem:[#allocation3 + $0xb8] sm:$0xff] %v2476
      %2509 = vst [vmem:[#allocation3 + $0xc0] sm:$0xff] %v2477
      %2510 = vst [vmem:[#allocation3 + $0xc8] sm:$0xff] %v2478
      %2511 = vst [vmem:[#allocation3 + $0xd0] sm:$0xff] %v2479
      %2512 = vst [vmem:[#allocation3 + $0xd8] sm:$0xff] %v2480
      %2513 = vst [vmem:[#allocation3 + $0xe0] sm:$0xff] %v2481
      %2514 = vst [vmem:[#allocation3 + $0xe8] sm:$0xff] %v2482
      %2515 = vst [vmem:[#allocation3 + $0xf0] sm:$0xff] %v2483
      %2516 = vst [vmem:[#allocation3 + $0xf8] sm:$0xff] %v2484
      %s2517 = scalar_lea.vmem [#allocation2], 48
      %v2518 = vld [vmem:[%s2517] sm:$0xff]
      %v2519 = vld [vmem:[%s2517 + $0x8] sm:$0xff]
      %v2520 = vld [vmem:[%s2517 + $0x18] sm:$0xff]
      %v2521 = vld [vmem:[%s2517 + $0x20] sm:$0xff]
      %v2522 = vld [vmem:[%s2517 + $0x30] sm:$0xff]
      %v2523 = vld [vmem:[%s2517 + $0x38] sm:$0xff]
      %v2524 = vld [vmem:[%s2517 + $0x48] sm:$0xff]
      %v2525 = vld [vmem:[%s2517 + $0x50] sm:$0xff]
      %v2526 = vld [vmem:[%s2517 + $0x60] sm:$0xff]
      %v2527 = vld [vmem:[%s2517 + $0x68] sm:$0xff]
      %v2528 = vld [vmem:[%s2517 + $0x78] sm:$0xff]
      %v2529 = vld [vmem:[%s2517 + $0x80] sm:$0xff]
      %v2530 = vld [vmem:[%s2517 + $0x90] sm:$0xff]
      %v2531 = vld [vmem:[%s2517 + $0x98] sm:$0xff]
      %v2532 = vld [vmem:[%s2517 + $0xa8] sm:$0xff]
      %v2533 = vld [vmem:[%s2517 + $0xb0] sm:$0xff]
      %v2534 = vld [vmem:[%s2517 + $0xc0] sm:$0xff]
      %v2535 = vld [vmem:[%s2517 + $0xc8] sm:$0xff]
      %v2536 = vld [vmem:[%s2517 + $0xd8] sm:$0xff]
      %v2537 = vld [vmem:[%s2517 + $0xe0] sm:$0xff]
      %v2538 = vld [vmem:[%s2517 + $0xf0] sm:$0xff]
      %v2539 = vld [vmem:[%s2517 + $0xf8] sm:$0xff]
      %v2540 = vld [vmem:[%s2517 + $0x108] sm:$0xff]
      %v2541 = vld [vmem:[%s2517 + $0x110] sm:$0xff]
      %v2542 = vld [vmem:[%s2517 + $0x120] sm:$0xff]
      %v2543 = vld [vmem:[%s2517 + $0x128] sm:$0xff]
      %v2544 = vld [vmem:[%s2517 + $0x138] sm:$0xff]
      %v2545 = vld [vmem:[%s2517 + $0x140] sm:$0xff]
      %v2546 = vld [vmem:[%s2517 + $0x150] sm:$0xff]
      %v2547 = vld [vmem:[%s2517 + $0x158] sm:$0xff]
      %v2548 = vld [vmem:[%s2517 + $0x168] sm:$0xff]
      %v2549 = vld [vmem:[%s2517 + $0x170] sm:$0xff]
      %v2550 = vpack.c.bf16 %v2519, %v2518
      %v2551 = vpack.c.bf16 %v2521, %v2520
      %v2552 = vpack.c.bf16 %v2523, %v2522
      %v2553 = vpack.c.bf16 %v2525, %v2524
      %v2554 = vpack.c.bf16 %v2527, %v2526
      %v2555 = vpack.c.bf16 %v2529, %v2528
      %v2556 = vpack.c.bf16 %v2531, %v2530
      %v2557 = vpack.c.bf16 %v2533, %v2532
      %v2558 = vpack.c.bf16 %v2535, %v2534
      %v2559 = vpack.c.bf16 %v2537, %v2536
      %v2560 = vpack.c.bf16 %v2539, %v2538
      %v2561 = vpack.c.bf16 %v2541, %v2540
      %v2562 = vpack.c.bf16 %v2543, %v2542
      %v2563 = vpack.c.bf16 %v2545, %v2544
      %v2564 = vpack.c.bf16 %v2547, %v2546
      %v2565 = vpack.c.bf16 %v2549, %v2548
      %s2566 = scalar_lea.vmem %s1, 384
      %v2567 = vld [vmem:[%s2566] sm:$0xf]
      %v2568 = vld [vmem:[%s2566 + $0x4] sm:$0xf]
      %v2569 = vld [vmem:[%s2566 + $0x8] sm:$0xf]
      %v2570 = vld [vmem:[%s2566 + $0xc] sm:$0xf]
      %v2571 = vld [vmem:[%s2566 + $0x10] sm:$0xf]
      %v2572 = vld [vmem:[%s2566 + $0x14] sm:$0xf]
      %v2573 = vld [vmem:[%s2566 + $0x18] sm:$0xf]
      %v2574 = vld [vmem:[%s2566 + $0x1c] sm:$0xf]
      %v2575 = vld [vmem:[%s2566 + $0x20] sm:$0xf]
      %v2576 = vld [vmem:[%s2566 + $0x24] sm:$0xf]
      %v2577 = vld [vmem:[%s2566 + $0x28] sm:$0xf]
      %v2578 = vld [vmem:[%s2566 + $0x2c] sm:$0xf]
      %v2579 = vld [vmem:[%s2566 + $0x30] sm:$0xf]
      %v2580 = vld [vmem:[%s2566 + $0x34] sm:$0xf]
      %v2581 = vld [vmem:[%s2566 + $0x38] sm:$0xf]
      %v2582 = vld [vmem:[%s2566 + $0x3c] sm:$0xf]
      %v2599 = vunpack.c.l.b16 %v2567
      %v2600 = vunpack.c.l.b16 %v2568
      %v2601 = vunpack.c.l.b16 %v2569
      %v2602 = vunpack.c.l.b16 %v2570
      %v2603 = vunpack.c.l.b16 %v2571
      %v2604 = vunpack.c.l.b16 %v2572
      %v2605 = vunpack.c.l.b16 %v2573
      %v2606 = vunpack.c.l.b16 %v2574
      %v2607 = vunpack.c.l.b16 %v2575
      %v2608 = vunpack.c.l.b16 %v2576
      %v2609 = vunpack.c.l.b16 %v2577
      %v2610 = vunpack.c.l.b16 %v2578
      %v2611 = vunpack.c.l.b16 %v2579
      %v2612 = vunpack.c.l.b16 %v2580
      %v2613 = vunpack.c.l.b16 %v2581
      %v2614 = vunpack.c.l.b16 %v2582
      %v2615 = vpack.c.b16 %v2600, %v2599
      %v2616 = vpack.c.b16 %v2602, %v2601
      %v2617 = vpack.c.b16 %v2604, %v2603
      %v2618 = vpack.c.b16 %v2606, %v2605
      %v2619 = vpack.c.b16 %v2608, %v2607
      %v2620 = vpack.c.b16 %v2610, %v2609
      %v2621 = vpack.c.b16 %v2612, %v2611
      %v2622 = vpack.c.b16 %v2614, %v2613
      %2631 = vmatprep.subr.bf16.mxu0 0
      %2632 = vmatpush1.bf16.msra.mxu0 %v2615
      %2633 = vmatprep.subr.bf16.mxu0 0
      %2634 = vmatpush1.bf16.msra.mxu0 %v2616
      %2635 = vmatprep.subr.bf16.mxu0 0
      %2636 = vmatpush1.bf16.msra.mxu0 %v2617
      %2637 = vmatprep.subr.bf16.mxu0 0
      %2638 = vmatpush1.bf16.msra.mxu0 %v2618
      %2639 = vmatprep.subr.bf16.mxu0 0
      %2640 = vmatpush1.bf16.msra.mxu0 %v2619
      %2641 = vmatprep.subr.bf16.mxu0 0
      %2642 = vmatpush1.bf16.msra.mxu0 %v2620
      %2643 = vmatprep.subr.bf16.mxu0 0
      %2644 = vmatpush1.bf16.msra.mxu0 %v2621
      %2645 = vmatprep.subr.bf16.mxu0 0
      %2646 = vmatpush1.bf16.msra.mxu0 %v2622
      %2647 = vmatprep.subr.bf16.mxu0 0
      %2648 = vmatpush1.bf16.msra.mxu0 0
      %2649 = vmatprep.subr.bf16.mxu0 0
      %2650 = vmatpush1.bf16.msra.mxu0 0
      %2651 = vmatprep.subr.bf16.mxu0 0
      %2652 = vmatpush1.bf16.msra.mxu0 0
      %2653 = vmatprep.subr.bf16.mxu0 0
      %2654 = vmatpush1.bf16.msra.mxu0 0
      %2655 = vmatprep.subr.bf16.mxu0 0
      %2656 = vmatpush1.bf16.msra.mxu0 0
      %2657 = vmatprep.subr.bf16.mxu0 0
      %2658 = vmatpush1.bf16.msra.mxu0 0
      %2659 = vmatprep.subr.bf16.mxu0 0
      %2660 = vmatpush1.bf16.msra.mxu0 0
      %2661 = vmatprep.subr.bf16.mxu0 0
      %2662 = vmatpush1.bf16.msra.mxu0 0
      %2663 = vmatprep.mubr.bf16.mxu0 0
      %2664 = vmatmul.mubr.bf16.gmra.mrb[0].mxu0 %v2550
      %v2665 = vpop.f32.mrb[0].mxu0
      %v2666 = vadd.f32 0.0, %v2665
      %v2667 = vpop.f32.mrb[0].mxu0
      %v2668 = vpop.f32.mrb[0].mxu0
      %v2669 = vadd.f32 0.0, %v2668
      %v2670 = vpop.f32.mrb[0].mxu0
      %2671 = vmatprep.mubr.bf16.mxu0 0
      %2672 = vmatmul.mubr.bf16.gmra.mrb[0].mxu0 %v2551
      %v2673 = vpop.f32.mrb[0].mxu0
      %v2674 = vadd.f32 0.0, %v2673
      %v2675 = vpop.f32.mrb[0].mxu0
      %v2676 = vpop.f32.mrb[0].mxu0
      %v2677 = vadd.f32 0.0, %v2676
      %v2678 = vpop.f32.mrb[0].mxu0
      %2679 = vmatprep.mubr.bf16.mxu0 0
      %2680 = vmatmul.mubr.bf16.gmra.mrb[0].mxu0 %v2552
      %v2681 = vpop.f32.mrb[0].mxu0
      %v2682 = vadd.f32 0.0, %v2681
      %v2683 = vpop.f32.mrb[0].mxu0
      %v2684 = vpop.f32.mrb[0].mxu0
      %v2685 = vadd.f32 0.0, %v2684
      %v2686 = vpop.f32.mrb[0].mxu0
      %2687 = vmatprep.mubr.bf16.mxu0 0
      %2688 = vmatmul.mubr.bf16.gmra.mrb[0].mxu0 %v2553
      %v2689 = vpop.f32.mrb[0].mxu0
      %v2690 = vadd.f32 0.0, %v2689
      %v2691 = vpop.f32.mrb[0].mxu0
      %v2692 = vpop.f32.mrb[0].mxu0
      %v2693 = vadd.f32 0.0, %v2692
      %v2694 = vpop.f32.mrb[0].mxu0
      %2695 = vmatprep.mubr.bf16.mxu0 0
      %2696 = vmatmul.mubr.bf16.gmra.mrb[0].mxu0 %v2554
      %v2697 = vpop.f32.mrb[0].mxu0
      %v2698 = vadd.f32 0.0, %v2697
      %v2699 = vpop.f32.mrb[0].mxu0
      %v2700 = vpop.f32.mrb[0].mxu0
      %v2701 = vadd.f32 0.0, %v2700
      %v2702 = vpop.f32.mrb[0].mxu0
      %2703 = vmatprep.mubr.bf16.mxu0 0
      %2704 = vmatmul.mubr.bf16.gmra.mrb[0].mxu0 %v2555
      %v2705 = vpop.f32.mrb[0].mxu0
      %v2706 = vadd.f32 0.0, %v2705
      %v2707 = vpop.f32.mrb[0].mxu0
      %v2708 = vpop.f32.mrb[0].mxu0
      %v2709 = vadd.f32 0.0, %v2708
      %v2710 = vpop.f32.mrb[0].mxu0
      %2711 = vmatprep.mubr.bf16.mxu0 0
      %2712 = vmatmul.mubr.bf16.gmra.mrb[0].mxu0 %v2556
      %v2713 = vpop.f32.mrb[0].mxu0
      %v2714 = vadd.f32 0.0, %v2713
      %v2715 = vpop.f32.mrb[0].mxu0
      %v2716 = vpop.f32.mrb[0].mxu0
      %v2717 = vadd.f32 0.0, %v2716
      %v2718 = vpop.f32.mrb[0].mxu0
      %2719 = vmatprep.mubr.bf16.mxu0 0
      %2720 = vmatmul.mubr.bf16.gmra.mrb[0].mxu0 %v2557
      %v2721 = vpop.f32.mrb[0].mxu0
      %v2722 = vadd.f32 0.0, %v2721
      %v2723 = vpop.f32.mrb[0].mxu0
      %v2724 = vpop.f32.mrb[0].mxu0
      %v2725 = vadd.f32 0.0, %v2724
      %v2726 = vpop.f32.mrb[0].mxu0
      %2727 = vmatprep.mubr.bf16.mxu0 0
      %2728 = vmatmul.mubr.bf16.gmra.mrb[0].mxu0 %v2558
      %v2729 = vpop.f32.mrb[0].mxu0
      %v2730 = vadd.f32 0.0, %v2729
      %v2731 = vpop.f32.mrb[0].mxu0
      %v2732 = vpop.f32.mrb[0].mxu0
      %v2733 = vadd.f32 0.0, %v2732
      %v2734 = vpop.f32.mrb[0].mxu0
      %2735 = vmatprep.mubr.bf16.mxu0 0
      %2736 = vmatmul.mubr.bf16.gmra.mrb[0].mxu0 %v2559
      %v2737 = vpop.f32.mrb[0].mxu0
      %v2738 = vadd.f32 0.0, %v2737
      %v2739 = vpop.f32.mrb[0].mxu0
      %v2740 = vpop.f32.mrb[0].mxu0
      %v2741 = vadd.f32 0.0, %v2740
      %v2742 = vpop.f32.mrb[0].mxu0
      %2743 = vmatprep.mubr.bf16.mxu0 0
      %2744 = vmatmul.mubr.bf16.gmra.mrb[0].mxu0 %v2560
      %v2745 = vpop.f32.mrb[0].mxu0
      %v2746 = vadd.f32 0.0, %v2745
      %v2747 = vpop.f32.mrb[0].mxu0
      %v2748 = vpop.f32.mrb[0].mxu0
      %v2749 = vadd.f32 0.0, %v2748
      %v2750 = vpop.f32.mrb[0].mxu0
      %2751 = vmatprep.mubr.bf16.mxu0 0
      %2752 = vmatmul.mubr.bf16.gmra.mrb[0].mxu0 %v2561
      %v2753 = vpop.f32.mrb[0].mxu0
      %v2754 = vadd.f32 0.0, %v2753
      %v2755 = vpop.f32.mrb[0].mxu0
      %v2756 = vpop.f32.mrb[0].mxu0
      %v2757 = vadd.f32 0.0, %v2756
      %v2758 = vpop.f32.mrb[0].mxu0
      %2759 = vmatprep.mubr.bf16.mxu0 0
      %2760 = vmatmul.mubr.bf16.gmra.mrb[0].mxu0 %v2562
      %v2761 = vpop.f32.mrb[0].mxu0
      %v2762 = vadd.f32 0.0, %v2761
      %v2763 = vpop.f32.mrb[0].mxu0
      %v2764 = vpop.f32.mrb[0].mxu0
      %v2765 = vadd.f32 0.0, %v2764
      %v2766 = vpop.f32.mrb[0].mxu0
      %2767 = vmatprep.mubr.bf16.mxu0 0
      %2768 = vmatmul.mubr.bf16.gmra.mrb[0].mxu0 %v2563
      %v2769 = vpop.f32.mrb[0].mxu0
      %v2770 = vadd.f32 0.0, %v2769
      %v2771 = vpop.f32.mrb[0].mxu0
      %v2772 = vpop.f32.mrb[0].mxu0
      %v2773 = vadd.f32 0.0, %v2772
      %v2774 = vpop.f32.mrb[0].mxu0
      %2775 = vmatprep.mubr.bf16.mxu0 0
      %2776 = vmatmul.mubr.bf16.gmra.mrb[0].mxu0 %v2564
      %v2777 = vpop.f32.mrb[0].mxu0
      %v2778 = vadd.f32 0.0, %v2777
      %v2779 = vpop.f32.mrb[0].mxu0
      %v2780 = vpop.f32.mrb[0].mxu0
      %v2781 = vadd.f32 0.0, %v2780
      %v2782 = vpop.f32.mrb[0].mxu0
      %2783 = vmatprep.mubr.bf16.mxu0 0
      %2784 = vmatmul.mubr.bf16.gmra.mrb[0].mxu0 %v2565
      %v2785 = vpop.f32.mrb[0].mxu0
      %v2786 = vadd.f32 0.0, %v2785
      %v2787 = vpop.f32.mrb[0].mxu0
      %v2788 = vpop.f32.mrb[0].mxu0
      %v2789 = vadd.f32 0.0, %v2788
      %v2790 = vpop.f32.mrb[0].mxu0
      %2791 = vdwg.mxu0
      %v2792 = vld [vmem:[#allocation3] sm:$0xff]
      %v2793 = vld [vmem:[#allocation3 + $0x8] sm:$0xff]
      %v2794 = vld [vmem:[#allocation3 + $0x10] sm:$0xff]
      %v2795 = vld [vmem:[#allocation3 + $0x18] sm:$0xff]
      %v2796 = vld [vmem:[#allocation3 + $0x20] sm:$0xff]
      %v2797 = vld [vmem:[#allocation3 + $0x28] sm:$0xff]
      %v2798 = vld [vmem:[#allocation3 + $0x30] sm:$0xff]
      %v2799 = vld [vmem:[#allocation3 + $0x38] sm:$0xff]
      %v2800 = vld [vmem:[#allocation3 + $0x40] sm:$0xff]
      %v2801 = vld [vmem:[#allocation3 + $0x48] sm:$0xff]
      %v2802 = vld [vmem:[#allocation3 + $0x50] sm:$0xff]
      %v2803 = vld [vmem:[#allocation3 + $0x58] sm:$0xff]
      %v2804 = vld [vmem:[#allocation3 + $0x60] sm:$0xff]
      %v2805 = vld [vmem:[#allocation3 + $0x68] sm:$0xff]
      %v2806 = vld [vmem:[#allocation3 + $0x70] sm:$0xff]
      %v2807 = vld [vmem:[#allocation3 + $0x78] sm:$0xff]
      %v2808 = vld [vmem:[#allocation3 + $0x80] sm:$0xff]
      %v2809 = vld [vmem:[#allocation3 + $0x88] sm:$0xff]
      %v2810 = vld [vmem:[#allocation3 + $0x90] sm:$0xff]
      %v2811 = vld [vmem:[#allocation3 + $0x98] sm:$0xff]
      %v2812 = vld [vmem:[#allocation3 + $0xa0] sm:$0xff]
      %v2813 = vld [vmem:[#allocation3 + $0xa8] sm:$0xff]
      %v2814 = vld [vmem:[#allocation3 + $0xb0] sm:$0xff]
      %v2815 = vld [vmem:[#allocation3 + $0xb8] sm:$0xff]
      %v2816 = vld [vmem:[#allocation3 + $0xc0] sm:$0xff]
      %v2817 = vld [vmem:[#allocation3 + $0xc8] sm:$0xff]
      %v2818 = vld [vmem:[#allocation3 + $0xd0] sm:$0xff]
      %v2819 = vld [vmem:[#allocation3 + $0xd8] sm:$0xff]
      %v2820 = vld [vmem:[#allocation3 + $0xe0] sm:$0xff]
      %v2821 = vld [vmem:[#allocation3 + $0xe8] sm:$0xff]
      %v2822 = vld [vmem:[#allocation3 + $0xf0] sm:$0xff]
      %v2823 = vld [vmem:[#allocation3 + $0xf8] sm:$0xff]
      %v2824 = vadd.f32 %v2792, %v2666
      %v2825 = vadd.f32 %v2793, %v2669
      %v2826 = vadd.f32 %v2794, %v2674
      %v2827 = vadd.f32 %v2795, %v2677
      %v2828 = vadd.f32 %v2796, %v2682
      %v2829 = vadd.f32 %v2797, %v2685
      %v2830 = vadd.f32 %v2798, %v2690
      %v2831 = vadd.f32 %v2799, %v2693
      %v2832 = vadd.f32 %v2800, %v2698
      %v2833 = vadd.f32 %v2801, %v2701
      %v2834 = vadd.f32 %v2802, %v2706
      %v2835 = vadd.f32 %v2803, %v2709
      %v2836 = vadd.f32 %v2804, %v2714
      %v2837 = vadd.f32 %v2805, %v2717
      %v2838 = vadd.f32 %v2806, %v2722
      %v2839 = vadd.f32 %v2807, %v2725
      %v2840 = vadd.f32 %v2808, %v2730
      %v2841 = vadd.f32 %v2809, %v2733
      %v2842 = vadd.f32 %v2810, %v2738
      %v2843 = vadd.f32 %v2811, %v2741
      %v2844 = vadd.f32 %v2812, %v2746
      %v2845 = vadd.f32 %v2813, %v2749
      %v2846 = vadd.f32 %v2814, %v2754
      %v2847 = vadd.f32 %v2815, %v2757
      %v2848 = vadd.f32 %v2816, %v2762
      %v2849 = vadd.f32 %v2817, %v2765
      %v2850 = vadd.f32 %v2818, %v2770
      %v2851 = vadd.f32 %v2819, %v2773
      %v2852 = vadd.f32 %v2820, %v2778
      %v2853 = vadd.f32 %v2821, %v2781
      %v2854 = vadd.f32 %v2822, %v2786
      %v2855 = vadd.f32 %v2823, %v2789
      %2856 = vst [vmem:[#allocation3] sm:$0xff] %v2824
      %2857 = vst [vmem:[#allocation3 + $0x8] sm:$0xff] %v2825
      %2858 = vst [vmem:[#allocation3 + $0x10] sm:$0xff] %v2826
      %2859 = vst [vmem:[#allocation3 + $0x18] sm:$0xff] %v2827
      %2860 = vst [vmem:[#allocation3 + $0x20] sm:$0xff] %v2828
      %2861 = vst [vmem:[#allocation3 + $0x28] sm:$0xff] %v2829
      %2862 = vst [vmem:[#allocation3 + $0x30] sm:$0xff] %v2830
      %2863 = vst [vmem:[#allocation3 + $0x38] sm:$0xff] %v2831
      %2864 = vst [vmem:[#allocation3 + $0x40] sm:$0xff] %v2832
      %2865 = vst [vmem:[#allocation3 + $0x48] sm:$0xff] %v2833
      %2866 = vst [vmem:[#allocation3 + $0x50] sm:$0xff] %v2834
      %2867 = vst [vmem:[#allocation3 + $0x58] sm:$0xff] %v2835
      %2868 = vst [vmem:[#allocation3 + $0x60] sm:$0xff] %v2836
      %2869 = vst [vmem:[#allocation3 + $0x68] sm:$0xff] %v2837
      %2870 = vst [vmem:[#allocation3 + $0x70] sm:$0xff] %v2838
      %2871 = vst [vmem:[#allocation3 + $0x78] sm:$0xff] %v2839
      %2872 = vst [vmem:[#allocation3 + $0x80] sm:$0xff] %v2840
      %2873 = vst [vmem:[#allocation3 + $0x88] sm:$0xff] %v2841
      %2874 = vst [vmem:[#allocation3 + $0x90] sm:$0xff] %v2842
      %2875 = vst [vmem:[#allocation3 + $0x98] sm:$0xff] %v2843
      %2876 = vst [vmem:[#allocation3 + $0xa0] sm:$0xff] %v2844
      %2877 = vst [vmem:[#allocation3 + $0xa8] sm:$0xff] %v2845
      %2878 = vst [vmem:[#allocation3 + $0xb0] sm:$0xff] %v2846
      %2879 = vst [vmem:[#allocation3 + $0xb8] sm:$0xff] %v2847
      %2880 = vst [vmem:[#allocation3 + $0xc0] sm:$0xff] %v2848
      %2881 = vst [vmem:[#allocation3 + $0xc8] sm:$0xff] %v2849
      %2882 = vst [vmem:[#allocation3 + $0xd0] sm:$0xff] %v2850
      %2883 = vst [vmem:[#allocation3 + $0xd8] sm:$0xff] %v2851
      %2884 = vst [vmem:[#allocation3 + $0xe0] sm:$0xff] %v2852
      %2885 = vst [vmem:[#allocation3 + $0xe8] sm:$0xff] %v2853
      %2886 = vst [vmem:[#allocation3 + $0xf0] sm:$0xff] %v2854
      %2887 = vst [vmem:[#allocation3 + $0xf8] sm:$0xff] %v2855
      %v2888 = vld [vmem:[%s2517 + $0x1] sm:$0xff]
      %v2889 = vld [vmem:[%s2517 + $0x9] sm:$0xff]
      %v2890 = vld [vmem:[%s2517 + $0x19] sm:$0xff]
      %v2891 = vld [vmem:[%s2517 + $0x21] sm:$0xff]
      %v2892 = vld [vmem:[%s2517 + $0x31] sm:$0xff]
      %v2893 = vld [vmem:[%s2517 + $0x39] sm:$0xff]
      %v2894 = vld [vmem:[%s2517 + $0x49] sm:$0xff]
      %v2895 = vld [vmem:[%s2517 + $0x51] sm:$0xff]
      %v2896 = vld [vmem:[%s2517 + $0x61] sm:$0xff]
      %v2897 = vld [vmem:[%s2517 + $0x69] sm:$0xff]
      %v2898 = vld [vmem:[%s2517 + $0x79] sm:$0xff]
      %v2899 = vld [vmem:[%s2517 + $0x81] sm:$0xff]
      %v2900 = vld [vmem:[%s2517 + $0x91] sm:$0xff]
      %v2901 = vld [vmem:[%s2517 + $0x99] sm:$0xff]
      %v2902 = vld [vmem:[%s2517 + $0xa9] sm:$0xff]
      %v2903 = vld [vmem:[%s2517 + $0xb1] sm:$0xff]
      %v2904 = vld [vmem:[%s2517 + $0xc1] sm:$0xff]
      %v2905 = vld [vmem:[%s2517 + $0xc9] sm:$0xff]
      %v2906 = vld [vmem:[%s2517 + $0xd9] sm:$0xff]
      %v2907 = vld [vmem:[%s2517 + $0xe1] sm:$0xff]
      %v2908 = vld [vmem:[%s2517 + $0xf1] sm:$0xff]
      %v2909 = vld [vmem:[%s2517 + $0xf9] sm:$0xff]
      %v2910 = vld [vmem:[%s2517 + $0x109] sm:$0xff]
      %v2911 = vld [vmem:[%s2517 + $0x111] sm:$0xff]
      %v2912 = vld [vmem:[%s2517 + $0x121] sm:$0xff]
      %v2913 = vld [vmem:[%s2517 + $0x129] sm:$0xff]
      %v2914 = vld [vmem:[%s2517 + $0x139] sm:$0xff]
      %v2915 = vld [vmem:[%s2517 + $0x141] sm:$0xff]
      %v2916 = vld [vmem:[%s2517 + $0x151] sm:$0xff]
      %v2917 = vld [vmem:[%s2517 + $0x159] sm:$0xff]
      %v2918 = vld [vmem:[%s2517 + $0x169] sm:$0xff]
      %v2919 = vld [vmem:[%s2517 + $0x171] sm:$0xff]
      %v2920 = vpack.c.bf16 %v2889, %v2888
      %v2921 = vpack.c.bf16 %v2891, %v2890
      %v2922 = vpack.c.bf16 %v2893, %v2892
      %v2923 = vpack.c.bf16 %v2895, %v2894
      %v2924 = vpack.c.bf16 %v2897, %v2896
      %v2925 = vpack.c.bf16 %v2899, %v2898
      %v2926 = vpack.c.bf16 %v2901, %v2900
      %v2927 = vpack.c.bf16 %v2903, %v2902
      %v2928 = vpack.c.bf16 %v2905, %v2904
      %v2929 = vpack.c.bf16 %v2907, %v2906
      %v2930 = vpack.c.bf16 %v2909, %v2908
      %v2931 = vpack.c.bf16 %v2911, %v2910
      %v2932 = vpack.c.bf16 %v2913, %v2912
      %v2933 = vpack.c.bf16 %v2915, %v2914
      %v2934 = vpack.c.bf16 %v2917, %v2916
      %v2935 = vpack.c.bf16 %v2919, %v2918
      %s2936 = scalar_lea.vmem %s1, 448
      %v2937 = vld [vmem:[%s2936] sm:$0xf]
      %v2938 = vld [vmem:[%s2936 + $0x4] sm:$0xf]
      %v2939 = vld [vmem:[%s2936 + $0x8] sm:$0xf]
      %v2940 = vld [vmem:[%s2936 + $0xc] sm:$0xf]
      %v2941 = vld [vmem:[%s2936 + $0x10] sm:$0xf]
      %v2942 = vld [vmem:[%s2936 + $0x14] sm:$0xf]
      %v2943 = vld [vmem:[%s2936 + $0x18] sm:$0xf]
      %v2944 = vld [vmem:[%s2936 + $0x1c] sm:$0xf]
      %v2945 = vld [vmem:[%s2936 + $0x20] sm:$0xf]
      %v2946 = vld [vmem:[%s2936 + $0x24] sm:$0xf]
      %v2947 = vld [vmem:[%s2936 + $0x28] sm:$0xf]
      %v2948 = vld [vmem:[%s2936 + $0x2c] sm:$0xf]
      %v2949 = vld [vmem:[%s2936 + $0x30] sm:$0xf]
      %v2950 = vld [vmem:[%s2936 + $0x34] sm:$0xf]
      %v2951 = vld [vmem:[%s2936 + $0x38] sm:$0xf]
      %v2952 = vld [vmem:[%s2936 + $0x3c] sm:$0xf]
      %v2969 = vunpack.c.l.b16 %v2937
      %v2970 = vunpack.c.l.b16 %v2938
      %v2971 = vunpack.c.l.b16 %v2939
      %v2972 = vunpack.c.l.b16 %v2940
      %v2973 = vunpack.c.l.b16 %v2941
      %v2974 = vunpack.c.l.b16 %v2942
      %v2975 = vunpack.c.l.b16 %v2943
      %v2976 = vunpack.c.l.b16 %v2944
      %v2977 = vunpack.c.l.b16 %v2945
      %v2978 = vunpack.c.l.b16 %v2946
      %v2979 = vunpack.c.l.b16 %v2947
      %v2980 = vunpack.c.l.b16 %v2948
      %v2981 = vunpack.c.l.b16 %v2949
      %v2982 = vunpack.c.l.b16 %v2950
      %v2983 = vunpack.c.l.b16 %v2951
      %v2984 = vunpack.c.l.b16 %v2952
      %v2985 = vpack.c.b16 %v2970, %v2969
      %v2986 = vpack.c.b16 %v2972, %v2971
      %v2987 = vpack.c.b16 %v2974, %v2973
      %v2988 = vpack.c.b16 %v2976, %v2975
      %v2989 = vpack.c.b16 %v2978, %v2977
      %v2990 = vpack.c.b16 %v2980, %v2979
      %v2991 = vpack.c.b16 %v2982, %v2981
      %v2992 = vpack.c.b16 %v2984, %v2983
      %3001 = vmatprep.subr.bf16.mxu0 0
      %3002 = vmatpush1.bf16.msra.mxu0 %v2985
      %3003 = vmatprep.subr.bf16.mxu0 0
      %3004 = vmatpush1.bf16.msra.mxu0 %v2986
      %3005 = vmatprep.subr.bf16.mxu0 0
      %3006 = vmatpush1.bf16.msra.mxu0 %v2987
      %3007 = vmatprep.subr.bf16.mxu0 0
      %3008 = vmatpush1.bf16.msra.mxu0 %v2988
      %3009 = vmatprep.subr.bf16.mxu0 0
      %3010 = vmatpush1.bf16.msra.mxu0 %v2989
      %3011 = vmatprep.subr.bf16.mxu0 0
      %3012 = vmatpush1.bf16.msra.mxu0 %v2990
      %3013 = vmatprep.subr.bf16.mxu0 0
      %3014 = vmatpush1.bf16.msra.mxu0 %v2991
      %3015 = vmatprep.subr.bf16.mxu0 0
      %3016 = vmatpush1.bf16.msra.mxu0 %v2992
      %3017 = vmatprep.subr.bf16.mxu0 0
      %3018 = vmatpush1.bf16.msra.mxu0 0
      %3019 = vmatprep.subr.bf16.mxu0 0
      %3020 = vmatpush1.bf16.msra.mxu0 0
      %3021 = vmatprep.subr.bf16.mxu0 0
      %3022 = vmatpush1.bf16.msra.mxu0 0
      %3023 = vmatprep.subr.bf16.mxu0 0
      %3024 = vmatpush1.bf16.msra.mxu0 0
      %3025 = vmatprep.subr.bf16.mxu0 0
      %3026 = vmatpush1.bf16.msra.mxu0 0
      %3027 = vmatprep.subr.bf16.mxu0 0
      %3028 = vmatpush1.bf16.msra.mxu0 0
      %3029 = vmatprep.subr.bf16.mxu0 0
      %3030 = vmatpush1.bf16.msra.mxu0 0
      %3031 = vmatprep.subr.bf16.mxu0 0
      %3032 = vmatpush1.bf16.msra.mxu0 0
      %3033 = vmatprep.mubr.bf16.mxu0 0
      %3034 = vmatmul.mubr.bf16.gmra.mrb[0].mxu0 %v2920
      %v3035 = vpop.f32.mrb[0].mxu0
      %v3036 = vadd.f32 0.0, %v3035
      %v3037 = vpop.f32.mrb[0].mxu0
      %v3038 = vpop.f32.mrb[0].mxu0
      %v3039 = vadd.f32 0.0, %v3038
      %v3040 = vpop.f32.mrb[0].mxu0
      %3041 = vmatprep.mubr.bf16.mxu0 0
      %3042 = vmatmul.mubr.bf16.gmra.mrb[0].mxu0 %v2921
      %v3043 = vpop.f32.mrb[0].mxu0
      %v3044 = vadd.f32 0.0, %v3043
      %v3045 = vpop.f32.mrb[0].mxu0
      %v3046 = vpop.f32.mrb[0].mxu0
      %v3047 = vadd.f32 0.0, %v3046
      %v3048 = vpop.f32.mrb[0].mxu0
      %3049 = vmatprep.mubr.bf16.mxu0 0
      %3050 = vmatmul.mubr.bf16.gmra.mrb[0].mxu0 %v2922
      %v3051 = vpop.f32.mrb[0].mxu0
      %v3052 = vadd.f32 0.0, %v3051
      %v3053 = vpop.f32.mrb[0].mxu0
      %v3054 = vpop.f32.mrb[0].mxu0
      %v3055 = vadd.f32 0.0, %v3054
      %v3056 = vpop.f32.mrb[0].mxu0
      %3057 = vmatprep.mubr.bf16.mxu0 0
      %3058 = vmatmul.mubr.bf16.gmra.mrb[0].mxu0 %v2923
      %v3059 = vpop.f32.mrb[0].mxu0
      %v3060 = vadd.f32 0.0, %v3059
      %v3061 = vpop.f32.mrb[0].mxu0
      %v3062 = vpop.f32.mrb[0].mxu0
      %v3063 = vadd.f32 0.0, %v3062
      %v3064 = vpop.f32.mrb[0].mxu0
      %3065 = vmatprep.mubr.bf16.mxu0 0
      %3066 = vmatmul.mubr.bf16.gmra.mrb[0].mxu0 %v2924
      %v3067 = vpop.f32.mrb[0].mxu0
      %v3068 = vadd.f32 0.0, %v3067
      %v3069 = vpop.f32.mrb[0].mxu0
      %v3070 = vpop.f32.mrb[0].mxu0
      %v3071 = vadd.f32 0.0, %v3070
      %v3072 = vpop.f32.mrb[0].mxu0
      %3073 = vmatprep.mubr.bf16.mxu0 0
      %3074 = vmatmul.mubr.bf16.gmra.mrb[0].mxu0 %v2925
      %v3075 = vpop.f32.mrb[0].mxu0
      %v3076 = vadd.f32 0.0, %v3075
      %v3077 = vpop.f32.mrb[0].mxu0
      %v3078 = vpop.f32.mrb[0].mxu0
      %v3079 = vadd.f32 0.0, %v3078
      %v3080 = vpop.f32.mrb[0].mxu0
      %3081 = vmatprep.mubr.bf16.mxu0 0
      %3082 = vmatmul.mubr.bf16.gmra.mrb[0].mxu0 %v2926
      %v3083 = vpop.f32.mrb[0].mxu0
      %v3084 = vadd.f32 0.0, %v3083
      %v3085 = vpop.f32.mrb[0].mxu0
      %v3086 = vpop.f32.mrb[0].mxu0
      %v3087 = vadd.f32 0.0, %v3086
      %v3088 = vpop.f32.mrb[0].mxu0
      %3089 = vmatprep.mubr.bf16.mxu0 0
      %3090 = vmatmul.mubr.bf16.gmra.mrb[0].mxu0 %v2927
      %v3091 = vpop.f32.mrb[0].mxu0
      %v3092 = vadd.f32 0.0, %v3091
      %v3093 = vpop.f32.mrb[0].mxu0
      %v3094 = vpop.f32.mrb[0].mxu0
      %v3095 = vadd.f32 0.0, %v3094
      %v3096 = vpop.f32.mrb[0].mxu0
      %3097 = vmatprep.mubr.bf16.mxu0 0
      %3098 = vmatmul.mubr.bf16.gmra.mrb[0].mxu0 %v2928
      %v3099 = vpop.f32.mrb[0].mxu0
      %v3100 = vadd.f32 0.0, %v3099
      %v3101 = vpop.f32.mrb[0].mxu0
      %v3102 = vpop.f32.mrb[0].mxu0
      %v3103 = vadd.f32 0.0, %v3102
      %v3104 = vpop.f32.mrb[0].mxu0
      %3105 = vmatprep.mubr.bf16.mxu0 0
      %3106 = vmatmul.mubr.bf16.gmra.mrb[0].mxu0 %v2929
      %v3107 = vpop.f32.mrb[0].mxu0
      %v3108 = vadd.f32 0.0, %v3107
      %v3109 = vpop.f32.mrb[0].mxu0
      %v3110 = vpop.f32.mrb[0].mxu0
      %v3111 = vadd.f32 0.0, %v3110
      %v3112 = vpop.f32.mrb[0].mxu0
      %3113 = vmatprep.mubr.bf16.mxu0 0
      %3114 = vmatmul.mubr.bf16.gmra.mrb[0].mxu0 %v2930
      %v3115 = vpop.f32.mrb[0].mxu0
      %v3116 = vadd.f32 0.0, %v3115
      %v3117 = vpop.f32.mrb[0].mxu0
      %v3118 = vpop.f32.mrb[0].mxu0
      %v3119 = vadd.f32 0.0, %v3118
      %v3120 = vpop.f32.mrb[0].mxu0
      %3121 = vmatprep.mubr.bf16.mxu0 0
      %3122 = vmatmul.mubr.bf16.gmra.mrb[0].mxu0 %v2931
      %v3123 = vpop.f32.mrb[0].mxu0
      %v3124 = vadd.f32 0.0, %v3123
      %v3125 = vpop.f32.mrb[0].mxu0
      %v3126 = vpop.f32.mrb[0].mxu0
      %v3127 = vadd.f32 0.0, %v3126
      %v3128 = vpop.f32.mrb[0].mxu0
      %3129 = vmatprep.mubr.bf16.mxu0 0
      %3130 = vmatmul.mubr.bf16.gmra.mrb[0].mxu0 %v2932
      %v3131 = vpop.f32.mrb[0].mxu0
      %v3132 = vadd.f32 0.0, %v3131
      %v3133 = vpop.f32.mrb[0].mxu0
      %v3134 = vpop.f32.mrb[0].mxu0
      %v3135 = vadd.f32 0.0, %v3134
      %v3136 = vpop.f32.mrb[0].mxu0
      %3137 = vmatprep.mubr.bf16.mxu0 0
      %3138 = vmatmul.mubr.bf16.gmra.mrb[0].mxu0 %v2933
      %v3139 = vpop.f32.mrb[0].mxu0
      %v3140 = vadd.f32 0.0, %v3139
      %v3141 = vpop.f32.mrb[0].mxu0
      %v3142 = vpop.f32.mrb[0].mxu0
      %v3143 = vadd.f32 0.0, %v3142
      %v3144 = vpop.f32.mrb[0].mxu0
      %3145 = vmatprep.mubr.bf16.mxu0 0
      %3146 = vmatmul.mubr.bf16.gmra.mrb[0].mxu0 %v2934
      %v3147 = vpop.f32.mrb[0].mxu0
      %v3148 = vadd.f32 0.0, %v3147
      %v3149 = vpop.f32.mrb[0].mxu0
      %v3150 = vpop.f32.mrb[0].mxu0
      %v3151 = vadd.f32 0.0, %v3150
      %v3152 = vpop.f32.mrb[0].mxu0
      %3153 = vmatprep.mubr.bf16.mxu0 0
      %3154 = vmatmul.mubr.bf16.gmra.mrb[0].mxu0 %v2935
      %v3155 = vpop.f32.mrb[0].mxu0
      %v3156 = vadd.f32 0.0, %v3155
      %v3157 = vpop.f32.mrb[0].mxu0
      %v3158 = vpop.f32.mrb[0].mxu0
      %v3159 = vadd.f32 0.0, %v3158
      %v3160 = vpop.f32.mrb[0].mxu0
      %3161 = vdwg.mxu0
      %v3162 = vld [vmem:[#allocation3] sm:$0xff]
      %v3163 = vld [vmem:[#allocation3 + $0x8] sm:$0xff]
      %v3164 = vld [vmem:[#allocation3 + $0x10] sm:$0xff]
      %v3165 = vld [vmem:[#allocation3 + $0x18] sm:$0xff]
      %v3166 = vld [vmem:[#allocation3 + $0x20] sm:$0xff]
      %v3167 = vld [vmem:[#allocation3 + $0x28] sm:$0xff]
      %v3168 = vld [vmem:[#allocation3 + $0x30] sm:$0xff]
      %v3169 = vld [vmem:[#allocation3 + $0x38] sm:$0xff]
      %v3170 = vld [vmem:[#allocation3 + $0x40] sm:$0xff]
      %v3171 = vld [vmem:[#allocation3 + $0x48] sm:$0xff]
      %v3172 = vld [vmem:[#allocation3 + $0x50] sm:$0xff]
      %v3173 = vld [vmem:[#allocation3 + $0x58] sm:$0xff]
      %v3174 = vld [vmem:[#allocation3 + $0x60] sm:$0xff]
      %v3175 = vld [vmem:[#allocation3 + $0x68] sm:$0xff]
      %v3176 = vld [vmem:[#allocation3 + $0x70] sm:$0xff]
      %v3177 = vld [vmem:[#allocation3 + $0x78] sm:$0xff]
      %v3178 = vld [vmem:[#allocation3 + $0x80] sm:$0xff]
      %v3179 = vld [vmem:[#allocation3 + $0x88] sm:$0xff]
      %v3180 = vld [vmem:[#allocation3 + $0x90] sm:$0xff]
      %v3181 = vld [vmem:[#allocation3 + $0x98] sm:$0xff]
      %v3182 = vld [vmem:[#allocation3 + $0xa0] sm:$0xff]
      %v3183 = vld [vmem:[#allocation3 + $0xa8] sm:$0xff]
      %v3184 = vld [vmem:[#allocation3 + $0xb0] sm:$0xff]
      %v3185 = vld [vmem:[#allocation3 + $0xb8] sm:$0xff]
      %v3186 = vld [vmem:[#allocation3 + $0xc0] sm:$0xff]
      %v3187 = vld [vmem:[#allocation3 + $0xc8] sm:$0xff]
      %v3188 = vld [vmem:[#allocation3 + $0xd0] sm:$0xff]
      %v3189 = vld [vmem:[#allocation3 + $0xd8] sm:$0xff]
      %v3190 = vld [vmem:[#allocation3 + $0xe0] sm:$0xff]
      %v3191 = vld [vmem:[#allocation3 + $0xe8] sm:$0xff]
      %v3192 = vld [vmem:[#allocation3 + $0xf0] sm:$0xff]
      %v3193 = vld [vmem:[#allocation3 + $0xf8] sm:$0xff]
      %v3194 = vadd.f32 %v3162, %v3036
      %v3195 = vadd.f32 %v3163, %v3039
      %v3196 = vadd.f32 %v3164, %v3044
      %v3197 = vadd.f32 %v3165, %v3047
      %v3198 = vadd.f32 %v3166, %v3052
      %v3199 = vadd.f32 %v3167, %v3055
      %v3200 = vadd.f32 %v3168, %v3060
      %v3201 = vadd.f32 %v3169, %v3063
      %v3202 = vadd.f32 %v3170, %v3068
      %v3203 = vadd.f32 %v3171, %v3071
      %v3204 = vadd.f32 %v3172, %v3076
      %v3205 = vadd.f32 %v3173, %v3079
      %v3206 = vadd.f32 %v3174, %v3084
      %v3207 = vadd.f32 %v3175, %v3087
      %v3208 = vadd.f32 %v3176, %v3092
      %v3209 = vadd.f32 %v3177, %v3095
      %v3210 = vadd.f32 %v3178, %v3100
      %v3211 = vadd.f32 %v3179, %v3103
      %v3212 = vadd.f32 %v3180, %v3108
      %v3213 = vadd.f32 %v3181, %v3111
      %v3214 = vadd.f32 %v3182, %v3116
      %v3215 = vadd.f32 %v3183, %v3119
      %v3216 = vadd.f32 %v3184, %v3124
      %v3217 = vadd.f32 %v3185, %v3127
      %v3218 = vadd.f32 %v3186, %v3132
      %v3219 = vadd.f32 %v3187, %v3135
      %v3220 = vadd.f32 %v3188, %v3140
      %v3221 = vadd.f32 %v3189, %v3143
      %v3222 = vadd.f32 %v3190, %v3148
      %v3223 = vadd.f32 %v3191, %v3151
      %v3224 = vadd.f32 %v3192, %v3156
      %v3225 = vadd.f32 %v3193, %v3159
      %3226 = vst [vmem:[#allocation3] sm:$0xff] %v3194
      %3227 = vst [vmem:[#allocation3 + $0x8] sm:$0xff] %v3195
      %3228 = vst [vmem:[#allocation3 + $0x10] sm:$0xff] %v3196
      %3229 = vst [vmem:[#allocation3 + $0x18] sm:$0xff] %v3197
      %3230 = vst [vmem:[#allocation3 + $0x20] sm:$0xff] %v3198
      %3231 = vst [vmem:[#allocation3 + $0x28] sm:$0xff] %v3199
      %3232 = vst [vmem:[#allocation3 + $0x30] sm:$0xff] %v3200
      %3233 = vst [vmem:[#allocation3 + $0x38] sm:$0xff] %v3201
      %3234 = vst [vmem:[#allocation3 + $0x40] sm:$0xff] %v3202
      %3235 = vst [vmem:[#allocation3 + $0x48] sm:$0xff] %v3203
      %3236 = vst [vmem:[#allocation3 + $0x50] sm:$0xff] %v3204
      %3237 = vst [vmem:[#allocation3 + $0x58] sm:$0xff] %v3205
      %3238 = vst [vmem:[#allocation3 + $0x60] sm:$0xff] %v3206
      %3239 = vst [vmem:[#allocation3 + $0x68] sm:$0xff] %v3207
      %3240 = vst [vmem:[#allocation3 + $0x70] sm:$0xff] %v3208
      %3241 = vst [vmem:[#allocation3 + $0x78] sm:$0xff] %v3209
      %3242 = vst [vmem:[#allocation3 + $0x80] sm:$0xff] %v3210
      %3243 = vst [vmem:[#allocation3 + $0x88] sm:$0xff] %v3211
      %3244 = vst [vmem:[#allocation3 + $0x90] sm:$0xff] %v3212
      %3245 = vst [vmem:[#allocation3 + $0x98] sm:$0xff] %v3213
      %3246 = vst [vmem:[#allocation3 + $0xa0] sm:$0xff] %v3214
      %3247 = vst [vmem:[#allocation3 + $0xa8] sm:$0xff] %v3215
      %3248 = vst [vmem:[#allocation3 + $0xb0] sm:$0xff] %v3216
      %3249 = vst [vmem:[#allocation3 + $0xb8] sm:$0xff] %v3217
      %3250 = vst [vmem:[#allocation3 + $0xc0] sm:$0xff] %v3218
      %3251 = vst [vmem:[#allocation3 + $0xc8] sm:$0xff] %v3219
      %3252 = vst [vmem:[#allocation3 + $0xd0] sm:$0xff] %v3220
      %3253 = vst [vmem:[#allocation3 + $0xd8] sm:$0xff] %v3221
      %3254 = vst [vmem:[#allocation3 + $0xe0] sm:$0xff] %v3222
      %3255 = vst [vmem:[#allocation3 + $0xe8] sm:$0xff] %v3223
      %3256 = vst [vmem:[#allocation3 + $0xf0] sm:$0xff] %v3224
      %3257 = vst [vmem:[#allocation3 + $0xf8] sm:$0xff] %v3225
      %v3258 = vld [vmem:[%s2517 + $0x2] sm:$0xff]
      %v3259 = vld [vmem:[%s2517 + $0xa] sm:$0xff]
      %v3260 = vld [vmem:[%s2517 + $0x1a] sm:$0xff]
      %v3261 = vld [vmem:[%s2517 + $0x22] sm:$0xff]
      %v3262 = vld [vmem:[%s2517 + $0x32] sm:$0xff]
      %v3263 = vld [vmem:[%s2517 + $0x3a] sm:$0xff]
      %v3264 = vld [vmem:[%s2517 + $0x4a] sm:$0xff]
      %v3265 = vld [vmem:[%s2517 + $0x52] sm:$0xff]
      %v3266 = vld [vmem:[%s2517 + $0x62] sm:$0xff]
      %v3267 = vld [vmem:[%s2517 + $0x6a] sm:$0xff]
      %v3268 = vld [vmem:[%s2517 + $0x7a] sm:$0xff]
      %v3269 = vld [vmem:[%s2517 + $0x82] sm:$0xff]
      %v3270 = vld [vmem:[%s2517 + $0x92] sm:$0xff]
      %v3271 = vld [vmem:[%s2517 + $0x9a] sm:$0xff]
      %v3272 = vld [vmem:[%s2517 + $0xaa] sm:$0xff]
      %v3273 = vld [vmem:[%s2517 + $0xb2] sm:$0xff]
      %v3274 = vld [vmem:[%s2517 + $0xc2] sm:$0xff]
      %v3275 = vld [vmem:[%s2517 + $0xca] sm:$0xff]
      %v3276 = vld [vmem:[%s2517 + $0xda] sm:$0xff]
      %v3277 = vld [vmem:[%s2517 + $0xe2] sm:$0xff]
      %v3278 = vld [vmem:[%s2517 + $0xf2] sm:$0xff]
      %v3279 = vld [vmem:[%s2517 + $0xfa] sm:$0xff]
      %v3280 = vld [vmem:[%s2517 + $0x10a] sm:$0xff]
      %v3281 = vld [vmem:[%s2517 + $0x112] sm:$0xff]
      %v3282 = vld [vmem:[%s2517 + $0x122] sm:$0xff]
      %v3283 = vld [vmem:[%s2517 + $0x12a] sm:$0xff]
      %v3284 = vld [vmem:[%s2517 + $0x13a] sm:$0xff]
      %v3285 = vld [vmem:[%s2517 + $0x142] sm:$0xff]
      %v3286 = vld [vmem:[%s2517 + $0x152] sm:$0xff]
      %v3287 = vld [vmem:[%s2517 + $0x15a] sm:$0xff]
      %v3288 = vld [vmem:[%s2517 + $0x16a] sm:$0xff]
      %v3289 = vld [vmem:[%s2517 + $0x172] sm:$0xff]
      %v3290 = vpack.c.bf16 %v3259, %v3258
      %v3291 = vpack.c.bf16 %v3261, %v3260
      %v3292 = vpack.c.bf16 %v3263, %v3262
      %v3293 = vpack.c.bf16 %v3265, %v3264
      %v3294 = vpack.c.bf16 %v3267, %v3266
      %v3295 = vpack.c.bf16 %v3269, %v3268
      %v3296 = vpack.c.bf16 %v3271, %v3270
      %v3297 = vpack.c.bf16 %v3273, %v3272
      %v3298 = vpack.c.bf16 %v3275, %v3274
      %v3299 = vpack.c.bf16 %v3277, %v3276
      %v3300 = vpack.c.bf16 %v3279, %v3278
      %v3301 = vpack.c.bf16 %v3281, %v3280
      %v3302 = vpack.c.bf16 %v3283, %v3282
      %v3303 = vpack.c.bf16 %v3285, %v3284
      %v3304 = vpack.c.bf16 %v3287, %v3286
      %v3305 = vpack.c.bf16 %v3289, %v3288
      %s3306 = scalar_lea.vmem %s1, 512
      %v3307 = vld [vmem:[%s3306] sm:$0xf]
      %v3308 = vld [vmem:[%s3306 + $0x4] sm:$0xf]
      %v3309 = vld [vmem:[%s3306 + $0x8] sm:$0xf]
      %v3310 = vld [vmem:[%s3306 + $0xc] sm:$0xf]
      %v3311 = vld [vmem:[%s3306 + $0x10] sm:$0xf]
      %v3312 = vld [vmem:[%s3306 + $0x14] sm:$0xf]
      %v3313 = vld [vmem:[%s3306 + $0x18] sm:$0xf]
      %v3314 = vld [vmem:[%s3306 + $0x1c] sm:$0xf]
      %v3315 = vld [vmem:[%s3306 + $0x20] sm:$0xf]
      %v3316 = vld [vmem:[%s3306 + $0x24] sm:$0xf]
      %v3317 = vld [vmem:[%s3306 + $0x28] sm:$0xf]
      %v3318 = vld [vmem:[%s3306 + $0x2c] sm:$0xf]
      %v3319 = vld [vmem:[%s3306 + $0x30] sm:$0xf]
      %v3320 = vld [vmem:[%s3306 + $0x34] sm:$0xf]
      %v3321 = vld [vmem:[%s3306 + $0x38] sm:$0xf]
      %v3322 = vld [vmem:[%s3306 + $0x3c] sm:$0xf]
      %v3339 = vunpack.c.l.b16 %v3307
      %v3340 = vunpack.c.l.b16 %v3308
      %v3341 = vunpack.c.l.b16 %v3309
      %v3342 = vunpack.c.l.b16 %v3310
      %v3343 = vunpack.c.l.b16 %v3311
      %v3344 = vunpack.c.l.b16 %v3312
      %v3345 = vunpack.c.l.b16 %v3313
      %v3346 = vunpack.c.l.b16 %v3314
      %v3347 = vunpack.c.l.b16 %v3315
      %v3348 = vunpack.c.l.b16 %v3316
      %v3349 = vunpack.c.l.b16 %v3317
      %v3350 = vunpack.c.l.b16 %v3318
      %v3351 = vunpack.c.l.b16 %v3319
      %v3352 = vunpack.c.l.b16 %v3320
      %v3353 = vunpack.c.l.b16 %v3321
      %v3354 = vunpack.c.l.b16 %v3322
      %v3355 = vpack.c.b16 %v3340, %v3339
      %v3356 = vpack.c.b16 %v3342, %v3341
      %v3357 = vpack.c.b16 %v3344, %v3343
      %v3358 = vpack.c.b16 %v3346, %v3345
      %v3359 = vpack.c.b16 %v3348, %v3347
      %v3360 = vpack.c.b16 %v3350, %v3349
      %v3361 = vpack.c.b16 %v3352, %v3351
      %v3362 = vpack.c.b16 %v3354, %v3353
      %3371 = vmatprep.subr.bf16.mxu0 0
      %3372 = vmatpush1.bf16.msra.mxu0 %v3355
      %3373 = vmatprep.subr.bf16.mxu0 0
      %3374 = vmatpush1.bf16.msra.mxu0 %v3356
      %3375 = vmatprep.subr.bf16.mxu0 0
      %3376 = vmatpush1.bf16.msra.mxu0 %v3357
      %3377 = vmatprep.subr.bf16.mxu0 0
      %3378 = vmatpush1.bf16.msra.mxu0 %v3358
      %3379 = vmatprep.subr.bf16.mxu0 0
      %3380 = vmatpush1.bf16.msra.mxu0 %v3359
      %3381 = vmatprep.subr.bf16.mxu0 0
      %3382 = vmatpush1.bf16.msra.mxu0 %v3360
      %3383 = vmatprep.subr.bf16.mxu0 0
      %3384 = vmatpush1.bf16.msra.mxu0 %v3361
      %3385 = vmatprep.subr.bf16.mxu0 0
      %3386 = vmatpush1.bf16.msra.mxu0 %v3362
      %3387 = vmatprep.subr.bf16.mxu0 0
      %3388 = vmatpush1.bf16.msra.mxu0 0
      %3389 = vmatprep.subr.bf16.mxu0 0
      %3390 = vmatpush1.bf16.msra.mxu0 0
      %3391 = vmatprep.subr.bf16.mxu0 0
      %3392 = vmatpush1.bf16.msra.mxu0 0
      %3393 = vmatprep.subr.bf16.mxu0 0
      %3394 = vmatpush1.bf16.msra.mxu0 0
      %3395 = vmatprep.subr.bf16.mxu0 0
      %3396 = vmatpush1.bf16.msra.mxu0 0
      %3397 = vmatprep.subr.bf16.mxu0 0
      %3398 = vmatpush1.bf16.msra.mxu0 0
      %3399 = vmatprep.subr.bf16.mxu0 0
      %3400 = vmatpush1.bf16.msra.mxu0 0
      %3401 = vmatprep.subr.bf16.mxu0 0
      %3402 = vmatpush1.bf16.msra.mxu0 0
      %3403 = vmatprep.mubr.bf16.mxu0 0
      %3404 = vmatmul.mubr.bf16.gmra.mrb[0].mxu0 %v3290
      %v3405 = vpop.f32.mrb[0].mxu0
      %v3406 = vadd.f32 0.0, %v3405
      %v3407 = vpop.f32.mrb[0].mxu0
      %v3408 = vpop.f32.mrb[0].mxu0
      %v3409 = vadd.f32 0.0, %v3408
      %v3410 = vpop.f32.mrb[0].mxu0
      %3411 = vmatprep.mubr.bf16.mxu0 0
      %3412 = vmatmul.mubr.bf16.gmra.mrb[0].mxu0 %v3291
      %v3413 = vpop.f32.mrb[0].mxu0
      %v3414 = vadd.f32 0.0, %v3413
      %v3415 = vpop.f32.mrb[0].mxu0
      %v3416 = vpop.f32.mrb[0].mxu0
      %v3417 = vadd.f32 0.0, %v3416
      %v3418 = vpop.f32.mrb[0].mxu0
      %3419 = vmatprep.mubr.bf16.mxu0 0
      %3420 = vmatmul.mubr.bf16.gmra.mrb[0].mxu0 %v3292
      %v3421 = vpop.f32.mrb[0].mxu0
      %v3422 = vadd.f32 0.0, %v3421
      %v3423 = vpop.f32.mrb[0].mxu0
      %v3424 = vpop.f32.mrb[0].mxu0
      %v3425 = vadd.f32 0.0, %v3424
      %v3426 = vpop.f32.mrb[0].mxu0
      %3427 = vmatprep.mubr.bf16.mxu0 0
      %3428 = vmatmul.mubr.bf16.gmra.mrb[0].mxu0 %v3293
      %v3429 = vpop.f32.mrb[0].mxu0
      %v3430 = vadd.f32 0.0, %v3429
      %v3431 = vpop.f32.mrb[0].mxu0
      %v3432 = vpop.f32.mrb[0].mxu0
      %v3433 = vadd.f32 0.0, %v3432
      %v3434 = vpop.f32.mrb[0].mxu0
      %3435 = vmatprep.mubr.bf16.mxu0 0
      %3436 = vmatmul.mubr.bf16.gmra.mrb[0].mxu0 %v3294
      %v3437 = vpop.f32.mrb[0].mxu0
      %v3438 = vadd.f32 0.0, %v3437
      %v3439 = vpop.f32.mrb[0].mxu0
      %v3440 = vpop.f32.mrb[0].mxu0
      %v3441 = vadd.f32 0.0, %v3440
      %v3442 = vpop.f32.mrb[0].mxu0
      %3443 = vmatprep.mubr.bf16.mxu0 0
      %3444 = vmatmul.mubr.bf16.gmra.mrb[0].mxu0 %v3295
      %v3445 = vpop.f32.mrb[0].mxu0
      %v3446 = vadd.f32 0.0, %v3445
      %v3447 = vpop.f32.mrb[0].mxu0
      %v3448 = vpop.f32.mrb[0].mxu0
      %v3449 = vadd.f32 0.0, %v3448
      %v3450 = vpop.f32.mrb[0].mxu0
      %3451 = vmatprep.mubr.bf16.mxu0 0
      %3452 = vmatmul.mubr.bf16.gmra.mrb[0].mxu0 %v3296
      %v3453 = vpop.f32.mrb[0].mxu0
      %v3454 = vadd.f32 0.0, %v3453
      %v3455 = vpop.f32.mrb[0].mxu0
      %v3456 = vpop.f32.mrb[0].mxu0
      %v3457 = vadd.f32 0.0, %v3456
      %v3458 = vpop.f32.mrb[0].mxu0
      %3459 = vmatprep.mubr.bf16.mxu0 0
      %3460 = vmatmul.mubr.bf16.gmra.mrb[0].mxu0 %v3297
      %v3461 = vpop.f32.mrb[0].mxu0
      %v3462 = vadd.f32 0.0, %v3461
      %v3463 = vpop.f32.mrb[0].mxu0
      %v3464 = vpop.f32.mrb[0].mxu0
      %v3465 = vadd.f32 0.0, %v3464
      %v3466 = vpop.f32.mrb[0].mxu0
      %3467 = vmatprep.mubr.bf16.mxu0 0
      %3468 = vmatmul.mubr.bf16.gmra.mrb[0].mxu0 %v3298
      %v3469 = vpop.f32.mrb[0].mxu0
      %v3470 = vadd.f32 0.0, %v3469
      %v3471 = vpop.f32.mrb[0].mxu0
      %v3472 = vpop.f32.mrb[0].mxu0
      %v3473 = vadd.f32 0.0, %v3472
      %v3474 = vpop.f32.mrb[0].mxu0
      %3475 = vmatprep.mubr.bf16.mxu0 0
      %3476 = vmatmul.mubr.bf16.gmra.mrb[0].mxu0 %v3299
      %v3477 = vpop.f32.mrb[0].mxu0
      %v3478 = vadd.f32 0.0, %v3477
      %v3479 = vpop.f32.mrb[0].mxu0
      %v3480 = vpop.f32.mrb[0].mxu0
      %v3481 = vadd.f32 0.0, %v3480
      %v3482 = vpop.f32.mrb[0].mxu0
      %3483 = vmatprep.mubr.bf16.mxu0 0
      %3484 = vmatmul.mubr.bf16.gmra.mrb[0].mxu0 %v3300
      %v3485 = vpop.f32.mrb[0].mxu0
      %v3486 = vadd.f32 0.0, %v3485
      %v3487 = vpop.f32.mrb[0].mxu0
      %v3488 = vpop.f32.mrb[0].mxu0
      %v3489 = vadd.f32 0.0, %v3488
      %v3490 = vpop.f32.mrb[0].mxu0
      %3491 = vmatprep.mubr.bf16.mxu0 0
      %3492 = vmatmul.mubr.bf16.gmra.mrb[0].mxu0 %v3301
      %v3493 = vpop.f32.mrb[0].mxu0
      %v3494 = vadd.f32 0.0, %v3493
      %v3495 = vpop.f32.mrb[0].mxu0
      %v3496 = vpop.f32.mrb[0].mxu0
      %v3497 = vadd.f32 0.0, %v3496
      %v3498 = vpop.f32.mrb[0].mxu0
      %3499 = vmatprep.mubr.bf16.mxu0 0
      %3500 = vmatmul.mubr.bf16.gmra.mrb[0].mxu0 %v3302
      %v3501 = vpop.f32.mrb[0].mxu0
      %v3502 = vadd.f32 0.0, %v3501
      %v3503 = vpop.f32.mrb[0].mxu0
      %v3504 = vpop.f32.mrb[0].mxu0
      %v3505 = vadd.f32 0.0, %v3504
      %v3506 = vpop.f32.mrb[0].mxu0
      %3507 = vmatprep.mubr.bf16.mxu0 0
      %3508 = vmatmul.mubr.bf16.gmra.mrb[0].mxu0 %v3303
      %v3509 = vpop.f32.mrb[0].mxu0
      %v3510 = vadd.f32 0.0, %v3509
      %v3511 = vpop.f32.mrb[0].mxu0
      %v3512 = vpop.f32.mrb[0].mxu0
      %v3513 = vadd.f32 0.0, %v3512
      %v3514 = vpop.f32.mrb[0].mxu0
      %3515 = vmatprep.mubr.bf16.mxu0 0
      %3516 = vmatmul.mubr.bf16.gmra.mrb[0].mxu0 %v3304
      %v3517 = vpop.f32.mrb[0].mxu0
      %v3518 = vadd.f32 0.0, %v3517
      %v3519 = vpop.f32.mrb[0].mxu0
      %v3520 = vpop.f32.mrb[0].mxu0
      %v3521 = vadd.f32 0.0, %v3520
      %v3522 = vpop.f32.mrb[0].mxu0
      %3523 = vmatprep.mubr.bf16.mxu0 0
      %3524 = vmatmul.mubr.bf16.gmra.mrb[0].mxu0 %v3305
      %v3525 = vpop.f32.mrb[0].mxu0
      %v3526 = vadd.f32 0.0, %v3525
      %v3527 = vpop.f32.mrb[0].mxu0
      %v3528 = vpop.f32.mrb[0].mxu0
      %v3529 = vadd.f32 0.0, %v3528
      %v3530 = vpop.f32.mrb[0].mxu0
      %3531 = vdwg.mxu0
      %v3532 = vld [vmem:[#allocation3] sm:$0xff]
      %v3533 = vld [vmem:[#allocation3 + $0x8] sm:$0xff]
      %v3534 = vld [vmem:[#allocation3 + $0x10] sm:$0xff]
      %v3535 = vld [vmem:[#allocation3 + $0x18] sm:$0xff]
      %v3536 = vld [vmem:[#allocation3 + $0x20] sm:$0xff]
      %v3537 = vld [vmem:[#allocation3 + $0x28] sm:$0xff]
      %v3538 = vld [vmem:[#allocation3 + $0x30] sm:$0xff]
      %v3539 = vld [vmem:[#allocation3 + $0x38] sm:$0xff]
      %v3540 = vld [vmem:[#allocation3 + $0x40] sm:$0xff]
      %v3541 = vld [vmem:[#allocation3 + $0x48] sm:$0xff]
      %v3542 = vld [vmem:[#allocation3 + $0x50] sm:$0xff]
      %v3543 = vld [vmem:[#allocation3 + $0x58] sm:$0xff]
      %v3544 = vld [vmem:[#allocation3 + $0x60] sm:$0xff]
      %v3545 = vld [vmem:[#allocation3 + $0x68] sm:$0xff]
      %v3546 = vld [vmem:[#allocation3 + $0x70] sm:$0xff]
      %v3547 = vld [vmem:[#allocation3 + $0x78] sm:$0xff]
      %v3548 = vld [vmem:[#allocation3 + $0x80] sm:$0xff]
      %v3549 = vld [vmem:[#allocation3 + $0x88] sm:$0xff]
      %v3550 = vld [vmem:[#allocation3 + $0x90] sm:$0xff]
      %v3551 = vld [vmem:[#allocation3 + $0x98] sm:$0xff]
      %v3552 = vld [vmem:[#allocation3 + $0xa0] sm:$0xff]
      %v3553 = vld [vmem:[#allocation3 + $0xa8] sm:$0xff]
      %v3554 = vld [vmem:[#allocation3 + $0xb0] sm:$0xff]
      %v3555 = vld [vmem:[#allocation3 + $0xb8] sm:$0xff]
      %v3556 = vld [vmem:[#allocation3 + $0xc0] sm:$0xff]
      %v3557 = vld [vmem:[#allocation3 + $0xc8] sm:$0xff]
      %v3558 = vld [vmem:[#allocation3 + $0xd0] sm:$0xff]
      %v3559 = vld [vmem:[#allocation3 + $0xd8] sm:$0xff]
      %v3560 = vld [vmem:[#allocation3 + $0xe0] sm:$0xff]
      %v3561 = vld [vmem:[#allocation3 + $0xe8] sm:$0xff]
      %v3562 = vld [vmem:[#allocation3 + $0xf0] sm:$0xff]
      %v3563 = vld [vmem:[#allocation3 + $0xf8] sm:$0xff]
      %v3564 = vadd.f32 %v3532, %v3406
      %v3565 = vadd.f32 %v3533, %v3409
      %v3566 = vadd.f32 %v3534, %v3414
      %v3567 = vadd.f32 %v3535, %v3417
      %v3568 = vadd.f32 %v3536, %v3422
      %v3569 = vadd.f32 %v3537, %v3425
      %v3570 = vadd.f32 %v3538, %v3430
      %v3571 = vadd.f32 %v3539, %v3433
      %v3572 = vadd.f32 %v3540, %v3438
      %v3573 = vadd.f32 %v3541, %v3441
      %v3574 = vadd.f32 %v3542, %v3446
      %v3575 = vadd.f32 %v3543, %v3449
      %v3576 = vadd.f32 %v3544, %v3454
      %v3577 = vadd.f32 %v3545, %v3457
      %v3578 = vadd.f32 %v3546, %v3462
      %v3579 = vadd.f32 %v3547, %v3465
      %v3580 = vadd.f32 %v3548, %v3470
      %v3581 = vadd.f32 %v3549, %v3473
      %v3582 = vadd.f32 %v3550, %v3478
      %v3583 = vadd.f32 %v3551, %v3481
      %v3584 = vadd.f32 %v3552, %v3486
      %v3585 = vadd.f32 %v3553, %v3489
      %v3586 = vadd.f32 %v3554, %v3494
      %v3587 = vadd.f32 %v3555, %v3497
      %v3588 = vadd.f32 %v3556, %v3502
      %v3589 = vadd.f32 %v3557, %v3505
      %v3590 = vadd.f32 %v3558, %v3510
      %v3591 = vadd.f32 %v3559, %v3513
      %v3592 = vadd.f32 %v3560, %v3518
      %v3593 = vadd.f32 %v3561, %v3521
      %v3594 = vadd.f32 %v3562, %v3526
      %v3595 = vadd.f32 %v3563, %v3529
      %3596 = vst [vmem:[#allocation3] sm:$0xff] %v3564
      %3597 = vst [vmem:[#allocation3 + $0x8] sm:$0xff] %v3565
      %3598 = vst [vmem:[#allocation3 + $0x10] sm:$0xff] %v3566
      %3599 = vst [vmem:[#allocation3 + $0x18] sm:$0xff] %v3567
      %3600 = vst [vmem:[#allocation3 + $0x20] sm:$0xff] %v3568
      %3601 = vst [vmem:[#allocation3 + $0x28] sm:$0xff] %v3569
      %3602 = vst [vmem:[#allocation3 + $0x30] sm:$0xff] %v3570
      %3603 = vst [vmem:[#allocation3 + $0x38] sm:$0xff] %v3571
      %3604 = vst [vmem:[#allocation3 + $0x40] sm:$0xff] %v3572
      %3605 = vst [vmem:[#allocation3 + $0x48] sm:$0xff] %v3573
      %3606 = vst [vmem:[#allocation3 + $0x50] sm:$0xff] %v3574
      %3607 = vst [vmem:[#allocation3 + $0x58] sm:$0xff] %v3575
      %3608 = vst [vmem:[#allocation3 + $0x60] sm:$0xff] %v3576
      %3609 = vst [vmem:[#allocation3 + $0x68] sm:$0xff] %v3577
      %3610 = vst [vmem:[#allocation3 + $0x70] sm:$0xff] %v3578
      %3611 = vst [vmem:[#allocation3 + $0x78] sm:$0xff] %v3579
      %3612 = vst [vmem:[#allocation3 + $0x80] sm:$0xff] %v3580
      %3613 = vst [vmem:[#allocation3 + $0x88] sm:$0xff] %v3581
      %3614 = vst [vmem:[#allocation3 + $0x90] sm:$0xff] %v3582
      %3615 = vst [vmem:[#allocation3 + $0x98] sm:$0xff] %v3583
      %3616 = vst [vmem:[#allocation3 + $0xa0] sm:$0xff] %v3584
      %3617 = vst [vmem:[#allocation3 + $0xa8] sm:$0xff] %v3585
      %3618 = vst [vmem:[#allocation3 + $0xb0] sm:$0xff] %v3586
      %3619 = vst [vmem:[#allocation3 + $0xb8] sm:$0xff] %v3587
      %3620 = vst [vmem:[#allocation3 + $0xc0] sm:$0xff] %v3588
      %3621 = vst [vmem:[#allocation3 + $0xc8] sm:$0xff] %v3589
      %3622 = vst [vmem:[#allocation3 + $0xd0] sm:$0xff] %v3590
      %3623 = vst [vmem:[#allocation3 + $0xd8] sm:$0xff] %v3591
      %3624 = vst [vmem:[#allocation3 + $0xe0] sm:$0xff] %v3592
      %3625 = vst [vmem:[#allocation3 + $0xe8] sm:$0xff] %v3593
      %3626 = vst [vmem:[#allocation3 + $0xf0] sm:$0xff] %v3594
      %3627 = vst [vmem:[#allocation3 + $0xf8] sm:$0xff] %v3595
      %v3628 = vld [vmem:[#allocation3] sm:$0xff]
      %v3629 = vld [vmem:[#allocation3 + $0x8] sm:$0xff]
      %v3630 = vld [vmem:[#allocation3 + $0x10] sm:$0xff]
      %v3631 = vld [vmem:[#allocation3 + $0x18] sm:$0xff]
      %v3632 = vld [vmem:[#allocation3 + $0x20] sm:$0xff]
      %v3633 = vld [vmem:[#allocation3 + $0x28] sm:$0xff]
      %v3634 = vld [vmem:[#allocation3 + $0x30] sm:$0xff]
      %v3635 = vld [vmem:[#allocation3 + $0x38] sm:$0xff]
      %v3636 = vld [vmem:[#allocation3 + $0x40] sm:$0xff]
      %v3637 = vld [vmem:[#allocation3 + $0x48] sm:$0xff]
      %v3638 = vld [vmem:[#allocation3 + $0x50] sm:$0xff]
      %v3639 = vld [vmem:[#allocation3 + $0x58] sm:$0xff]
      %v3640 = vld [vmem:[#allocation3 + $0x60] sm:$0xff]
      %v3641 = vld [vmem:[#allocation3 + $0x68] sm:$0xff]
      %v3642 = vld [vmem:[#allocation3 + $0x70] sm:$0xff]
      %v3643 = vld [vmem:[#allocation3 + $0x78] sm:$0xff]
      %v3644 = vld [vmem:[#allocation3 + $0x80] sm:$0xff]
      %v3645 = vld [vmem:[#allocation3 + $0x88] sm:$0xff]
      %v3646 = vld [vmem:[#allocation3 + $0x90] sm:$0xff]
      %v3647 = vld [vmem:[#allocation3 + $0x98] sm:$0xff]
      %v3648 = vld [vmem:[#allocation3 + $0xa0] sm:$0xff]
      %v3649 = vld [vmem:[#allocation3 + $0xa8] sm:$0xff]
      %v3650 = vld [vmem:[#allocation3 + $0xb0] sm:$0xff]
      %v3651 = vld [vmem:[#allocation3 + $0xb8] sm:$0xff]
      %v3652 = vld [vmem:[#allocation3 + $0xc0] sm:$0xff]
      %v3653 = vld [vmem:[#allocation3 + $0xc8] sm:$0xff]
      %v3654 = vld [vmem:[#allocation3 + $0xd0] sm:$0xff]
      %v3655 = vld [vmem:[#allocation3 + $0xd8] sm:$0xff]
      %v3656 = vld [vmem:[#allocation3 + $0xe0] sm:$0xff]
      %v3657 = vld [vmem:[#allocation3 + $0xe8] sm:$0xff]
      %v3658 = vld [vmem:[#allocation3 + $0xf0] sm:$0xff]
      %v3659 = vld [vmem:[#allocation3 + $0xf8] sm:$0xff]
      %v3660 = vld [vmem:[%s2] sm:$0x1]
      %v3662 = vlaneseq
      %v3663 = vshrl.u32 %v3662, 7
      %v3664 = vsub.s32 0, %v3663
      %v3665 = vrot.slane %v3660, %v3664
      %v3667 = vadd.f32 %v3628, %v3665
      %v3668 = vadd.f32 %v3629, %v3665
      %v3669 = vadd.f32 %v3630, %v3665
      %v3670 = vadd.f32 %v3631, %v3665
      %v3671 = vadd.f32 %v3632, %v3665
      %v3672 = vadd.f32 %v3633, %v3665
      %v3673 = vadd.f32 %v3634, %v3665
      %v3674 = vadd.f32 %v3635, %v3665
      %v3675 = vadd.f32 %v3636, %v3665
      %v3676 = vadd.f32 %v3637, %v3665
      %v3677 = vadd.f32 %v3638, %v3665
      %v3678 = vadd.f32 %v3639, %v3665
      %v3679 = vadd.f32 %v3640, %v3665
      %v3680 = vadd.f32 %v3641, %v3665
      %v3681 = vadd.f32 %v3642, %v3665
      %v3682 = vadd.f32 %v3643, %v3665
      %v3683 = vadd.f32 %v3644, %v3665
      %v3684 = vadd.f32 %v3645, %v3665
      %v3685 = vadd.f32 %v3646, %v3665
      %v3686 = vadd.f32 %v3647, %v3665
      %v3687 = vadd.f32 %v3648, %v3665
      %v3688 = vadd.f32 %v3649, %v3665
      %v3689 = vadd.f32 %v3650, %v3665
      %v3690 = vadd.f32 %v3651, %v3665
      %v3691 = vadd.f32 %v3652, %v3665
      %v3692 = vadd.f32 %v3653, %v3665
      %v3693 = vadd.f32 %v3654, %v3665
      %v3694 = vadd.f32 %v3655, %v3665
      %v3695 = vadd.f32 %v3656, %v3665
      %v3696 = vadd.f32 %v3657, %v3665
      %v3697 = vadd.f32 %v3658, %v3665
      %v3698 = vadd.f32 %v3659, %v3665
      %3699 = vst [vmem:[%s235] sm:$0xff] %v3667
      %3700 = vst [vmem:[%s235 + $0x8] sm:$0xff] %v3668
      %3701 = vst [vmem:[%s235 + $0x10] sm:$0xff] %v3669
      %3702 = vst [vmem:[%s235 + $0x18] sm:$0xff] %v3670
      %3703 = vst [vmem:[%s235 + $0x20] sm:$0xff] %v3671
      %3704 = vst [vmem:[%s235 + $0x28] sm:$0xff] %v3672
      %3705 = vst [vmem:[%s235 + $0x30] sm:$0xff] %v3673
      %3706 = vst [vmem:[%s235 + $0x38] sm:$0xff] %v3674
      %3707 = vst [vmem:[%s235 + $0x40] sm:$0xff] %v3675
      %3708 = vst [vmem:[%s235 + $0x48] sm:$0xff] %v3676
      %3709 = vst [vmem:[%s235 + $0x50] sm:$0xff] %v3677
      %3710 = vst [vmem:[%s235 + $0x58] sm:$0xff] %v3678
      %3711 = vst [vmem:[%s235 + $0x60] sm:$0xff] %v3679
      %3712 = vst [vmem:[%s235 + $0x68] sm:$0xff] %v3680
      %3713 = vst [vmem:[%s235 + $0x70] sm:$0xff] %v3681
      %3714 = vst [vmem:[%s235 + $0x78] sm:$0xff] %v3682
      %3715 = vst [vmem:[%s235 + $0x80] sm:$0xff] %v3683
      %3716 = vst [vmem:[%s235 + $0x88] sm:$0xff] %v3684
      %3717 = vst [vmem:[%s235 + $0x90] sm:$0xff] %v3685
      %3718 = vst [vmem:[%s235 + $0x98] sm:$0xff] %v3686
      %3719 = vst [vmem:[%s235 + $0xa0] sm:$0xff] %v3687
      %3720 = vst [vmem:[%s235 + $0xa8] sm:$0xff] %v3688
      %3721 = vst [vmem:[%s235 + $0xb0] sm:$0xff] %v3689
      %3722 = vst [vmem:[%s235 + $0xb8] sm:$0xff] %v3690
      %3723 = vst [vmem:[%s235 + $0xc0] sm:$0xff] %v3691
      %3724 = vst [vmem:[%s235 + $0xc8] sm:$0xff] %v3692
      %3725 = vst [vmem:[%s235 + $0xd0] sm:$0xff] %v3693
      %3726 = vst [vmem:[%s235 + $0xd8] sm:$0xff] %v3694
      %3727 = vst [vmem:[%s235 + $0xe0] sm:$0xff] %v3695
      %3728 = vst [vmem:[%s235 + $0xe8] sm:$0xff] %v3696
      %3729 = vst [vmem:[%s235 + $0xf0] sm:$0xff] %v3697
      %3730 = vst [vmem:[%s235 + $0xf8] sm:$0xff] %v3698
      %v3731 = vadd.f32 %v3667, %v3668
      %v3732 = vadd.f32 %v3731, %v3669
      %v3733 = vadd.f32 %v3732, %v3670
      %v3734 = vadd.f32 %v3733, %v3671
      %v3735 = vadd.f32 %v3734, %v3672
      %v3736 = vadd.f32 %v3735, %v3673
      %v3737 = vadd.f32 %v3736, %v3674
      %v3738 = vadd.f32 %v3737, %v3675
      %v3739 = vadd.f32 %v3738, %v3676
      %v3740 = vadd.f32 %v3739, %v3677
      %v3741 = vadd.f32 %v3740, %v3678
      %v3742 = vadd.f32 %v3741, %v3679
      %v3743 = vadd.f32 %v3742, %v3680
      %v3744 = vadd.f32 %v3743, %v3681
      %v3745 = vadd.f32 %v3744, %v3682
      %v3746 = vadd.f32 %v3745, %v3683
      %v3747 = vadd.f32 %v3746, %v3684
      %v3748 = vadd.f32 %v3747, %v3685
      %v3749 = vadd.f32 %v3748, %v3686
      %v3750 = vadd.f32 %v3749, %v3687
      %v3751 = vadd.f32 %v3750, %v3688
      %v3752 = vadd.f32 %v3751, %v3689
      %v3753 = vadd.f32 %v3752, %v3690
      %v3754 = vadd.f32 %v3753, %v3691
      %v3755 = vadd.f32 %v3754, %v3692
      %v3756 = vadd.f32 %v3755, %v3693
      %v3757 = vadd.f32 %v3756, %v3694
      %v3758 = vadd.f32 %v3757, %v3695
      %v3759 = vadd.f32 %v3758, %v3696
      %v3760 = vadd.f32 %v3759, %v3697
      %v3761 = vadd.f32 %v3760, %v3698
      %v3762 = vrot.slane %v3761, 4
      %v3763 = vadd.f32 %v3761, %v3762
      %v3764 = vrot.slane %v3763, 2
      %v3765 = vadd.f32 %v3763, %v3764
      %v3766 = vrot.slane %v3765, 1
      %v3767 = vadd.f32 %v3765, %v3766
      %3768 = vst [vmem:[%s238] sm:$0x1] %v3767
      %v3769 = vmul.f32 %v3667, %v3667
      %v3770 = vmul.f32 %v3668, %v3668
      %v3771 = vmul.f32 %v3669, %v3669
      %v3772 = vmul.f32 %v3670, %v3670
      %v3773 = vmul.f32 %v3671, %v3671
      %v3774 = vmul.f32 %v3672, %v3672
      %v3775 = vmul.f32 %v3673, %v3673
      %v3776 = vmul.f32 %v3674, %v3674
      %v3777 = vmul.f32 %v3675, %v3675
      %v3778 = vmul.f32 %v3676, %v3676
      %v3779 = vmul.f32 %v3677, %v3677
      %v3780 = vmul.f32 %v3678, %v3678
      %v3781 = vmul.f32 %v3679, %v3679
      %v3782 = vmul.f32 %v3680, %v3680
      %v3783 = vmul.f32 %v3681, %v3681
      %v3784 = vmul.f32 %v3682, %v3682
      %v3785 = vmul.f32 %v3683, %v3683
      %v3786 = vmul.f32 %v3684, %v3684
      %v3787 = vmul.f32 %v3685, %v3685
      %v3788 = vmul.f32 %v3686, %v3686
      %v3789 = vmul.f32 %v3687, %v3687
      %v3790 = vmul.f32 %v3688, %v3688
      %v3791 = vmul.f32 %v3689, %v3689
      %v3792 = vmul.f32 %v3690, %v3690
      %v3793 = vmul.f32 %v3691, %v3691
      %v3794 = vmul.f32 %v3692, %v3692
      %v3795 = vmul.f32 %v3693, %v3693
      %v3796 = vmul.f32 %v3694, %v3694
      %v3797 = vmul.f32 %v3695, %v3695
      %v3798 = vmul.f32 %v3696, %v3696
      %v3799 = vmul.f32 %v3697, %v3697
      %v3800 = vmul.f32 %v3698, %v3698
      %v3801 = vadd.f32 %v3769, %v3770
      %v3802 = vadd.f32 %v3801, %v3771
      %v3803 = vadd.f32 %v3802, %v3772
      %v3804 = vadd.f32 %v3803, %v3773
      %v3805 = vadd.f32 %v3804, %v3774
      %v3806 = vadd.f32 %v3805, %v3775
      %v3807 = vadd.f32 %v3806, %v3776
      %v3808 = vadd.f32 %v3807, %v3777
      %v3809 = vadd.f32 %v3808, %v3778
      %v3810 = vadd.f32 %v3809, %v3779
      %v3811 = vadd.f32 %v3810, %v3780
      %v3812 = vadd.f32 %v3811, %v3781
      %v3813 = vadd.f32 %v3812, %v3782
      %v3814 = vadd.f32 %v3813, %v3783
      %v3815 = vadd.f32 %v3814, %v3784
      %v3816 = vadd.f32 %v3815, %v3785
      %v3817 = vadd.f32 %v3816, %v3786
      %v3818 = vadd.f32 %v3817, %v3787
      %v3819 = vadd.f32 %v3818, %v3788
      %v3820 = vadd.f32 %v3819, %v3789
      %v3821 = vadd.f32 %v3820, %v3790
      %v3822 = vadd.f32 %v3821, %v3791
      %v3823 = vadd.f32 %v3822, %v3792
      %v3824 = vadd.f32 %v3823, %v3793
      %v3825 = vadd.f32 %v3824, %v3794
      %v3826 = vadd.f32 %v3825, %v3795
      %v3827 = vadd.f32 %v3826, %v3796
      %v3828 = vadd.f32 %v3827, %v3797
      %v3829 = vadd.f32 %v3828, %v3798
      %v3830 = vadd.f32 %v3829, %v3799
      %v3831 = vadd.f32 %v3830, %v3800
      %v3832 = vrot.slane %v3831, 4
      %v3833 = vadd.f32 %v3831, %v3832
      %v3834 = vrot.slane %v3833, 2
      %v3835 = vadd.f32 %v3833, %v3834
      %v3836 = vrot.slane %v3835, 1
      %v3837 = vadd.f32 %v3835, %v3836
      %3838 = vst [vmem:[%s241] sm:$0x1] %v3837
      %p3839 = scmp.lt.s32.totalorder %s17, 1
      %s3840 = scalar_select %p3839, %s17, 1
      %s3841 = smul.addr %s3840, 32
      %s3842 = smul.addr %s3841, 8
      %s3843 = scalar_lea.vmem %s3, %s3842
      %p3844 = scmp.lt.s32.totalorder %s17, 1
      %s3845 = scalar_select %p3844, %s17, 1
      %s3846 = scalar_lea.vmem %s4, %s3845
      %p3847 = scmp.lt.s32.totalorder %s17, 1
      %s3848 = scalar_select %p3847, %s17, 1
      %s3849 = scalar_lea.vmem %s5, %s3848
      // Predicated region
      $region33: #{recurrent_block_forward.4} parent=31 // pred_check
        %p3850 = pneg %p103
      $region34: #{recurrent_block_forward.4} parent=31 // pred_check_branch
        %3852 = sbr.rel (%p3850) target = $region36
      $region35: #{recurrent_block_forward.4} parent=31 // pred_region
        _
      $region36: #{recurrent_block_forward.4} parent=31 // pred_fallthru
        _
      // Predicated region
      $region37: #{recurrent_block_forward.4} parent=31 // pred_check
        %p3853 = pneg %p129
      $region38: #{recurrent_block_forward.4} parent=31 // pred_check_branch
        %3855 = sbr.rel (%p3853) target = $region40
      $region39: #{recurrent_block_forward.4} parent=31 // pred_region
        _
      $region40: #{recurrent_block_forward.4} parent=31 // pred_fallthru
        _
      // Predicated region
      $region41: #{recurrent_block_forward.4} parent=31 // pred_check
        %p3856 = pneg %p155
      $region42: #{recurrent_block_forward.4} parent=31 // pred_check_branch
        %3858 = sbr.rel (%p3856) target = $region44
      $region43: #{recurrent_block_forward.4} parent=31 // pred_region
        _
      $region44: #{recurrent_block_forward.4} parent=31 // pred_fallthru
        _
    $region32: #{recurrent_block_forward.4} parent=5 // pred_fallthru
      _
    %p3859 = scmp.le.s32.totalorder 2, %s12
    // Predicated region
    $region45: #{recurrent_block_forward.4} parent=5 // pred_check
      %p3860 = pneg %p3859
    $region46: #{recurrent_block_forward.4} parent=5 // pred_check_branch
      %3862 = sbr.rel (%p3860) target = $region48
    $region47: #{recurrent_block_forward.4} parent=5 // pred_region
      %s3863 = ssub.s32 %s12, 2
      // Predicated region
      $region49: #{recurrent_block_forward.4} parent=47 // pred_check
        %p3864 = pneg %p109
      $region50: #{recurrent_block_forward.4} parent=47 // pred_check_branch
        %3866 = sbr.rel (%p3864) target = $region52
      $region51: #{recurrent_block_forward.4} parent=47 // pred_region
        %p3867 = scmp.lt.s32.totalorder %s18, 1
        %s3868 = scalar_select %p3867, %s18, 1
        %s3869 = smul.addr %s3868, 32
        %s3870 = smul.addr %s3869, 8
        %s3871 = scalar_lea.vmem %s3, %s3870
      $region52: #{recurrent_block_forward.4} parent=47 // pred_fallthru
        _
      // Predicated region
      $region53: #{recurrent_block_forward.4} parent=47 // pred_check
        %p3872 = pneg %p135
      $region54: #{recurrent_block_forward.4} parent=47 // pred_check_branch
        %3874 = sbr.rel (%p3872) target = $region56
      $region55: #{recurrent_block_forward.4} parent=47 // pred_region
        %p3875 = scmp.lt.s32.totalorder %s18, 1
        %s3876 = scalar_select %p3875, %s18, 1
        %s3877 = scalar_lea.vmem %s4, %s3876
      $region56: #{recurrent_block_forward.4} parent=47 // pred_fallthru
        _
      // Predicated region
      $region57: #{recurrent_block_forward.4} parent=47 // pred_check
        %p3878 = pneg %p161
      $region58: #{recurrent_block_forward.4} parent=47 // pred_check_branch
        %3880 = sbr.rel (%p3878) target = $region60
      $region59: #{recurrent_block_forward.4} parent=47 // pred_region
        %p3881 = scmp.lt.s32.totalorder %s18, 1
        %s3882 = scalar_select %p3881, %s18, 1
        %s3883 = scalar_lea.vmem %s5, %s3882
      $region60: #{recurrent_block_forward.4} parent=47 // pred_fallthru
        _
    $region48: #{recurrent_block_forward.4} parent=5 // pred_fallthru
      _
  $region6: #{recurrent_block_forward.4} parent=0 // loop_footer
    %s16 = sadd.s32 1, %s12
  $region7: #{recurrent_block_forward.4} parent=0 // loop_footer_branch
    %11 = sbr.rel target = $region3
  $region8: #{recurrent_block_forward.4} parent=0 // loop_exit
    _

// kernel: recurrent_block_forward.5
$region0: #{recurrent_block_forward.5}
  #allocation0 [shape = 'u32[]', space=smem, size = 0x4, offset = 0x4, fixed_abs, tag = 'smem constant byte address 0x4 - core index']
  #allocation1 [shape = 'u32[144,128]{1,0:T(1,128)}', space=vmem, size = 0x12000, scoped, tag = 'internal scratch']
  #allocation2 [shape = 'f32[18,18,128]{2,1,0:T(8,128)}', space=vmem, size = 0x36000, scoped, tag = 'scratch operand']
  #allocation3 [shape = 'f32[256,128]{1,0:T(8,128)}', space=vmem, size = 0x20000, scoped, tag = 'scratch operand']
  %s0 = inlined_call_operand.vmem [shape: f32[2,16,16,128], index: 0, kind: input, shape index: {}]
  %s1 = inlined_call_operand.vmem [shape: f32[2,16,16,128], index: 1, kind: input, shape index: {}]
  %s2 = inlined_call_operand.vmem [shape: f32[1,128], index: 2, kind: input, shape index: {}]
  %s3 = inlined_call_operand.vmem [shape: f32[1,128], index: 3, kind: input, shape index: {}]
  %s4 = inlined_call_operand.vmem [shape: bf16[9,128,128], index: 4, kind: input, shape index: {}]
  %s5 = inlined_call_operand.vmem [shape: f32[1,128], index: 5, kind: input, shape index: {}]
  %s6 = inlined_call_operand.vmem [shape: f32[2,16,16,128], index: 6, kind: output, shape index: {0}]
  %s7 = inlined_call_operand.vmem [shape: f32[2,1,128], index: 7, kind: output, shape index: {1}]
  %s8 = inlined_call_operand.vmem [shape: f32[2,1,128], index: 8, kind: output, shape index: {2}]
  %9 = xla_tuple %s6, %s7, %s8
  %s10 = sld [smem:[#allocation0]]
  $region73: #{recurrent_block_forward.5} parent=0
    _
  %s12 = ssub.s32 1, %s10
  %s13 = scalar_select 0, %s12, %s10
  loop: start=0, step=1, limit=4
  $region2: #{recurrent_block_forward.5} parent=0 // loop_pre_header
    _
  $region3: #{recurrent_block_forward.5} parent=0 // loop_header
    %s15 = sphi 0, %s19
    %p16 = scmp.ge.s32.totalorder %s15, 4
    %s25 = sphi 0, %s27
    %s28 = sphi 0, %s25
    %s29 = sphi 0, %s28
    %s45 = sphi 0, %s29
    %s51 = sphi 0, %s53
    %s54 = sphi 0, %s51
    %s55 = sphi 0, %s54
    %s71 = sphi 0, %s55
    %s75 = sphi 0, %s75
    %s77 = sphi 0, %s75
    %s78 = sphi 0, %s77
    %s92 = sphi 0, %s78
    %s96 = sphi 0, %s96
    %s98 = sphi 0, %s96
    %s99 = sphi 0, %s98
    %s113 = sphi 0, %s99
    %s117 = sphi 0, %s117
    %s119 = sphi 0, %s117
    %s120 = sphi 0, %s119
    %s134 = sphi 0, %s120
    %s138 = sphi 0, %s138
    %s140 = sphi 0, %s138
    %s141 = sphi 0, %s140
    %s155 = sphi 0, %s141
    %s161 = sphi 0, %s163
    %s164 = sphi 0, %s161
    %s165 = sphi 0, %s164
    %s181 = sphi 0, %s165
    %s187 = sphi 0, %s189
    %s190 = sphi 0, %s187
    %s191 = sphi 0, %s190
    %s207 = sphi 0, %s191
    %s213 = sphi 0, %s215
    %s216 = sphi 0, %s213
    %s217 = sphi 0, %s216
    %s233 = sphi 0, %s217
  $region4: #{recurrent_block_forward.5} parent=0 // loop_header_branch
    %18 = sbr.rel (%p16) target = $region8
  $region5: #{recurrent_block_forward.5} parent=0 // loop_body
    %s20 = ssub.s32 %s15, 1
    %s21 = ssub.s32 %s15, 2
    %s22 = sadd.s32 %s15, 1
    %s23 = ssub.s32 %s15, %s22
    %p24 = scmp.eq.s32.totalorder %s23, 0
    %s26 = sadd.s32 %s25, 1
    %s27 = scalar_select %p24, %s25, %s26
    %p30 = pneg %p24
    %p31 = scmp.eq.s32.totalorder %s15, 1
    %p32 = por %p30, %p31
    %p33 = scmp.ne.s32.totalorder %s25, %s28
    %p34 = scmp.eq.s32.totalorder %s15, 0
    %p35 = por %p33, %p34
    %p36 = scmp.ne.s32.totalorder %s25, %s28
    %p37 = scmp.eq.s32.totalorder %s20, 1
    %p38 = por %p36, %p37
    %p39 = scmp.ne.s32.totalorder %s28, %s29
    %p40 = scmp.eq.s32.totalorder %s20, 0
    %p41 = por %p39, %p40
    %p42 = scmp.ne.s32.totalorder %s28, %s29
    %p43 = scmp.eq.s32.totalorder %s21, 1
    %p44 = por %p42, %p43
    %p46 = scmp.ne.s32.totalorder %s29, %s45
    %p47 = scmp.eq.s32.totalorder %s21, 0
    %p48 = por %p46, %p47
    %s49 = ssub.s32 %s15, %s22
    %p50 = scmp.eq.s32.totalorder %s49, 0
    %s52 = sadd.s32 %s51, 1
    %s53 = scalar_select %p50, %s51, %s52
    %p56 = pneg %p50
    %p57 = scmp.eq.s32.totalorder %s15, 1
    %p58 = por %p56, %p57
    %p59 = scmp.ne.s32.totalorder %s51, %s54
    %p60 = scmp.eq.s32.totalorder %s15, 0
    %p61 = por %p59, %p60
    %p62 = scmp.ne.s32.totalorder %s51, %s54
    %p63 = scmp.eq.s32.totalorder %s20, 1
    %p64 = por %p62, %p63
    %p65 = scmp.ne.s32.totalorder %s54, %s55
    %p66 = scmp.eq.s32.totalorder %s20, 0
    %p67 = por %p65, %p66
    %p68 = scmp.ne.s32.totalorder %s54, %s55
    %p69 = scmp.eq.s32.totalorder %s21, 1
    %p70 = por %p68, %p69
    %p72 = scmp.ne.s32.totalorder %s55, %s71
    %p73 = scmp.eq.s32.totalorder %s21, 0
    %p74 = por %p72, %p73
    %s76 = sadd.s32 %s75, 1
    %p79 = scmp.eq.s32.totalorder %s15, 1
    %p80 = scmp.ne.s32.totalorder %s75, %s77
    %p81 = scmp.eq.s32.totalorder %s15, 0
    %p82 = por %p80, %p81
    %p83 = scmp.ne.s32.totalorder %s75, %s77
    %p84 = scmp.eq.s32.totalorder %s20, 1
    %p85 = por %p83, %p84
    %p86 = scmp.ne.s32.totalorder %s77, %s78
    %p87 = scmp.eq.s32.totalorder %s20, 0
    %p88 = por %p86, %p87
    %p89 = scmp.ne.s32.totalorder %s77, %s78
    %p90 = scmp.eq.s32.totalorder %s21, 1
    %p91 = por %p89, %p90
    %p93 = scmp.ne.s32.totalorder %s78, %s92
    %p94 = scmp.eq.s32.totalorder %s21, 0
    %p95 = por %p93, %p94
    %s97 = sadd.s32 %s96, 1
    %p100 = scmp.eq.s32.totalorder %s15, 1
    %p101 = scmp.ne.s32.totalorder %s96, %s98
    %p102 = scmp.eq.s32.totalorder %s15, 0
    %p103 = por %p101, %p102
    %p104 = scmp.ne.s32.totalorder %s96, %s98
    %p105 = scmp.eq.s32.totalorder %s20, 1
    %p106 = por %p104, %p105
    %p107 = scmp.ne.s32.totalorder %s98, %s99
    %p108 = scmp.eq.s32.totalorder %s20, 0
    %p109 = por %p107, %p108
    %p110 = scmp.ne.s32.totalorder %s98, %s99
    %p111 = scmp.eq.s32.totalorder %s21, 1
    %p112 = por %p110, %p111
    %p114 = scmp.ne.s32.totalorder %s99, %s113
    %p115 = scmp.eq.s32.totalorder %s21, 0
    %p116 = por %p114, %p115
    %s118 = sadd.s32 %s117, 1
    %p121 = scmp.eq.s32.totalorder %s15, 1
    %p122 = scmp.ne.s32.totalorder %s117, %s119
    %p123 = scmp.eq.s32.totalorder %s15, 0
    %p124 = por %p122, %p123
    %p125 = scmp.ne.s32.totalorder %s117, %s119
    %p126 = scmp.eq.s32.totalorder %s20, 1
    %p127 = por %p125, %p126
    %p128 = scmp.ne.s32.totalorder %s119, %s120
    %p129 = scmp.eq.s32.totalorder %s20, 0
    %p130 = por %p128, %p129
    %p131 = scmp.ne.s32.totalorder %s119, %s120
    %p132 = scmp.eq.s32.totalorder %s21, 1
    %p133 = por %p131, %p132
    %p135 = scmp.ne.s32.totalorder %s120, %s134
    %p136 = scmp.eq.s32.totalorder %s21, 0
    %p137 = por %p135, %p136
    %s139 = sadd.s32 %s138, 1
    %p142 = scmp.eq.s32.totalorder %s15, 1
    %p143 = scmp.ne.s32.totalorder %s138, %s140
    %p144 = scmp.eq.s32.totalorder %s15, 0
    %p145 = por %p143, %p144
    %p146 = scmp.ne.s32.totalorder %s138, %s140
    %p147 = scmp.eq.s32.totalorder %s20, 1
    %p148 = por %p146, %p147
    %p149 = scmp.ne.s32.totalorder %s140, %s141
    %p150 = scmp.eq.s32.totalorder %s20, 0
    %p151 = por %p149, %p150
    %p152 = scmp.ne.s32.totalorder %s140, %s141
    %p153 = scmp.eq.s32.totalorder %s21, 1
    %p154 = por %p152, %p153
    %p156 = scmp.ne.s32.totalorder %s141, %s155
    %p157 = scmp.eq.s32.totalorder %s21, 0
    %p158 = por %p156, %p157
    %s159 = ssub.s32 %s15, %s22
    %p160 = scmp.eq.s32.totalorder %s159, 0
    %s162 = sadd.s32 %s161, 1
    %s163 = scalar_select %p160, %s161, %s162
    %p166 = pneg %p160
    %p167 = scmp.eq.s32.totalorder %s15, 1
    %p168 = por %p166, %p167
    %p169 = scmp.ne.s32.totalorder %s161, %s164
    %p170 = scmp.eq.s32.totalorder %s15, 0
    %p171 = por %p169, %p170
    %p172 = scmp.ne.s32.totalorder %s161, %s164
    %p173 = scmp.eq.s32.totalorder %s20, 1
    %p174 = por %p172, %p173
    %p175 = scmp.ne.s32.totalorder %s164, %s165
    %p176 = scmp.eq.s32.totalorder %s20, 0
    %p177 = por %p175, %p176
    %p178 = scmp.ne.s32.totalorder %s164, %s165
    %p179 = scmp.eq.s32.totalorder %s21, 1
    %p180 = por %p178, %p179
    %p182 = scmp.ne.s32.totalorder %s165, %s181
    %p183 = scmp.eq.s32.totalorder %s21, 0
    %p184 = por %p182, %p183
    %s185 = ssub.s32 %s15, %s22
    %p186 = scmp.eq.s32.totalorder %s185, 0
    %s188 = sadd.s32 %s187, 1
    %s189 = scalar_select %p186, %s187, %s188
    %p192 = pneg %p186
    %p193 = scmp.eq.s32.totalorder %s15, 1
    %p194 = por %p192, %p193
    %p195 = scmp.ne.s32.totalorder %s187, %s190
    %p196 = scmp.eq.s32.totalorder %s15, 0
    %p197 = por %p195, %p196
    %p198 = scmp.ne.s32.totalorder %s187, %s190
    %p199 = scmp.eq.s32.totalorder %s20, 1
    %p200 = por %p198, %p199
    %p201 = scmp.ne.s32.totalorder %s190, %s191
    %p202 = scmp.eq.s32.totalorder %s20, 0
    %p203 = por %p201, %p202
    %p204 = scmp.ne.s32.totalorder %s190, %s191
    %p205 = scmp.eq.s32.totalorder %s21, 1
    %p206 = por %p204, %p205
    %p208 = scmp.ne.s32.totalorder %s191, %s207
    %p209 = scmp.eq.s32.totalorder %s21, 0
    %p210 = por %p208, %p209
    %s211 = ssub.s32 %s15, %s22
    %p212 = scmp.eq.s32.totalorder %s211, 0
    %s214 = sadd.s32 %s213, 1
    %s215 = scalar_select %p212, %s213, %s214
    %p218 = pneg %p212
    %p219 = scmp.eq.s32.totalorder %s15, 1
    %p220 = por %p218, %p219
    %p221 = scmp.ne.s32.totalorder %s213, %s216
    %p222 = scmp.eq.s32.totalorder %s15, 0
    %p223 = por %p221, %p222
    %p224 = scmp.ne.s32.totalorder %s213, %s216
    %p225 = scmp.eq.s32.totalorder %s20, 1
    %p226 = por %p224, %p225
    %p227 = scmp.ne.s32.totalorder %s216, %s217
    %p228 = scmp.eq.s32.totalorder %s20, 0
    %p229 = por %p227, %p228
    %p230 = scmp.ne.s32.totalorder %s216, %s217
    %p231 = scmp.eq.s32.totalorder %s21, 1
    %p232 = por %p230, %p231
    %p234 = scmp.ne.s32.totalorder %s217, %s233
    %p235 = scmp.eq.s32.totalorder %s21, 0
    %p236 = por %p234, %p235
    %p237 = scmp.le.s32.totalorder 1, %s15
    %p238 = scmp.lt.s32.totalorder %s15, 3
    %p239 = pnand %p237, %p238
    %p240 = pneg %p239
    // Predicated region
    $region9: #{recurrent_block_forward.5} parent=5 // pred_check
      _
    $region10: #{recurrent_block_forward.5} parent=5 // pred_check_branch
      %242 = sbr.rel (%p239) target = $region12
    $region11: #{recurrent_block_forward.5} parent=5 // pred_region
      %s243 = ssub.s32 %s15, 1
      // Predicated region
      $region13: #{recurrent_block_forward.5} parent=11 // pred_check
        %p244 = pneg %p88
      $region14: #{recurrent_block_forward.5} parent=11 // pred_check_branch
        %246 = sbr.rel (%p244) target = $region16
      $region15: #{recurrent_block_forward.5} parent=11 // pred_region
        _
      $region16: #{recurrent_block_forward.5} parent=11 // pred_fallthru
        _
      // Predicated region
      $region17: #{recurrent_block_forward.5} parent=11 // pred_check
        %p247 = pneg %p109
      $region18: #{recurrent_block_forward.5} parent=11 // pred_check_branch
        %249 = sbr.rel (%p247) target = $region20
      $region19: #{recurrent_block_forward.5} parent=11 // pred_region
        _
      $region20: #{recurrent_block_forward.5} parent=11 // pred_fallthru
        _
      // Predicated region
      $region21: #{recurrent_block_forward.5} parent=11 // pred_check
        %p250 = pneg %p130
      $region22: #{recurrent_block_forward.5} parent=11 // pred_check_branch
        %252 = sbr.rel (%p250) target = $region24
      $region23: #{recurrent_block_forward.5} parent=11 // pred_region
        _
      $region24: #{recurrent_block_forward.5} parent=11 // pred_fallthru
        _
      // Predicated region
      $region25: #{recurrent_block_forward.5} parent=11 // pred_check
        %p253 = pneg %p151
      $region26: #{recurrent_block_forward.5} parent=11 // pred_check_branch
        %255 = sbr.rel (%p253) target = $region28
      $region27: #{recurrent_block_forward.5} parent=11 // pred_region
        _
      $region28: #{recurrent_block_forward.5} parent=11 // pred_fallthru
        _
    $region12: #{recurrent_block_forward.5} parent=5 // pred_fallthru
      _
    %p256 = scmp.lt.s32.totalorder %s15, 2
    // Predicated region
    $region29: #{recurrent_block_forward.5} parent=5 // pred_check
      %p257 = pneg %p256
    $region30: #{recurrent_block_forward.5} parent=5 // pred_check_branch
      %259 = sbr.rel (%p257) target = $region32
    $region31: #{recurrent_block_forward.5} parent=5 // pred_region
      // Predicated region
      $region33: #{recurrent_block_forward.5} parent=31 // pred_check
        %p260 = pneg %p35
      $region34: #{recurrent_block_forward.5} parent=31 // pred_check_branch
        %262 = sbr.rel (%p260) target = $region36
      $region35: #{recurrent_block_forward.5} parent=31 // pred_region
        %p263 = scmp.lt.s32.totalorder %s15, 1
        %s264 = scalar_select %p263, %s15, 1
        %s265 = smul.addr %s264, 32
        %s266 = smul.addr %s265, 8
        %s267 = scalar_lea.vmem %s0, %s266
      $region36: #{recurrent_block_forward.5} parent=31 // pred_fallthru
        _
      // Predicated region
      $region37: #{recurrent_block_forward.5} parent=31 // pred_check
        %p268 = pneg %p61
      $region38: #{recurrent_block_forward.5} parent=31 // pred_check_branch
        %270 = sbr.rel (%p268) target = $region40
      $region39: #{recurrent_block_forward.5} parent=31 // pred_region
        %p271 = scmp.lt.s32.totalorder %s15, 1
        %s272 = scalar_select %p271, %s15, 1
        %s273 = smul.addr %s272, 32
        %s274 = smul.addr %s273, 8
        %s275 = scalar_lea.vmem %s1, %s274
      $region40: #{recurrent_block_forward.5} parent=31 // pred_fallthru
        _
    $region32: #{recurrent_block_forward.5} parent=5 // pred_fallthru
      _
    %p276 = scmp.le.s32.totalorder 1, %s15
    %p277 = scmp.lt.s32.totalorder %s15, 3
    %p278 = pnand %p276, %p277
    %p279 = pneg %p278
    // Predicated region
    $region41: #{recurrent_block_forward.5} parent=5 // pred_check
      _
    $region42: #{recurrent_block_forward.5} parent=5 // pred_check_branch
      %281 = sbr.rel (%p278) target = $region44
    $region43: #{recurrent_block_forward.5} parent=5 // pred_region
      %s282 = ssub.s32 %s15, 1
      %p283 = scmp.lt.s32.totalorder %s20, 1
      %s284 = scalar_select %p283, %s20, 1
      %s285 = smul.addr %s284, 32
      %s286 = smul.addr %s285, 8
      %s287 = scalar_lea.vmem %s0, %s286
      %p288 = pneg %p41
      %p289 = pneg %p38
      %p290 = scmp.lt.s32.totalorder %s20, 1
      %s291 = scalar_select %p290, %s20, 1
      %s292 = smul.addr %s291, 32
      %s293 = smul.addr %s292, 8
      %s294 = scalar_lea.vmem %s1, %s293
      %p295 = pneg %p67
      %p296 = pneg %p64
      %p297 = pneg %p88
      %p298 = pneg %p85
      %p299 = pneg %p109
      %p300 = pneg %p106
      %p301 = pneg %p130
      %p302 = pneg %p127
      %p303 = pneg %p151
      %p304 = pneg %p148
      %p305 = pneg %p177
      %p306 = pneg %p174
      %p307 = scmp.lt.s32.totalorder %s20, 1
      %s308 = scalar_select %p307, %s20, 1
      %s309 = smul.addr %s308, 32
      %s310 = smul.addr %s309, 8
      %s311 = scalar_lea.vmem %s6, %s310
      %p312 = pneg %p203
      %p313 = pneg %p200
      %p314 = scmp.lt.s32.totalorder %s20, 1
      %s315 = scalar_select %p314, %s20, 1
      %s316 = scalar_lea.vmem %s7, %s315
      %p317 = pneg %p229
      %p318 = pneg %p226
      %p319 = scmp.lt.s32.totalorder %s20, 1
      %s320 = scalar_select %p319, %s20, 1
      %s321 = scalar_lea.vmem %s8, %s320
      %p322 = scmp.lt.s32.totalorder %s20, 1
      %s323 = scalar_select %p322, %s20, 1
      %s324 = smul.addr %s323, 32
      %s325 = smul.addr %s324, 8
      %s326 = scalar_lea.vmem %s0, %s325
      %p327 = scmp.lt.s32.totalorder %s20, 1
      %s328 = scalar_select %p327, %s20, 1
      %s329 = smul.addr %s328, 32
      %s330 = smul.addr %s329, 8
      %s331 = scalar_lea.vmem %s1, %s330
      %p332 = scmp.lt.s32.totalorder %s20, 1
      %s333 = scalar_select %p332, %s20, 1
      %s334 = smul.addr %s333, 32
      %s335 = smul.addr %s334, 8
      %s336 = scalar_lea.vmem %s6, %s335
      %p337 = scmp.lt.s32.totalorder %s20, 1
      %s338 = scalar_select %p337, %s20, 1
      %s339 = scalar_lea.vmem %s7, %s338
      %p340 = scmp.lt.s32.totalorder %s20, 1
      %s341 = scalar_select %p340, %s20, 1
      %s342 = scalar_lea.vmem %s8, %s341
      %v344 = vld [vmem:[%s331] sm:$0xff]
      %v345 = vld [vmem:[%s331 + $0x8] sm:$0xff]
      %v346 = vld [vmem:[%s331 + $0x10] sm:$0xff]
      %v347 = vld [vmem:[%s331 + $0x18] sm:$0xff]
      %v348 = vld [vmem:[%s331 + $0x20] sm:$0xff]
      %v349 = vld [vmem:[%s331 + $0x28] sm:$0xff]
      %v350 = vld [vmem:[%s331 + $0x30] sm:$0xff]
      %v351 = vld [vmem:[%s331 + $0x38] sm:$0xff]
      %v352 = vld [vmem:[%s331 + $0x40] sm:$0xff]
      %v353 = vld [vmem:[%s331 + $0x48] sm:$0xff]
      %v354 = vld [vmem:[%s331 + $0x50] sm:$0xff]
      %v355 = vld [vmem:[%s331 + $0x58] sm:$0xff]
      %v356 = vld [vmem:[%s331 + $0x60] sm:$0xff]
      %v357 = vld [vmem:[%s331 + $0x68] sm:$0xff]
      %v358 = vld [vmem:[%s331 + $0x70] sm:$0xff]
      %v359 = vld [vmem:[%s331 + $0x78] sm:$0xff]
      %v360 = vld [vmem:[%s331 + $0x80] sm:$0xff]
      %v361 = vld [vmem:[%s331 + $0x88] sm:$0xff]
      %v362 = vld [vmem:[%s331 + $0x90] sm:$0xff]
      %v363 = vld [vmem:[%s331 + $0x98] sm:$0xff]
      %v364 = vld [vmem:[%s331 + $0xa0] sm:$0xff]
      %v365 = vld [vmem:[%s331 + $0xa8] sm:$0xff]
      %v366 = vld [vmem:[%s331 + $0xb0] sm:$0xff]
      %v367 = vld [vmem:[%s331 + $0xb8] sm:$0xff]
      %v368 = vld [vmem:[%s331 + $0xc0] sm:$0xff]
      %v369 = vld [vmem:[%s331 + $0xc8] sm:$0xff]
      %v370 = vld [vmem:[%s331 + $0xd0] sm:$0xff]
      %v371 = vld [vmem:[%s331 + $0xd8] sm:$0xff]
      %v372 = vld [vmem:[%s331 + $0xe0] sm:$0xff]
      %v373 = vld [vmem:[%s331 + $0xe8] sm:$0xff]
      %v374 = vld [vmem:[%s331 + $0xf0] sm:$0xff]
      %v375 = vld [vmem:[%s331 + $0xf8] sm:$0xff]
      %v376 = vld [vmem:[%s2] sm:$0x1]
      %v378 = vlaneseq
      %v379 = vshrl.u32 %v378, 7
      %v380 = vsub.s32 0, %v379
      %v381 = vrot.slane %v376, %v380
      %v383 = vmul.f32 %v344, %v381
      %v384 = vmul.f32 %v345, %v381
      %v385 = vmul.f32 %v346, %v381
      %v386 = vmul.f32 %v347, %v381
      %v387 = vmul.f32 %v348, %v381
      %v388 = vmul.f32 %v349, %v381
      %v389 = vmul.f32 %v350, %v381
      %v390 = vmul.f32 %v351, %v381
      %v391 = vmul.f32 %v352, %v381
      %v392 = vmul.f32 %v353, %v381
      %v393 = vmul.f32 %v354, %v381
      %v394 = vmul.f32 %v355, %v381
      %v395 = vmul.f32 %v356, %v381
      %v396 = vmul.f32 %v357, %v381
      %v397 = vmul.f32 %v358, %v381
      %v398 = vmul.f32 %v359, %v381
      %v399 = vmul.f32 %v360, %v381
      %v400 = vmul.f32 %v361, %v381
      %v401 = vmul.f32 %v362, %v381
      %v402 = vmul.f32 %v363, %v381
      %v403 = vmul.f32 %v364, %v381
      %v404 = vmul.f32 %v365, %v381
      %v405 = vmul.f32 %v366, %v381
      %v406 = vmul.f32 %v367, %v381
      %v407 = vmul.f32 %v368, %v381
      %v408 = vmul.f32 %v369, %v381
      %v409 = vmul.f32 %v370, %v381
      %v410 = vmul.f32 %v371, %v381
      %v411 = vmul.f32 %v372, %v381
      %v412 = vmul.f32 %v373, %v381
      %v413 = vmul.f32 %v374, %v381
      %v414 = vmul.f32 %v375, %v381
      %v415 = vld [vmem:[%s3] sm:$0x1]
      %v417 = vlaneseq
      %v418 = vshrl.u32 %v417, 7
      %v419 = vsub.s32 0, %v418
      %v420 = vrot.slane %v415, %v419
      %v422 = vadd.f32 %v383, %v420
      %v423 = vadd.f32 %v384, %v420
      %v424 = vadd.f32 %v385, %v420
      %v425 = vadd.f32 %v386, %v420
      %v426 = vadd.f32 %v387, %v420
      %v427 = vadd.f32 %v388, %v420
      %v428 = vadd.f32 %v389, %v420
      %v429 = vadd.f32 %v390, %v420
      %v430 = vadd.f32 %v391, %v420
      %v431 = vadd.f32 %v392, %v420
      %v432 = vadd.f32 %v393, %v420
      %v433 = vadd.f32 %v394, %v420
      %v434 = vadd.f32 %v395, %v420
      %v435 = vadd.f32 %v396, %v420
      %v436 = vadd.f32 %v397, %v420
      %v437 = vadd.f32 %v398, %v420
      %v438 = vadd.f32 %v399, %v420
      %v439 = vadd.f32 %v400, %v420
      %v440 = vadd.f32 %v401, %v420
      %v441 = vadd.f32 %v402, %v420
      %v442 = vadd.f32 %v403, %v420
      %v443 = vadd.f32 %v404, %v420
      %v444 = vadd.f32 %v405, %v420
      %v445 = vadd.f32 %v406, %v420
      %v446 = vadd.f32 %v407, %v420
      %v447 = vadd.f32 %v408, %v420
      %v448 = vadd.f32 %v409, %v420
      %v449 = vadd.f32 %v410, %v420
      %v450 = vadd.f32 %v411, %v420
      %v451 = vadd.f32 %v412, %v420
      %v452 = vadd.f32 %v413, %v420
      %v453 = vadd.f32 %v414, %v420
      %v454 = vmax.f32 %v422, 0.0
      %v455 = vmax.f32 %v423, 0.0
      %v456 = vmax.f32 %v424, 0.0
      %v457 = vmax.f32 %v425, 0.0
      %v458 = vmax.f32 %v426, 0.0
      %v459 = vmax.f32 %v427, 0.0
      %v460 = vmax.f32 %v428, 0.0
      %v461 = vmax.f32 %v429, 0.0
      %v462 = vmax.f32 %v430, 0.0
      %v463 = vmax.f32 %v431, 0.0
      %v464 = vmax.f32 %v432, 0.0
      %v465 = vmax.f32 %v433, 0.0
      %v466 = vmax.f32 %v434, 0.0
      %v467 = vmax.f32 %v435, 0.0
      %v468 = vmax.f32 %v436, 0.0
      %v469 = vmax.f32 %v437, 0.0
      %v470 = vmax.f32 %v438, 0.0
      %v471 = vmax.f32 %v439, 0.0
      %v472 = vmax.f32 %v440, 0.0
      %v473 = vmax.f32 %v441, 0.0
      %v474 = vmax.f32 %v442, 0.0
      %v475 = vmax.f32 %v443, 0.0
      %v476 = vmax.f32 %v444, 0.0
      %v477 = vmax.f32 %v445, 0.0
      %v478 = vmax.f32 %v446, 0.0
      %v479 = vmax.f32 %v447, 0.0
      %v480 = vmax.f32 %v448, 0.0
      %v481 = vmax.f32 %v449, 0.0
      %v482 = vmax.f32 %v450, 0.0
      %v483 = vmax.f32 %v451, 0.0
      %v484 = vmax.f32 %v452, 0.0
      %v485 = vmax.f32 %v453, 0.0
      %v486 = vld [vmem:[%s326] sm:$0xff]
      %v487 = vld [vmem:[%s326 + $0x8] sm:$0xff]
      %v488 = vld [vmem:[%s326 + $0x10] sm:$0xff]
      %v489 = vld [vmem:[%s326 + $0x18] sm:$0xff]
      %v490 = vld [vmem:[%s326 + $0x20] sm:$0xff]
      %v491 = vld [vmem:[%s326 + $0x28] sm:$0xff]
      %v492 = vld [vmem:[%s326 + $0x30] sm:$0xff]
      %v493 = vld [vmem:[%s326 + $0x38] sm:$0xff]
      %v494 = vld [vmem:[%s326 + $0x40] sm:$0xff]
      %v495 = vld [vmem:[%s326 + $0x48] sm:$0xff]
      %v496 = vld [vmem:[%s326 + $0x50] sm:$0xff]
      %v497 = vld [vmem:[%s326 + $0x58] sm:$0xff]
      %v498 = vld [vmem:[%s326 + $0x60] sm:$0xff]
      %v499 = vld [vmem:[%s326 + $0x68] sm:$0xff]
      %v500 = vld [vmem:[%s326 + $0x70] sm:$0xff]
      %v501 = vld [vmem:[%s326 + $0x78] sm:$0xff]
      %v502 = vld [vmem:[%s326 + $0x80] sm:$0xff]
      %v503 = vld [vmem:[%s326 + $0x88] sm:$0xff]
      %v504 = vld [vmem:[%s326 + $0x90] sm:$0xff]
      %v505 = vld [vmem:[%s326 + $0x98] sm:$0xff]
      %v506 = vld [vmem:[%s326 + $0xa0] sm:$0xff]
      %v507 = vld [vmem:[%s326 + $0xa8] sm:$0xff]
      %v508 = vld [vmem:[%s326 + $0xb0] sm:$0xff]
      %v509 = vld [vmem:[%s326 + $0xb8] sm:$0xff]
      %v510 = vld [vmem:[%s326 + $0xc0] sm:$0xff]
      %v511 = vld [vmem:[%s326 + $0xc8] sm:$0xff]
      %v512 = vld [vmem:[%s326 + $0xd0] sm:$0xff]
      %v513 = vld [vmem:[%s326 + $0xd8] sm:$0xff]
      %v514 = vld [vmem:[%s326 + $0xe0] sm:$0xff]
      %v515 = vld [vmem:[%s326 + $0xe8] sm:$0xff]
      %v516 = vld [vmem:[%s326 + $0xf0] sm:$0xff]
      %v517 = vld [vmem:[%s326 + $0xf8] sm:$0xff]
      %v518 = vadd.f32 %v486, %v454
      %v519 = vadd.f32 %v487, %v455
      %v520 = vadd.f32 %v488, %v456
      %v521 = vadd.f32 %v489, %v457
      %v522 = vadd.f32 %v490, %v458
      %v523 = vadd.f32 %v491, %v459
      %v524 = vadd.f32 %v492, %v460
      %v525 = vadd.f32 %v493, %v461
      %v526 = vadd.f32 %v494, %v462
      %v527 = vadd.f32 %v495, %v463
      %v528 = vadd.f32 %v496, %v464
      %v529 = vadd.f32 %v497, %v465
      %v530 = vadd.f32 %v498, %v466
      %v531 = vadd.f32 %v499, %v467
      %v532 = vadd.f32 %v500, %v468
      %v533 = vadd.f32 %v501, %v469
      %v534 = vadd.f32 %v502, %v470
      %v535 = vadd.f32 %v503, %v471
      %v536 = vadd.f32 %v504, %v472
      %v537 = vadd.f32 %v505, %v473
      %v538 = vadd.f32 %v506, %v474
      %v539 = vadd.f32 %v507, %v475
      %v540 = vadd.f32 %v508, %v476
      %v541 = vadd.f32 %v509, %v477
      %v542 = vadd.f32 %v510, %v478
      %v543 = vadd.f32 %v511, %v479
      %v544 = vadd.f32 %v512, %v480
      %v545 = vadd.f32 %v513, %v481
      %v546 = vadd.f32 %v514, %v482
      %v547 = vadd.f32 %v515, %v483
      %v548 = vadd.f32 %v516, %v484
      %v549 = vadd.f32 %v517, %v485
      %550 = vst [vmem:[#allocation2] sm:$0xff] 0.0
      %551 = vst [vmem:[#allocation2 + $0x8] sm:$0xff] 0.0
      %552 = vst [vmem:[#allocation2 + $0x10] sm:$0x3] 0.0
      %553 = vst [vmem:[#allocation2 + $0x18] sm:$0xff] 0.0
      %554 = vst [vmem:[#allocation2 + $0x20] sm:$0xff] 0.0
      %555 = vst [vmem:[#allocation2 + $0x28] sm:$0x3] 0.0
      %556 = vst [vmem:[#allocation2 + $0x30] sm:$0xff] 0.0
      %557 = vst [vmem:[#allocation2 + $0x38] sm:$0xff] 0.0
      %558 = vst [vmem:[#allocation2 + $0x40] sm:$0x3] 0.0
      %559 = vst [vmem:[#allocation2 + $0x48] sm:$0xff] 0.0
      %560 = vst [vmem:[#allocation2 + $0x50] sm:$0xff] 0.0
      %561 = vst [vmem:[#allocation2 + $0x58] sm:$0x3] 0.0
      %562 = vst [vmem:[#allocation2 + $0x60] sm:$0xff] 0.0
      %563 = vst [vmem:[#allocation2 + $0x68] sm:$0xff] 0.0
      %564 = vst [vmem:[#allocation2 + $0x70] sm:$0x3] 0.0
      %565 = vst [vmem:[#allocation2 + $0x78] sm:$0xff] 0.0
      %566 = vst [vmem:[#allocation2 + $0x80] sm:$0xff] 0.0
      %567 = vst [vmem:[#allocation2 + $0x88] sm:$0x3] 0.0
      %568 = vst [vmem:[#allocation2 + $0x90] sm:$0xff] 0.0
      %569 = vst [vmem:[#allocation2 + $0x98] sm:$0xff] 0.0
      %570 = vst [vmem:[#allocation2 + $0xa0] sm:$0x3] 0.0
      %571 = vst [vmem:[#allocation2 + $0xa8] sm:$0xff] 0.0
      %572 = vst [vmem:[#allocation2 + $0xb0] sm:$0xff] 0.0
      %573 = vst [vmem:[#allocation2 + $0xb8] sm:$0x3] 0.0
      %574 = vst [vmem:[#allocation2 + $0xc0] sm:$0xff] 0.0
      %575 = vst [vmem:[#allocation2 + $0xc8] sm:$0xff] 0.0
      %576 = vst [vmem:[#allocation2 + $0xd0] sm:$0x3] 0.0
      %577 = vst [vmem:[#allocation2 + $0xd8] sm:$0xff] 0.0
      %578 = vst [vmem:[#allocation2 + $0xe0] sm:$0xff] 0.0
      %579 = vst [vmem:[#allocation2 + $0xe8] sm:$0x3] 0.0
      %580 = vst [vmem:[#allocation2 + $0xf0] sm:$0xff] 0.0
      %581 = vst [vmem:[#allocation2 + $0xf8] sm:$0xff] 0.0
      %582 = vst [vmem:[#allocation2 + $0x100] sm:$0x3] 0.0
      %583 = vst [vmem:[#allocation2 + $0x108] sm:$0xff] 0.0
      %584 = vst [vmem:[#allocation2 + $0x110] sm:$0xff] 0.0
      %585 = vst [vmem:[#allocation2 + $0x118] sm:$0x3] 0.0
      %586 = vst [vmem:[#allocation2 + $0x120] sm:$0xff] 0.0
      %587 = vst [vmem:[#allocation2 + $0x128] sm:$0xff] 0.0
      %588 = vst [vmem:[#allocation2 + $0x130] sm:$0x3] 0.0
      %589 = vst [vmem:[#allocation2 + $0x138] sm:$0xff] 0.0
      %590 = vst [vmem:[#allocation2 + $0x140] sm:$0xff] 0.0
      %591 = vst [vmem:[#allocation2 + $0x148] sm:$0x3] 0.0
      %592 = vst [vmem:[#allocation2 + $0x150] sm:$0xff] 0.0
      %593 = vst [vmem:[#allocation2 + $0x158] sm:$0xff] 0.0
      %594 = vst [vmem:[#allocation2 + $0x160] sm:$0x3] 0.0
      %595 = vst [vmem:[#allocation2 + $0x168] sm:$0xff] 0.0
      %596 = vst [vmem:[#allocation2 + $0x170] sm:$0xff] 0.0
      %597 = vst [vmem:[#allocation2 + $0x178] sm:$0x3] 0.0
      %598 = vst [vmem:[#allocation2 + $0x180] sm:$0xff] 0.0
      %599 = vst [vmem:[#allocation2 + $0x188] sm:$0xff] 0.0
      %600 = vst [vmem:[#allocation2 + $0x190] sm:$0x3] 0.0
      %601 = vst [vmem:[#allocation2 + $0x198] sm:$0xff] 0.0
      %602 = vst [vmem:[#allocation2 + $0x1a0] sm:$0xff] 0.0
      %603 = vst [vmem:[#allocation2 + $0x1a8] sm:$0x3] 0.0
      %s604 = scalar_lea.vmem [#allocation2], 24
      %605 = vst [vmem:[%s604 + $0x1] sm:$0xff] %v518
      %606 = vst [vmem:[%s604 + $0x9] sm:$0xff] %v519
      %607 = vst [vmem:[%s604 + $0x19] sm:$0xff] %v520
      %608 = vst [vmem:[%s604 + $0x21] sm:$0xff] %v521
      %609 = vst [vmem:[%s604 + $0x31] sm:$0xff] %v522
      %610 = vst [vmem:[%s604 + $0x39] sm:$0xff] %v523
      %611 = vst [vmem:[%s604 + $0x49] sm:$0xff] %v524
      %612 = vst [vmem:[%s604 + $0x51] sm:$0xff] %v525
      %613 = vst [vmem:[%s604 + $0x61] sm:$0xff] %v526
      %614 = vst [vmem:[%s604 + $0x69] sm:$0xff] %v527
      %615 = vst [vmem:[%s604 + $0x79] sm:$0xff] %v528
      %616 = vst [vmem:[%s604 + $0x81] sm:$0xff] %v529
      %617 = vst [vmem:[%s604 + $0x91] sm:$0xff] %v530
      %618 = vst [vmem:[%s604 + $0x99] sm:$0xff] %v531
      %619 = vst [vmem:[%s604 + $0xa9] sm:$0xff] %v532
      %620 = vst [vmem:[%s604 + $0xb1] sm:$0xff] %v533
      %621 = vst [vmem:[%s604 + $0xc1] sm:$0xff] %v534
      %622 = vst [vmem:[%s604 + $0xc9] sm:$0xff] %v535
      %623 = vst [vmem:[%s604 + $0xd9] sm:$0xff] %v536
      %624 = vst [vmem:[%s604 + $0xe1] sm:$0xff] %v537
      %625 = vst [vmem:[%s604 + $0xf1] sm:$0xff] %v538
      %626 = vst [vmem:[%s604 + $0xf9] sm:$0xff] %v539
      %627 = vst [vmem:[%s604 + $0x109] sm:$0xff] %v540
      %628 = vst [vmem:[%s604 + $0x111] sm:$0xff] %v541
      %629 = vst [vmem:[%s604 + $0x121] sm:$0xff] %v542
      %630 = vst [vmem:[%s604 + $0x129] sm:$0xff] %v543
      %631 = vst [vmem:[%s604 + $0x139] sm:$0xff] %v544
      %632 = vst [vmem:[%s604 + $0x141] sm:$0xff] %v545
      %633 = vst [vmem:[%s604 + $0x151] sm:$0xff] %v546
      %634 = vst [vmem:[%s604 + $0x159] sm:$0xff] %v547
      %635 = vst [vmem:[%s604 + $0x169] sm:$0xff] %v548
      %636 = vst [vmem:[%s604 + $0x171] sm:$0xff] %v549
      %v637 = vld [vmem:[#allocation2] sm:$0xff]
      %v638 = vld [vmem:[#allocation2 + $0x8] sm:$0xff]
      %v639 = vld [vmem:[#allocation2 + $0x18] sm:$0xff]
      %v640 = vld [vmem:[#allocation2 + $0x20] sm:$0xff]
      %v641 = vld [vmem:[#allocation2 + $0x30] sm:$0xff]
      %v642 = vld [vmem:[#allocation2 + $0x38] sm:$0xff]
      %v643 = vld [vmem:[#allocation2 + $0x48] sm:$0xff]
      %v644 = vld [vmem:[#allocation2 + $0x50] sm:$0xff]
      %v645 = vld [vmem:[#allocation2 + $0x60] sm:$0xff]
      %v646 = vld [vmem:[#allocation2 + $0x68] sm:$0xff]
      %v647 = vld [vmem:[#allocation2 + $0x78] sm:$0xff]
      %v648 = vld [vmem:[#allocation2 + $0x80] sm:$0xff]
      %v649 = vld [vmem:[#allocation2 + $0x90] sm:$0xff]
      %v650 = vld [vmem:[#allocation2 + $0x98] sm:$0xff]
      %v651 = vld [vmem:[#allocation2 + $0xa8] sm:$0xff]
      %v652 = vld [vmem:[#allocation2 + $0xb0] sm:$0xff]
      %v653 = vld [vmem:[#allocation2 + $0xc0] sm:$0xff]
      %v654 = vld [vmem:[#allocation2 + $0xc8] sm:$0xff]
      %v655 = vld [vmem:[#allocation2 + $0xd8] sm:$0xff]
      %v656 = vld [vmem:[#allocation2 + $0xe0] sm:$0xff]
      %v657 = vld [vmem:[#allocation2 + $0xf0] sm:$0xff]
      %v658 = vld [vmem:[#allocation2 + $0xf8] sm:$0xff]
      %v659 = vld [vmem:[#allocation2 + $0x108] sm:$0xff]
      %v660 = vld [vmem:[#allocation2 + $0x110] sm:$0xff]
      %v661 = vld [vmem:[#allocation2 + $0x120] sm:$0xff]
      %v662 = vld [vmem:[#allocation2 + $0x128] sm:$0xff]
      %v663 = vld [vmem:[#allocation2 + $0x138] sm:$0xff]
      %v664 = vld [vmem:[#allocation2 + $0x140] sm:$0xff]
      %v665 = vld [vmem:[#allocation2 + $0x150] sm:$0xff]
      %v666 = vld [vmem:[#allocation2 + $0x158] sm:$0xff]
      %v667 = vld [vmem:[#allocation2 + $0x168] sm:$0xff]
      %v668 = vld [vmem:[#allocation2 + $0x170] sm:$0xff]
      %v669 = vpack.c.bf16 %v638, %v637
      %v670 = vpack.c.bf16 %v640, %v639
      %v671 = vpack.c.bf16 %v642, %v641
      %v672 = vpack.c.bf16 %v644, %v643
      %v673 = vpack.c.bf16 %v646, %v645
      %v674 = vpack.c.bf16 %v648, %v647
      %v675 = vpack.c.bf16 %v650, %v649
      %v676 = vpack.c.bf16 %v652, %v651
      %v677 = vpack.c.bf16 %v654, %v653
      %v678 = vpack.c.bf16 %v656, %v655
      %v679 = vpack.c.bf16 %v658, %v657
      %v680 = vpack.c.bf16 %v660, %v659
      %v681 = vpack.c.bf16 %v662, %v661
      %v682 = vpack.c.bf16 %v664, %v663
      %v683 = vpack.c.bf16 %v666, %v665
      %v684 = vpack.c.bf16 %v668, %v667
      %v685 = vld [vmem:[%s4] sm:$0xf]
      %v686 = vld [vmem:[%s4 + $0x4] sm:$0xf]
      %v687 = vld [vmem:[%s4 + $0x8] sm:$0xf]
      %v688 = vld [vmem:[%s4 + $0xc] sm:$0xf]
      %v689 = vld [vmem:[%s4 + $0x10] sm:$0xf]
      %v690 = vld [vmem:[%s4 + $0x14] sm:$0xf]
      %v691 = vld [vmem:[%s4 + $0x18] sm:$0xf]
      %v692 = vld [vmem:[%s4 + $0x1c] sm:$0xf]
      %v693 = vld [vmem:[%s4 + $0x20] sm:$0xf]
      %v694 = vld [vmem:[%s4 + $0x24] sm:$0xf]
      %v695 = vld [vmem:[%s4 + $0x28] sm:$0xf]
      %v696 = vld [vmem:[%s4 + $0x2c] sm:$0xf]
      %v697 = vld [vmem:[%s4 + $0x30] sm:$0xf]
      %v698 = vld [vmem:[%s4 + $0x34] sm:$0xf]
      %v699 = vld [vmem:[%s4 + $0x38] sm:$0xf]
      %v700 = vld [vmem:[%s4 + $0x3c] sm:$0xf]
      %v717 = vunpack.c.l.b16 %v685
      %v718 = vunpack.c.l.b16 %v686
      %v719 = vunpack.c.l.b16 %v687
      %v720 = vunpack.c.l.b16 %v688
      %v721 = vunpack.c.l.b16 %v689
      %v722 = vunpack.c.l.b16 %v690
      %v723 = vunpack.c.l.b16 %v691
      %v724 = vunpack.c.l.b16 %v692
      %v725 = vunpack.c.l.b16 %v693
      %v726 = vunpack.c.l.b16 %v694
      %v727 = vunpack.c.l.b16 %v695
      %v728 = vunpack.c.l.b16 %v696
      %v729 = vunpack.c.l.b16 %v697
      %v730 = vunpack.c.l.b16 %v698
      %v731 = vunpack.c.l.b16 %v699
      %v732 = vunpack.c.l.b16 %v700
      %v733 = vpack.c.b16 %v718, %v717
      %v734 = vpack.c.b16 %v720, %v719
      %v735 = vpack.c.b16 %v722, %v721
      %v736 = vpack.c.b16 %v724, %v723
      %v737 = vpack.c.b16 %v726, %v725
      %v738 = vpack.c.b16 %v728, %v727
      %v739 = vpack.c.b16 %v730, %v729
      %v740 = vpack.c.b16 %v732, %v731
      %749 = vmatprep.subr.bf16.mxu0 0
      %750 = vmatpush1.bf16.msra.mxu0 %v733
      %751 = vmatprep.subr.bf16.mxu0 0
      %752 = vmatpush1.bf16.msra.mxu0 %v734
      %753 = vmatprep.subr.bf16.mxu0 0
      %754 = vmatpush1.bf16.msra.mxu0 %v735
      %755 = vmatprep.subr.bf16.mxu0 0
      %756 = vmatpush1.bf16.msra.mxu0 %v736
      %757 = vmatprep.subr.bf16.mxu0 0
      %758 = vmatpush1.bf16.msra.mxu0 %v737
      %759 = vmatprep.subr.bf16.mxu0 0
      %760 = vmatpush1.bf16.msra.mxu0 %v738
      %761 = vmatprep.subr.bf16.mxu0 0
      %762 = vmatpush1.bf16.msra.mxu0 %v739
      %763 = vmatprep.subr.bf16.mxu0 0
      %764 = vmatpush1.bf16.msra.mxu0 %v740
      %765 = vmatprep.subr.bf16.mxu0 0
      %766 = vmatpush1.bf16.msra.mxu0 0
      %767 = vmatprep.subr.bf16.mxu0 0
      %768 = vmatpush1.bf16.msra.mxu0 0
      %769 = vmatprep.subr.bf16.mxu0 0
      %770 = vmatpush1.bf16.msra.mxu0 0
      %771 = vmatprep.subr.bf16.mxu0 0
      %772 = vmatpush1.bf16.msra.mxu0 0
      %773 = vmatprep.subr.bf16.mxu0 0
      %774 = vmatpush1.bf16.msra.mxu0 0
      %775 = vmatprep.subr.bf16.mxu0 0
      %776 = vmatpush1.bf16.msra.mxu0 0
      %777 = vmatprep.subr.bf16.mxu0 0
      %778 = vmatpush1.bf16.msra.mxu0 0
      %779 = vmatprep.subr.bf16.mxu0 0
      %780 = vmatpush1.bf16.msra.mxu0 0
      %781 = vmatprep.mubr.bf16.mxu0 0
      %782 = vmatmul.mubr.bf16.gmra.mrb[0].mxu0 %v669
      %v783 = vpop.f32.mrb[0].mxu0
      %v784 = vadd.f32 0.0, %v783
      %v785 = vpop.f32.mrb[0].mxu0
      %v786 = vpop.f32.mrb[0].mxu0
      %v787 = vadd.f32 0.0, %v786
      %v788 = vpop.f32.mrb[0].mxu0
      %789 = vmatprep.mubr.bf16.mxu0 0
      %790 = vmatmul.mubr.bf16.gmra.mrb[0].mxu0 %v670
      %v791 = vpop.f32.mrb[0].mxu0
      %v792 = vadd.f32 0.0, %v791
      %v793 = vpop.f32.mrb[0].mxu0
      %v794 = vpop.f32.mrb[0].mxu0
      %v795 = vadd.f32 0.0, %v794
      %v796 = vpop.f32.mrb[0].mxu0
      %797 = vmatprep.mubr.bf16.mxu0 0
      %798 = vmatmul.mubr.bf16.gmra.mrb[0].mxu0 %v671
      %v799 = vpop.f32.mrb[0].mxu0
      %v800 = vadd.f32 0.0, %v799
      %v801 = vpop.f32.mrb[0].mxu0
      %v802 = vpop.f32.mrb[0].mxu0
      %v803 = vadd.f32 0.0, %v802
      %v804 = vpop.f32.mrb[0].mxu0
      %805 = vmatprep.mubr.bf16.mxu0 0
      %806 = vmatmul.mubr.bf16.gmra.mrb[0].mxu0 %v672
      %v807 = vpop.f32.mrb[0].mxu0
      %v808 = vadd.f32 0.0, %v807
      %v809 = vpop.f32.mrb[0].mxu0
      %v810 = vpop.f32.mrb[0].mxu0
      %v811 = vadd.f32 0.0, %v810
      %v812 = vpop.f32.mrb[0].mxu0
      %813 = vmatprep.mubr.bf16.mxu0 0
      %814 = vmatmul.mubr.bf16.gmra.mrb[0].mxu0 %v673
      %v815 = vpop.f32.mrb[0].mxu0
      %v816 = vadd.f32 0.0, %v815
      %v817 = vpop.f32.mrb[0].mxu0
      %v818 = vpop.f32.mrb[0].mxu0
      %v819 = vadd.f32 0.0, %v818
      %v820 = vpop.f32.mrb[0].mxu0
      %821 = vmatprep.mubr.bf16.mxu0 0
      %822 = vmatmul.mubr.bf16.gmra.mrb[0].mxu0 %v674
      %v823 = vpop.f32.mrb[0].mxu0
      %v824 = vadd.f32 0.0, %v823
      %v825 = vpop.f32.mrb[0].mxu0
      %v826 = vpop.f32.mrb[0].mxu0
      %v827 = vadd.f32 0.0, %v826
      %v828 = vpop.f32.mrb[0].mxu0
      %829 = vmatprep.mubr.bf16.mxu0 0
      %830 = vmatmul.mubr.bf16.gmra.mrb[0].mxu0 %v675
      %v831 = vpop.f32.mrb[0].mxu0
      %v832 = vadd.f32 0.0, %v831
      %v833 = vpop.f32.mrb[0].mxu0
      %v834 = vpop.f32.mrb[0].mxu0
      %v835 = vadd.f32 0.0, %v834
      %v836 = vpop.f32.mrb[0].mxu0
      %837 = vmatprep.mubr.bf16.mxu0 0
      %838 = vmatmul.mubr.bf16.gmra.mrb[0].mxu0 %v676
      %v839 = vpop.f32.mrb[0].mxu0
      %v840 = vadd.f32 0.0, %v839
      %v841 = vpop.f32.mrb[0].mxu0
      %v842 = vpop.f32.mrb[0].mxu0
      %v843 = vadd.f32 0.0, %v842
      %v844 = vpop.f32.mrb[0].mxu0
      %845 = vmatprep.mubr.bf16.mxu0 0
      %846 = vmatmul.mubr.bf16.gmra.mrb[0].mxu0 %v677
      %v847 = vpop.f32.mrb[0].mxu0
      %v848 = vadd.f32 0.0, %v847
      %v849 = vpop.f32.mrb[0].mxu0
      %v850 = vpop.f32.mrb[0].mxu0
      %v851 = vadd.f32 0.0, %v850
      %v852 = vpop.f32.mrb[0].mxu0
      %853 = vmatprep.mubr.bf16.mxu0 0
      %854 = vmatmul.mubr.bf16.gmra.mrb[0].mxu0 %v678
      %v855 = vpop.f32.mrb[0].mxu0
      %v856 = vadd.f32 0.0, %v855
      %v857 = vpop.f32.mrb[0].mxu0
      %v858 = vpop.f32.mrb[0].mxu0
      %v859 = vadd.f32 0.0, %v858
      %v860 = vpop.f32.mrb[0].mxu0
      %861 = vmatprep.mubr.bf16.mxu0 0
      %862 = vmatmul.mubr.bf16.gmra.mrb[0].mxu0 %v679
      %v863 = vpop.f32.mrb[0].mxu0
      %v864 = vadd.f32 0.0, %v863
      %v865 = vpop.f32.mrb[0].mxu0
      %v866 = vpop.f32.mrb[0].mxu0
      %v867 = vadd.f32 0.0, %v866
      %v868 = vpop.f32.mrb[0].mxu0
      %869 = vmatprep.mubr.bf16.mxu0 0
      %870 = vmatmul.mubr.bf16.gmra.mrb[0].mxu0 %v680
      %v871 = vpop.f32.mrb[0].mxu0
      %v872 = vadd.f32 0.0, %v871
      %v873 = vpop.f32.mrb[0].mxu0
      %v874 = vpop.f32.mrb[0].mxu0
      %v875 = vadd.f32 0.0, %v874
      %v876 = vpop.f32.mrb[0].mxu0
      %877 = vmatprep.mubr.bf16.mxu0 0
      %878 = vmatmul.mubr.bf16.gmra.mrb[0].mxu0 %v681
      %v879 = vpop.f32.mrb[0].mxu0
      %v880 = vadd.f32 0.0, %v879
      %v881 = vpop.f32.mrb[0].mxu0
      %v882 = vpop.f32.mrb[0].mxu0
      %v883 = vadd.f32 0.0, %v882
      %v884 = vpop.f32.mrb[0].mxu0
      %885 = vmatprep.mubr.bf16.mxu0 0
      %886 = vmatmul.mubr.bf16.gmra.mrb[0].mxu0 %v682
      %v887 = vpop.f32.mrb[0].mxu0
      %v888 = vadd.f32 0.0, %v887
      %v889 = vpop.f32.mrb[0].mxu0
      %v890 = vpop.f32.mrb[0].mxu0
      %v891 = vadd.f32 0.0, %v890
      %v892 = vpop.f32.mrb[0].mxu0
      %893 = vmatprep.mubr.bf16.mxu0 0
      %894 = vmatmul.mubr.bf16.gmra.mrb[0].mxu0 %v683
      %v895 = vpop.f32.mrb[0].mxu0
      %v896 = vadd.f32 0.0, %v895
      %v897 = vpop.f32.mrb[0].mxu0
      %v898 = vpop.f32.mrb[0].mxu0
      %v899 = vadd.f32 0.0, %v898
      %v900 = vpop.f32.mrb[0].mxu0
      %901 = vmatprep.mubr.bf16.mxu0 0
      %902 = vmatmul.mubr.bf16.gmra.mrb[0].mxu0 %v684
      %v903 = vpop.f32.mrb[0].mxu0
      %v904 = vadd.f32 0.0, %v903
      %v905 = vpop.f32.mrb[0].mxu0
      %v906 = vpop.f32.mrb[0].mxu0
      %v907 = vadd.f32 0.0, %v906
      %v908 = vpop.f32.mrb[0].mxu0
      %909 = vdwg.mxu0
      %910 = vst [vmem:[#allocation3] sm:$0xff] %v784
      %911 = vst [vmem:[#allocation3 + $0x8] sm:$0xff] %v787
      %912 = vst [vmem:[#allocation3 + $0x10] sm:$0xff] %v792
      %913 = vst [vmem:[#allocation3 + $0x18] sm:$0xff] %v795
      %914 = vst [vmem:[#allocation3 + $0x20] sm:$0xff] %v800
      %915 = vst [vmem:[#allocation3 + $0x28] sm:$0xff] %v803
      %916 = vst [vmem:[#allocation3 + $0x30] sm:$0xff] %v808
      %917 = vst [vmem:[#allocation3 + $0x38] sm:$0xff] %v811
      %918 = vst [vmem:[#allocation3 + $0x40] sm:$0xff] %v816
      %919 = vst [vmem:[#allocation3 + $0x48] sm:$0xff] %v819
      %920 = vst [vmem:[#allocation3 + $0x50] sm:$0xff] %v824
      %921 = vst [vmem:[#allocation3 + $0x58] sm:$0xff] %v827
      %922 = vst [vmem:[#allocation3 + $0x60] sm:$0xff] %v832
      %923 = vst [vmem:[#allocation3 + $0x68] sm:$0xff] %v835
      %924 = vst [vmem:[#allocation3 + $0x70] sm:$0xff] %v840
      %925 = vst [vmem:[#allocation3 + $0x78] sm:$0xff] %v843
      %926 = vst [vmem:[#allocation3 + $0x80] sm:$0xff] %v848
      %927 = vst [vmem:[#allocation3 + $0x88] sm:$0xff] %v851
      %928 = vst [vmem:[#allocation3 + $0x90] sm:$0xff] %v856
      %929 = vst [vmem:[#allocation3 + $0x98] sm:$0xff] %v859
      %930 = vst [vmem:[#allocation3 + $0xa0] sm:$0xff] %v864
      %931 = vst [vmem:[#allocation3 + $0xa8] sm:$0xff] %v867
      %932 = vst [vmem:[#allocation3 + $0xb0] sm:$0xff] %v872
      %933 = vst [vmem:[#allocation3 + $0xb8] sm:$0xff] %v875
      %934 = vst [vmem:[#allocation3 + $0xc0] sm:$0xff] %v880
      %935 = vst [vmem:[#allocation3 + $0xc8] sm:$0xff] %v883
      %936 = vst [vmem:[#allocation3 + $0xd0] sm:$0xff] %v888
      %937 = vst [vmem:[#allocation3 + $0xd8] sm:$0xff] %v891
      %938 = vst [vmem:[#allocation3 + $0xe0] sm:$0xff] %v896
      %939 = vst [vmem:[#allocation3 + $0xe8] sm:$0xff] %v899
      %940 = vst [vmem:[#allocation3 + $0xf0] sm:$0xff] %v904
      %941 = vst [vmem:[#allocation3 + $0xf8] sm:$0xff] %v907
      %v942 = vld [vmem:[#allocation2 + $0x1] sm:$0xff]
      %v943 = vld [vmem:[#allocation2 + $0x9] sm:$0xff]
      %v944 = vld [vmem:[#allocation2 + $0x19] sm:$0xff]
      %v945 = vld [vmem:[#allocation2 + $0x21] sm:$0xff]
      %v946 = vld [vmem:[#allocation2 + $0x31] sm:$0xff]
      %v947 = vld [vmem:[#allocation2 + $0x39] sm:$0xff]
      %v948 = vld [vmem:[#allocation2 + $0x49] sm:$0xff]
      %v949 = vld [vmem:[#allocation2 + $0x51] sm:$0xff]
      %v950 = vld [vmem:[#allocation2 + $0x61] sm:$0xff]
      %v951 = vld [vmem:[#allocation2 + $0x69] sm:$0xff]
      %v952 = vld [vmem:[#allocation2 + $0x79] sm:$0xff]
      %v953 = vld [vmem:[#allocation2 + $0x81] sm:$0xff]
      %v954 = vld [vmem:[#allocation2 + $0x91] sm:$0xff]
      %v955 = vld [vmem:[#allocation2 + $0x99] sm:$0xff]
      %v956 = vld [vmem:[#allocation2 + $0xa9] sm:$0xff]
      %v957 = vld [vmem:[#allocation2 + $0xb1] sm:$0xff]
      %v958 = vld [vmem:[#allocation2 + $0xc1] sm:$0xff]
      %v959 = vld [vmem:[#allocation2 + $0xc9] sm:$0xff]
      %v960 = vld [vmem:[#allocation2 + $0xd9] sm:$0xff]
      %v961 = vld [vmem:[#allocation2 + $0xe1] sm:$0xff]
      %v962 = vld [vmem:[#allocation2 + $0xf1] sm:$0xff]
      %v963 = vld [vmem:[#allocation2 + $0xf9] sm:$0xff]
      %v964 = vld [vmem:[#allocation2 + $0x109] sm:$0xff]
      %v965 = vld [vmem:[#allocation2 + $0x111] sm:$0xff]
      %v966 = vld [vmem:[#allocation2 + $0x121] sm:$0xff]
      %v967 = vld [vmem:[#allocation2 + $0x129] sm:$0xff]
      %v968 = vld [vmem:[#allocation2 + $0x139] sm:$0xff]
      %v969 = vld [vmem:[#allocation2 + $0x141] sm:$0xff]
      %v970 = vld [vmem:[#allocation2 + $0x151] sm:$0xff]
      %v971 = vld [vmem:[#allocation2 + $0x159] sm:$0xff]
      %v972 = vld [vmem:[#allocation2 + $0x169] sm:$0xff]
      %v973 = vld [vmem:[#allocation2 + $0x171] sm:$0xff]
      %v974 = vpack.c.bf16 %v943, %v942
      %v975 = vpack.c.bf16 %v945, %v944
      %v976 = vpack.c.bf16 %v947, %v946
      %v977 = vpack.c.bf16 %v949, %v948
      %v978 = vpack.c.bf16 %v951, %v950
      %v979 = vpack.c.bf16 %v953, %v952
      %v980 = vpack.c.bf16 %v955, %v954
      %v981 = vpack.c.bf16 %v957, %v956
      %v982 = vpack.c.bf16 %v959, %v958
      %v983 = vpack.c.bf16 %v961, %v960
      %v984 = vpack.c.bf16 %v963, %v962
      %v985 = vpack.c.bf16 %v965, %v964
      %v986 = vpack.c.bf16 %v967, %v966
      %v987 = vpack.c.bf16 %v969, %v968
      %v988 = vpack.c.bf16 %v971, %v970
      %v989 = vpack.c.bf16 %v973, %v972
      %s990 = scalar_lea.vmem %s4, 64
      %v991 = vld [vmem:[%s990] sm:$0xf]
      %v992 = vld [vmem:[%s990 + $0x4] sm:$0xf]
      %v993 = vld [vmem:[%s990 + $0x8] sm:$0xf]
      %v994 = vld [vmem:[%s990 + $0xc] sm:$0xf]
      %v995 = vld [vmem:[%s990 + $0x10] sm:$0xf]
      %v996 = vld [vmem:[%s990 + $0x14] sm:$0xf]
      %v997 = vld [vmem:[%s990 + $0x18] sm:$0xf]
      %v998 = vld [vmem:[%s990 + $0x1c] sm:$0xf]
      %v999 = vld [vmem:[%s990 + $0x20] sm:$0xf]
      %v1000 = vld [vmem:[%s990 + $0x24] sm:$0xf]
      %v1001 = vld [vmem:[%s990 + $0x28] sm:$0xf]
      %v1002 = vld [vmem:[%s990 + $0x2c] sm:$0xf]
      %v1003 = vld [vmem:[%s990 + $0x30] sm:$0xf]
      %v1004 = vld [vmem:[%s990 + $0x34] sm:$0xf]
      %v1005 = vld [vmem:[%s990 + $0x38] sm:$0xf]
      %v1006 = vld [vmem:[%s990 + $0x3c] sm:$0xf]
      %v1023 = vunpack.c.l.b16 %v991
      %v1024 = vunpack.c.l.b16 %v992
      %v1025 = vunpack.c.l.b16 %v993
      %v1026 = vunpack.c.l.b16 %v994
      %v1027 = vunpack.c.l.b16 %v995
      %v1028 = vunpack.c.l.b16 %v996
      %v1029 = vunpack.c.l.b16 %v997
      %v1030 = vunpack.c.l.b16 %v998
      %v1031 = vunpack.c.l.b16 %v999
      %v1032 = vunpack.c.l.b16 %v1000
      %v1033 = vunpack.c.l.b16 %v1001
      %v1034 = vunpack.c.l.b16 %v1002
      %v1035 = vunpack.c.l.b16 %v1003
      %v1036 = vunpack.c.l.b16 %v1004
      %v1037 = vunpack.c.l.b16 %v1005
      %v1038 = vunpack.c.l.b16 %v1006
      %v1039 = vpack.c.b16 %v1024, %v1023
      %v1040 = vpack.c.b16 %v1026, %v1025
      %v1041 = vpack.c.b16 %v1028, %v1027
      %v1042 = vpack.c.b16 %v1030, %v1029
      %v1043 = vpack.c.b16 %v1032, %v1031
      %v1044 = vpack.c.b16 %v1034, %v1033
      %v1045 = vpack.c.b16 %v1036, %v1035
      %v1046 = vpack.c.b16 %v1038, %v1037
      %1055 = vmatprep.subr.bf16.mxu0 0
      %1056 = vmatpush1.bf16.msra.mxu0 %v1039
      %1057 = vmatprep.subr.bf16.mxu0 0
      %1058 = vmatpush1.bf16.msra.mxu0 %v1040
      %1059 = vmatprep.subr.bf16.mxu0 0
      %1060 = vmatpush1.bf16.msra.mxu0 %v1041
      %1061 = vmatprep.subr.bf16.mxu0 0
      %1062 = vmatpush1.bf16.msra.mxu0 %v1042
      %1063 = vmatprep.subr.bf16.mxu0 0
      %1064 = vmatpush1.bf16.msra.mxu0 %v1043
      %1065 = vmatprep.subr.bf16.mxu0 0
      %1066 = vmatpush1.bf16.msra.mxu0 %v1044
      %1067 = vmatprep.subr.bf16.mxu0 0
      %1068 = vmatpush1.bf16.msra.mxu0 %v1045
      %1069 = vmatprep.subr.bf16.mxu0 0
      %1070 = vmatpush1.bf16.msra.mxu0 %v1046
      %1071 = vmatprep.subr.bf16.mxu0 0
      %1072 = vmatpush1.bf16.msra.mxu0 0
      %1073 = vmatprep.subr.bf16.mxu0 0
      %1074 = vmatpush1.bf16.msra.mxu0 0
      %1075 = vmatprep.subr.bf16.mxu0 0
      %1076 = vmatpush1.bf16.msra.mxu0 0
      %1077 = vmatprep.subr.bf16.mxu0 0
      %1078 = vmatpush1.bf16.msra.mxu0 0
      %1079 = vmatprep.subr.bf16.mxu0 0
      %1080 = vmatpush1.bf16.msra.mxu0 0
      %1081 = vmatprep.subr.bf16.mxu0 0
      %1082 = vmatpush1.bf16.msra.mxu0 0
      %1083 = vmatprep.subr.bf16.mxu0 0
      %1084 = vmatpush1.bf16.msra.mxu0 0
      %1085 = vmatprep.subr.bf16.mxu0 0
      %1086 = vmatpush1.bf16.msra.mxu0 0
      %1087 = vmatprep.mubr.bf16.mxu0 0
      %1088 = vmatmul.mubr.bf16.gmra.mrb[0].mxu0 %v974
      %v1089 = vpop.f32.mrb[0].mxu0
      %v1090 = vadd.f32 0.0, %v1089
      %v1091 = vpop.f32.mrb[0].mxu0
      %v1092 = vpop.f32.mrb[0].mxu0
      %v1093 = vadd.f32 0.0, %v1092
      %v1094 = vpop.f32.mrb[0].mxu0
      %1095 = vmatprep.mubr.bf16.mxu0 0
      %1096 = vmatmul.mubr.bf16.gmra.mrb[0].mxu0 %v975
      %v1097 = vpop.f32.mrb[0].mxu0
      %v1098 = vadd.f32 0.0, %v1097
      %v1099 = vpop.f32.mrb[0].mxu0
      %v1100 = vpop.f32.mrb[0].mxu0
      %v1101 = vadd.f32 0.0, %v1100
      %v1102 = vpop.f32.mrb[0].mxu0
      %1103 = vmatprep.mubr.bf16.mxu0 0
      %1104 = vmatmul.mubr.bf16.gmra.mrb[0].mxu0 %v976
      %v1105 = vpop.f32.mrb[0].mxu0
      %v1106 = vadd.f32 0.0, %v1105
      %v1107 = vpop.f32.mrb[0].mxu0
      %v1108 = vpop.f32.mrb[0].mxu0
      %v1109 = vadd.f32 0.0, %v1108
      %v1110 = vpop.f32.mrb[0].mxu0
      %1111 = vmatprep.mubr.bf16.mxu0 0
      %1112 = vmatmul.mubr.bf16.gmra.mrb[0].mxu0 %v977
      %v1113 = vpop.f32.mrb[0].mxu0
      %v1114 = vadd.f32 0.0, %v1113
      %v1115 = vpop.f32.mrb[0].mxu0
      %v1116 = vpop.f32.mrb[0].mxu0
      %v1117 = vadd.f32 0.0, %v1116
      %v1118 = vpop.f32.mrb[0].mxu0
      %1119 = vmatprep.mubr.bf16.mxu0 0
      %1120 = vmatmul.mubr.bf16.gmra.mrb[0].mxu0 %v978
      %v1121 = vpop.f32.mrb[0].mxu0
      %v1122 = vadd.f32 0.0, %v1121
      %v1123 = vpop.f32.mrb[0].mxu0
      %v1124 = vpop.f32.mrb[0].mxu0
      %v1125 = vadd.f32 0.0, %v1124
      %v1126 = vpop.f32.mrb[0].mxu0
      %1127 = vmatprep.mubr.bf16.mxu0 0
      %1128 = vmatmul.mubr.bf16.gmra.mrb[0].mxu0 %v979
      %v1129 = vpop.f32.mrb[0].mxu0
      %v1130 = vadd.f32 0.0, %v1129
      %v1131 = vpop.f32.mrb[0].mxu0
      %v1132 = vpop.f32.mrb[0].mxu0
      %v1133 = vadd.f32 0.0, %v1132
      %v1134 = vpop.f32.mrb[0].mxu0
      %1135 = vmatprep.mubr.bf16.mxu0 0
      %1136 = vmatmul.mubr.bf16.gmra.mrb[0].mxu0 %v980
      %v1137 = vpop.f32.mrb[0].mxu0
      %v1138 = vadd.f32 0.0, %v1137
      %v1139 = vpop.f32.mrb[0].mxu0
      %v1140 = vpop.f32.mrb[0].mxu0
      %v1141 = vadd.f32 0.0, %v1140
      %v1142 = vpop.f32.mrb[0].mxu0
      %1143 = vmatprep.mubr.bf16.mxu0 0
      %1144 = vmatmul.mubr.bf16.gmra.mrb[0].mxu0 %v981
      %v1145 = vpop.f32.mrb[0].mxu0
      %v1146 = vadd.f32 0.0, %v1145
      %v1147 = vpop.f32.mrb[0].mxu0
      %v1148 = vpop.f32.mrb[0].mxu0
      %v1149 = vadd.f32 0.0, %v1148
      %v1150 = vpop.f32.mrb[0].mxu0
      %1151 = vmatprep.mubr.bf16.mxu0 0
      %1152 = vmatmul.mubr.bf16.gmra.mrb[0].mxu0 %v982
      %v1153 = vpop.f32.mrb[0].mxu0
      %v1154 = vadd.f32 0.0, %v1153
      %v1155 = vpop.f32.mrb[0].mxu0
      %v1156 = vpop.f32.mrb[0].mxu0
      %v1157 = vadd.f32 0.0, %v1156
      %v1158 = vpop.f32.mrb[0].mxu0
      %1159 = vmatprep.mubr.bf16.mxu0 0
      %1160 = vmatmul.mubr.bf16.gmra.mrb[0].mxu0 %v983
      %v1161 = vpop.f32.mrb[0].mxu0
      %v1162 = vadd.f32 0.0, %v1161
      %v1163 = vpop.f32.mrb[0].mxu0
      %v1164 = vpop.f32.mrb[0].mxu0
      %v1165 = vadd.f32 0.0, %v1164
      %v1166 = vpop.f32.mrb[0].mxu0
      %1167 = vmatprep.mubr.bf16.mxu0 0
      %1168 = vmatmul.mubr.bf16.gmra.mrb[0].mxu0 %v984
      %v1169 = vpop.f32.mrb[0].mxu0
      %v1170 = vadd.f32 0.0, %v1169
      %v1171 = vpop.f32.mrb[0].mxu0
      %v1172 = vpop.f32.mrb[0].mxu0
      %v1173 = vadd.f32 0.0, %v1172
      %v1174 = vpop.f32.mrb[0].mxu0
      %1175 = vmatprep.mubr.bf16.mxu0 0
      %1176 = vmatmul.mubr.bf16.gmra.mrb[0].mxu0 %v985
      %v1177 = vpop.f32.mrb[0].mxu0
      %v1178 = vadd.f32 0.0, %v1177
      %v1179 = vpop.f32.mrb[0].mxu0
      %v1180 = vpop.f32.mrb[0].mxu0
      %v1181 = vadd.f32 0.0, %v1180
      %v1182 = vpop.f32.mrb[0].mxu0
      %1183 = vmatprep.mubr.bf16.mxu0 0
      %1184 = vmatmul.mubr.bf16.gmra.mrb[0].mxu0 %v986
      %v1185 = vpop.f32.mrb[0].mxu0
      %v1186 = vadd.f32 0.0, %v1185
      %v1187 = vpop.f32.mrb[0].mxu0
      %v1188 = vpop.f32.mrb[0].mxu0
      %v1189 = vadd.f32 0.0, %v1188
      %v1190 = vpop.f32.mrb[0].mxu0
      %1191 = vmatprep.mubr.bf16.mxu0 0
      %1192 = vmatmul.mubr.bf16.gmra.mrb[0].mxu0 %v987
      %v1193 = vpop.f32.mrb[0].mxu0
      %v1194 = vadd.f32 0.0, %v1193
      %v1195 = vpop.f32.mrb[0].mxu0
      %v1196 = vpop.f32.mrb[0].mxu0
      %v1197 = vadd.f32 0.0, %v1196
      %v1198 = vpop.f32.mrb[0].mxu0
      %1199 = vmatprep.mubr.bf16.mxu0 0
      %1200 = vmatmul.mubr.bf16.gmra.mrb[0].mxu0 %v988
      %v1201 = vpop.f32.mrb[0].mxu0
      %v1202 = vadd.f32 0.0, %v1201
      %v1203 = vpop.f32.mrb[0].mxu0
      %v1204 = vpop.f32.mrb[0].mxu0
      %v1205 = vadd.f32 0.0, %v1204
      %v1206 = vpop.f32.mrb[0].mxu0
      %1207 = vmatprep.mubr.bf16.mxu0 0
      %1208 = vmatmul.mubr.bf16.gmra.mrb[0].mxu0 %v989
      %v1209 = vpop.f32.mrb[0].mxu0
      %v1210 = vadd.f32 0.0, %v1209
      %v1211 = vpop.f32.mrb[0].mxu0
      %v1212 = vpop.f32.mrb[0].mxu0
      %v1213 = vadd.f32 0.0, %v1212
      %v1214 = vpop.f32.mrb[0].mxu0
      %1215 = vdwg.mxu0
      %v1216 = vld [vmem:[#allocation3] sm:$0xff]
      %v1217 = vld [vmem:[#allocation3 + $0x8] sm:$0xff]
      %v1218 = vld [vmem:[#allocation3 + $0x10] sm:$0xff]
      %v1219 = vld [vmem:[#allocation3 + $0x18] sm:$0xff]
      %v1220 = vld [vmem:[#allocation3 + $0x20] sm:$0xff]
      %v1221 = vld [vmem:[#allocation3 + $0x28] sm:$0xff]
      %v1222 = vld [vmem:[#allocation3 + $0x30] sm:$0xff]
      %v1223 = vld [vmem:[#allocation3 + $0x38] sm:$0xff]
      %v1224 = vld [vmem:[#allocation3 + $0x40] sm:$0xff]
      %v1225 = vld [vmem:[#allocation3 + $0x48] sm:$0xff]
      %v1226 = vld [vmem:[#allocation3 + $0x50] sm:$0xff]
      %v1227 = vld [vmem:[#allocation3 + $0x58] sm:$0xff]
      %v1228 = vld [vmem:[#allocation3 + $0x60] sm:$0xff]
      %v1229 = vld [vmem:[#allocation3 + $0x68] sm:$0xff]
      %v1230 = vld [vmem:[#allocation3 + $0x70] sm:$0xff]
      %v1231 = vld [vmem:[#allocation3 + $0x78] sm:$0xff]
      %v1232 = vld [vmem:[#allocation3 + $0x80] sm:$0xff]
      %v1233 = vld [vmem:[#allocation3 + $0x88] sm:$0xff]
      %v1234 = vld [vmem:[#allocation3 + $0x90] sm:$0xff]
      %v1235 = vld [vmem:[#allocation3 + $0x98] sm:$0xff]
      %v1236 = vld [vmem:[#allocation3 + $0xa0] sm:$0xff]
      %v1237 = vld [vmem:[#allocation3 + $0xa8] sm:$0xff]
      %v1238 = vld [vmem:[#allocation3 + $0xb0] sm:$0xff]
      %v1239 = vld [vmem:[#allocation3 + $0xb8] sm:$0xff]
      %v1240 = vld [vmem:[#allocation3 + $0xc0] sm:$0xff]
      %v1241 = vld [vmem:[#allocation3 + $0xc8] sm:$0xff]
      %v1242 = vld [vmem:[#allocation3 + $0xd0] sm:$0xff]
      %v1243 = vld [vmem:[#allocation3 + $0xd8] sm:$0xff]
      %v1244 = vld [vmem:[#allocation3 + $0xe0] sm:$0xff]
      %v1245 = vld [vmem:[#allocation3 + $0xe8] sm:$0xff]
      %v1246 = vld [vmem:[#allocation3 + $0xf0] sm:$0xff]
      %v1247 = vld [vmem:[#allocation3 + $0xf8] sm:$0xff]
      %v1248 = vadd.f32 %v1216, %v1090
      %v1249 = vadd.f32 %v1217, %v1093
      %v1250 = vadd.f32 %v1218, %v1098
      %v1251 = vadd.f32 %v1219, %v1101
      %v1252 = vadd.f32 %v1220, %v1106
      %v1253 = vadd.f32 %v1221, %v1109
      %v1254 = vadd.f32 %v1222, %v1114
      %v1255 = vadd.f32 %v1223, %v1117
      %v1256 = vadd.f32 %v1224, %v1122
      %v1257 = vadd.f32 %v1225, %v1125
      %v1258 = vadd.f32 %v1226, %v1130
      %v1259 = vadd.f32 %v1227, %v1133
      %v1260 = vadd.f32 %v1228, %v1138
      %v1261 = vadd.f32 %v1229, %v1141
      %v1262 = vadd.f32 %v1230, %v1146
      %v1263 = vadd.f32 %v1231, %v1149
      %v1264 = vadd.f32 %v1232, %v1154
      %v1265 = vadd.f32 %v1233, %v1157
      %v1266 = vadd.f32 %v1234, %v1162
      %v1267 = vadd.f32 %v1235, %v1165
      %v1268 = vadd.f32 %v1236, %v1170
      %v1269 = vadd.f32 %v1237, %v1173
      %v1270 = vadd.f32 %v1238, %v1178
      %v1271 = vadd.f32 %v1239, %v1181
      %v1272 = vadd.f32 %v1240, %v1186
      %v1273 = vadd.f32 %v1241, %v1189
      %v1274 = vadd.f32 %v1242, %v1194
      %v1275 = vadd.f32 %v1243, %v1197
      %v1276 = vadd.f32 %v1244, %v1202
      %v1277 = vadd.f32 %v1245, %v1205
      %v1278 = vadd.f32 %v1246, %v1210
      %v1279 = vadd.f32 %v1247, %v1213
      %1280 = vst [vmem:[#allocation3] sm:$0xff] %v1248
      %1281 = vst [vmem:[#allocation3 + $0x8] sm:$0xff] %v1249
      %1282 = vst [vmem:[#allocation3 + $0x10] sm:$0xff] %v1250
      %1283 = vst [vmem:[#allocation3 + $0x18] sm:$0xff] %v1251
      %1284 = vst [vmem:[#allocation3 + $0x20] sm:$0xff] %v1252
      %1285 = vst [vmem:[#allocation3 + $0x28] sm:$0xff] %v1253
      %1286 = vst [vmem:[#allocation3 + $0x30] sm:$0xff] %v1254
      %1287 = vst [vmem:[#allocation3 + $0x38] sm:$0xff] %v1255
      %1288 = vst [vmem:[#allocation3 + $0x40] sm:$0xff] %v1256
      %1289 = vst [vmem:[#allocation3 + $0x48] sm:$0xff] %v1257
      %1290 = vst [vmem:[#allocation3 + $0x50] sm:$0xff] %v1258
      %1291 = vst [vmem:[#allocation3 + $0x58] sm:$0xff] %v1259
      %1292 = vst [vmem:[#allocation3 + $0x60] sm:$0xff] %v1260
      %1293 = vst [vmem:[#allocation3 + $0x68] sm:$0xff] %v1261
      %1294 = vst [vmem:[#allocation3 + $0x70] sm:$0xff] %v1262
      %1295 = vst [vmem:[#allocation3 + $0x78] sm:$0xff] %v1263
      %1296 = vst [vmem:[#allocation3 + $0x80] sm:$0xff] %v1264
      %1297 = vst [vmem:[#allocation3 + $0x88] sm:$0xff] %v1265
      %1298 = vst [vmem:[#allocation3 + $0x90] sm:$0xff] %v1266
      %1299 = vst [vmem:[#allocation3 + $0x98] sm:$0xff] %v1267
      %1300 = vst [vmem:[#allocation3 + $0xa0] sm:$0xff] %v1268
      %1301 = vst [vmem:[#allocation3 + $0xa8] sm:$0xff] %v1269
      %1302 = vst [vmem:[#allocation3 + $0xb0] sm:$0xff] %v1270
      %1303 = vst [vmem:[#allocation3 + $0xb8] sm:$0xff] %v1271
      %1304 = vst [vmem:[#allocation3 + $0xc0] sm:$0xff] %v1272
      %1305 = vst [vmem:[#allocation3 + $0xc8] sm:$0xff] %v1273
      %1306 = vst [vmem:[#allocation3 + $0xd0] sm:$0xff] %v1274
      %1307 = vst [vmem:[#allocation3 + $0xd8] sm:$0xff] %v1275
      %1308 = vst [vmem:[#allocation3 + $0xe0] sm:$0xff] %v1276
      %1309 = vst [vmem:[#allocation3 + $0xe8] sm:$0xff] %v1277
      %1310 = vst [vmem:[#allocation3 + $0xf0] sm:$0xff] %v1278
      %1311 = vst [vmem:[#allocation3 + $0xf8] sm:$0xff] %v1279
      %v1312 = vld [vmem:[#allocation2 + $0x2] sm:$0xff]
      %v1313 = vld [vmem:[#allocation2 + $0xa] sm:$0xff]
      %v1314 = vld [vmem:[#allocation2 + $0x1a] sm:$0xff]
      %v1315 = vld [vmem:[#allocation2 + $0x22] sm:$0xff]
      %v1316 = vld [vmem:[#allocation2 + $0x32] sm:$0xff]
      %v1317 = vld [vmem:[#allocation2 + $0x3a] sm:$0xff]
      %v1318 = vld [vmem:[#allocation2 + $0x4a] sm:$0xff]
      %v1319 = vld [vmem:[#allocation2 + $0x52] sm:$0xff]
      %v1320 = vld [vmem:[#allocation2 + $0x62] sm:$0xff]
      %v1321 = vld [vmem:[#allocation2 + $0x6a] sm:$0xff]
      %v1322 = vld [vmem:[#allocation2 + $0x7a] sm:$0xff]
      %v1323 = vld [vmem:[#allocation2 + $0x82] sm:$0xff]
      %v1324 = vld [vmem:[#allocation2 + $0x92] sm:$0xff]
      %v1325 = vld [vmem:[#allocation2 + $0x9a] sm:$0xff]
      %v1326 = vld [vmem:[#allocation2 + $0xaa] sm:$0xff]
      %v1327 = vld [vmem:[#allocation2 + $0xb2] sm:$0xff]
      %v1328 = vld [vmem:[#allocation2 + $0xc2] sm:$0xff]
      %v1329 = vld [vmem:[#allocation2 + $0xca] sm:$0xff]
      %v1330 = vld [vmem:[#allocation2 + $0xda] sm:$0xff]
      %v1331 = vld [vmem:[#allocation2 + $0xe2] sm:$0xff]
      %v1332 = vld [vmem:[#allocation2 + $0xf2] sm:$0xff]
      %v1333 = vld [vmem:[#allocation2 + $0xfa] sm:$0xff]
      %v1334 = vld [vmem:[#allocation2 + $0x10a] sm:$0xff]
      %v1335 = vld [vmem:[#allocation2 + $0x112] sm:$0xff]
      %v1336 = vld [vmem:[#allocation2 + $0x122] sm:$0xff]
      %v1337 = vld [vmem:[#allocation2 + $0x12a] sm:$0xff]
      %v1338 = vld [vmem:[#allocation2 + $0x13a] sm:$0xff]
      %v1339 = vld [vmem:[#allocation2 + $0x142] sm:$0xff]
      %v1340 = vld [vmem:[#allocation2 + $0x152] sm:$0xff]
      %v1341 = vld [vmem:[#allocation2 + $0x15a] sm:$0xff]
      %v1342 = vld [vmem:[#allocation2 + $0x16a] sm:$0xff]
      %v1343 = vld [vmem:[#allocation2 + $0x172] sm:$0xff]
      %v1344 = vpack.c.bf16 %v1313, %v1312
      %v1345 = vpack.c.bf16 %v1315, %v1314
      %v1346 = vpack.c.bf16 %v1317, %v1316
      %v1347 = vpack.c.bf16 %v1319, %v1318
      %v1348 = vpack.c.bf16 %v1321, %v1320
      %v1349 = vpack.c.bf16 %v1323, %v1322
      %v1350 = vpack.c.bf16 %v1325, %v1324
      %v1351 = vpack.c.bf16 %v1327, %v1326
      %v1352 = vpack.c.bf16 %v1329, %v1328
      %v1353 = vpack.c.bf16 %v1331, %v1330
      %v1354 = vpack.c.bf16 %v1333, %v1332
      %v1355 = vpack.c.bf16 %v1335, %v1334
      %v1356 = vpack.c.bf16 %v1337, %v1336
      %v1357 = vpack.c.bf16 %v1339, %v1338
      %v1358 = vpack.c.bf16 %v1341, %v1340
      %v1359 = vpack.c.bf16 %v1343, %v1342
      %s1360 = scalar_lea.vmem %s4, 128
      %v1361 = vld [vmem:[%s1360] sm:$0xf]
      %v1362 = vld [vmem:[%s1360 + $0x4] sm:$0xf]
      %v1363 = vld [vmem:[%s1360 + $0x8] sm:$0xf]
      %v1364 = vld [vmem:[%s1360 + $0xc] sm:$0xf]
      %v1365 = vld [vmem:[%s1360 + $0x10] sm:$0xf]
      %v1366 = vld [vmem:[%s1360 + $0x14] sm:$0xf]
      %v1367 = vld [vmem:[%s1360 + $0x18] sm:$0xf]
      %v1368 = vld [vmem:[%s1360 + $0x1c] sm:$0xf]
      %v1369 = vld [vmem:[%s1360 + $0x20] sm:$0xf]
      %v1370 = vld [vmem:[%s1360 + $0x24] sm:$0xf]
      %v1371 = vld [vmem:[%s1360 + $0x28] sm:$0xf]
      %v1372 = vld [vmem:[%s1360 + $0x2c] sm:$0xf]
      %v1373 = vld [vmem:[%s1360 + $0x30] sm:$0xf]
      %v1374 = vld [vmem:[%s1360 + $0x34] sm:$0xf]
      %v1375 = vld [vmem:[%s1360 + $0x38] sm:$0xf]
      %v1376 = vld [vmem:[%s1360 + $0x3c] sm:$0xf]
      %v1393 = vunpack.c.l.b16 %v1361
      %v1394 = vunpack.c.l.b16 %v1362
      %v1395 = vunpack.c.l.b16 %v1363
      %v1396 = vunpack.c.l.b16 %v1364
      %v1397 = vunpack.c.l.b16 %v1365
      %v1398 = vunpack.c.l.b16 %v1366
      %v1399 = vunpack.c.l.b16 %v1367
      %v1400 = vunpack.c.l.b16 %v1368
      %v1401 = vunpack.c.l.b16 %v1369
      %v1402 = vunpack.c.l.b16 %v1370
      %v1403 = vunpack.c.l.b16 %v1371
      %v1404 = vunpack.c.l.b16 %v1372
      %v1405 = vunpack.c.l.b16 %v1373
      %v1406 = vunpack.c.l.b16 %v1374
      %v1407 = vunpack.c.l.b16 %v1375
      %v1408 = vunpack.c.l.b16 %v1376
      %v1409 = vpack.c.b16 %v1394, %v1393
      %v1410 = vpack.c.b16 %v1396, %v1395
      %v1411 = vpack.c.b16 %v1398, %v1397
      %v1412 = vpack.c.b16 %v1400, %v1399
      %v1413 = vpack.c.b16 %v1402, %v1401
      %v1414 = vpack.c.b16 %v1404, %v1403
      %v1415 = vpack.c.b16 %v1406, %v1405
      %v1416 = vpack.c.b16 %v1408, %v1407
      %1425 = vmatprep.subr.bf16.mxu0 0
      %1426 = vmatpush1.bf16.msra.mxu0 %v1409
      %1427 = vmatprep.subr.bf16.mxu0 0
      %1428 = vmatpush1.bf16.msra.mxu0 %v1410
      %1429 = vmatprep.subr.bf16.mxu0 0
      %1430 = vmatpush1.bf16.msra.mxu0 %v1411
      %1431 = vmatprep.subr.bf16.mxu0 0
      %1432 = vmatpush1.bf16.msra.mxu0 %v1412
      %1433 = vmatprep.subr.bf16.mxu0 0
      %1434 = vmatpush1.bf16.msra.mxu0 %v1413
      %1435 = vmatprep.subr.bf16.mxu0 0
      %1436 = vmatpush1.bf16.msra.mxu0 %v1414
      %1437 = vmatprep.subr.bf16.mxu0 0
      %1438 = vmatpush1.bf16.msra.mxu0 %v1415
      %1439 = vmatprep.subr.bf16.mxu0 0
      %1440 = vmatpush1.bf16.msra.mxu0 %v1416
      %1441 = vmatprep.subr.bf16.mxu0 0
      %1442 = vmatpush1.bf16.msra.mxu0 0
      %1443 = vmatprep.subr.bf16.mxu0 0
      %1444 = vmatpush1.bf16.msra.mxu0 0
      %1445 = vmatprep.subr.bf16.mxu0 0
      %1446 = vmatpush1.bf16.msra.mxu0 0
      %1447 = vmatprep.subr.bf16.mxu0 0
      %1448 = vmatpush1.bf16.msra.mxu0 0
      %1449 = vmatprep.subr.bf16.mxu0 0
      %1450 = vmatpush1.bf16.msra.mxu0 0
      %1451 = vmatprep.subr.bf16.mxu0 0
      %1452 = vmatpush1.bf16.msra.mxu0 0
      %1453 = vmatprep.subr.bf16.mxu0 0
      %1454 = vmatpush1.bf16.msra.mxu0 0
      %1455 = vmatprep.subr.bf16.mxu0 0
      %1456 = vmatpush1.bf16.msra.mxu0 0
      %1457 = vmatprep.mubr.bf16.mxu0 0
      %1458 = vmatmul.mubr.bf16.gmra.mrb[0].mxu0 %v1344
      %v1459 = vpop.f32.mrb[0].mxu0
      %v1460 = vadd.f32 0.0, %v1459
      %v1461 = vpop.f32.mrb[0].mxu0
      %v1462 = vpop.f32.mrb[0].mxu0
      %v1463 = vadd.f32 0.0, %v1462
      %v1464 = vpop.f32.mrb[0].mxu0
      %1465 = vmatprep.mubr.bf16.mxu0 0
      %1466 = vmatmul.mubr.bf16.gmra.mrb[0].mxu0 %v1345
      %v1467 = vpop.f32.mrb[0].mxu0
      %v1468 = vadd.f32 0.0, %v1467
      %v1469 = vpop.f32.mrb[0].mxu0
      %v1470 = vpop.f32.mrb[0].mxu0
      %v1471 = vadd.f32 0.0, %v1470
      %v1472 = vpop.f32.mrb[0].mxu0
      %1473 = vmatprep.mubr.bf16.mxu0 0
      %1474 = vmatmul.mubr.bf16.gmra.mrb[0].mxu0 %v1346
      %v1475 = vpop.f32.mrb[0].mxu0
      %v1476 = vadd.f32 0.0, %v1475
      %v1477 = vpop.f32.mrb[0].mxu0
      %v1478 = vpop.f32.mrb[0].mxu0
      %v1479 = vadd.f32 0.0, %v1478
      %v1480 = vpop.f32.mrb[0].mxu0
      %1481 = vmatprep.mubr.bf16.mxu0 0
      %1482 = vmatmul.mubr.bf16.gmra.mrb[0].mxu0 %v1347
      %v1483 = vpop.f32.mrb[0].mxu0
      %v1484 = vadd.f32 0.0, %v1483
      %v1485 = vpop.f32.mrb[0].mxu0
      %v1486 = vpop.f32.mrb[0].mxu0
      %v1487 = vadd.f32 0.0, %v1486
      %v1488 = vpop.f32.mrb[0].mxu0
      %1489 = vmatprep.mubr.bf16.mxu0 0
      %1490 = vmatmul.mubr.bf16.gmra.mrb[0].mxu0 %v1348
      %v1491 = vpop.f32.mrb[0].mxu0
      %v1492 = vadd.f32 0.0, %v1491
      %v1493 = vpop.f32.mrb[0].mxu0
      %v1494 = vpop.f32.mrb[0].mxu0
      %v1495 = vadd.f32 0.0, %v1494
      %v1496 = vpop.f32.mrb[0].mxu0
      %1497 = vmatprep.mubr.bf16.mxu0 0
      %1498 = vmatmul.mubr.bf16.gmra.mrb[0].mxu0 %v1349
      %v1499 = vpop.f32.mrb[0].mxu0
      %v1500 = vadd.f32 0.0, %v1499
      %v1501 = vpop.f32.mrb[0].mxu0
      %v1502 = vpop.f32.mrb[0].mxu0
      %v1503 = vadd.f32 0.0, %v1502
      %v1504 = vpop.f32.mrb[0].mxu0
      %1505 = vmatprep.mubr.bf16.mxu0 0
      %1506 = vmatmul.mubr.bf16.gmra.mrb[0].mxu0 %v1350
      %v1507 = vpop.f32.mrb[0].mxu0
      %v1508 = vadd.f32 0.0, %v1507
      %v1509 = vpop.f32.mrb[0].mxu0
      %v1510 = vpop.f32.mrb[0].mxu0
      %v1511 = vadd.f32 0.0, %v1510
      %v1512 = vpop.f32.mrb[0].mxu0
      %1513 = vmatprep.mubr.bf16.mxu0 0
      %1514 = vmatmul.mubr.bf16.gmra.mrb[0].mxu0 %v1351
      %v1515 = vpop.f32.mrb[0].mxu0
      %v1516 = vadd.f32 0.0, %v1515
      %v1517 = vpop.f32.mrb[0].mxu0
      %v1518 = vpop.f32.mrb[0].mxu0
      %v1519 = vadd.f32 0.0, %v1518
      %v1520 = vpop.f32.mrb[0].mxu0
      %1521 = vmatprep.mubr.bf16.mxu0 0
      %1522 = vmatmul.mubr.bf16.gmra.mrb[0].mxu0 %v1352
      %v1523 = vpop.f32.mrb[0].mxu0
      %v1524 = vadd.f32 0.0, %v1523
      %v1525 = vpop.f32.mrb[0].mxu0
      %v1526 = vpop.f32.mrb[0].mxu0
      %v1527 = vadd.f32 0.0, %v1526
      %v1528 = vpop.f32.mrb[0].mxu0
      %1529 = vmatprep.mubr.bf16.mxu0 0
      %1530 = vmatmul.mubr.bf16.gmra.mrb[0].mxu0 %v1353
      %v1531 = vpop.f32.mrb[0].mxu0
      %v1532 = vadd.f32 0.0, %v1531
      %v1533 = vpop.f32.mrb[0].mxu0
      %v1534 = vpop.f32.mrb[0].mxu0
      %v1535 = vadd.f32 0.0, %v1534
      %v1536 = vpop.f32.mrb[0].mxu0
      %1537 = vmatprep.mubr.bf16.mxu0 0
      %1538 = vmatmul.mubr.bf16.gmra.mrb[0].mxu0 %v1354
      %v1539 = vpop.f32.mrb[0].mxu0
      %v1540 = vadd.f32 0.0, %v1539
      %v1541 = vpop.f32.mrb[0].mxu0
      %v1542 = vpop.f32.mrb[0].mxu0
      %v1543 = vadd.f32 0.0, %v1542
      %v1544 = vpop.f32.mrb[0].mxu0
      %1545 = vmatprep.mubr.bf16.mxu0 0
      %1546 = vmatmul.mubr.bf16.gmra.mrb[0].mxu0 %v1355
      %v1547 = vpop.f32.mrb[0].mxu0
      %v1548 = vadd.f32 0.0, %v1547
      %v1549 = vpop.f32.mrb[0].mxu0
      %v1550 = vpop.f32.mrb[0].mxu0
      %v1551 = vadd.f32 0.0, %v1550
      %v1552 = vpop.f32.mrb[0].mxu0
      %1553 = vmatprep.mubr.bf16.mxu0 0
      %1554 = vmatmul.mubr.bf16.gmra.mrb[0].mxu0 %v1356
      %v1555 = vpop.f32.mrb[0].mxu0
      %v1556 = vadd.f32 0.0, %v1555
      %v1557 = vpop.f32.mrb[0].mxu0
      %v1558 = vpop.f32.mrb[0].mxu0
      %v1559 = vadd.f32 0.0, %v1558
      %v1560 = vpop.f32.mrb[0].mxu0
      %1561 = vmatprep.mubr.bf16.mxu0 0
      %1562 = vmatmul.mubr.bf16.gmra.mrb[0].mxu0 %v1357
      %v1563 = vpop.f32.mrb[0].mxu0
      %v1564 = vadd.f32 0.0, %v1563
      %v1565 = vpop.f32.mrb[0].mxu0
      %v1566 = vpop.f32.mrb[0].mxu0
      %v1567 = vadd.f32 0.0, %v1566
      %v1568 = vpop.f32.mrb[0].mxu0
      %1569 = vmatprep.mubr.bf16.mxu0 0
      %1570 = vmatmul.mubr.bf16.gmra.mrb[0].mxu0 %v1358
      %v1571 = vpop.f32.mrb[0].mxu0
      %v1572 = vadd.f32 0.0, %v1571
      %v1573 = vpop.f32.mrb[0].mxu0
      %v1574 = vpop.f32.mrb[0].mxu0
      %v1575 = vadd.f32 0.0, %v1574
      %v1576 = vpop.f32.mrb[0].mxu0
      %1577 = vmatprep.mubr.bf16.mxu0 0
      %1578 = vmatmul.mubr.bf16.gmra.mrb[0].mxu0 %v1359
      %v1579 = vpop.f32.mrb[0].mxu0
      %v1580 = vadd.f32 0.0, %v1579
      %v1581 = vpop.f32.mrb[0].mxu0
      %v1582 = vpop.f32.mrb[0].mxu0
      %v1583 = vadd.f32 0.0, %v1582
      %v1584 = vpop.f32.mrb[0].mxu0
      %1585 = vdwg.mxu0
      %v1586 = vld [vmem:[#allocation3] sm:$0xff]
      %v1587 = vld [vmem:[#allocation3 + $0x8] sm:$0xff]
      %v1588 = vld [vmem:[#allocation3 + $0x10] sm:$0xff]
      %v1589 = vld [vmem:[#allocation3 + $0x18] sm:$0xff]
      %v1590 = vld [vmem:[#allocation3 + $0x20] sm:$0xff]
      %v1591 = vld [vmem:[#allocation3 + $0x28] sm:$0xff]
      %v1592 = vld [vmem:[#allocation3 + $0x30] sm:$0xff]
      %v1593 = vld [vmem:[#allocation3 + $0x38] sm:$0xff]
      %v1594 = vld [vmem:[#allocation3 + $0x40] sm:$0xff]
      %v1595 = vld [vmem:[#allocation3 + $0x48] sm:$0xff]
      %v1596 = vld [vmem:[#allocation3 + $0x50] sm:$0xff]
      %v1597 = vld [vmem:[#allocation3 + $0x58] sm:$0xff]
      %v1598 = vld [vmem:[#allocation3 + $0x60] sm:$0xff]
      %v1599 = vld [vmem:[#allocation3 + $0x68] sm:$0xff]
      %v1600 = vld [vmem:[#allocation3 + $0x70] sm:$0xff]
      %v1601 = vld [vmem:[#allocation3 + $0x78] sm:$0xff]
      %v1602 = vld [vmem:[#allocation3 + $0x80] sm:$0xff]
      %v1603 = vld [vmem:[#allocation3 + $0x88] sm:$0xff]
      %v1604 = vld [vmem:[#allocation3 + $0x90] sm:$0xff]
      %v1605 = vld [vmem:[#allocation3 + $0x98] sm:$0xff]
      %v1606 = vld [vmem:[#allocation3 + $0xa0] sm:$0xff]
      %v1607 = vld [vmem:[#allocation3 + $0xa8] sm:$0xff]
      %v1608 = vld [vmem:[#allocation3 + $0xb0] sm:$0xff]
      %v1609 = vld [vmem:[#allocation3 + $0xb8] sm:$0xff]
      %v1610 = vld [vmem:[#allocation3 + $0xc0] sm:$0xff]
      %v1611 = vld [vmem:[#allocation3 + $0xc8] sm:$0xff]
      %v1612 = vld [vmem:[#allocation3 + $0xd0] sm:$0xff]
      %v1613 = vld [vmem:[#allocation3 + $0xd8] sm:$0xff]
      %v1614 = vld [vmem:[#allocation3 + $0xe0] sm:$0xff]
      %v1615 = vld [vmem:[#allocation3 + $0xe8] sm:$0xff]
      %v1616 = vld [vmem:[#allocation3 + $0xf0] sm:$0xff]
      %v1617 = vld [vmem:[#allocation3 + $0xf8] sm:$0xff]
      %v1618 = vadd.f32 %v1586, %v1460
      %v1619 = vadd.f32 %v1587, %v1463
      %v1620 = vadd.f32 %v1588, %v1468
      %v1621 = vadd.f32 %v1589, %v1471
      %v1622 = vadd.f32 %v1590, %v1476
      %v1623 = vadd.f32 %v1591, %v1479
      %v1624 = vadd.f32 %v1592, %v1484
      %v1625 = vadd.f32 %v1593, %v1487
      %v1626 = vadd.f32 %v1594, %v1492
      %v1627 = vadd.f32 %v1595, %v1495
      %v1628 = vadd.f32 %v1596, %v1500
      %v1629 = vadd.f32 %v1597, %v1503
      %v1630 = vadd.f32 %v1598, %v1508
      %v1631 = vadd.f32 %v1599, %v1511
      %v1632 = vadd.f32 %v1600, %v1516
      %v1633 = vadd.f32 %v1601, %v1519
      %v1634 = vadd.f32 %v1602, %v1524
      %v1635 = vadd.f32 %v1603, %v1527
      %v1636 = vadd.f32 %v1604, %v1532
      %v1637 = vadd.f32 %v1605, %v1535
      %v1638 = vadd.f32 %v1606, %v1540
      %v1639 = vadd.f32 %v1607, %v1543
      %v1640 = vadd.f32 %v1608, %v1548
      %v1641 = vadd.f32 %v1609, %v1551
      %v1642 = vadd.f32 %v1610, %v1556
      %v1643 = vadd.f32 %v1611, %v1559
      %v1644 = vadd.f32 %v1612, %v1564
      %v1645 = vadd.f32 %v1613, %v1567
      %v1646 = vadd.f32 %v1614, %v1572
      %v1647 = vadd.f32 %v1615, %v1575
      %v1648 = vadd.f32 %v1616, %v1580
      %v1649 = vadd.f32 %v1617, %v1583
      %1650 = vst [vmem:[#allocation3] sm:$0xff] %v1618
      %1651 = vst [vmem:[#allocation3 + $0x8] sm:$0xff] %v1619
      %1652 = vst [vmem:[#allocation3 + $0x10] sm:$0xff] %v1620
      %1653 = vst [vmem:[#allocation3 + $0x18] sm:$0xff] %v1621
      %1654 = vst [vmem:[#allocation3 + $0x20] sm:$0xff] %v1622
      %1655 = vst [vmem:[#allocation3 + $0x28] sm:$0xff] %v1623
      %1656 = vst [vmem:[#allocation3 + $0x30] sm:$0xff] %v1624
      %1657 = vst [vmem:[#allocation3 + $0x38] sm:$0xff] %v1625
      %1658 = vst [vmem:[#allocation3 + $0x40] sm:$0xff] %v1626
      %1659 = vst [vmem:[#allocation3 + $0x48] sm:$0xff] %v1627
      %1660 = vst [vmem:[#allocation3 + $0x50] sm:$0xff] %v1628
      %1661 = vst [vmem:[#allocation3 + $0x58] sm:$0xff] %v1629
      %1662 = vst [vmem:[#allocation3 + $0x60] sm:$0xff] %v1630
      %1663 = vst [vmem:[#allocation3 + $0x68] sm:$0xff] %v1631
      %1664 = vst [vmem:[#allocation3 + $0x70] sm:$0xff] %v1632
      %1665 = vst [vmem:[#allocation3 + $0x78] sm:$0xff] %v1633
      %1666 = vst [vmem:[#allocation3 + $0x80] sm:$0xff] %v1634
      %1667 = vst [vmem:[#allocation3 + $0x88] sm:$0xff] %v1635
      %1668 = vst [vmem:[#allocation3 + $0x90] sm:$0xff] %v1636
      %1669 = vst [vmem:[#allocation3 + $0x98] sm:$0xff] %v1637
      %1670 = vst [vmem:[#allocation3 + $0xa0] sm:$0xff] %v1638
      %1671 = vst [vmem:[#allocation3 + $0xa8] sm:$0xff] %v1639
      %1672 = vst [vmem:[#allocation3 + $0xb0] sm:$0xff] %v1640
      %1673 = vst [vmem:[#allocation3 + $0xb8] sm:$0xff] %v1641
      %1674 = vst [vmem:[#allocation3 + $0xc0] sm:$0xff] %v1642
      %1675 = vst [vmem:[#allocation3 + $0xc8] sm:$0xff] %v1643
      %1676 = vst [vmem:[#allocation3 + $0xd0] sm:$0xff] %v1644
      %1677 = vst [vmem:[#allocation3 + $0xd8] sm:$0xff] %v1645
      %1678 = vst [vmem:[#allocation3 + $0xe0] sm:$0xff] %v1646
      %1679 = vst [vmem:[#allocation3 + $0xe8] sm:$0xff] %v1647
      %1680 = vst [vmem:[#allocation3 + $0xf0] sm:$0xff] %v1648
      %1681 = vst [vmem:[#allocation3 + $0xf8] sm:$0xff] %v1649
      %v1682 = vld [vmem:[%s604] sm:$0xff]
      %v1683 = vld [vmem:[%s604 + $0x8] sm:$0xff]
      %v1684 = vld [vmem:[%s604 + $0x18] sm:$0xff]
      %v1685 = vld [vmem:[%s604 + $0x20] sm:$0xff]
      %v1686 = vld [vmem:[%s604 + $0x30] sm:$0xff]
      %v1687 = vld [vmem:[%s604 + $0x38] sm:$0xff]
      %v1688 = vld [vmem:[%s604 + $0x48] sm:$0xff]
      %v1689 = vld [vmem:[%s604 + $0x50] sm:$0xff]
      %v1690 = vld [vmem:[%s604 + $0x60] sm:$0xff]
      %v1691 = vld [vmem:[%s604 + $0x68] sm:$0xff]
      %v1692 = vld [vmem:[%s604 + $0x78] sm:$0xff]
      %v1693 = vld [vmem:[%s604 + $0x80] sm:$0xff]
      %v1694 = vld [vmem:[%s604 + $0x90] sm:$0xff]
      %v1695 = vld [vmem:[%s604 + $0x98] sm:$0xff]
      %v1696 = vld [vmem:[%s604 + $0xa8] sm:$0xff]
      %v1697 = vld [vmem:[%s604 + $0xb0] sm:$0xff]
      %v1698 = vld [vmem:[%s604 + $0xc0] sm:$0xff]
      %v1699 = vld [vmem:[%s604 + $0xc8] sm:$0xff]
      %v1700 = vld [vmem:[%s604 + $0xd8] sm:$0xff]
      %v1701 = vld [vmem:[%s604 + $0xe0] sm:$0xff]
      %v1702 = vld [vmem:[%s604 + $0xf0] sm:$0xff]
      %v1703 = vld [vmem:[%s604 + $0xf8] sm:$0xff]
      %v1704 = vld [vmem:[%s604 + $0x108] sm:$0xff]
      %v1705 = vld [vmem:[%s604 + $0x110] sm:$0xff]
      %v1706 = vld [vmem:[%s604 + $0x120] sm:$0xff]
      %v1707 = vld [vmem:[%s604 + $0x128] sm:$0xff]
      %v1708 = vld [vmem:[%s604 + $0x138] sm:$0xff]
      %v1709 = vld [vmem:[%s604 + $0x140] sm:$0xff]
      %v1710 = vld [vmem:[%s604 + $0x150] sm:$0xff]
      %v1711 = vld [vmem:[%s604 + $0x158] sm:$0xff]
      %v1712 = vld [vmem:[%s604 + $0x168] sm:$0xff]
      %v1713 = vld [vmem:[%s604 + $0x170] sm:$0xff]
      %v1714 = vpack.c.bf16 %v1683, %v1682
      %v1715 = vpack.c.bf16 %v1685, %v1684
      %v1716 = vpack.c.bf16 %v1687, %v1686
      %v1717 = vpack.c.bf16 %v1689, %v1688
      %v1718 = vpack.c.bf16 %v1691, %v1690
      %v1719 = vpack.c.bf16 %v1693, %v1692
      %v1720 = vpack.c.bf16 %v1695, %v1694
      %v1721 = vpack.c.bf16 %v1697, %v1696
      %v1722 = vpack.c.bf16 %v1699, %v1698
      %v1723 = vpack.c.bf16 %v1701, %v1700
      %v1724 = vpack.c.bf16 %v1703, %v1702
      %v1725 = vpack.c.bf16 %v1705, %v1704
      %v1726 = vpack.c.bf16 %v1707, %v1706
      %v1727 = vpack.c.bf16 %v1709, %v1708
      %v1728 = vpack.c.bf16 %v1711, %v1710
      %v1729 = vpack.c.bf16 %v1713, %v1712
      %s1730 = scalar_lea.vmem %s4, 192
      %v1731 = vld [vmem:[%s1730] sm:$0xf]
      %v1732 = vld [vmem:[%s1730 + $0x4] sm:$0xf]
      %v1733 = vld [vmem:[%s1730 + $0x8] sm:$0xf]
      %v1734 = vld [vmem:[%s1730 + $0xc] sm:$0xf]
      %v1735 = vld [vmem:[%s1730 + $0x10] sm:$0xf]
      %v1736 = vld [vmem:[%s1730 + $0x14] sm:$0xf]
      %v1737 = vld [vmem:[%s1730 + $0x18] sm:$0xf]
      %v1738 = vld [vmem:[%s1730 + $0x1c] sm:$0xf]
      %v1739 = vld [vmem:[%s1730 + $0x20] sm:$0xf]
      %v1740 = vld [vmem:[%s1730 + $0x24] sm:$0xf]
      %v1741 = vld [vmem:[%s1730 + $0x28] sm:$0xf]
      %v1742 = vld [vmem:[%s1730 + $0x2c] sm:$0xf]
      %v1743 = vld [vmem:[%s1730 + $0x30] sm:$0xf]
      %v1744 = vld [vmem:[%s1730 + $0x34] sm:$0xf]
      %v1745 = vld [vmem:[%s1730 + $0x38] sm:$0xf]
      %v1746 = vld [vmem:[%s1730 + $0x3c] sm:$0xf]
      %v1763 = vunpack.c.l.b16 %v1731
      %v1764 = vunpack.c.l.b16 %v1732
      %v1765 = vunpack.c.l.b16 %v1733
      %v1766 = vunpack.c.l.b16 %v1734
      %v1767 = vunpack.c.l.b16 %v1735
      %v1768 = vunpack.c.l.b16 %v1736
      %v1769 = vunpack.c.l.b16 %v1737
      %v1770 = vunpack.c.l.b16 %v1738
      %v1771 = vunpack.c.l.b16 %v1739
      %v1772 = vunpack.c.l.b16 %v1740
      %v1773 = vunpack.c.l.b16 %v1741
      %v1774 = vunpack.c.l.b16 %v1742
      %v1775 = vunpack.c.l.b16 %v1743
      %v1776 = vunpack.c.l.b16 %v1744
      %v1777 = vunpack.c.l.b16 %v1745
      %v1778 = vunpack.c.l.b16 %v1746
      %v1779 = vpack.c.b16 %v1764, %v1763
      %v1780 = vpack.c.b16 %v1766, %v1765
      %v1781 = vpack.c.b16 %v1768, %v1767
      %v1782 = vpack.c.b16 %v1770, %v1769
      %v1783 = vpack.c.b16 %v1772, %v1771
      %v1784 = vpack.c.b16 %v1774, %v1773
      %v1785 = vpack.c.b16 %v1776, %v1775
      %v1786 = vpack.c.b16 %v1778, %v1777
      %1795 = vmatprep.subr.bf16.mxu0 0
      %1796 = vmatpush1.bf16.msra.mxu0 %v1779
      %1797 = vmatprep.subr.bf16.mxu0 0
      %1798 = vmatpush1.bf16.msra.mxu0 %v1780
      %1799 = vmatprep.subr.bf16.mxu0 0
      %1800 = vmatpush1.bf16.msra.mxu0 %v1781
      %1801 = vmatprep.subr.bf16.mxu0 0
      %1802 = vmatpush1.bf16.msra.mxu0 %v1782
      %1803 = vmatprep.subr.bf16.mxu0 0
      %1804 = vmatpush1.bf16.msra.mxu0 %v1783
      %1805 = vmatprep.subr.bf16.mxu0 0
      %1806 = vmatpush1.bf16.msra.mxu0 %v1784
      %1807 = vmatprep.subr.bf16.mxu0 0
      %1808 = vmatpush1.bf16.msra.mxu0 %v1785
      %1809 = vmatprep.subr.bf16.mxu0 0
      %1810 = vmatpush1.bf16.msra.mxu0 %v1786
      %1811 = vmatprep.subr.bf16.mxu0 0
      %1812 = vmatpush1.bf16.msra.mxu0 0
      %1813 = vmatprep.subr.bf16.mxu0 0
      %1814 = vmatpush1.bf16.msra.mxu0 0
      %1815 = vmatprep.subr.bf16.mxu0 0
      %1816 = vmatpush1.bf16.msra.mxu0 0
      %1817 = vmatprep.subr.bf16.mxu0 0
      %1818 = vmatpush1.bf16.msra.mxu0 0
      %1819 = vmatprep.subr.bf16.mxu0 0
      %1820 = vmatpush1.bf16.msra.mxu0 0
      %1821 = vmatprep.subr.bf16.mxu0 0
      %1822 = vmatpush1.bf16.msra.mxu0 0
      %1823 = vmatprep.subr.bf16.mxu0 0
      %1824 = vmatpush1.bf16.msra.mxu0 0
      %1825 = vmatprep.subr.bf16.mxu0 0
      %1826 = vmatpush1.bf16.msra.mxu0 0
      %1827 = vmatprep.mubr.bf16.mxu0 0
      %1828 = vmatmul.mubr.bf16.gmra.mrb[0].mxu0 %v1714
      %v1829 = vpop.f32.mrb[0].mxu0
      %v1830 = vadd.f32 0.0, %v1829
      %v1831 = vpop.f32.mrb[0].mxu0
      %v1832 = vpop.f32.mrb[0].mxu0
      %v1833 = vadd.f32 0.0, %v1832
      %v1834 = vpop.f32.mrb[0].mxu0
      %1835 = vmatprep.mubr.bf16.mxu0 0
      %1836 = vmatmul.mubr.bf16.gmra.mrb[0].mxu0 %v1715
      %v1837 = vpop.f32.mrb[0].mxu0
      %v1838 = vadd.f32 0.0, %v1837
      %v1839 = vpop.f32.mrb[0].mxu0
      %v1840 = vpop.f32.mrb[0].mxu0
      %v1841 = vadd.f32 0.0, %v1840
      %v1842 = vpop.f32.mrb[0].mxu0
      %1843 = vmatprep.mubr.bf16.mxu0 0
      %1844 = vmatmul.mubr.bf16.gmra.mrb[0].mxu0 %v1716
      %v1845 = vpop.f32.mrb[0].mxu0
      %v1846 = vadd.f32 0.0, %v1845
      %v1847 = vpop.f32.mrb[0].mxu0
      %v1848 = vpop.f32.mrb[0].mxu0
      %v1849 = vadd.f32 0.0, %v1848
      %v1850 = vpop.f32.mrb[0].mxu0
      %1851 = vmatprep.mubr.bf16.mxu0 0
      %1852 = vmatmul.mubr.bf16.gmra.mrb[0].mxu0 %v1717
      %v1853 = vpop.f32.mrb[0].mxu0
      %v1854 = vadd.f32 0.0, %v1853
      %v1855 = vpop.f32.mrb[0].mxu0
      %v1856 = vpop.f32.mrb[0].mxu0
      %v1857 = vadd.f32 0.0, %v1856
      %v1858 = vpop.f32.mrb[0].mxu0
      %1859 = vmatprep.mubr.bf16.mxu0 0
      %1860 = vmatmul.mubr.bf16.gmra.mrb[0].mxu0 %v1718
      %v1861 = vpop.f32.mrb[0].mxu0
      %v1862 = vadd.f32 0.0, %v1861
      %v1863 = vpop.f32.mrb[0].mxu0
      %v1864 = vpop.f32.mrb[0].mxu0
      %v1865 = vadd.f32 0.0, %v1864
      %v1866 = vpop.f32.mrb[0].mxu0
      %1867 = vmatprep.mubr.bf16.mxu0 0
      %1868 = vmatmul.mubr.bf16.gmra.mrb[0].mxu0 %v1719
      %v1869 = vpop.f32.mrb[0].mxu0
      %v1870 = vadd.f32 0.0, %v1869
      %v1871 = vpop.f32.mrb[0].mxu0
      %v1872 = vpop.f32.mrb[0].mxu0
      %v1873 = vadd.f32 0.0, %v1872
      %v1874 = vpop.f32.mrb[0].mxu0
      %1875 = vmatprep.mubr.bf16.mxu0 0
      %1876 = vmatmul.mubr.bf16.gmra.mrb[0].mxu0 %v1720
      %v1877 = vpop.f32.mrb[0].mxu0
      %v1878 = vadd.f32 0.0, %v1877
      %v1879 = vpop.f32.mrb[0].mxu0
      %v1880 = vpop.f32.mrb[0].mxu0
      %v1881 = vadd.f32 0.0, %v1880
      %v1882 = vpop.f32.mrb[0].mxu0
      %1883 = vmatprep.mubr.bf16.mxu0 0
      %1884 = vmatmul.mubr.bf16.gmra.mrb[0].mxu0 %v1721
      %v1885 = vpop.f32.mrb[0].mxu0
      %v1886 = vadd.f32 0.0, %v1885
      %v1887 = vpop.f32.mrb[0].mxu0
      %v1888 = vpop.f32.mrb[0].mxu0
      %v1889 = vadd.f32 0.0, %v1888
      %v1890 = vpop.f32.mrb[0].mxu0
      %1891 = vmatprep.mubr.bf16.mxu0 0
      %1892 = vmatmul.mubr.bf16.gmra.mrb[0].mxu0 %v1722
      %v1893 = vpop.f32.mrb[0].mxu0
      %v1894 = vadd.f32 0.0, %v1893
      %v1895 = vpop.f32.mrb[0].mxu0
      %v1896 = vpop.f32.mrb[0].mxu0
      %v1897 = vadd.f32 0.0, %v1896
      %v1898 = vpop.f32.mrb[0].mxu0
      %1899 = vmatprep.mubr.bf16.mxu0 0
      %1900 = vmatmul.mubr.bf16.gmra.mrb[0].mxu0 %v1723
      %v1901 = vpop.f32.mrb[0].mxu0
      %v1902 = vadd.f32 0.0, %v1901
      %v1903 = vpop.f32.mrb[0].mxu0
      %v1904 = vpop.f32.mrb[0].mxu0
      %v1905 = vadd.f32 0.0, %v1904
      %v1906 = vpop.f32.mrb[0].mxu0
      %1907 = vmatprep.mubr.bf16.mxu0 0
      %1908 = vmatmul.mubr.bf16.gmra.mrb[0].mxu0 %v1724
      %v1909 = vpop.f32.mrb[0].mxu0
      %v1910 = vadd.f32 0.0, %v1909
      %v1911 = vpop.f32.mrb[0].mxu0
      %v1912 = vpop.f32.mrb[0].mxu0
      %v1913 = vadd.f32 0.0, %v1912
      %v1914 = vpop.f32.mrb[0].mxu0
      %1915 = vmatprep.mubr.bf16.mxu0 0
      %1916 = vmatmul.mubr.bf16.gmra.mrb[0].mxu0 %v1725
      %v1917 = vpop.f32.mrb[0].mxu0
      %v1918 = vadd.f32 0.0, %v1917
      %v1919 = vpop.f32.mrb[0].mxu0
      %v1920 = vpop.f32.mrb[0].mxu0
      %v1921 = vadd.f32 0.0, %v1920
      %v1922 = vpop.f32.mrb[0].mxu0
      %1923 = vmatprep.mubr.bf16.mxu0 0
      %1924 = vmatmul.mubr.bf16.gmra.mrb[0].mxu0 %v1726
      %v1925 = vpop.f32.mrb[0].mxu0
      %v1926 = vadd.f32 0.0, %v1925
      %v1927 = vpop.f32.mrb[0].mxu0
      %v1928 = vpop.f32.mrb[0].mxu0
      %v1929 = vadd.f32 0.0, %v1928
      %v1930 = vpop.f32.mrb[0].mxu0
      %1931 = vmatprep.mubr.bf16.mxu0 0
      %1932 = vmatmul.mubr.bf16.gmra.mrb[0].mxu0 %v1727
      %v1933 = vpop.f32.mrb[0].mxu0
      %v1934 = vadd.f32 0.0, %v1933
      %v1935 = vpop.f32.mrb[0].mxu0
      %v1936 = vpop.f32.mrb[0].mxu0
      %v1937 = vadd.f32 0.0, %v1936
      %v1938 = vpop.f32.mrb[0].mxu0
      %1939 = vmatprep.mubr.bf16.mxu0 0
      %1940 = vmatmul.mubr.bf16.gmra.mrb[0].mxu0 %v1728
      %v1941 = vpop.f32.mrb[0].mxu0
      %v1942 = vadd.f32 0.0, %v1941
      %v1943 = vpop.f32.mrb[0].mxu0
      %v1944 = vpop.f32.mrb[0].mxu0
      %v1945 = vadd.f32 0.0, %v1944
      %v1946 = vpop.f32.mrb[0].mxu0
      %1947 = vmatprep.mubr.bf16.mxu0 0
      %1948 = vmatmul.mubr.bf16.gmra.mrb[0].mxu0 %v1729
      %v1949 = vpop.f32.mrb[0].mxu0
      %v1950 = vadd.f32 0.0, %v1949
      %v1951 = vpop.f32.mrb[0].mxu0
      %v1952 = vpop.f32.mrb[0].mxu0
      %v1953 = vadd.f32 0.0, %v1952
      %v1954 = vpop.f32.mrb[0].mxu0
      %1955 = vdwg.mxu0
      %v1956 = vld [vmem:[#allocation3] sm:$0xff]
      %v1957 = vld [vmem:[#allocation3 + $0x8] sm:$0xff]
      %v1958 = vld [vmem:[#allocation3 + $0x10] sm:$0xff]
      %v1959 = vld [vmem:[#allocation3 + $0x18] sm:$0xff]
      %v1960 = vld [vmem:[#allocation3 + $0x20] sm:$0xff]
      %v1961 = vld [vmem:[#allocation3 + $0x28] sm:$0xff]
      %v1962 = vld [vmem:[#allocation3 + $0x30] sm:$0xff]
      %v1963 = vld [vmem:[#allocation3 + $0x38] sm:$0xff]
      %v1964 = vld [vmem:[#allocation3 + $0x40] sm:$0xff]
      %v1965 = vld [vmem:[#allocation3 + $0x48] sm:$0xff]
      %v1966 = vld [vmem:[#allocation3 + $0x50] sm:$0xff]
      %v1967 = vld [vmem:[#allocation3 + $0x58] sm:$0xff]
      %v1968 = vld [vmem:[#allocation3 + $0x60] sm:$0xff]
      %v1969 = vld [vmem:[#allocation3 + $0x68] sm:$0xff]
      %v1970 = vld [vmem:[#allocation3 + $0x70] sm:$0xff]
      %v1971 = vld [vmem:[#allocation3 + $0x78] sm:$0xff]
      %v1972 = vld [vmem:[#allocation3 + $0x80] sm:$0xff]
      %v1973 = vld [vmem:[#allocation3 + $0x88] sm:$0xff]
      %v1974 = vld [vmem:[#allocation3 + $0x90] sm:$0xff]
      %v1975 = vld [vmem:[#allocation3 + $0x98] sm:$0xff]
      %v1976 = vld [vmem:[#allocation3 + $0xa0] sm:$0xff]
      %v1977 = vld [vmem:[#allocation3 + $0xa8] sm:$0xff]
      %v1978 = vld [vmem:[#allocation3 + $0xb0] sm:$0xff]
      %v1979 = vld [vmem:[#allocation3 + $0xb8] sm:$0xff]
      %v1980 = vld [vmem:[#allocation3 + $0xc0] sm:$0xff]
      %v1981 = vld [vmem:[#allocation3 + $0xc8] sm:$0xff]
      %v1982 = vld [vmem:[#allocation3 + $0xd0] sm:$0xff]
      %v1983 = vld [vmem:[#allocation3 + $0xd8] sm:$0xff]
      %v1984 = vld [vmem:[#allocation3 + $0xe0] sm:$0xff]
      %v1985 = vld [vmem:[#allocation3 + $0xe8] sm:$0xff]
      %v1986 = vld [vmem:[#allocation3 + $0xf0] sm:$0xff]
      %v1987 = vld [vmem:[#allocation3 + $0xf8] sm:$0xff]
      %v1988 = vadd.f32 %v1956, %v1830
      %v1989 = vadd.f32 %v1957, %v1833
      %v1990 = vadd.f32 %v1958, %v1838
      %v1991 = vadd.f32 %v1959, %v1841
      %v1992 = vadd.f32 %v1960, %v1846
      %v1993 = vadd.f32 %v1961, %v1849
      %v1994 = vadd.f32 %v1962, %v1854
      %v1995 = vadd.f32 %v1963, %v1857
      %v1996 = vadd.f32 %v1964, %v1862
      %v1997 = vadd.f32 %v1965, %v1865
      %v1998 = vadd.f32 %v1966, %v1870
      %v1999 = vadd.f32 %v1967, %v1873
      %v2000 = vadd.f32 %v1968, %v1878
      %v2001 = vadd.f32 %v1969, %v1881
      %v2002 = vadd.f32 %v1970, %v1886
      %v2003 = vadd.f32 %v1971, %v1889
      %v2004 = vadd.f32 %v1972, %v1894
      %v2005 = vadd.f32 %v1973, %v1897
      %v2006 = vadd.f32 %v1974, %v1902
      %v2007 = vadd.f32 %v1975, %v1905
      %v2008 = vadd.f32 %v1976, %v1910
      %v2009 = vadd.f32 %v1977, %v1913
      %v2010 = vadd.f32 %v1978, %v1918
      %v2011 = vadd.f32 %v1979, %v1921
      %v2012 = vadd.f32 %v1980, %v1926
      %v2013 = vadd.f32 %v1981, %v1929
      %v2014 = vadd.f32 %v1982, %v1934
      %v2015 = vadd.f32 %v1983, %v1937
      %v2016 = vadd.f32 %v1984, %v1942
      %v2017 = vadd.f32 %v1985, %v1945
      %v2018 = vadd.f32 %v1986, %v1950
      %v2019 = vadd.f32 %v1987, %v1953
      %2020 = vst [vmem:[#allocation3] sm:$0xff] %v1988
      %2021 = vst [vmem:[#allocation3 + $0x8] sm:$0xff] %v1989
      %2022 = vst [vmem:[#allocation3 + $0x10] sm:$0xff] %v1990
      %2023 = vst [vmem:[#allocation3 + $0x18] sm:$0xff] %v1991
      %2024 = vst [vmem:[#allocation3 + $0x20] sm:$0xff] %v1992
      %2025 = vst [vmem:[#allocation3 + $0x28] sm:$0xff] %v1993
      %2026 = vst [vmem:[#allocation3 + $0x30] sm:$0xff] %v1994
      %2027 = vst [vmem:[#allocation3 + $0x38] sm:$0xff] %v1995
      %2028 = vst [vmem:[#allocation3 + $0x40] sm:$0xff] %v1996
      %2029 = vst [vmem:[#allocation3 + $0x48] sm:$0xff] %v1997
      %2030 = vst [vmem:[#allocation3 + $0x50] sm:$0xff] %v1998
      %2031 = vst [vmem:[#allocation3 + $0x58] sm:$0xff] %v1999
      %2032 = vst [vmem:[#allocation3 + $0x60] sm:$0xff] %v2000
      %2033 = vst [vmem:[#allocation3 + $0x68] sm:$0xff] %v2001
      %2034 = vst [vmem:[#allocation3 + $0x70] sm:$0xff] %v2002
      %2035 = vst [vmem:[#allocation3 + $0x78] sm:$0xff] %v2003
      %2036 = vst [vmem:[#allocation3 + $0x80] sm:$0xff] %v2004
      %2037 = vst [vmem:[#allocation3 + $0x88] sm:$0xff] %v2005
      %2038 = vst [vmem:[#allocation3 + $0x90] sm:$0xff] %v2006
      %2039 = vst [vmem:[#allocation3 + $0x98] sm:$0xff] %v2007
      %2040 = vst [vmem:[#allocation3 + $0xa0] sm:$0xff] %v2008
      %2041 = vst [vmem:[#allocation3 + $0xa8] sm:$0xff] %v2009
      %2042 = vst [vmem:[#allocation3 + $0xb0] sm:$0xff] %v2010
      %2043 = vst [vmem:[#allocation3 + $0xb8] sm:$0xff] %v2011
      %2044 = vst [vmem:[#allocation3 + $0xc0] sm:$0xff] %v2012
      %2045 = vst [vmem:[#allocation3 + $0xc8] sm:$0xff] %v2013
      %2046 = vst [vmem:[#allocation3 + $0xd0] sm:$0xff] %v2014
      %2047 = vst [vmem:[#allocation3 + $0xd8] sm:$0xff] %v2015
      %2048 = vst [vmem:[#allocation3 + $0xe0] sm:$0xff] %v2016
      %2049 = vst [vmem:[#allocation3 + $0xe8] sm:$0xff] %v2017
      %2050 = vst [vmem:[#allocation3 + $0xf0] sm:$0xff] %v2018
      %2051 = vst [vmem:[#allocation3 + $0xf8] sm:$0xff] %v2019
      %v2052 = vld [vmem:[%s604 + $0x1] sm:$0xff]
      %v2053 = vld [vmem:[%s604 + $0x9] sm:$0xff]
      %v2054 = vld [vmem:[%s604 + $0x19] sm:$0xff]
      %v2055 = vld [vmem:[%s604 + $0x21] sm:$0xff]
      %v2056 = vld [vmem:[%s604 + $0x31] sm:$0xff]
      %v2057 = vld [vmem:[%s604 + $0x39] sm:$0xff]
      %v2058 = vld [vmem:[%s604 + $0x49] sm:$0xff]
      %v2059 = vld [vmem:[%s604 + $0x51] sm:$0xff]
      %v2060 = vld [vmem:[%s604 + $0x61] sm:$0xff]
      %v2061 = vld [vmem:[%s604 + $0x69] sm:$0xff]
      %v2062 = vld [vmem:[%s604 + $0x79] sm:$0xff]
      %v2063 = vld [vmem:[%s604 + $0x81] sm:$0xff]
      %v2064 = vld [vmem:[%s604 + $0x91] sm:$0xff]
      %v2065 = vld [vmem:[%s604 + $0x99] sm:$0xff]
      %v2066 = vld [vmem:[%s604 + $0xa9] sm:$0xff]
      %v2067 = vld [vmem:[%s604 + $0xb1] sm:$0xff]
      %v2068 = vld [vmem:[%s604 + $0xc1] sm:$0xff]
      %v2069 = vld [vmem:[%s604 + $0xc9] sm:$0xff]
      %v2070 = vld [vmem:[%s604 + $0xd9] sm:$0xff]
      %v2071 = vld [vmem:[%s604 + $0xe1] sm:$0xff]
      %v2072 = vld [vmem:[%s604 + $0xf1] sm:$0xff]
      %v2073 = vld [vmem:[%s604 + $0xf9] sm:$0xff]
      %v2074 = vld [vmem:[%s604 + $0x109] sm:$0xff]
      %v2075 = vld [vmem:[%s604 + $0x111] sm:$0xff]
      %v2076 = vld [vmem:[%s604 + $0x121] sm:$0xff]
      %v2077 = vld [vmem:[%s604 + $0x129] sm:$0xff]
      %v2078 = vld [vmem:[%s604 + $0x139] sm:$0xff]
      %v2079 = vld [vmem:[%s604 + $0x141] sm:$0xff]
      %v2080 = vld [vmem:[%s604 + $0x151] sm:$0xff]
      %v2081 = vld [vmem:[%s604 + $0x159] sm:$0xff]
      %v2082 = vld [vmem:[%s604 + $0x169] sm:$0xff]
      %v2083 = vld [vmem:[%s604 + $0x171] sm:$0xff]
      %v2084 = vpack.c.bf16 %v2053, %v2052
      %v2085 = vpack.c.bf16 %v2055, %v2054
      %v2086 = vpack.c.bf16 %v2057, %v2056
      %v2087 = vpack.c.bf16 %v2059, %v2058
      %v2088 = vpack.c.bf16 %v2061, %v2060
      %v2089 = vpack.c.bf16 %v2063, %v2062
      %v2090 = vpack.c.bf16 %v2065, %v2064
      %v2091 = vpack.c.bf16 %v2067, %v2066
      %v2092 = vpack.c.bf16 %v2069, %v2068
      %v2093 = vpack.c.bf16 %v2071, %v2070
      %v2094 = vpack.c.bf16 %v2073, %v2072
      %v2095 = vpack.c.bf16 %v2075, %v2074
      %v2096 = vpack.c.bf16 %v2077, %v2076
      %v2097 = vpack.c.bf16 %v2079, %v2078
      %v2098 = vpack.c.bf16 %v2081, %v2080
      %v2099 = vpack.c.bf16 %v2083, %v2082
      %s2100 = scalar_lea.vmem %s4, 256
      %v2101 = vld [vmem:[%s2100] sm:$0xf]
      %v2102 = vld [vmem:[%s2100 + $0x4] sm:$0xf]
      %v2103 = vld [vmem:[%s2100 + $0x8] sm:$0xf]
      %v2104 = vld [vmem:[%s2100 + $0xc] sm:$0xf]
      %v2105 = vld [vmem:[%s2100 + $0x10] sm:$0xf]
      %v2106 = vld [vmem:[%s2100 + $0x14] sm:$0xf]
      %v2107 = vld [vmem:[%s2100 + $0x18] sm:$0xf]
      %v2108 = vld [vmem:[%s2100 + $0x1c] sm:$0xf]
      %v2109 = vld [vmem:[%s2100 + $0x20] sm:$0xf]
      %v2110 = vld [vmem:[%s2100 + $0x24] sm:$0xf]
      %v2111 = vld [vmem:[%s2100 + $0x28] sm:$0xf]
      %v2112 = vld [vmem:[%s2100 + $0x2c] sm:$0xf]
      %v2113 = vld [vmem:[%s2100 + $0x30] sm:$0xf]
      %v2114 = vld [vmem:[%s2100 + $0x34] sm:$0xf]
      %v2115 = vld [vmem:[%s2100 + $0x38] sm:$0xf]
      %v2116 = vld [vmem:[%s2100 + $0x3c] sm:$0xf]
      %v2133 = vunpack.c.l.b16 %v2101
      %v2134 = vunpack.c.l.b16 %v2102
      %v2135 = vunpack.c.l.b16 %v2103
      %v2136 = vunpack.c.l.b16 %v2104
      %v2137 = vunpack.c.l.b16 %v2105
      %v2138 = vunpack.c.l.b16 %v2106
      %v2139 = vunpack.c.l.b16 %v2107
      %v2140 = vunpack.c.l.b16 %v2108
      %v2141 = vunpack.c.l.b16 %v2109
      %v2142 = vunpack.c.l.b16 %v2110
      %v2143 = vunpack.c.l.b16 %v2111
      %v2144 = vunpack.c.l.b16 %v2112
      %v2145 = vunpack.c.l.b16 %v2113
      %v2146 = vunpack.c.l.b16 %v2114
      %v2147 = vunpack.c.l.b16 %v2115
      %v2148 = vunpack.c.l.b16 %v2116
      %v2149 = vpack.c.b16 %v2134, %v2133
      %v2150 = vpack.c.b16 %v2136, %v2135
      %v2151 = vpack.c.b16 %v2138, %v2137
      %v2152 = vpack.c.b16 %v2140, %v2139
      %v2153 = vpack.c.b16 %v2142, %v2141
      %v2154 = vpack.c.b16 %v2144, %v2143
      %v2155 = vpack.c.b16 %v2146, %v2145
      %v2156 = vpack.c.b16 %v2148, %v2147
      %2165 = vmatprep.subr.bf16.mxu0 0
      %2166 = vmatpush1.bf16.msra.mxu0 %v2149
      %2167 = vmatprep.subr.bf16.mxu0 0
      %2168 = vmatpush1.bf16.msra.mxu0 %v2150
      %2169 = vmatprep.subr.bf16.mxu0 0
      %2170 = vmatpush1.bf16.msra.mxu0 %v2151
      %2171 = vmatprep.subr.bf16.mxu0 0
      %2172 = vmatpush1.bf16.msra.mxu0 %v2152
      %2173 = vmatprep.subr.bf16.mxu0 0
      %2174 = vmatpush1.bf16.msra.mxu0 %v2153
      %2175 = vmatprep.subr.bf16.mxu0 0
      %2176 = vmatpush1.bf16.msra.mxu0 %v2154
      %2177 = vmatprep.subr.bf16.mxu0 0
      %2178 = vmatpush1.bf16.msra.mxu0 %v2155
      %2179 = vmatprep.subr.bf16.mxu0 0
      %2180 = vmatpush1.bf16.msra.mxu0 %v2156
      %2181 = vmatprep.subr.bf16.mxu0 0
      %2182 = vmatpush1.bf16.msra.mxu0 0
      %2183 = vmatprep.subr.bf16.mxu0 0
      %2184 = vmatpush1.bf16.msra.mxu0 0
      %2185 = vmatprep.subr.bf16.mxu0 0
      %2186 = vmatpush1.bf16.msra.mxu0 0
      %2187 = vmatprep.subr.bf16.mxu0 0
      %2188 = vmatpush1.bf16.msra.mxu0 0
      %2189 = vmatprep.subr.bf16.mxu0 0
      %2190 = vmatpush1.bf16.msra.mxu0 0
      %2191 = vmatprep.subr.bf16.mxu0 0
      %2192 = vmatpush1.bf16.msra.mxu0 0
      %2193 = vmatprep.subr.bf16.mxu0 0
      %2194 = vmatpush1.bf16.msra.mxu0 0
      %2195 = vmatprep.subr.bf16.mxu0 0
      %2196 = vmatpush1.bf16.msra.mxu0 0
      %2197 = vmatprep.mubr.bf16.mxu0 0
      %2198 = vmatmul.mubr.bf16.gmra.mrb[0].mxu0 %v2084
      %v2199 = vpop.f32.mrb[0].mxu0
      %v2200 = vadd.f32 0.0, %v2199
      %v2201 = vpop.f32.mrb[0].mxu0
      %v2202 = vpop.f32.mrb[0].mxu0
      %v2203 = vadd.f32 0.0, %v2202
      %v2204 = vpop.f32.mrb[0].mxu0
      %2205 = vmatprep.mubr.bf16.mxu0 0
      %2206 = vmatmul.mubr.bf16.gmra.mrb[0].mxu0 %v2085
      %v2207 = vpop.f32.mrb[0].mxu0
      %v2208 = vadd.f32 0.0, %v2207
      %v2209 = vpop.f32.mrb[0].mxu0
      %v2210 = vpop.f32.mrb[0].mxu0
      %v2211 = vadd.f32 0.0, %v2210
      %v2212 = vpop.f32.mrb[0].mxu0
      %2213 = vmatprep.mubr.bf16.mxu0 0
      %2214 = vmatmul.mubr.bf16.gmra.mrb[0].mxu0 %v2086
      %v2215 = vpop.f32.mrb[0].mxu0
      %v2216 = vadd.f32 0.0, %v2215
      %v2217 = vpop.f32.mrb[0].mxu0
      %v2218 = vpop.f32.mrb[0].mxu0
      %v2219 = vadd.f32 0.0, %v2218
      %v2220 = vpop.f32.mrb[0].mxu0
      %2221 = vmatprep.mubr.bf16.mxu0 0
      %2222 = vmatmul.mubr.bf16.gmra.mrb[0].mxu0 %v2087
      %v2223 = vpop.f32.mrb[0].mxu0
      %v2224 = vadd.f32 0.0, %v2223
      %v2225 = vpop.f32.mrb[0].mxu0
      %v2226 = vpop.f32.mrb[0].mxu0
      %v2227 = vadd.f32 0.0, %v2226
      %v2228 = vpop.f32.mrb[0].mxu0
      %2229 = vmatprep.mubr.bf16.mxu0 0
      %2230 = vmatmul.mubr.bf16.gmra.mrb[0].mxu0 %v2088
      %v2231 = vpop.f32.mrb[0].mxu0
      %v2232 = vadd.f32 0.0, %v2231
      %v2233 = vpop.f32.mrb[0].mxu0
      %v2234 = vpop.f32.mrb[0].mxu0
      %v2235 = vadd.f32 0.0, %v2234
      %v2236 = vpop.f32.mrb[0].mxu0
      %2237 = vmatprep.mubr.bf16.mxu0 0
      %2238 = vmatmul.mubr.bf16.gmra.mrb[0].mxu0 %v2089
      %v2239 = vpop.f32.mrb[0].mxu0
      %v2240 = vadd.f32 0.0, %v2239
      %v2241 = vpop.f32.mrb[0].mxu0
      %v2242 = vpop.f32.mrb[0].mxu0
      %v2243 = vadd.f32 0.0, %v2242
      %v2244 = vpop.f32.mrb[0].mxu0
      %2245 = vmatprep.mubr.bf16.mxu0 0
      %2246 = vmatmul.mubr.bf16.gmra.mrb[0].mxu0 %v2090
      %v2247 = vpop.f32.mrb[0].mxu0
      %v2248 = vadd.f32 0.0, %v2247
      %v2249 = vpop.f32.mrb[0].mxu0
      %v2250 = vpop.f32.mrb[0].mxu0
      %v2251 = vadd.f32 0.0, %v2250
      %v2252 = vpop.f32.mrb[0].mxu0
      %2253 = vmatprep.mubr.bf16.mxu0 0
      %2254 = vmatmul.mubr.bf16.gmra.mrb[0].mxu0 %v2091
      %v2255 = vpop.f32.mrb[0].mxu0
      %v2256 = vadd.f32 0.0, %v2255
      %v2257 = vpop.f32.mrb[0].mxu0
      %v2258 = vpop.f32.mrb[0].mxu0
      %v2259 = vadd.f32 0.0, %v2258
      %v2260 = vpop.f32.mrb[0].mxu0
      %2261 = vmatprep.mubr.bf16.mxu0 0
      %2262 = vmatmul.mubr.bf16.gmra.mrb[0].mxu0 %v2092
      %v2263 = vpop.f32.mrb[0].mxu0
      %v2264 = vadd.f32 0.0, %v2263
      %v2265 = vpop.f32.mrb[0].mxu0
      %v2266 = vpop.f32.mrb[0].mxu0
      %v2267 = vadd.f32 0.0, %v2266
      %v2268 = vpop.f32.mrb[0].mxu0
      %2269 = vmatprep.mubr.bf16.mxu0 0
      %2270 = vmatmul.mubr.bf16.gmra.mrb[0].mxu0 %v2093
      %v2271 = vpop.f32.mrb[0].mxu0
      %v2272 = vadd.f32 0.0, %v2271
      %v2273 = vpop.f32.mrb[0].mxu0
      %v2274 = vpop.f32.mrb[0].mxu0
      %v2275 = vadd.f32 0.0, %v2274
      %v2276 = vpop.f32.mrb[0].mxu0
      %2277 = vmatprep.mubr.bf16.mxu0 0
      %2278 = vmatmul.mubr.bf16.gmra.mrb[0].mxu0 %v2094
      %v2279 = vpop.f32.mrb[0].mxu0
      %v2280 = vadd.f32 0.0, %v2279
      %v2281 = vpop.f32.mrb[0].mxu0
      %v2282 = vpop.f32.mrb[0].mxu0
      %v2283 = vadd.f32 0.0, %v2282
      %v2284 = vpop.f32.mrb[0].mxu0
      %2285 = vmatprep.mubr.bf16.mxu0 0
      %2286 = vmatmul.mubr.bf16.gmra.mrb[0].mxu0 %v2095
      %v2287 = vpop.f32.mrb[0].mxu0
      %v2288 = vadd.f32 0.0, %v2287
      %v2289 = vpop.f32.mrb[0].mxu0
      %v2290 = vpop.f32.mrb[0].mxu0
      %v2291 = vadd.f32 0.0, %v2290
      %v2292 = vpop.f32.mrb[0].mxu0
      %2293 = vmatprep.mubr.bf16.mxu0 0
      %2294 = vmatmul.mubr.bf16.gmra.mrb[0].mxu0 %v2096
      %v2295 = vpop.f32.mrb[0].mxu0
      %v2296 = vadd.f32 0.0, %v2295
      %v2297 = vpop.f32.mrb[0].mxu0
      %v2298 = vpop.f32.mrb[0].mxu0
      %v2299 = vadd.f32 0.0, %v2298
      %v2300 = vpop.f32.mrb[0].mxu0
      %2301 = vmatprep.mubr.bf16.mxu0 0
      %2302 = vmatmul.mubr.bf16.gmra.mrb[0].mxu0 %v2097
      %v2303 = vpop.f32.mrb[0].mxu0
      %v2304 = vadd.f32 0.0, %v2303
      %v2305 = vpop.f32.mrb[0].mxu0
      %v2306 = vpop.f32.mrb[0].mxu0
      %v2307 = vadd.f32 0.0, %v2306
      %v2308 = vpop.f32.mrb[0].mxu0
      %2309 = vmatprep.mubr.bf16.mxu0 0
      %2310 = vmatmul.mubr.bf16.gmra.mrb[0].mxu0 %v2098
      %v2311 = vpop.f32.mrb[0].mxu0
      %v2312 = vadd.f32 0.0, %v2311
      %v2313 = vpop.f32.mrb[0].mxu0
      %v2314 = vpop.f32.mrb[0].mxu0
      %v2315 = vadd.f32 0.0, %v2314
      %v2316 = vpop.f32.mrb[0].mxu0
      %2317 = vmatprep.mubr.bf16.mxu0 0
      %2318 = vmatmul.mubr.bf16.gmra.mrb[0].mxu0 %v2099
      %v2319 = vpop.f32.mrb[0].mxu0
      %v2320 = vadd.f32 0.0, %v2319
      %v2321 = vpop.f32.mrb[0].mxu0
      %v2322 = vpop.f32.mrb[0].mxu0
      %v2323 = vadd.f32 0.0, %v2322
      %v2324 = vpop.f32.mrb[0].mxu0
      %2325 = vdwg.mxu0
      %v2326 = vld [vmem:[#allocation3] sm:$0xff]
      %v2327 = vld [vmem:[#allocation3 + $0x8] sm:$0xff]
      %v2328 = vld [vmem:[#allocation3 + $0x10] sm:$0xff]
      %v2329 = vld [vmem:[#allocation3 + $0x18] sm:$0xff]
      %v2330 = vld [vmem:[#allocation3 + $0x20] sm:$0xff]
      %v2331 = vld [vmem:[#allocation3 + $0x28] sm:$0xff]
      %v2332 = vld [vmem:[#allocation3 + $0x30] sm:$0xff]
      %v2333 = vld [vmem:[#allocation3 + $0x38] sm:$0xff]
      %v2334 = vld [vmem:[#allocation3 + $0x40] sm:$0xff]
      %v2335 = vld [vmem:[#allocation3 + $0x48] sm:$0xff]
      %v2336 = vld [vmem:[#allocation3 + $0x50] sm:$0xff]
      %v2337 = vld [vmem:[#allocation3 + $0x58] sm:$0xff]
      %v2338 = vld [vmem:[#allocation3 + $0x60] sm:$0xff]
      %v2339 = vld [vmem:[#allocation3 + $0x68] sm:$0xff]
      %v2340 = vld [vmem:[#allocation3 + $0x70] sm:$0xff]
      %v2341 = vld [vmem:[#allocation3 + $0x78] sm:$0xff]
      %v2342 = vld [vmem:[#allocation3 + $0x80] sm:$0xff]
      %v2343 = vld [vmem:[#allocation3 + $0x88] sm:$0xff]
      %v2344 = vld [vmem:[#allocation3 + $0x90] sm:$0xff]
      %v2345 = vld [vmem:[#allocation3 + $0x98] sm:$0xff]
      %v2346 = vld [vmem:[#allocation3 + $0xa0] sm:$0xff]
      %v2347 = vld [vmem:[#allocation3 + $0xa8] sm:$0xff]
      %v2348 = vld [vmem:[#allocation3 + $0xb0] sm:$0xff]
      %v2349 = vld [vmem:[#allocation3 + $0xb8] sm:$0xff]
      %v2350 = vld [vmem:[#allocation3 + $0xc0] sm:$0xff]
      %v2351 = vld [vmem:[#allocation3 + $0xc8] sm:$0xff]
      %v2352 = vld [vmem:[#allocation3 + $0xd0] sm:$0xff]
      %v2353 = vld [vmem:[#allocation3 + $0xd8] sm:$0xff]
      %v2354 = vld [vmem:[#allocation3 + $0xe0] sm:$0xff]
      %v2355 = vld [vmem:[#allocation3 + $0xe8] sm:$0xff]
      %v2356 = vld [vmem:[#allocation3 + $0xf0] sm:$0xff]
      %v2357 = vld [vmem:[#allocation3 + $0xf8] sm:$0xff]
      %v2358 = vadd.f32 %v2326, %v2200
      %v2359 = vadd.f32 %v2327, %v2203
      %v2360 = vadd.f32 %v2328, %v2208
      %v2361 = vadd.f32 %v2329, %v2211
      %v2362 = vadd.f32 %v2330, %v2216
      %v2363 = vadd.f32 %v2331, %v2219
      %v2364 = vadd.f32 %v2332, %v2224
      %v2365 = vadd.f32 %v2333, %v2227
      %v2366 = vadd.f32 %v2334, %v2232
      %v2367 = vadd.f32 %v2335, %v2235
      %v2368 = vadd.f32 %v2336, %v2240
      %v2369 = vadd.f32 %v2337, %v2243
      %v2370 = vadd.f32 %v2338, %v2248
      %v2371 = vadd.f32 %v2339, %v2251
      %v2372 = vadd.f32 %v2340, %v2256
      %v2373 = vadd.f32 %v2341, %v2259
      %v2374 = vadd.f32 %v2342, %v2264
      %v2375 = vadd.f32 %v2343, %v2267
      %v2376 = vadd.f32 %v2344, %v2272
      %v2377 = vadd.f32 %v2345, %v2275
      %v2378 = vadd.f32 %v2346, %v2280
      %v2379 = vadd.f32 %v2347, %v2283
      %v2380 = vadd.f32 %v2348, %v2288
      %v2381 = vadd.f32 %v2349, %v2291
      %v2382 = vadd.f32 %v2350, %v2296
      %v2383 = vadd.f32 %v2351, %v2299
      %v2384 = vadd.f32 %v2352, %v2304
      %v2385 = vadd.f32 %v2353, %v2307
      %v2386 = vadd.f32 %v2354, %v2312
      %v2387 = vadd.f32 %v2355, %v2315
      %v2388 = vadd.f32 %v2356, %v2320
      %v2389 = vadd.f32 %v2357, %v2323
      %2390 = vst [vmem:[#allocation3] sm:$0xff] %v2358
      %2391 = vst [vmem:[#allocation3 + $0x8] sm:$0xff] %v2359
      %2392 = vst [vmem:[#allocation3 + $0x10] sm:$0xff] %v2360
      %2393 = vst [vmem:[#allocation3 + $0x18] sm:$0xff] %v2361
      %2394 = vst [vmem:[#allocation3 + $0x20] sm:$0xff] %v2362
      %2395 = vst [vmem:[#allocation3 + $0x28] sm:$0xff] %v2363
      %2396 = vst [vmem:[#allocation3 + $0x30] sm:$0xff] %v2364
      %2397 = vst [vmem:[#allocation3 + $0x38] sm:$0xff] %v2365
      %2398 = vst [vmem:[#allocation3 + $0x40] sm:$0xff] %v2366
      %2399 = vst [vmem:[#allocation3 + $0x48] sm:$0xff] %v2367
      %2400 = vst [vmem:[#allocation3 + $0x50] sm:$0xff] %v2368
      %2401 = vst [vmem:[#allocation3 + $0x58] sm:$0xff] %v2369
      %2402 = vst [vmem:[#allocation3 + $0x60] sm:$0xff] %v2370
      %2403 = vst [vmem:[#allocation3 + $0x68] sm:$0xff] %v2371
      %2404 = vst [vmem:[#allocation3 + $0x70] sm:$0xff] %v2372
      %2405 = vst [vmem:[#allocation3 + $0x78] sm:$0xff] %v2373
      %2406 = vst [vmem:[#allocation3 + $0x80] sm:$0xff] %v2374
      %2407 = vst [vmem:[#allocation3 + $0x88] sm:$0xff] %v2375
      %2408 = vst [vmem:[#allocation3 + $0x90] sm:$0xff] %v2376
      %2409 = vst [vmem:[#allocation3 + $0x98] sm:$0xff] %v2377
      %2410 = vst [vmem:[#allocation3 + $0xa0] sm:$0xff] %v2378
      %2411 = vst [vmem:[#allocation3 + $0xa8] sm:$0xff] %v2379
      %2412 = vst [vmem:[#allocation3 + $0xb0] sm:$0xff] %v2380
      %2413 = vst [vmem:[#allocation3 + $0xb8] sm:$0xff] %v2381
      %2414 = vst [vmem:[#allocation3 + $0xc0] sm:$0xff] %v2382
      %2415 = vst [vmem:[#allocation3 + $0xc8] sm:$0xff] %v2383
      %2416 = vst [vmem:[#allocation3 + $0xd0] sm:$0xff] %v2384
      %2417 = vst [vmem:[#allocation3 + $0xd8] sm:$0xff] %v2385
      %2418 = vst [vmem:[#allocation3 + $0xe0] sm:$0xff] %v2386
      %2419 = vst [vmem:[#allocation3 + $0xe8] sm:$0xff] %v2387
      %2420 = vst [vmem:[#allocation3 + $0xf0] sm:$0xff] %v2388
      %2421 = vst [vmem:[#allocation3 + $0xf8] sm:$0xff] %v2389
      %v2422 = vld [vmem:[%s604 + $0x2] sm:$0xff]
      %v2423 = vld [vmem:[%s604 + $0xa] sm:$0xff]
      %v2424 = vld [vmem:[%s604 + $0x1a] sm:$0xff]
      %v2425 = vld [vmem:[%s604 + $0x22] sm:$0xff]
      %v2426 = vld [vmem:[%s604 + $0x32] sm:$0xff]
      %v2427 = vld [vmem:[%s604 + $0x3a] sm:$0xff]
      %v2428 = vld [vmem:[%s604 + $0x4a] sm:$0xff]
      %v2429 = vld [vmem:[%s604 + $0x52] sm:$0xff]
      %v2430 = vld [vmem:[%s604 + $0x62] sm:$0xff]
      %v2431 = vld [vmem:[%s604 + $0x6a] sm:$0xff]
      %v2432 = vld [vmem:[%s604 + $0x7a] sm:$0xff]
      %v2433 = vld [vmem:[%s604 + $0x82] sm:$0xff]
      %v2434 = vld [vmem:[%s604 + $0x92] sm:$0xff]
      %v2435 = vld [vmem:[%s604 + $0x9a] sm:$0xff]
      %v2436 = vld [vmem:[%s604 + $0xaa] sm:$0xff]
      %v2437 = vld [vmem:[%s604 + $0xb2] sm:$0xff]
      %v2438 = vld [vmem:[%s604 + $0xc2] sm:$0xff]
      %v2439 = vld [vmem:[%s604 + $0xca] sm:$0xff]
      %v2440 = vld [vmem:[%s604 + $0xda] sm:$0xff]
      %v2441 = vld [vmem:[%s604 + $0xe2] sm:$0xff]
      %v2442 = vld [vmem:[%s604 + $0xf2] sm:$0xff]
      %v2443 = vld [vmem:[%s604 + $0xfa] sm:$0xff]
      %v2444 = vld [vmem:[%s604 + $0x10a] sm:$0xff]
      %v2445 = vld [vmem:[%s604 + $0x112] sm:$0xff]
      %v2446 = vld [vmem:[%s604 + $0x122] sm:$0xff]
      %v2447 = vld [vmem:[%s604 + $0x12a] sm:$0xff]
      %v2448 = vld [vmem:[%s604 + $0x13a] sm:$0xff]
      %v2449 = vld [vmem:[%s604 + $0x142] sm:$0xff]
      %v2450 = vld [vmem:[%s604 + $0x152] sm:$0xff]
      %v2451 = vld [vmem:[%s604 + $0x15a] sm:$0xff]
      %v2452 = vld [vmem:[%s604 + $0x16a] sm:$0xff]
      %v2453 = vld [vmem:[%s604 + $0x172] sm:$0xff]
      %v2454 = vpack.c.bf16 %v2423, %v2422
      %v2455 = vpack.c.bf16 %v2425, %v2424
      %v2456 = vpack.c.bf16 %v2427, %v2426
      %v2457 = vpack.c.bf16 %v2429, %v2428
      %v2458 = vpack.c.bf16 %v2431, %v2430
      %v2459 = vpack.c.bf16 %v2433, %v2432
      %v2460 = vpack.c.bf16 %v2435, %v2434
      %v2461 = vpack.c.bf16 %v2437, %v2436
      %v2462 = vpack.c.bf16 %v2439, %v2438
      %v2463 = vpack.c.bf16 %v2441, %v2440
      %v2464 = vpack.c.bf16 %v2443, %v2442
      %v2465 = vpack.c.bf16 %v2445, %v2444
      %v2466 = vpack.c.bf16 %v2447, %v2446
      %v2467 = vpack.c.bf16 %v2449, %v2448
      %v2468 = vpack.c.bf16 %v2451, %v2450
      %v2469 = vpack.c.bf16 %v2453, %v2452
      %s2470 = scalar_lea.vmem %s4, 320
      %v2471 = vld [vmem:[%s2470] sm:$0xf]
      %v2472 = vld [vmem:[%s2470 + $0x4] sm:$0xf]
      %v2473 = vld [vmem:[%s2470 + $0x8] sm:$0xf]
      %v2474 = vld [vmem:[%s2470 + $0xc] sm:$0xf]
      %v2475 = vld [vmem:[%s2470 + $0x10] sm:$0xf]
      %v2476 = vld [vmem:[%s2470 + $0x14] sm:$0xf]
      %v2477 = vld [vmem:[%s2470 + $0x18] sm:$0xf]
      %v2478 = vld [vmem:[%s2470 + $0x1c] sm:$0xf]
      %v2479 = vld [vmem:[%s2470 + $0x20] sm:$0xf]
      %v2480 = vld [vmem:[%s2470 + $0x24] sm:$0xf]
      %v2481 = vld [vmem:[%s2470 + $0x28] sm:$0xf]
      %v2482 = vld [vmem:[%s2470 + $0x2c] sm:$0xf]
      %v2483 = vld [vmem:[%s2470 + $0x30] sm:$0xf]
      %v2484 = vld [vmem:[%s2470 + $0x34] sm:$0xf]
      %v2485 = vld [vmem:[%s2470 + $0x38] sm:$0xf]
      %v2486 = vld [vmem:[%s2470 + $0x3c] sm:$0xf]
      %v2503 = vunpack.c.l.b16 %v2471
      %v2504 = vunpack.c.l.b16 %v2472
      %v2505 = vunpack.c.l.b16 %v2473
      %v2506 = vunpack.c.l.b16 %v2474
      %v2507 = vunpack.c.l.b16 %v2475
      %v2508 = vunpack.c.l.b16 %v2476
      %v2509 = vunpack.c.l.b16 %v2477
      %v2510 = vunpack.c.l.b16 %v2478
      %v2511 = vunpack.c.l.b16 %v2479
      %v2512 = vunpack.c.l.b16 %v2480
      %v2513 = vunpack.c.l.b16 %v2481
      %v2514 = vunpack.c.l.b16 %v2482
      %v2515 = vunpack.c.l.b16 %v2483
      %v2516 = vunpack.c.l.b16 %v2484
      %v2517 = vunpack.c.l.b16 %v2485
      %v2518 = vunpack.c.l.b16 %v2486
      %v2519 = vpack.c.b16 %v2504, %v2503
      %v2520 = vpack.c.b16 %v2506, %v2505
      %v2521 = vpack.c.b16 %v2508, %v2507
      %v2522 = vpack.c.b16 %v2510, %v2509
      %v2523 = vpack.c.b16 %v2512, %v2511
      %v2524 = vpack.c.b16 %v2514, %v2513
      %v2525 = vpack.c.b16 %v2516, %v2515
      %v2526 = vpack.c.b16 %v2518, %v2517
      %2535 = vmatprep.subr.bf16.mxu0 0
      %2536 = vmatpush1.bf16.msra.mxu0 %v2519
      %2537 = vmatprep.subr.bf16.mxu0 0
      %2538 = vmatpush1.bf16.msra.mxu0 %v2520
      %2539 = vmatprep.subr.bf16.mxu0 0
      %2540 = vmatpush1.bf16.msra.mxu0 %v2521
      %2541 = vmatprep.subr.bf16.mxu0 0
      %2542 = vmatpush1.bf16.msra.mxu0 %v2522
      %2543 = vmatprep.subr.bf16.mxu0 0
      %2544 = vmatpush1.bf16.msra.mxu0 %v2523
      %2545 = vmatprep.subr.bf16.mxu0 0
      %2546 = vmatpush1.bf16.msra.mxu0 %v2524
      %2547 = vmatprep.subr.bf16.mxu0 0
      %2548 = vmatpush1.bf16.msra.mxu0 %v2525
      %2549 = vmatprep.subr.bf16.mxu0 0
      %2550 = vmatpush1.bf16.msra.mxu0 %v2526
      %2551 = vmatprep.subr.bf16.mxu0 0
      %2552 = vmatpush1.bf16.msra.mxu0 0
      %2553 = vmatprep.subr.bf16.mxu0 0
      %2554 = vmatpush1.bf16.msra.mxu0 0
      %2555 = vmatprep.subr.bf16.mxu0 0
      %2556 = vmatpush1.bf16.msra.mxu0 0
      %2557 = vmatprep.subr.bf16.mxu0 0
      %2558 = vmatpush1.bf16.msra.mxu0 0
      %2559 = vmatprep.subr.bf16.mxu0 0
      %2560 = vmatpush1.bf16.msra.mxu0 0
      %2561 = vmatprep.subr.bf16.mxu0 0
      %2562 = vmatpush1.bf16.msra.mxu0 0
      %2563 = vmatprep.subr.bf16.mxu0 0
      %2564 = vmatpush1.bf16.msra.mxu0 0
      %2565 = vmatprep.subr.bf16.mxu0 0
      %2566 = vmatpush1.bf16.msra.mxu0 0
      %2567 = vmatprep.mubr.bf16.mxu0 0
      %2568 = vmatmul.mubr.bf16.gmra.mrb[0].mxu0 %v2454
      %v2569 = vpop.f32.mrb[0].mxu0
      %v2570 = vadd.f32 0.0, %v2569
      %v2571 = vpop.f32.mrb[0].mxu0
      %v2572 = vpop.f32.mrb[0].mxu0
      %v2573 = vadd.f32 0.0, %v2572
      %v2574 = vpop.f32.mrb[0].mxu0
      %2575 = vmatprep.mubr.bf16.mxu0 0
      %2576 = vmatmul.mubr.bf16.gmra.mrb[0].mxu0 %v2455
      %v2577 = vpop.f32.mrb[0].mxu0
      %v2578 = vadd.f32 0.0, %v2577
      %v2579 = vpop.f32.mrb[0].mxu0
      %v2580 = vpop.f32.mrb[0].mxu0
      %v2581 = vadd.f32 0.0, %v2580
      %v2582 = vpop.f32.mrb[0].mxu0
      %2583 = vmatprep.mubr.bf16.mxu0 0
      %2584 = vmatmul.mubr.bf16.gmra.mrb[0].mxu0 %v2456
      %v2585 = vpop.f32.mrb[0].mxu0
      %v2586 = vadd.f32 0.0, %v2585
      %v2587 = vpop.f32.mrb[0].mxu0
      %v2588 = vpop.f32.mrb[0].mxu0
      %v2589 = vadd.f32 0.0, %v2588
      %v2590 = vpop.f32.mrb[0].mxu0
      %2591 = vmatprep.mubr.bf16.mxu0 0
      %2592 = vmatmul.mubr.bf16.gmra.mrb[0].mxu0 %v2457
      %v2593 = vpop.f32.mrb[0].mxu0
      %v2594 = vadd.f32 0.0, %v2593
      %v2595 = vpop.f32.mrb[0].mxu0
      %v2596 = vpop.f32.mrb[0].mxu0
      %v2597 = vadd.f32 0.0, %v2596
      %v2598 = vpop.f32.mrb[0].mxu0
      %2599 = vmatprep.mubr.bf16.mxu0 0
      %2600 = vmatmul.mubr.bf16.gmra.mrb[0].mxu0 %v2458
      %v2601 = vpop.f32.mrb[0].mxu0
      %v2602 = vadd.f32 0.0, %v2601
      %v2603 = vpop.f32.mrb[0].mxu0
      %v2604 = vpop.f32.mrb[0].mxu0
      %v2605 = vadd.f32 0.0, %v2604
      %v2606 = vpop.f32.mrb[0].mxu0
      %2607 = vmatprep.mubr.bf16.mxu0 0
      %2608 = vmatmul.mubr.bf16.gmra.mrb[0].mxu0 %v2459
      %v2609 = vpop.f32.mrb[0].mxu0
      %v2610 = vadd.f32 0.0, %v2609
      %v2611 = vpop.f32.mrb[0].mxu0
      %v2612 = vpop.f32.mrb[0].mxu0
      %v2613 = vadd.f32 0.0, %v2612
      %v2614 = vpop.f32.mrb[0].mxu0
      %2615 = vmatprep.mubr.bf16.mxu0 0
      %2616 = vmatmul.mubr.bf16.gmra.mrb[0].mxu0 %v2460
      %v2617 = vpop.f32.mrb[0].mxu0
      %v2618 = vadd.f32 0.0, %v2617
      %v2619 = vpop.f32.mrb[0].mxu0
      %v2620 = vpop.f32.mrb[0].mxu0
      %v2621 = vadd.f32 0.0, %v2620
      %v2622 = vpop.f32.mrb[0].mxu0
      %2623 = vmatprep.mubr.bf16.mxu0 0
      %2624 = vmatmul.mubr.bf16.gmra.mrb[0].mxu0 %v2461
      %v2625 = vpop.f32.mrb[0].mxu0
      %v2626 = vadd.f32 0.0, %v2625
      %v2627 = vpop.f32.mrb[0].mxu0
      %v2628 = vpop.f32.mrb[0].mxu0
      %v2629 = vadd.f32 0.0, %v2628
      %v2630 = vpop.f32.mrb[0].mxu0
      %2631 = vmatprep.mubr.bf16.mxu0 0
      %2632 = vmatmul.mubr.bf16.gmra.mrb[0].mxu0 %v2462
      %v2633 = vpop.f32.mrb[0].mxu0
      %v2634 = vadd.f32 0.0, %v2633
      %v2635 = vpop.f32.mrb[0].mxu0
      %v2636 = vpop.f32.mrb[0].mxu0
      %v2637 = vadd.f32 0.0, %v2636
      %v2638 = vpop.f32.mrb[0].mxu0
      %2639 = vmatprep.mubr.bf16.mxu0 0
      %2640 = vmatmul.mubr.bf16.gmra.mrb[0].mxu0 %v2463
      %v2641 = vpop.f32.mrb[0].mxu0
      %v2642 = vadd.f32 0.0, %v2641
      %v2643 = vpop.f32.mrb[0].mxu0
      %v2644 = vpop.f32.mrb[0].mxu0
      %v2645 = vadd.f32 0.0, %v2644
      %v2646 = vpop.f32.mrb[0].mxu0
      %2647 = vmatprep.mubr.bf16.mxu0 0
      %2648 = vmatmul.mubr.bf16.gmra.mrb[0].mxu0 %v2464
      %v2649 = vpop.f32.mrb[0].mxu0
      %v2650 = vadd.f32 0.0, %v2649
      %v2651 = vpop.f32.mrb[0].mxu0
      %v2652 = vpop.f32.mrb[0].mxu0
      %v2653 = vadd.f32 0.0, %v2652
      %v2654 = vpop.f32.mrb[0].mxu0
      %2655 = vmatprep.mubr.bf16.mxu0 0
      %2656 = vmatmul.mubr.bf16.gmra.mrb[0].mxu0 %v2465
      %v2657 = vpop.f32.mrb[0].mxu0
      %v2658 = vadd.f32 0.0, %v2657
      %v2659 = vpop.f32.mrb[0].mxu0
      %v2660 = vpop.f32.mrb[0].mxu0
      %v2661 = vadd.f32 0.0, %v2660
      %v2662 = vpop.f32.mrb[0].mxu0
      %2663 = vmatprep.mubr.bf16.mxu0 0
      %2664 = vmatmul.mubr.bf16.gmra.mrb[0].mxu0 %v2466
      %v2665 = vpop.f32.mrb[0].mxu0
      %v2666 = vadd.f32 0.0, %v2665
      %v2667 = vpop.f32.mrb[0].mxu0
      %v2668 = vpop.f32.mrb[0].mxu0
      %v2669 = vadd.f32 0.0, %v2668
      %v2670 = vpop.f32.mrb[0].mxu0
      %2671 = vmatprep.mubr.bf16.mxu0 0
      %2672 = vmatmul.mubr.bf16.gmra.mrb[0].mxu0 %v2467
      %v2673 = vpop.f32.mrb[0].mxu0
      %v2674 = vadd.f32 0.0, %v2673
      %v2675 = vpop.f32.mrb[0].mxu0
      %v2676 = vpop.f32.mrb[0].mxu0
      %v2677 = vadd.f32 0.0, %v2676
      %v2678 = vpop.f32.mrb[0].mxu0
      %2679 = vmatprep.mubr.bf16.mxu0 0
      %2680 = vmatmul.mubr.bf16.gmra.mrb[0].mxu0 %v2468
      %v2681 = vpop.f32.mrb[0].mxu0
      %v2682 = vadd.f32 0.0, %v2681
      %v2683 = vpop.f32.mrb[0].mxu0
      %v2684 = vpop.f32.mrb[0].mxu0
      %v2685 = vadd.f32 0.0, %v2684
      %v2686 = vpop.f32.mrb[0].mxu0
      %2687 = vmatprep.mubr.bf16.mxu0 0
      %2688 = vmatmul.mubr.bf16.gmra.mrb[0].mxu0 %v2469
      %v2689 = vpop.f32.mrb[0].mxu0
      %v2690 = vadd.f32 0.0, %v2689
      %v2691 = vpop.f32.mrb[0].mxu0
      %v2692 = vpop.f32.mrb[0].mxu0
      %v2693 = vadd.f32 0.0, %v2692
      %v2694 = vpop.f32.mrb[0].mxu0
      %2695 = vdwg.mxu0
      %v2696 = vld [vmem:[#allocation3] sm:$0xff]
      %v2697 = vld [vmem:[#allocation3 + $0x8] sm:$0xff]
      %v2698 = vld [vmem:[#allocation3 + $0x10] sm:$0xff]
      %v2699 = vld [vmem:[#allocation3 + $0x18] sm:$0xff]
      %v2700 = vld [vmem:[#allocation3 + $0x20] sm:$0xff]
      %v2701 = vld [vmem:[#allocation3 + $0x28] sm:$0xff]
      %v2702 = vld [vmem:[#allocation3 + $0x30] sm:$0xff]
      %v2703 = vld [vmem:[#allocation3 + $0x38] sm:$0xff]
      %v2704 = vld [vmem:[#allocation3 + $0x40] sm:$0xff]
      %v2705 = vld [vmem:[#allocation3 + $0x48] sm:$0xff]
      %v2706 = vld [vmem:[#allocation3 + $0x50] sm:$0xff]
      %v2707 = vld [vmem:[#allocation3 + $0x58] sm:$0xff]
      %v2708 = vld [vmem:[#allocation3 + $0x60] sm:$0xff]
      %v2709 = vld [vmem:[#allocation3 + $0x68] sm:$0xff]
      %v2710 = vld [vmem:[#allocation3 + $0x70] sm:$0xff]
      %v2711 = vld [vmem:[#allocation3 + $0x78] sm:$0xff]
      %v2712 = vld [vmem:[#allocation3 + $0x80] sm:$0xff]
      %v2713 = vld [vmem:[#allocation3 + $0x88] sm:$0xff]
      %v2714 = vld [vmem:[#allocation3 + $0x90] sm:$0xff]
      %v2715 = vld [vmem:[#allocation3 + $0x98] sm:$0xff]
      %v2716 = vld [vmem:[#allocation3 + $0xa0] sm:$0xff]
      %v2717 = vld [vmem:[#allocation3 + $0xa8] sm:$0xff]
      %v2718 = vld [vmem:[#allocation3 + $0xb0] sm:$0xff]
      %v2719 = vld [vmem:[#allocation3 + $0xb8] sm:$0xff]
      %v2720 = vld [vmem:[#allocation3 + $0xc0] sm:$0xff]
      %v2721 = vld [vmem:[#allocation3 + $0xc8] sm:$0xff]
      %v2722 = vld [vmem:[#allocation3 + $0xd0] sm:$0xff]
      %v2723 = vld [vmem:[#allocation3 + $0xd8] sm:$0xff]
      %v2724 = vld [vmem:[#allocation3 + $0xe0] sm:$0xff]
      %v2725 = vld [vmem:[#allocation3 + $0xe8] sm:$0xff]
      %v2726 = vld [vmem:[#allocation3 + $0xf0] sm:$0xff]
      %v2727 = vld [vmem:[#allocation3 + $0xf8] sm:$0xff]
      %v2728 = vadd.f32 %v2696, %v2570
      %v2729 = vadd.f32 %v2697, %v2573
      %v2730 = vadd.f32 %v2698, %v2578
      %v2731 = vadd.f32 %v2699, %v2581
      %v2732 = vadd.f32 %v2700, %v2586
      %v2733 = vadd.f32 %v2701, %v2589
      %v2734 = vadd.f32 %v2702, %v2594
      %v2735 = vadd.f32 %v2703, %v2597
      %v2736 = vadd.f32 %v2704, %v2602
      %v2737 = vadd.f32 %v2705, %v2605
      %v2738 = vadd.f32 %v2706, %v2610
      %v2739 = vadd.f32 %v2707, %v2613
      %v2740 = vadd.f32 %v2708, %v2618
      %v2741 = vadd.f32 %v2709, %v2621
      %v2742 = vadd.f32 %v2710, %v2626
      %v2743 = vadd.f32 %v2711, %v2629
      %v2744 = vadd.f32 %v2712, %v2634
      %v2745 = vadd.f32 %v2713, %v2637
      %v2746 = vadd.f32 %v2714, %v2642
      %v2747 = vadd.f32 %v2715, %v2645
      %v2748 = vadd.f32 %v2716, %v2650
      %v2749 = vadd.f32 %v2717, %v2653
      %v2750 = vadd.f32 %v2718, %v2658
      %v2751 = vadd.f32 %v2719, %v2661
      %v2752 = vadd.f32 %v2720, %v2666
      %v2753 = vadd.f32 %v2721, %v2669
      %v2754 = vadd.f32 %v2722, %v2674
      %v2755 = vadd.f32 %v2723, %v2677
      %v2756 = vadd.f32 %v2724, %v2682
      %v2757 = vadd.f32 %v2725, %v2685
      %v2758 = vadd.f32 %v2726, %v2690
      %v2759 = vadd.f32 %v2727, %v2693
      %2760 = vst [vmem:[#allocation3] sm:$0xff] %v2728
      %2761 = vst [vmem:[#allocation3 + $0x8] sm:$0xff] %v2729
      %2762 = vst [vmem:[#allocation3 + $0x10] sm:$0xff] %v2730
      %2763 = vst [vmem:[#allocation3 + $0x18] sm:$0xff] %v2731
      %2764 = vst [vmem:[#allocation3 + $0x20] sm:$0xff] %v2732
      %2765 = vst [vmem:[#allocation3 + $0x28] sm:$0xff] %v2733
      %2766 = vst [vmem:[#allocation3 + $0x30] sm:$0xff] %v2734
      %2767 = vst [vmem:[#allocation3 + $0x38] sm:$0xff] %v2735
      %2768 = vst [vmem:[#allocation3 + $0x40] sm:$0xff] %v2736
      %2769 = vst [vmem:[#allocation3 + $0x48] sm:$0xff] %v2737
      %2770 = vst [vmem:[#allocation3 + $0x50] sm:$0xff] %v2738
      %2771 = vst [vmem:[#allocation3 + $0x58] sm:$0xff] %v2739
      %2772 = vst [vmem:[#allocation3 + $0x60] sm:$0xff] %v2740
      %2773 = vst [vmem:[#allocation3 + $0x68] sm:$0xff] %v2741
      %2774 = vst [vmem:[#allocation3 + $0x70] sm:$0xff] %v2742
      %2775 = vst [vmem:[#allocation3 + $0x78] sm:$0xff] %v2743
      %2776 = vst [vmem:[#allocation3 + $0x80] sm:$0xff] %v2744
      %2777 = vst [vmem:[#allocation3 + $0x88] sm:$0xff] %v2745
      %2778 = vst [vmem:[#allocation3 + $0x90] sm:$0xff] %v2746
      %2779 = vst [vmem:[#allocation3 + $0x98] sm:$0xff] %v2747
      %2780 = vst [vmem:[#allocation3 + $0xa0] sm:$0xff] %v2748
      %2781 = vst [vmem:[#allocation3 + $0xa8] sm:$0xff] %v2749
      %2782 = vst [vmem:[#allocation3 + $0xb0] sm:$0xff] %v2750
      %2783 = vst [vmem:[#allocation3 + $0xb8] sm:$0xff] %v2751
      %2784 = vst [vmem:[#allocation3 + $0xc0] sm:$0xff] %v2752
      %2785 = vst [vmem:[#allocation3 + $0xc8] sm:$0xff] %v2753
      %2786 = vst [vmem:[#allocation3 + $0xd0] sm:$0xff] %v2754
      %2787 = vst [vmem:[#allocation3 + $0xd8] sm:$0xff] %v2755
      %2788 = vst [vmem:[#allocation3 + $0xe0] sm:$0xff] %v2756
      %2789 = vst [vmem:[#allocation3 + $0xe8] sm:$0xff] %v2757
      %2790 = vst [vmem:[#allocation3 + $0xf0] sm:$0xff] %v2758
      %2791 = vst [vmem:[#allocation3 + $0xf8] sm:$0xff] %v2759
      %s2792 = scalar_lea.vmem [#allocation2], 48
      %v2793 = vld [vmem:[%s2792] sm:$0xff]
      %v2794 = vld [vmem:[%s2792 + $0x8] sm:$0xff]
      %v2795 = vld [vmem:[%s2792 + $0x18] sm:$0xff]
      %v2796 = vld [vmem:[%s2792 + $0x20] sm:$0xff]
      %v2797 = vld [vmem:[%s2792 + $0x30] sm:$0xff]
      %v2798 = vld [vmem:[%s2792 + $0x38] sm:$0xff]
      %v2799 = vld [vmem:[%s2792 + $0x48] sm:$0xff]
      %v2800 = vld [vmem:[%s2792 + $0x50] sm:$0xff]
      %v2801 = vld [vmem:[%s2792 + $0x60] sm:$0xff]
      %v2802 = vld [vmem:[%s2792 + $0x68] sm:$0xff]
      %v2803 = vld [vmem:[%s2792 + $0x78] sm:$0xff]
      %v2804 = vld [vmem:[%s2792 + $0x80] sm:$0xff]
      %v2805 = vld [vmem:[%s2792 + $0x90] sm:$0xff]
      %v2806 = vld [vmem:[%s2792 + $0x98] sm:$0xff]
      %v2807 = vld [vmem:[%s2792 + $0xa8] sm:$0xff]
      %v2808 = vld [vmem:[%s2792 + $0xb0] sm:$0xff]
      %v2809 = vld [vmem:[%s2792 + $0xc0] sm:$0xff]
      %v2810 = vld [vmem:[%s2792 + $0xc8] sm:$0xff]
      %v2811 = vld [vmem:[%s2792 + $0xd8] sm:$0xff]
      %v2812 = vld [vmem:[%s2792 + $0xe0] sm:$0xff]
      %v2813 = vld [vmem:[%s2792 + $0xf0] sm:$0xff]
      %v2814 = vld [vmem:[%s2792 + $0xf8] sm:$0xff]
      %v2815 = vld [vmem:[%s2792 + $0x108] sm:$0xff]
      %v2816 = vld [vmem:[%s2792 + $0x110] sm:$0xff]
      %v2817 = vld [vmem:[%s2792 + $0x120] sm:$0xff]
      %v2818 = vld [vmem:[%s2792 + $0x128] sm:$0xff]
      %v2819 = vld [vmem:[%s2792 + $0x138] sm:$0xff]
      %v2820 = vld [vmem:[%s2792 + $0x140] sm:$0xff]
      %v2821 = vld [vmem:[%s2792 + $0x150] sm:$0xff]
      %v2822 = vld [vmem:[%s2792 + $0x158] sm:$0xff]
      %v2823 = vld [vmem:[%s2792 + $0x168] sm:$0xff]
      %v2824 = vld [vmem:[%s2792 + $0x170] sm:$0xff]
      %v2825 = vpack.c.bf16 %v2794, %v2793
      %v2826 = vpack.c.bf16 %v2796, %v2795
      %v2827 = vpack.c.bf16 %v2798, %v2797
      %v2828 = vpack.c.bf16 %v2800, %v2799
      %v2829 = vpack.c.bf16 %v2802, %v2801
      %v2830 = vpack.c.bf16 %v2804, %v2803
      %v2831 = vpack.c.bf16 %v2806, %v2805
      %v2832 = vpack.c.bf16 %v2808, %v2807
      %v2833 = vpack.c.bf16 %v2810, %v2809
      %v2834 = vpack.c.bf16 %v2812, %v2811
      %v2835 = vpack.c.bf16 %v2814, %v2813
      %v2836 = vpack.c.bf16 %v2816, %v2815
      %v2837 = vpack.c.bf16 %v2818, %v2817
      %v2838 = vpack.c.bf16 %v2820, %v2819
      %v2839 = vpack.c.bf16 %v2822, %v2821
      %v2840 = vpack.c.bf16 %v2824, %v2823
      %s2841 = scalar_lea.vmem %s4, 384
      %v2842 = vld [vmem:[%s2841] sm:$0xf]
      %v2843 = vld [vmem:[%s2841 + $0x4] sm:$0xf]
      %v2844 = vld [vmem:[%s2841 + $0x8] sm:$0xf]
      %v2845 = vld [vmem:[%s2841 + $0xc] sm:$0xf]
      %v2846 = vld [vmem:[%s2841 + $0x10] sm:$0xf]
      %v2847 = vld [vmem:[%s2841 + $0x14] sm:$0xf]
      %v2848 = vld [vmem:[%s2841 + $0x18] sm:$0xf]
      %v2849 = vld [vmem:[%s2841 + $0x1c] sm:$0xf]
      %v2850 = vld [vmem:[%s2841 + $0x20] sm:$0xf]
      %v2851 = vld [vmem:[%s2841 + $0x24] sm:$0xf]
      %v2852 = vld [vmem:[%s2841 + $0x28] sm:$0xf]
      %v2853 = vld [vmem:[%s2841 + $0x2c] sm:$0xf]
      %v2854 = vld [vmem:[%s2841 + $0x30] sm:$0xf]
      %v2855 = vld [vmem:[%s2841 + $0x34] sm:$0xf]
      %v2856 = vld [vmem:[%s2841 + $0x38] sm:$0xf]
      %v2857 = vld [vmem:[%s2841 + $0x3c] sm:$0xf]
      %v2874 = vunpack.c.l.b16 %v2842
      %v2875 = vunpack.c.l.b16 %v2843
      %v2876 = vunpack.c.l.b16 %v2844
      %v2877 = vunpack.c.l.b16 %v2845
      %v2878 = vunpack.c.l.b16 %v2846
      %v2879 = vunpack.c.l.b16 %v2847
      %v2880 = vunpack.c.l.b16 %v2848
      %v2881 = vunpack.c.l.b16 %v2849
      %v2882 = vunpack.c.l.b16 %v2850
      %v2883 = vunpack.c.l.b16 %v2851
      %v2884 = vunpack.c.l.b16 %v2852
      %v2885 = vunpack.c.l.b16 %v2853
      %v2886 = vunpack.c.l.b16 %v2854
      %v2887 = vunpack.c.l.b16 %v2855
      %v2888 = vunpack.c.l.b16 %v2856
      %v2889 = vunpack.c.l.b16 %v2857
      %v2890 = vpack.c.b16 %v2875, %v2874
      %v2891 = vpack.c.b16 %v2877, %v2876
      %v2892 = vpack.c.b16 %v2879, %v2878
      %v2893 = vpack.c.b16 %v2881, %v2880
      %v2894 = vpack.c.b16 %v2883, %v2882
      %v2895 = vpack.c.b16 %v2885, %v2884
      %v2896 = vpack.c.b16 %v2887, %v2886
      %v2897 = vpack.c.b16 %v2889, %v2888
      %2906 = vmatprep.subr.bf16.mxu0 0
      %2907 = vmatpush1.bf16.msra.mxu0 %v2890
      %2908 = vmatprep.subr.bf16.mxu0 0
      %2909 = vmatpush1.bf16.msra.mxu0 %v2891
      %2910 = vmatprep.subr.bf16.mxu0 0
      %2911 = vmatpush1.bf16.msra.mxu0 %v2892
      %2912 = vmatprep.subr.bf16.mxu0 0
      %2913 = vmatpush1.bf16.msra.mxu0 %v2893
      %2914 = vmatprep.subr.bf16.mxu0 0
      %2915 = vmatpush1.bf16.msra.mxu0 %v2894
      %2916 = vmatprep.subr.bf16.mxu0 0
      %2917 = vmatpush1.bf16.msra.mxu0 %v2895
      %2918 = vmatprep.subr.bf16.mxu0 0
      %2919 = vmatpush1.bf16.msra.mxu0 %v2896
      %2920 = vmatprep.subr.bf16.mxu0 0
      %2921 = vmatpush1.bf16.msra.mxu0 %v2897
      %2922 = vmatprep.subr.bf16.mxu0 0
      %2923 = vmatpush1.bf16.msra.mxu0 0
      %2924 = vmatprep.subr.bf16.mxu0 0
      %2925 = vmatpush1.bf16.msra.mxu0 0
      %2926 = vmatprep.subr.bf16.mxu0 0
      %2927 = vmatpush1.bf16.msra.mxu0 0
      %2928 = vmatprep.subr.bf16.mxu0 0
      %2929 = vmatpush1.bf16.msra.mxu0 0
      %2930 = vmatprep.subr.bf16.mxu0 0
      %2931 = vmatpush1.bf16.msra.mxu0 0
      %2932 = vmatprep.subr.bf16.mxu0 0
      %2933 = vmatpush1.bf16.msra.mxu0 0
      %2934 = vmatprep.subr.bf16.mxu0 0
      %2935 = vmatpush1.bf16.msra.mxu0 0
      %2936 = vmatprep.subr.bf16.mxu0 0
      %2937 = vmatpush1.bf16.msra.mxu0 0
      %2938 = vmatprep.mubr.bf16.mxu0 0
      %2939 = vmatmul.mubr.bf16.gmra.mrb[0].mxu0 %v2825
      %v2940 = vpop.f32.mrb[0].mxu0
      %v2941 = vadd.f32 0.0, %v2940
      %v2942 = vpop.f32.mrb[0].mxu0
      %v2943 = vpop.f32.mrb[0].mxu0
      %v2944 = vadd.f32 0.0, %v2943
      %v2945 = vpop.f32.mrb[0].mxu0
      %2946 = vmatprep.mubr.bf16.mxu0 0
      %2947 = vmatmul.mubr.bf16.gmra.mrb[0].mxu0 %v2826
      %v2948 = vpop.f32.mrb[0].mxu0
      %v2949 = vadd.f32 0.0, %v2948
      %v2950 = vpop.f32.mrb[0].mxu0
      %v2951 = vpop.f32.mrb[0].mxu0
      %v2952 = vadd.f32 0.0, %v2951
      %v2953 = vpop.f32.mrb[0].mxu0
      %2954 = vmatprep.mubr.bf16.mxu0 0
      %2955 = vmatmul.mubr.bf16.gmra.mrb[0].mxu0 %v2827
      %v2956 = vpop.f32.mrb[0].mxu0
      %v2957 = vadd.f32 0.0, %v2956
      %v2958 = vpop.f32.mrb[0].mxu0
      %v2959 = vpop.f32.mrb[0].mxu0
      %v2960 = vadd.f32 0.0, %v2959
      %v2961 = vpop.f32.mrb[0].mxu0
      %2962 = vmatprep.mubr.bf16.mxu0 0
      %2963 = vmatmul.mubr.bf16.gmra.mrb[0].mxu0 %v2828
      %v2964 = vpop.f32.mrb[0].mxu0
      %v2965 = vadd.f32 0.0, %v2964
      %v2966 = vpop.f32.mrb[0].mxu0
      %v2967 = vpop.f32.mrb[0].mxu0
      %v2968 = vadd.f32 0.0, %v2967
      %v2969 = vpop.f32.mrb[0].mxu0
      %2970 = vmatprep.mubr.bf16.mxu0 0
      %2971 = vmatmul.mubr.bf16.gmra.mrb[0].mxu0 %v2829
      %v2972 = vpop.f32.mrb[0].mxu0
      %v2973 = vadd.f32 0.0, %v2972
      %v2974 = vpop.f32.mrb[0].mxu0
      %v2975 = vpop.f32.mrb[0].mxu0
      %v2976 = vadd.f32 0.0, %v2975
      %v2977 = vpop.f32.mrb[0].mxu0
      %2978 = vmatprep.mubr.bf16.mxu0 0
      %2979 = vmatmul.mubr.bf16.gmra.mrb[0].mxu0 %v2830
      %v2980 = vpop.f32.mrb[0].mxu0
      %v2981 = vadd.f32 0.0, %v2980
      %v2982 = vpop.f32.mrb[0].mxu0
      %v2983 = vpop.f32.mrb[0].mxu0
      %v2984 = vadd.f32 0.0, %v2983
      %v2985 = vpop.f32.mrb[0].mxu0
      %2986 = vmatprep.mubr.bf16.mxu0 0
      %2987 = vmatmul.mubr.bf16.gmra.mrb[0].mxu0 %v2831
      %v2988 = vpop.f32.mrb[0].mxu0
      %v2989 = vadd.f32 0.0, %v2988
      %v2990 = vpop.f32.mrb[0].mxu0
      %v2991 = vpop.f32.mrb[0].mxu0
      %v2992 = vadd.f32 0.0, %v2991
      %v2993 = vpop.f32.mrb[0].mxu0
      %2994 = vmatprep.mubr.bf16.mxu0 0
      %2995 = vmatmul.mubr.bf16.gmra.mrb[0].mxu0 %v2832
      %v2996 = vpop.f32.mrb[0].mxu0
      %v2997 = vadd.f32 0.0, %v2996
      %v2998 = vpop.f32.mrb[0].mxu0
      %v2999 = vpop.f32.mrb[0].mxu0
      %v3000 = vadd.f32 0.0, %v2999
      %v3001 = vpop.f32.mrb[0].mxu0
      %3002 = vmatprep.mubr.bf16.mxu0 0
      %3003 = vmatmul.mubr.bf16.gmra.mrb[0].mxu0 %v2833
      %v3004 = vpop.f32.mrb[0].mxu0
      %v3005 = vadd.f32 0.0, %v3004
      %v3006 = vpop.f32.mrb[0].mxu0
      %v3007 = vpop.f32.mrb[0].mxu0
      %v3008 = vadd.f32 0.0, %v3007
      %v3009 = vpop.f32.mrb[0].mxu0
      %3010 = vmatprep.mubr.bf16.mxu0 0
      %3011 = vmatmul.mubr.bf16.gmra.mrb[0].mxu0 %v2834
      %v3012 = vpop.f32.mrb[0].mxu0
      %v3013 = vadd.f32 0.0, %v3012
      %v3014 = vpop.f32.mrb[0].mxu0
      %v3015 = vpop.f32.mrb[0].mxu0
      %v3016 = vadd.f32 0.0, %v3015
      %v3017 = vpop.f32.mrb[0].mxu0
      %3018 = vmatprep.mubr.bf16.mxu0 0
      %3019 = vmatmul.mubr.bf16.gmra.mrb[0].mxu0 %v2835
      %v3020 = vpop.f32.mrb[0].mxu0
      %v3021 = vadd.f32 0.0, %v3020
      %v3022 = vpop.f32.mrb[0].mxu0
      %v3023 = vpop.f32.mrb[0].mxu0
      %v3024 = vadd.f32 0.0, %v3023
      %v3025 = vpop.f32.mrb[0].mxu0
      %3026 = vmatprep.mubr.bf16.mxu0 0
      %3027 = vmatmul.mubr.bf16.gmra.mrb[0].mxu0 %v2836
      %v3028 = vpop.f32.mrb[0].mxu0
      %v3029 = vadd.f32 0.0, %v3028
      %v3030 = vpop.f32.mrb[0].mxu0
      %v3031 = vpop.f32.mrb[0].mxu0
      %v3032 = vadd.f32 0.0, %v3031
      %v3033 = vpop.f32.mrb[0].mxu0
      %3034 = vmatprep.mubr.bf16.mxu0 0
      %3035 = vmatmul.mubr.bf16.gmra.mrb[0].mxu0 %v2837
      %v3036 = vpop.f32.mrb[0].mxu0
      %v3037 = vadd.f32 0.0, %v3036
      %v3038 = vpop.f32.mrb[0].mxu0
      %v3039 = vpop.f32.mrb[0].mxu0
      %v3040 = vadd.f32 0.0, %v3039
      %v3041 = vpop.f32.mrb[0].mxu0
      %3042 = vmatprep.mubr.bf16.mxu0 0
      %3043 = vmatmul.mubr.bf16.gmra.mrb[0].mxu0 %v2838
      %v3044 = vpop.f32.mrb[0].mxu0
      %v3045 = vadd.f32 0.0, %v3044
      %v3046 = vpop.f32.mrb[0].mxu0
      %v3047 = vpop.f32.mrb[0].mxu0
      %v3048 = vadd.f32 0.0, %v3047
      %v3049 = vpop.f32.mrb[0].mxu0
      %3050 = vmatprep.mubr.bf16.mxu0 0
      %3051 = vmatmul.mubr.bf16.gmra.mrb[0].mxu0 %v2839
      %v3052 = vpop.f32.mrb[0].mxu0
      %v3053 = vadd.f32 0.0, %v3052
      %v3054 = vpop.f32.mrb[0].mxu0
      %v3055 = vpop.f32.mrb[0].mxu0
      %v3056 = vadd.f32 0.0, %v3055
      %v3057 = vpop.f32.mrb[0].mxu0
      %3058 = vmatprep.mubr.bf16.mxu0 0
      %3059 = vmatmul.mubr.bf16.gmra.mrb[0].mxu0 %v2840
      %v3060 = vpop.f32.mrb[0].mxu0
      %v3061 = vadd.f32 0.0, %v3060
      %v3062 = vpop.f32.mrb[0].mxu0
      %v3063 = vpop.f32.mrb[0].mxu0
      %v3064 = vadd.f32 0.0, %v3063
      %v3065 = vpop.f32.mrb[0].mxu0
      %3066 = vdwg.mxu0
      %v3067 = vld [vmem:[#allocation3] sm:$0xff]
      %v3068 = vld [vmem:[#allocation3 + $0x8] sm:$0xff]
      %v3069 = vld [vmem:[#allocation3 + $0x10] sm:$0xff]
      %v3070 = vld [vmem:[#allocation3 + $0x18] sm:$0xff]
      %v3071 = vld [vmem:[#allocation3 + $0x20] sm:$0xff]
      %v3072 = vld [vmem:[#allocation3 + $0x28] sm:$0xff]
      %v3073 = vld [vmem:[#allocation3 + $0x30] sm:$0xff]
      %v3074 = vld [vmem:[#allocation3 + $0x38] sm:$0xff]
      %v3075 = vld [vmem:[#allocation3 + $0x40] sm:$0xff]
      %v3076 = vld [vmem:[#allocation3 + $0x48] sm:$0xff]
      %v3077 = vld [vmem:[#allocation3 + $0x50] sm:$0xff]
      %v3078 = vld [vmem:[#allocation3 + $0x58] sm:$0xff]
      %v3079 = vld [vmem:[#allocation3 + $0x60] sm:$0xff]
      %v3080 = vld [vmem:[#allocation3 + $0x68] sm:$0xff]
      %v3081 = vld [vmem:[#allocation3 + $0x70] sm:$0xff]
      %v3082 = vld [vmem:[#allocation3 + $0x78] sm:$0xff]
      %v3083 = vld [vmem:[#allocation3 + $0x80] sm:$0xff]
      %v3084 = vld [vmem:[#allocation3 + $0x88] sm:$0xff]
      %v3085 = vld [vmem:[#allocation3 + $0x90] sm:$0xff]
      %v3086 = vld [vmem:[#allocation3 + $0x98] sm:$0xff]
      %v3087 = vld [vmem:[#allocation3 + $0xa0] sm:$0xff]
      %v3088 = vld [vmem:[#allocation3 + $0xa8] sm:$0xff]
      %v3089 = vld [vmem:[#allocation3 + $0xb0] sm:$0xff]
      %v3090 = vld [vmem:[#allocation3 + $0xb8] sm:$0xff]
      %v3091 = vld [vmem:[#allocation3 + $0xc0] sm:$0xff]
      %v3092 = vld [vmem:[#allocation3 + $0xc8] sm:$0xff]
      %v3093 = vld [vmem:[#allocation3 + $0xd0] sm:$0xff]
      %v3094 = vld [vmem:[#allocation3 + $0xd8] sm:$0xff]
      %v3095 = vld [vmem:[#allocation3 + $0xe0] sm:$0xff]
      %v3096 = vld [vmem:[#allocation3 + $0xe8] sm:$0xff]
      %v3097 = vld [vmem:[#allocation3 + $0xf0] sm:$0xff]
      %v3098 = vld [vmem:[#allocation3 + $0xf8] sm:$0xff]
      %v3099 = vadd.f32 %v3067, %v2941
      %v3100 = vadd.f32 %v3068, %v2944
      %v3101 = vadd.f32 %v3069, %v2949
      %v3102 = vadd.f32 %v3070, %v2952
      %v3103 = vadd.f32 %v3071, %v2957
      %v3104 = vadd.f32 %v3072, %v2960
      %v3105 = vadd.f32 %v3073, %v2965
      %v3106 = vadd.f32 %v3074, %v2968
      %v3107 = vadd.f32 %v3075, %v2973
      %v3108 = vadd.f32 %v3076, %v2976
      %v3109 = vadd.f32 %v3077, %v2981
      %v3110 = vadd.f32 %v3078, %v2984
      %v3111 = vadd.f32 %v3079, %v2989
      %v3112 = vadd.f32 %v3080, %v2992
      %v3113 = vadd.f32 %v3081, %v2997
      %v3114 = vadd.f32 %v3082, %v3000
      %v3115 = vadd.f32 %v3083, %v3005
      %v3116 = vadd.f32 %v3084, %v3008
      %v3117 = vadd.f32 %v3085, %v3013
      %v3118 = vadd.f32 %v3086, %v3016
      %v3119 = vadd.f32 %v3087, %v3021
      %v3120 = vadd.f32 %v3088, %v3024
      %v3121 = vadd.f32 %v3089, %v3029
      %v3122 = vadd.f32 %v3090, %v3032
      %v3123 = vadd.f32 %v3091, %v3037
      %v3124 = vadd.f32 %v3092, %v3040
      %v3125 = vadd.f32 %v3093, %v3045
      %v3126 = vadd.f32 %v3094, %v3048
      %v3127 = vadd.f32 %v3095, %v3053
      %v3128 = vadd.f32 %v3096, %v3056
      %v3129 = vadd.f32 %v3097, %v3061
      %v3130 = vadd.f32 %v3098, %v3064
      %3131 = vst [vmem:[#allocation3] sm:$0xff] %v3099
      %3132 = vst [vmem:[#allocation3 + $0x8] sm:$0xff] %v3100
      %3133 = vst [vmem:[#allocation3 + $0x10] sm:$0xff] %v3101
      %3134 = vst [vmem:[#allocation3 + $0x18] sm:$0xff] %v3102
      %3135 = vst [vmem:[#allocation3 + $0x20] sm:$0xff] %v3103
      %3136 = vst [vmem:[#allocation3 + $0x28] sm:$0xff] %v3104
      %3137 = vst [vmem:[#allocation3 + $0x30] sm:$0xff] %v3105
      %3138 = vst [vmem:[#allocation3 + $0x38] sm:$0xff] %v3106
      %3139 = vst [vmem:[#allocation3 + $0x40] sm:$0xff] %v3107
      %3140 = vst [vmem:[#allocation3 + $0x48] sm:$0xff] %v3108
      %3141 = vst [vmem:[#allocation3 + $0x50] sm:$0xff] %v3109
      %3142 = vst [vmem:[#allocation3 + $0x58] sm:$0xff] %v3110
      %3143 = vst [vmem:[#allocation3 + $0x60] sm:$0xff] %v3111
      %3144 = vst [vmem:[#allocation3 + $0x68] sm:$0xff] %v3112
      %3145 = vst [vmem:[#allocation3 + $0x70] sm:$0xff] %v3113
      %3146 = vst [vmem:[#allocation3 + $0x78] sm:$0xff] %v3114
      %3147 = vst [vmem:[#allocation3 + $0x80] sm:$0xff] %v3115
      %3148 = vst [vmem:[#allocation3 + $0x88] sm:$0xff] %v3116
      %3149 = vst [vmem:[#allocation3 + $0x90] sm:$0xff] %v3117
      %3150 = vst [vmem:[#allocation3 + $0x98] sm:$0xff] %v3118
      %3151 = vst [vmem:[#allocation3 + $0xa0] sm:$0xff] %v3119
      %3152 = vst [vmem:[#allocation3 + $0xa8] sm:$0xff] %v3120
      %3153 = vst [vmem:[#allocation3 + $0xb0] sm:$0xff] %v3121
      %3154 = vst [vmem:[#allocation3 + $0xb8] sm:$0xff] %v3122
      %3155 = vst [vmem:[#allocation3 + $0xc0] sm:$0xff] %v3123
      %3156 = vst [vmem:[#allocation3 + $0xc8] sm:$0xff] %v3124
      %3157 = vst [vmem:[#allocation3 + $0xd0] sm:$0xff] %v3125
      %3158 = vst [vmem:[#allocation3 + $0xd8] sm:$0xff] %v3126
      %3159 = vst [vmem:[#allocation3 + $0xe0] sm:$0xff] %v3127
      %3160 = vst [vmem:[#allocation3 + $0xe8] sm:$0xff] %v3128
      %3161 = vst [vmem:[#allocation3 + $0xf0] sm:$0xff] %v3129
      %3162 = vst [vmem:[#allocation3 + $0xf8] sm:$0xff] %v3130
      %v3163 = vld [vmem:[%s2792 + $0x1] sm:$0xff]
      %v3164 = vld [vmem:[%s2792 + $0x9] sm:$0xff]
      %v3165 = vld [vmem:[%s2792 + $0x19] sm:$0xff]
      %v3166 = vld [vmem:[%s2792 + $0x21] sm:$0xff]
      %v3167 = vld [vmem:[%s2792 + $0x31] sm:$0xff]
      %v3168 = vld [vmem:[%s2792 + $0x39] sm:$0xff]
      %v3169 = vld [vmem:[%s2792 + $0x49] sm:$0xff]
      %v3170 = vld [vmem:[%s2792 + $0x51] sm:$0xff]
      %v3171 = vld [vmem:[%s2792 + $0x61] sm:$0xff]
      %v3172 = vld [vmem:[%s2792 + $0x69] sm:$0xff]
      %v3173 = vld [vmem:[%s2792 + $0x79] sm:$0xff]
      %v3174 = vld [vmem:[%s2792 + $0x81] sm:$0xff]
      %v3175 = vld [vmem:[%s2792 + $0x91] sm:$0xff]
      %v3176 = vld [vmem:[%s2792 + $0x99] sm:$0xff]
      %v3177 = vld [vmem:[%s2792 + $0xa9] sm:$0xff]
      %v3178 = vld [vmem:[%s2792 + $0xb1] sm:$0xff]
      %v3179 = vld [vmem:[%s2792 + $0xc1] sm:$0xff]
      %v3180 = vld [vmem:[%s2792 + $0xc9] sm:$0xff]
      %v3181 = vld [vmem:[%s2792 + $0xd9] sm:$0xff]
      %v3182 = vld [vmem:[%s2792 + $0xe1] sm:$0xff]
      %v3183 = vld [vmem:[%s2792 + $0xf1] sm:$0xff]
      %v3184 = vld [vmem:[%s2792 + $0xf9] sm:$0xff]
      %v3185 = vld [vmem:[%s2792 + $0x109] sm:$0xff]
      %v3186 = vld [vmem:[%s2792 + $0x111] sm:$0xff]
      %v3187 = vld [vmem:[%s2792 + $0x121] sm:$0xff]
      %v3188 = vld [vmem:[%s2792 + $0x129] sm:$0xff]
      %v3189 = vld [vmem:[%s2792 + $0x139] sm:$0xff]
      %v3190 = vld [vmem:[%s2792 + $0x141] sm:$0xff]
      %v3191 = vld [vmem:[%s2792 + $0x151] sm:$0xff]
      %v3192 = vld [vmem:[%s2792 + $0x159] sm:$0xff]
      %v3193 = vld [vmem:[%s2792 + $0x169] sm:$0xff]
      %v3194 = vld [vmem:[%s2792 + $0x171] sm:$0xff]
      %v3195 = vpack.c.bf16 %v3164, %v3163
      %v3196 = vpack.c.bf16 %v3166, %v3165
      %v3197 = vpack.c.bf16 %v3168, %v3167
      %v3198 = vpack.c.bf16 %v3170, %v3169
      %v3199 = vpack.c.bf16 %v3172, %v3171
      %v3200 = vpack.c.bf16 %v3174, %v3173
      %v3201 = vpack.c.bf16 %v3176, %v3175
      %v3202 = vpack.c.bf16 %v3178, %v3177
      %v3203 = vpack.c.bf16 %v3180, %v3179
      %v3204 = vpack.c.bf16 %v3182, %v3181
      %v3205 = vpack.c.bf16 %v3184, %v3183
      %v3206 = vpack.c.bf16 %v3186, %v3185
      %v3207 = vpack.c.bf16 %v3188, %v3187
      %v3208 = vpack.c.bf16 %v3190, %v3189
      %v3209 = vpack.c.bf16 %v3192, %v3191
      %v3210 = vpack.c.bf16 %v3194, %v3193
      %s3211 = scalar_lea.vmem %s4, 448
      %v3212 = vld [vmem:[%s3211] sm:$0xf]
      %v3213 = vld [vmem:[%s3211 + $0x4] sm:$0xf]
      %v3214 = vld [vmem:[%s3211 + $0x8] sm:$0xf]
      %v3215 = vld [vmem:[%s3211 + $0xc] sm:$0xf]
      %v3216 = vld [vmem:[%s3211 + $0x10] sm:$0xf]
      %v3217 = vld [vmem:[%s3211 + $0x14] sm:$0xf]
      %v3218 = vld [vmem:[%s3211 + $0x18] sm:$0xf]
      %v3219 = vld [vmem:[%s3211 + $0x1c] sm:$0xf]
      %v3220 = vld [vmem:[%s3211 + $0x20] sm:$0xf]
      %v3221 = vld [vmem:[%s3211 + $0x24] sm:$0xf]
      %v3222 = vld [vmem:[%s3211 + $0x28] sm:$0xf]
      %v3223 = vld [vmem:[%s3211 + $0x2c] sm:$0xf]
      %v3224 = vld [vmem:[%s3211 + $0x30] sm:$0xf]
      %v3225 = vld [vmem:[%s3211 + $0x34] sm:$0xf]
      %v3226 = vld [vmem:[%s3211 + $0x38] sm:$0xf]
      %v3227 = vld [vmem:[%s3211 + $0x3c] sm:$0xf]
      %v3244 = vunpack.c.l.b16 %v3212
      %v3245 = vunpack.c.l.b16 %v3213
      %v3246 = vunpack.c.l.b16 %v3214
      %v3247 = vunpack.c.l.b16 %v3215
      %v3248 = vunpack.c.l.b16 %v3216
      %v3249 = vunpack.c.l.b16 %v3217
      %v3250 = vunpack.c.l.b16 %v3218
      %v3251 = vunpack.c.l.b16 %v3219
      %v3252 = vunpack.c.l.b16 %v3220
      %v3253 = vunpack.c.l.b16 %v3221
      %v3254 = vunpack.c.l.b16 %v3222
      %v3255 = vunpack.c.l.b16 %v3223
      %v3256 = vunpack.c.l.b16 %v3224
      %v3257 = vunpack.c.l.b16 %v3225
      %v3258 = vunpack.c.l.b16 %v3226
      %v3259 = vunpack.c.l.b16 %v3227
      %v3260 = vpack.c.b16 %v3245, %v3244
      %v3261 = vpack.c.b16 %v3247, %v3246
      %v3262 = vpack.c.b16 %v3249, %v3248
      %v3263 = vpack.c.b16 %v3251, %v3250
      %v3264 = vpack.c.b16 %v3253, %v3252
      %v3265 = vpack.c.b16 %v3255, %v3254
      %v3266 = vpack.c.b16 %v3257, %v3256
      %v3267 = vpack.c.b16 %v3259, %v3258
      %3276 = vmatprep.subr.bf16.mxu0 0
      %3277 = vmatpush1.bf16.msra.mxu0 %v3260
      %3278 = vmatprep.subr.bf16.mxu0 0
      %3279 = vmatpush1.bf16.msra.mxu0 %v3261
      %3280 = vmatprep.subr.bf16.mxu0 0
      %3281 = vmatpush1.bf16.msra.mxu0 %v3262
      %3282 = vmatprep.subr.bf16.mxu0 0
      %3283 = vmatpush1.bf16.msra.mxu0 %v3263
      %3284 = vmatprep.subr.bf16.mxu0 0
      %3285 = vmatpush1.bf16.msra.mxu0 %v3264
      %3286 = vmatprep.subr.bf16.mxu0 0
      %3287 = vmatpush1.bf16.msra.mxu0 %v3265
      %3288 = vmatprep.subr.bf16.mxu0 0
      %3289 = vmatpush1.bf16.msra.mxu0 %v3266
      %3290 = vmatprep.subr.bf16.mxu0 0
      %3291 = vmatpush1.bf16.msra.mxu0 %v3267
      %3292 = vmatprep.subr.bf16.mxu0 0
      %3293 = vmatpush1.bf16.msra.mxu0 0
      %3294 = vmatprep.subr.bf16.mxu0 0
      %3295 = vmatpush1.bf16.msra.mxu0 0
      %3296 = vmatprep.subr.bf16.mxu0 0
      %3297 = vmatpush1.bf16.msra.mxu0 0
      %3298 = vmatprep.subr.bf16.mxu0 0
      %3299 = vmatpush1.bf16.msra.mxu0 0
      %3300 = vmatprep.subr.bf16.mxu0 0
      %3301 = vmatpush1.bf16.msra.mxu0 0
      %3302 = vmatprep.subr.bf16.mxu0 0
      %3303 = vmatpush1.bf16.msra.mxu0 0
      %3304 = vmatprep.subr.bf16.mxu0 0
      %3305 = vmatpush1.bf16.msra.mxu0 0
      %3306 = vmatprep.subr.bf16.mxu0 0
      %3307 = vmatpush1.bf16.msra.mxu0 0
      %3308 = vmatprep.mubr.bf16.mxu0 0
      %3309 = vmatmul.mubr.bf16.gmra.mrb[0].mxu0 %v3195
      %v3310 = vpop.f32.mrb[0].mxu0
      %v3311 = vadd.f32 0.0, %v3310
      %v3312 = vpop.f32.mrb[0].mxu0
      %v3313 = vpop.f32.mrb[0].mxu0
      %v3314 = vadd.f32 0.0, %v3313
      %v3315 = vpop.f32.mrb[0].mxu0
      %3316 = vmatprep.mubr.bf16.mxu0 0
      %3317 = vmatmul.mubr.bf16.gmra.mrb[0].mxu0 %v3196
      %v3318 = vpop.f32.mrb[0].mxu0
      %v3319 = vadd.f32 0.0, %v3318
      %v3320 = vpop.f32.mrb[0].mxu0
      %v3321 = vpop.f32.mrb[0].mxu0
      %v3322 = vadd.f32 0.0, %v3321
      %v3323 = vpop.f32.mrb[0].mxu0
      %3324 = vmatprep.mubr.bf16.mxu0 0
      %3325 = vmatmul.mubr.bf16.gmra.mrb[0].mxu0 %v3197
      %v3326 = vpop.f32.mrb[0].mxu0
      %v3327 = vadd.f32 0.0, %v3326
      %v3328 = vpop.f32.mrb[0].mxu0
      %v3329 = vpop.f32.mrb[0].mxu0
      %v3330 = vadd.f32 0.0, %v3329
      %v3331 = vpop.f32.mrb[0].mxu0
      %3332 = vmatprep.mubr.bf16.mxu0 0
      %3333 = vmatmul.mubr.bf16.gmra.mrb[0].mxu0 %v3198
      %v3334 = vpop.f32.mrb[0].mxu0
      %v3335 = vadd.f32 0.0, %v3334
      %v3336 = vpop.f32.mrb[0].mxu0
      %v3337 = vpop.f32.mrb[0].mxu0
      %v3338 = vadd.f32 0.0, %v3337
      %v3339 = vpop.f32.mrb[0].mxu0
      %3340 = vmatprep.mubr.bf16.mxu0 0
      %3341 = vmatmul.mubr.bf16.gmra.mrb[0].mxu0 %v3199
      %v3342 = vpop.f32.mrb[0].mxu0
      %v3343 = vadd.f32 0.0, %v3342
      %v3344 = vpop.f32.mrb[0].mxu0
      %v3345 = vpop.f32.mrb[0].mxu0
      %v3346 = vadd.f32 0.0, %v3345
      %v3347 = vpop.f32.mrb[0].mxu0
      %3348 = vmatprep.mubr.bf16.mxu0 0
      %3349 = vmatmul.mubr.bf16.gmra.mrb[0].mxu0 %v3200
      %v3350 = vpop.f32.mrb[0].mxu0
      %v3351 = vadd.f32 0.0, %v3350
      %v3352 = vpop.f32.mrb[0].mxu0
      %v3353 = vpop.f32.mrb[0].mxu0
      %v3354 = vadd.f32 0.0, %v3353
      %v3355 = vpop.f32.mrb[0].mxu0
      %3356 = vmatprep.mubr.bf16.mxu0 0
      %3357 = vmatmul.mubr.bf16.gmra.mrb[0].mxu0 %v3201
      %v3358 = vpop.f32.mrb[0].mxu0
      %v3359 = vadd.f32 0.0, %v3358
      %v3360 = vpop.f32.mrb[0].mxu0
      %v3361 = vpop.f32.mrb[0].mxu0
      %v3362 = vadd.f32 0.0, %v3361
      %v3363 = vpop.f32.mrb[0].mxu0
      %3364 = vmatprep.mubr.bf16.mxu0 0
      %3365 = vmatmul.mubr.bf16.gmra.mrb[0].mxu0 %v3202
      %v3366 = vpop.f32.mrb[0].mxu0
      %v3367 = vadd.f32 0.0, %v3366
      %v3368 = vpop.f32.mrb[0].mxu0
      %v3369 = vpop.f32.mrb[0].mxu0
      %v3370 = vadd.f32 0.0, %v3369
      %v3371 = vpop.f32.mrb[0].mxu0
      %3372 = vmatprep.mubr.bf16.mxu0 0
      %3373 = vmatmul.mubr.bf16.gmra.mrb[0].mxu0 %v3203
      %v3374 = vpop.f32.mrb[0].mxu0
      %v3375 = vadd.f32 0.0, %v3374
      %v3376 = vpop.f32.mrb[0].mxu0
      %v3377 = vpop.f32.mrb[0].mxu0
      %v3378 = vadd.f32 0.0, %v3377
      %v3379 = vpop.f32.mrb[0].mxu0
      %3380 = vmatprep.mubr.bf16.mxu0 0
      %3381 = vmatmul.mubr.bf16.gmra.mrb[0].mxu0 %v3204
      %v3382 = vpop.f32.mrb[0].mxu0
      %v3383 = vadd.f32 0.0, %v3382
      %v3384 = vpop.f32.mrb[0].mxu0
      %v3385 = vpop.f32.mrb[0].mxu0
      %v3386 = vadd.f32 0.0, %v3385
      %v3387 = vpop.f32.mrb[0].mxu0
      %3388 = vmatprep.mubr.bf16.mxu0 0
      %3389 = vmatmul.mubr.bf16.gmra.mrb[0].mxu0 %v3205
      %v3390 = vpop.f32.mrb[0].mxu0
      %v3391 = vadd.f32 0.0, %v3390
      %v3392 = vpop.f32.mrb[0].mxu0
      %v3393 = vpop.f32.mrb[0].mxu0
      %v3394 = vadd.f32 0.0, %v3393
      %v3395 = vpop.f32.mrb[0].mxu0
      %3396 = vmatprep.mubr.bf16.mxu0 0
      %3397 = vmatmul.mubr.bf16.gmra.mrb[0].mxu0 %v3206
      %v3398 = vpop.f32.mrb[0].mxu0
      %v3399 = vadd.f32 0.0, %v3398
      %v3400 = vpop.f32.mrb[0].mxu0
      %v3401 = vpop.f32.mrb[0].mxu0
      %v3402 = vadd.f32 0.0, %v3401
      %v3403 = vpop.f32.mrb[0].mxu0
      %3404 = vmatprep.mubr.bf16.mxu0 0
      %3405 = vmatmul.mubr.bf16.gmra.mrb[0].mxu0 %v3207
      %v3406 = vpop.f32.mrb[0].mxu0
      %v3407 = vadd.f32 0.0, %v3406
      %v3408 = vpop.f32.mrb[0].mxu0
      %v3409 = vpop.f32.mrb[0].mxu0
      %v3410 = vadd.f32 0.0, %v3409
      %v3411 = vpop.f32.mrb[0].mxu0
      %3412 = vmatprep.mubr.bf16.mxu0 0
      %3413 = vmatmul.mubr.bf16.gmra.mrb[0].mxu0 %v3208
      %v3414 = vpop.f32.mrb[0].mxu0
      %v3415 = vadd.f32 0.0, %v3414
      %v3416 = vpop.f32.mrb[0].mxu0
      %v3417 = vpop.f32.mrb[0].mxu0
      %v3418 = vadd.f32 0.0, %v3417
      %v3419 = vpop.f32.mrb[0].mxu0
      %3420 = vmatprep.mubr.bf16.mxu0 0
      %3421 = vmatmul.mubr.bf16.gmra.mrb[0].mxu0 %v3209
      %v3422 = vpop.f32.mrb[0].mxu0
      %v3423 = vadd.f32 0.0, %v3422
      %v3424 = vpop.f32.mrb[0].mxu0
      %v3425 = vpop.f32.mrb[0].mxu0
      %v3426 = vadd.f32 0.0, %v3425
      %v3427 = vpop.f32.mrb[0].mxu0
      %3428 = vmatprep.mubr.bf16.mxu0 0
      %3429 = vmatmul.mubr.bf16.gmra.mrb[0].mxu0 %v3210
      %v3430 = vpop.f32.mrb[0].mxu0
      %v3431 = vadd.f32 0.0, %v3430
      %v3432 = vpop.f32.mrb[0].mxu0
      %v3433 = vpop.f32.mrb[0].mxu0
      %v3434 = vadd.f32 0.0, %v3433
      %v3435 = vpop.f32.mrb[0].mxu0
      %3436 = vdwg.mxu0
      %v3437 = vld [vmem:[#allocation3] sm:$0xff]
      %v3438 = vld [vmem:[#allocation3 + $0x8] sm:$0xff]
      %v3439 = vld [vmem:[#allocation3 + $0x10] sm:$0xff]
      %v3440 = vld [vmem:[#allocation3 + $0x18] sm:$0xff]
      %v3441 = vld [vmem:[#allocation3 + $0x20] sm:$0xff]
      %v3442 = vld [vmem:[#allocation3 + $0x28] sm:$0xff]
      %v3443 = vld [vmem:[#allocation3 + $0x30] sm:$0xff]
      %v3444 = vld [vmem:[#allocation3 + $0x38] sm:$0xff]
      %v3445 = vld [vmem:[#allocation3 + $0x40] sm:$0xff]
      %v3446 = vld [vmem:[#allocation3 + $0x48] sm:$0xff]
      %v3447 = vld [vmem:[#allocation3 + $0x50] sm:$0xff]
      %v3448 = vld [vmem:[#allocation3 + $0x58] sm:$0xff]
      %v3449 = vld [vmem:[#allocation3 + $0x60] sm:$0xff]
      %v3450 = vld [vmem:[#allocation3 + $0x68] sm:$0xff]
      %v3451 = vld [vmem:[#allocation3 + $0x70] sm:$0xff]
      %v3452 = vld [vmem:[#allocation3 + $0x78] sm:$0xff]
      %v3453 = vld [vmem:[#allocation3 + $0x80] sm:$0xff]
      %v3454 = vld [vmem:[#allocation3 + $0x88] sm:$0xff]
      %v3455 = vld [vmem:[#allocation3 + $0x90] sm:$0xff]
      %v3456 = vld [vmem:[#allocation3 + $0x98] sm:$0xff]
      %v3457 = vld [vmem:[#allocation3 + $0xa0] sm:$0xff]
      %v3458 = vld [vmem:[#allocation3 + $0xa8] sm:$0xff]
      %v3459 = vld [vmem:[#allocation3 + $0xb0] sm:$0xff]
      %v3460 = vld [vmem:[#allocation3 + $0xb8] sm:$0xff]
      %v3461 = vld [vmem:[#allocation3 + $0xc0] sm:$0xff]
      %v3462 = vld [vmem:[#allocation3 + $0xc8] sm:$0xff]
      %v3463 = vld [vmem:[#allocation3 + $0xd0] sm:$0xff]
      %v3464 = vld [vmem:[#allocation3 + $0xd8] sm:$0xff]
      %v3465 = vld [vmem:[#allocation3 + $0xe0] sm:$0xff]
      %v3466 = vld [vmem:[#allocation3 + $0xe8] sm:$0xff]
      %v3467 = vld [vmem:[#allocation3 + $0xf0] sm:$0xff]
      %v3468 = vld [vmem:[#allocation3 + $0xf8] sm:$0xff]
      %v3469 = vadd.f32 %v3437, %v3311
      %v3470 = vadd.f32 %v3438, %v3314
      %v3471 = vadd.f32 %v3439, %v3319
      %v3472 = vadd.f32 %v3440, %v3322
      %v3473 = vadd.f32 %v3441, %v3327
      %v3474 = vadd.f32 %v3442, %v3330
      %v3475 = vadd.f32 %v3443, %v3335
      %v3476 = vadd.f32 %v3444, %v3338
      %v3477 = vadd.f32 %v3445, %v3343
      %v3478 = vadd.f32 %v3446, %v3346
      %v3479 = vadd.f32 %v3447, %v3351
      %v3480 = vadd.f32 %v3448, %v3354
      %v3481 = vadd.f32 %v3449, %v3359
      %v3482 = vadd.f32 %v3450, %v3362
      %v3483 = vadd.f32 %v3451, %v3367
      %v3484 = vadd.f32 %v3452, %v3370
      %v3485 = vadd.f32 %v3453, %v3375
      %v3486 = vadd.f32 %v3454, %v3378
      %v3487 = vadd.f32 %v3455, %v3383
      %v3488 = vadd.f32 %v3456, %v3386
      %v3489 = vadd.f32 %v3457, %v3391
      %v3490 = vadd.f32 %v3458, %v3394
      %v3491 = vadd.f32 %v3459, %v3399
      %v3492 = vadd.f32 %v3460, %v3402
      %v3493 = vadd.f32 %v3461, %v3407
      %v3494 = vadd.f32 %v3462, %v3410
      %v3495 = vadd.f32 %v3463, %v3415
      %v3496 = vadd.f32 %v3464, %v3418
      %v3497 = vadd.f32 %v3465, %v3423
      %v3498 = vadd.f32 %v3466, %v3426
      %v3499 = vadd.f32 %v3467, %v3431
      %v3500 = vadd.f32 %v3468, %v3434
      %3501 = vst [vmem:[#allocation3] sm:$0xff] %v3469
      %3502 = vst [vmem:[#allocation3 + $0x8] sm:$0xff] %v3470
      %3503 = vst [vmem:[#allocation3 + $0x10] sm:$0xff] %v3471
      %3504 = vst [vmem:[#allocation3 + $0x18] sm:$0xff] %v3472
      %3505 = vst [vmem:[#allocation3 + $0x20] sm:$0xff] %v3473
      %3506 = vst [vmem:[#allocation3 + $0x28] sm:$0xff] %v3474
      %3507 = vst [vmem:[#allocation3 + $0x30] sm:$0xff] %v3475
      %3508 = vst [vmem:[#allocation3 + $0x38] sm:$0xff] %v3476
      %3509 = vst [vmem:[#allocation3 + $0x40] sm:$0xff] %v3477
      %3510 = vst [vmem:[#allocation3 + $0x48] sm:$0xff] %v3478
      %3511 = vst [vmem:[#allocation3 + $0x50] sm:$0xff] %v3479
      %3512 = vst [vmem:[#allocation3 + $0x58] sm:$0xff] %v3480
      %3513 = vst [vmem:[#allocation3 + $0x60] sm:$0xff] %v3481
      %3514 = vst [vmem:[#allocation3 + $0x68] sm:$0xff] %v3482
      %3515 = vst [vmem:[#allocation3 + $0x70] sm:$0xff] %v3483
      %3516 = vst [vmem:[#allocation3 + $0x78] sm:$0xff] %v3484
      %3517 = vst [vmem:[#allocation3 + $0x80] sm:$0xff] %v3485
      %3518 = vst [vmem:[#allocation3 + $0x88] sm:$0xff] %v3486
      %3519 = vst [vmem:[#allocation3 + $0x90] sm:$0xff] %v3487
      %3520 = vst [vmem:[#allocation3 + $0x98] sm:$0xff] %v3488
      %3521 = vst [vmem:[#allocation3 + $0xa0] sm:$0xff] %v3489
      %3522 = vst [vmem:[#allocation3 + $0xa8] sm:$0xff] %v3490
      %3523 = vst [vmem:[#allocation3 + $0xb0] sm:$0xff] %v3491
      %3524 = vst [vmem:[#allocation3 + $0xb8] sm:$0xff] %v3492
      %3525 = vst [vmem:[#allocation3 + $0xc0] sm:$0xff] %v3493
      %3526 = vst [vmem:[#allocation3 + $0xc8] sm:$0xff] %v3494
      %3527 = vst [vmem:[#allocation3 + $0xd0] sm:$0xff] %v3495
      %3528 = vst [vmem:[#allocation3 + $0xd8] sm:$0xff] %v3496
      %3529 = vst [vmem:[#allocation3 + $0xe0] sm:$0xff] %v3497
      %3530 = vst [vmem:[#allocation3 + $0xe8] sm:$0xff] %v3498
      %3531 = vst [vmem:[#allocation3 + $0xf0] sm:$0xff] %v3499
      %3532 = vst [vmem:[#allocation3 + $0xf8] sm:$0xff] %v3500
      %v3533 = vld [vmem:[%s2792 + $0x2] sm:$0xff]
      %v3534 = vld [vmem:[%s2792 + $0xa] sm:$0xff]
      %v3535 = vld [vmem:[%s2792 + $0x1a] sm:$0xff]
      %v3536 = vld [vmem:[%s2792 + $0x22] sm:$0xff]
      %v3537 = vld [vmem:[%s2792 + $0x32] sm:$0xff]
      %v3538 = vld [vmem:[%s2792 + $0x3a] sm:$0xff]
      %v3539 = vld [vmem:[%s2792 + $0x4a] sm:$0xff]
      %v3540 = vld [vmem:[%s2792 + $0x52] sm:$0xff]
      %v3541 = vld [vmem:[%s2792 + $0x62] sm:$0xff]
      %v3542 = vld [vmem:[%s2792 + $0x6a] sm:$0xff]
      %v3543 = vld [vmem:[%s2792 + $0x7a] sm:$0xff]
      %v3544 = vld [vmem:[%s2792 + $0x82] sm:$0xff]
      %v3545 = vld [vmem:[%s2792 + $0x92] sm:$0xff]
      %v3546 = vld [vmem:[%s2792 + $0x9a] sm:$0xff]
      %v3547 = vld [vmem:[%s2792 + $0xaa] sm:$0xff]
      %v3548 = vld [vmem:[%s2792 + $0xb2] sm:$0xff]
      %v3549 = vld [vmem:[%s2792 + $0xc2] sm:$0xff]
      %v3550 = vld [vmem:[%s2792 + $0xca] sm:$0xff]
      %v3551 = vld [vmem:[%s2792 + $0xda] sm:$0xff]
      %v3552 = vld [vmem:[%s2792 + $0xe2] sm:$0xff]
      %v3553 = vld [vmem:[%s2792 + $0xf2] sm:$0xff]
      %v3554 = vld [vmem:[%s2792 + $0xfa] sm:$0xff]
      %v3555 = vld [vmem:[%s2792 + $0x10a] sm:$0xff]
      %v3556 = vld [vmem:[%s2792 + $0x112] sm:$0xff]
      %v3557 = vld [vmem:[%s2792 + $0x122] sm:$0xff]
      %v3558 = vld [vmem:[%s2792 + $0x12a] sm:$0xff]
      %v3559 = vld [vmem:[%s2792 + $0x13a] sm:$0xff]
      %v3560 = vld [vmem:[%s2792 + $0x142] sm:$0xff]
      %v3561 = vld [vmem:[%s2792 + $0x152] sm:$0xff]
      %v3562 = vld [vmem:[%s2792 + $0x15a] sm:$0xff]
      %v3563 = vld [vmem:[%s2792 + $0x16a] sm:$0xff]
      %v3564 = vld [vmem:[%s2792 + $0x172] sm:$0xff]
      %v3565 = vpack.c.bf16 %v3534, %v3533
      %v3566 = vpack.c.bf16 %v3536, %v3535
      %v3567 = vpack.c.bf16 %v3538, %v3537
      %v3568 = vpack.c.bf16 %v3540, %v3539
      %v3569 = vpack.c.bf16 %v3542, %v3541
      %v3570 = vpack.c.bf16 %v3544, %v3543
      %v3571 = vpack.c.bf16 %v3546, %v3545
      %v3572 = vpack.c.bf16 %v3548, %v3547
      %v3573 = vpack.c.bf16 %v3550, %v3549
      %v3574 = vpack.c.bf16 %v3552, %v3551
      %v3575 = vpack.c.bf16 %v3554, %v3553
      %v3576 = vpack.c.bf16 %v3556, %v3555
      %v3577 = vpack.c.bf16 %v3558, %v3557
      %v3578 = vpack.c.bf16 %v3560, %v3559
      %v3579 = vpack.c.bf16 %v3562, %v3561
      %v3580 = vpack.c.bf16 %v3564, %v3563
      %s3581 = scalar_lea.vmem %s4, 512
      %v3582 = vld [vmem:[%s3581] sm:$0xf]
      %v3583 = vld [vmem:[%s3581 + $0x4] sm:$0xf]
      %v3584 = vld [vmem:[%s3581 + $0x8] sm:$0xf]
      %v3585 = vld [vmem:[%s3581 + $0xc] sm:$0xf]
      %v3586 = vld [vmem:[%s3581 + $0x10] sm:$0xf]
      %v3587 = vld [vmem:[%s3581 + $0x14] sm:$0xf]
      %v3588 = vld [vmem:[%s3581 + $0x18] sm:$0xf]
      %v3589 = vld [vmem:[%s3581 + $0x1c] sm:$0xf]
      %v3590 = vld [vmem:[%s3581 + $0x20] sm:$0xf]
      %v3591 = vld [vmem:[%s3581 + $0x24] sm:$0xf]
      %v3592 = vld [vmem:[%s3581 + $0x28] sm:$0xf]
      %v3593 = vld [vmem:[%s3581 + $0x2c] sm:$0xf]
      %v3594 = vld [vmem:[%s3581 + $0x30] sm:$0xf]
      %v3595 = vld [vmem:[%s3581 + $0x34] sm:$0xf]
      %v3596 = vld [vmem:[%s3581 + $0x38] sm:$0xf]
      %v3597 = vld [vmem:[%s3581 + $0x3c] sm:$0xf]
      %v3614 = vunpack.c.l.b16 %v3582
      %v3615 = vunpack.c.l.b16 %v3583
      %v3616 = vunpack.c.l.b16 %v3584
      %v3617 = vunpack.c.l.b16 %v3585
      %v3618 = vunpack.c.l.b16 %v3586
      %v3619 = vunpack.c.l.b16 %v3587
      %v3620 = vunpack.c.l.b16 %v3588
      %v3621 = vunpack.c.l.b16 %v3589
      %v3622 = vunpack.c.l.b16 %v3590
      %v3623 = vunpack.c.l.b16 %v3591
      %v3624 = vunpack.c.l.b16 %v3592
      %v3625 = vunpack.c.l.b16 %v3593
      %v3626 = vunpack.c.l.b16 %v3594
      %v3627 = vunpack.c.l.b16 %v3595
      %v3628 = vunpack.c.l.b16 %v3596
      %v3629 = vunpack.c.l.b16 %v3597
      %v3630 = vpack.c.b16 %v3615, %v3614
      %v3631 = vpack.c.b16 %v3617, %v3616
      %v3632 = vpack.c.b16 %v3619, %v3618
      %v3633 = vpack.c.b16 %v3621, %v3620
      %v3634 = vpack.c.b16 %v3623, %v3622
      %v3635 = vpack.c.b16 %v3625, %v3624
      %v3636 = vpack.c.b16 %v3627, %v3626
      %v3637 = vpack.c.b16 %v3629, %v3628
      %3646 = vmatprep.subr.bf16.mxu0 0
      %3647 = vmatpush1.bf16.msra.mxu0 %v3630
      %3648 = vmatprep.subr.bf16.mxu0 0
      %3649 = vmatpush1.bf16.msra.mxu0 %v3631
      %3650 = vmatprep.subr.bf16.mxu0 0
      %3651 = vmatpush1.bf16.msra.mxu0 %v3632
      %3652 = vmatprep.subr.bf16.mxu0 0
      %3653 = vmatpush1.bf16.msra.mxu0 %v3633
      %3654 = vmatprep.subr.bf16.mxu0 0
      %3655 = vmatpush1.bf16.msra.mxu0 %v3634
      %3656 = vmatprep.subr.bf16.mxu0 0
      %3657 = vmatpush1.bf16.msra.mxu0 %v3635
      %3658 = vmatprep.subr.bf16.mxu0 0
      %3659 = vmatpush1.bf16.msra.mxu0 %v3636
      %3660 = vmatprep.subr.bf16.mxu0 0
      %3661 = vmatpush1.bf16.msra.mxu0 %v3637
      %3662 = vmatprep.subr.bf16.mxu0 0
      %3663 = vmatpush1.bf16.msra.mxu0 0
      %3664 = vmatprep.subr.bf16.mxu0 0
      %3665 = vmatpush1.bf16.msra.mxu0 0
      %3666 = vmatprep.subr.bf16.mxu0 0
      %3667 = vmatpush1.bf16.msra.mxu0 0
      %3668 = vmatprep.subr.bf16.mxu0 0
      %3669 = vmatpush1.bf16.msra.mxu0 0
      %3670 = vmatprep.subr.bf16.mxu0 0
      %3671 = vmatpush1.bf16.msra.mxu0 0
      %3672 = vmatprep.subr.bf16.mxu0 0
      %3673 = vmatpush1.bf16.msra.mxu0 0
      %3674 = vmatprep.subr.bf16.mxu0 0
      %3675 = vmatpush1.bf16.msra.mxu0 0
      %3676 = vmatprep.subr.bf16.mxu0 0
      %3677 = vmatpush1.bf16.msra.mxu0 0
      %3678 = vmatprep.mubr.bf16.mxu0 0
      %3679 = vmatmul.mubr.bf16.gmra.mrb[0].mxu0 %v3565
      %v3680 = vpop.f32.mrb[0].mxu0
      %v3681 = vadd.f32 0.0, %v3680
      %v3682 = vpop.f32.mrb[0].mxu0
      %v3683 = vpop.f32.mrb[0].mxu0
      %v3684 = vadd.f32 0.0, %v3683
      %v3685 = vpop.f32.mrb[0].mxu0
      %3686 = vmatprep.mubr.bf16.mxu0 0
      %3687 = vmatmul.mubr.bf16.gmra.mrb[0].mxu0 %v3566
      %v3688 = vpop.f32.mrb[0].mxu0
      %v3689 = vadd.f32 0.0, %v3688
      %v3690 = vpop.f32.mrb[0].mxu0
      %v3691 = vpop.f32.mrb[0].mxu0
      %v3692 = vadd.f32 0.0, %v3691
      %v3693 = vpop.f32.mrb[0].mxu0
      %3694 = vmatprep.mubr.bf16.mxu0 0
      %3695 = vmatmul.mubr.bf16.gmra.mrb[0].mxu0 %v3567
      %v3696 = vpop.f32.mrb[0].mxu0
      %v3697 = vadd.f32 0.0, %v3696
      %v3698 = vpop.f32.mrb[0].mxu0
      %v3699 = vpop.f32.mrb[0].mxu0
      %v3700 = vadd.f32 0.0, %v3699
      %v3701 = vpop.f32.mrb[0].mxu0
      %3702 = vmatprep.mubr.bf16.mxu0 0
      %3703 = vmatmul.mubr.bf16.gmra.mrb[0].mxu0 %v3568
      %v3704 = vpop.f32.mrb[0].mxu0
      %v3705 = vadd.f32 0.0, %v3704
      %v3706 = vpop.f32.mrb[0].mxu0
      %v3707 = vpop.f32.mrb[0].mxu0
      %v3708 = vadd.f32 0.0, %v3707
      %v3709 = vpop.f32.mrb[0].mxu0
      %3710 = vmatprep.mubr.bf16.mxu0 0
      %3711 = vmatmul.mubr.bf16.gmra.mrb[0].mxu0 %v3569
      %v3712 = vpop.f32.mrb[0].mxu0
      %v3713 = vadd.f32 0.0, %v3712
      %v3714 = vpop.f32.mrb[0].mxu0
      %v3715 = vpop.f32.mrb[0].mxu0
      %v3716 = vadd.f32 0.0, %v3715
      %v3717 = vpop.f32.mrb[0].mxu0
      %3718 = vmatprep.mubr.bf16.mxu0 0
      %3719 = vmatmul.mubr.bf16.gmra.mrb[0].mxu0 %v3570
      %v3720 = vpop.f32.mrb[0].mxu0
      %v3721 = vadd.f32 0.0, %v3720
      %v3722 = vpop.f32.mrb[0].mxu0
      %v3723 = vpop.f32.mrb[0].mxu0
      %v3724 = vadd.f32 0.0, %v3723
      %v3725 = vpop.f32.mrb[0].mxu0
      %3726 = vmatprep.mubr.bf16.mxu0 0
      %3727 = vmatmul.mubr.bf16.gmra.mrb[0].mxu0 %v3571
      %v3728 = vpop.f32.mrb[0].mxu0
      %v3729 = vadd.f32 0.0, %v3728
      %v3730 = vpop.f32.mrb[0].mxu0
      %v3731 = vpop.f32.mrb[0].mxu0
      %v3732 = vadd.f32 0.0, %v3731
      %v3733 = vpop.f32.mrb[0].mxu0
      %3734 = vmatprep.mubr.bf16.mxu0 0
      %3735 = vmatmul.mubr.bf16.gmra.mrb[0].mxu0 %v3572
      %v3736 = vpop.f32.mrb[0].mxu0
      %v3737 = vadd.f32 0.0, %v3736
      %v3738 = vpop.f32.mrb[0].mxu0
      %v3739 = vpop.f32.mrb[0].mxu0
      %v3740 = vadd.f32 0.0, %v3739
      %v3741 = vpop.f32.mrb[0].mxu0
      %3742 = vmatprep.mubr.bf16.mxu0 0
      %3743 = vmatmul.mubr.bf16.gmra.mrb[0].mxu0 %v3573
      %v3744 = vpop.f32.mrb[0].mxu0
      %v3745 = vadd.f32 0.0, %v3744
      %v3746 = vpop.f32.mrb[0].mxu0
      %v3747 = vpop.f32.mrb[0].mxu0
      %v3748 = vadd.f32 0.0, %v3747
      %v3749 = vpop.f32.mrb[0].mxu0
      %3750 = vmatprep.mubr.bf16.mxu0 0
      %3751 = vmatmul.mubr.bf16.gmra.mrb[0].mxu0 %v3574
      %v3752 = vpop.f32.mrb[0].mxu0
      %v3753 = vadd.f32 0.0, %v3752
      %v3754 = vpop.f32.mrb[0].mxu0
      %v3755 = vpop.f32.mrb[0].mxu0
      %v3756 = vadd.f32 0.0, %v3755
      %v3757 = vpop.f32.mrb[0].mxu0
      %3758 = vmatprep.mubr.bf16.mxu0 0
      %3759 = vmatmul.mubr.bf16.gmra.mrb[0].mxu0 %v3575
      %v3760 = vpop.f32.mrb[0].mxu0
      %v3761 = vadd.f32 0.0, %v3760
      %v3762 = vpop.f32.mrb[0].mxu0
      %v3763 = vpop.f32.mrb[0].mxu0
      %v3764 = vadd.f32 0.0, %v3763
      %v3765 = vpop.f32.mrb[0].mxu0
      %3766 = vmatprep.mubr.bf16.mxu0 0
      %3767 = vmatmul.mubr.bf16.gmra.mrb[0].mxu0 %v3576
      %v3768 = vpop.f32.mrb[0].mxu0
      %v3769 = vadd.f32 0.0, %v3768
      %v3770 = vpop.f32.mrb[0].mxu0
      %v3771 = vpop.f32.mrb[0].mxu0
      %v3772 = vadd.f32 0.0, %v3771
      %v3773 = vpop.f32.mrb[0].mxu0
      %3774 = vmatprep.mubr.bf16.mxu0 0
      %3775 = vmatmul.mubr.bf16.gmra.mrb[0].mxu0 %v3577
      %v3776 = vpop.f32.mrb[0].mxu0
      %v3777 = vadd.f32 0.0, %v3776
      %v3778 = vpop.f32.mrb[0].mxu0
      %v3779 = vpop.f32.mrb[0].mxu0
      %v3780 = vadd.f32 0.0, %v3779
      %v3781 = vpop.f32.mrb[0].mxu0
      %3782 = vmatprep.mubr.bf16.mxu0 0
      %3783 = vmatmul.mubr.bf16.gmra.mrb[0].mxu0 %v3578
      %v3784 = vpop.f32.mrb[0].mxu0
      %v3785 = vadd.f32 0.0, %v3784
      %v3786 = vpop.f32.mrb[0].mxu0
      %v3787 = vpop.f32.mrb[0].mxu0
      %v3788 = vadd.f32 0.0, %v3787
      %v3789 = vpop.f32.mrb[0].mxu0
      %3790 = vmatprep.mubr.bf16.mxu0 0
      %3791 = vmatmul.mubr.bf16.gmra.mrb[0].mxu0 %v3579
      %v3792 = vpop.f32.mrb[0].mxu0
      %v3793 = vadd.f32 0.0, %v3792
      %v3794 = vpop.f32.mrb[0].mxu0
      %v3795 = vpop.f32.mrb[0].mxu0
      %v3796 = vadd.f32 0.0, %v3795
      %v3797 = vpop.f32.mrb[0].mxu0
      %3798 = vmatprep.mubr.bf16.mxu0 0
      %3799 = vmatmul.mubr.bf16.gmra.mrb[0].mxu0 %v3580
      %v3800 = vpop.f32.mrb[0].mxu0
      %v3801 = vadd.f32 0.0, %v3800
      %v3802 = vpop.f32.mrb[0].mxu0
      %v3803 = vpop.f32.mrb[0].mxu0
      %v3804 = vadd.f32 0.0, %v3803
      %v3805 = vpop.f32.mrb[0].mxu0
      %3806 = vdwg.mxu0
      %v3807 = vld [vmem:[#allocation3] sm:$0xff]
      %v3808 = vld [vmem:[#allocation3 + $0x8] sm:$0xff]
      %v3809 = vld [vmem:[#allocation3 + $0x10] sm:$0xff]
      %v3810 = vld [vmem:[#allocation3 + $0x18] sm:$0xff]
      %v3811 = vld [vmem:[#allocation3 + $0x20] sm:$0xff]
      %v3812 = vld [vmem:[#allocation3 + $0x28] sm:$0xff]
      %v3813 = vld [vmem:[#allocation3 + $0x30] sm:$0xff]
      %v3814 = vld [vmem:[#allocation3 + $0x38] sm:$0xff]
      %v3815 = vld [vmem:[#allocation3 + $0x40] sm:$0xff]
      %v3816 = vld [vmem:[#allocation3 + $0x48] sm:$0xff]
      %v3817 = vld [vmem:[#allocation3 + $0x50] sm:$0xff]
      %v3818 = vld [vmem:[#allocation3 + $0x58] sm:$0xff]
      %v3819 = vld [vmem:[#allocation3 + $0x60] sm:$0xff]
      %v3820 = vld [vmem:[#allocation3 + $0x68] sm:$0xff]
      %v3821 = vld [vmem:[#allocation3 + $0x70] sm:$0xff]
      %v3822 = vld [vmem:[#allocation3 + $0x78] sm:$0xff]
      %v3823 = vld [vmem:[#allocation3 + $0x80] sm:$0xff]
      %v3824 = vld [vmem:[#allocation3 + $0x88] sm:$0xff]
      %v3825 = vld [vmem:[#allocation3 + $0x90] sm:$0xff]
      %v3826 = vld [vmem:[#allocation3 + $0x98] sm:$0xff]
      %v3827 = vld [vmem:[#allocation3 + $0xa0] sm:$0xff]
      %v3828 = vld [vmem:[#allocation3 + $0xa8] sm:$0xff]
      %v3829 = vld [vmem:[#allocation3 + $0xb0] sm:$0xff]
      %v3830 = vld [vmem:[#allocation3 + $0xb8] sm:$0xff]
      %v3831 = vld [vmem:[#allocation3 + $0xc0] sm:$0xff]
      %v3832 = vld [vmem:[#allocation3 + $0xc8] sm:$0xff]
      %v3833 = vld [vmem:[#allocation3 + $0xd0] sm:$0xff]
      %v3834 = vld [vmem:[#allocation3 + $0xd8] sm:$0xff]
      %v3835 = vld [vmem:[#allocation3 + $0xe0] sm:$0xff]
      %v3836 = vld [vmem:[#allocation3 + $0xe8] sm:$0xff]
      %v3837 = vld [vmem:[#allocation3 + $0xf0] sm:$0xff]
      %v3838 = vld [vmem:[#allocation3 + $0xf8] sm:$0xff]
      %v3839 = vadd.f32 %v3807, %v3681
      %v3840 = vadd.f32 %v3808, %v3684
      %v3841 = vadd.f32 %v3809, %v3689
      %v3842 = vadd.f32 %v3810, %v3692
      %v3843 = vadd.f32 %v3811, %v3697
      %v3844 = vadd.f32 %v3812, %v3700
      %v3845 = vadd.f32 %v3813, %v3705
      %v3846 = vadd.f32 %v3814, %v3708
      %v3847 = vadd.f32 %v3815, %v3713
      %v3848 = vadd.f32 %v3816, %v3716
      %v3849 = vadd.f32 %v3817, %v3721
      %v3850 = vadd.f32 %v3818, %v3724
      %v3851 = vadd.f32 %v3819, %v3729
      %v3852 = vadd.f32 %v3820, %v3732
      %v3853 = vadd.f32 %v3821, %v3737
      %v3854 = vadd.f32 %v3822, %v3740
      %v3855 = vadd.f32 %v3823, %v3745
      %v3856 = vadd.f32 %v3824, %v3748
      %v3857 = vadd.f32 %v3825, %v3753
      %v3858 = vadd.f32 %v3826, %v3756
      %v3859 = vadd.f32 %v3827, %v3761
      %v3860 = vadd.f32 %v3828, %v3764
      %v3861 = vadd.f32 %v3829, %v3769
      %v3862 = vadd.f32 %v3830, %v3772
      %v3863 = vadd.f32 %v3831, %v3777
      %v3864 = vadd.f32 %v3832, %v3780
      %v3865 = vadd.f32 %v3833, %v3785
      %v3866 = vadd.f32 %v3834, %v3788
      %v3867 = vadd.f32 %v3835, %v3793
      %v3868 = vadd.f32 %v3836, %v3796
      %v3869 = vadd.f32 %v3837, %v3801
      %v3870 = vadd.f32 %v3838, %v3804
      %3871 = vst [vmem:[#allocation3] sm:$0xff] %v3839
      %3872 = vst [vmem:[#allocation3 + $0x8] sm:$0xff] %v3840
      %3873 = vst [vmem:[#allocation3 + $0x10] sm:$0xff] %v3841
      %3874 = vst [vmem:[#allocation3 + $0x18] sm:$0xff] %v3842
      %3875 = vst [vmem:[#allocation3 + $0x20] sm:$0xff] %v3843
      %3876 = vst [vmem:[#allocation3 + $0x28] sm:$0xff] %v3844
      %3877 = vst [vmem:[#allocation3 + $0x30] sm:$0xff] %v3845
      %3878 = vst [vmem:[#allocation3 + $0x38] sm:$0xff] %v3846
      %3879 = vst [vmem:[#allocation3 + $0x40] sm:$0xff] %v3847
      %3880 = vst [vmem:[#allocation3 + $0x48] sm:$0xff] %v3848
      %3881 = vst [vmem:[#allocation3 + $0x50] sm:$0xff] %v3849
      %3882 = vst [vmem:[#allocation3 + $0x58] sm:$0xff] %v3850
      %3883 = vst [vmem:[#allocation3 + $0x60] sm:$0xff] %v3851
      %3884 = vst [vmem:[#allocation3 + $0x68] sm:$0xff] %v3852
      %3885 = vst [vmem:[#allocation3 + $0x70] sm:$0xff] %v3853
      %3886 = vst [vmem:[#allocation3 + $0x78] sm:$0xff] %v3854
      %3887 = vst [vmem:[#allocation3 + $0x80] sm:$0xff] %v3855
      %3888 = vst [vmem:[#allocation3 + $0x88] sm:$0xff] %v3856
      %3889 = vst [vmem:[#allocation3 + $0x90] sm:$0xff] %v3857
      %3890 = vst [vmem:[#allocation3 + $0x98] sm:$0xff] %v3858
      %3891 = vst [vmem:[#allocation3 + $0xa0] sm:$0xff] %v3859
      %3892 = vst [vmem:[#allocation3 + $0xa8] sm:$0xff] %v3860
      %3893 = vst [vmem:[#allocation3 + $0xb0] sm:$0xff] %v3861
      %3894 = vst [vmem:[#allocation3 + $0xb8] sm:$0xff] %v3862
      %3895 = vst [vmem:[#allocation3 + $0xc0] sm:$0xff] %v3863
      %3896 = vst [vmem:[#allocation3 + $0xc8] sm:$0xff] %v3864
      %3897 = vst [vmem:[#allocation3 + $0xd0] sm:$0xff] %v3865
      %3898 = vst [vmem:[#allocation3 + $0xd8] sm:$0xff] %v3866
      %3899 = vst [vmem:[#allocation3 + $0xe0] sm:$0xff] %v3867
      %3900 = vst [vmem:[#allocation3 + $0xe8] sm:$0xff] %v3868
      %3901 = vst [vmem:[#allocation3 + $0xf0] sm:$0xff] %v3869
      %3902 = vst [vmem:[#allocation3 + $0xf8] sm:$0xff] %v3870
      %v3903 = vld [vmem:[#allocation3] sm:$0xff]
      %v3904 = vld [vmem:[#allocation3 + $0x8] sm:$0xff]
      %v3905 = vld [vmem:[#allocation3 + $0x10] sm:$0xff]
      %v3906 = vld [vmem:[#allocation3 + $0x18] sm:$0xff]
      %v3907 = vld [vmem:[#allocation3 + $0x20] sm:$0xff]
      %v3908 = vld [vmem:[#allocation3 + $0x28] sm:$0xff]
      %v3909 = vld [vmem:[#allocation3 + $0x30] sm:$0xff]
      %v3910 = vld [vmem:[#allocation3 + $0x38] sm:$0xff]
      %v3911 = vld [vmem:[#allocation3 + $0x40] sm:$0xff]
      %v3912 = vld [vmem:[#allocation3 + $0x48] sm:$0xff]
      %v3913 = vld [vmem:[#allocation3 + $0x50] sm:$0xff]
      %v3914 = vld [vmem:[#allocation3 + $0x58] sm:$0xff]
      %v3915 = vld [vmem:[#allocation3 + $0x60] sm:$0xff]
      %v3916 = vld [vmem:[#allocation3 + $0x68] sm:$0xff]
      %v3917 = vld [vmem:[#allocation3 + $0x70] sm:$0xff]
      %v3918 = vld [vmem:[#allocation3 + $0x78] sm:$0xff]
      %v3919 = vld [vmem:[#allocation3 + $0x80] sm:$0xff]
      %v3920 = vld [vmem:[#allocation3 + $0x88] sm:$0xff]
      %v3921 = vld [vmem:[#allocation3 + $0x90] sm:$0xff]
      %v3922 = vld [vmem:[#allocation3 + $0x98] sm:$0xff]
      %v3923 = vld [vmem:[#allocation3 + $0xa0] sm:$0xff]
      %v3924 = vld [vmem:[#allocation3 + $0xa8] sm:$0xff]
      %v3925 = vld [vmem:[#allocation3 + $0xb0] sm:$0xff]
      %v3926 = vld [vmem:[#allocation3 + $0xb8] sm:$0xff]
      %v3927 = vld [vmem:[#allocation3 + $0xc0] sm:$0xff]
      %v3928 = vld [vmem:[#allocation3 + $0xc8] sm:$0xff]
      %v3929 = vld [vmem:[#allocation3 + $0xd0] sm:$0xff]
      %v3930 = vld [vmem:[#allocation3 + $0xd8] sm:$0xff]
      %v3931 = vld [vmem:[#allocation3 + $0xe0] sm:$0xff]
      %v3932 = vld [vmem:[#allocation3 + $0xe8] sm:$0xff]
      %v3933 = vld [vmem:[#allocation3 + $0xf0] sm:$0xff]
      %v3934 = vld [vmem:[#allocation3 + $0xf8] sm:$0xff]
      %v3935 = vld [vmem:[%s5] sm:$0x1]
      %v3937 = vlaneseq
      %v3938 = vshrl.u32 %v3937, 7
      %v3939 = vsub.s32 0, %v3938
      %v3940 = vrot.slane %v3935, %v3939
      %v3942 = vadd.f32 %v3903, %v3940
      %v3943 = vadd.f32 %v3904, %v3940
      %v3944 = vadd.f32 %v3905, %v3940
      %v3945 = vadd.f32 %v3906, %v3940
      %v3946 = vadd.f32 %v3907, %v3940
      %v3947 = vadd.f32 %v3908, %v3940
      %v3948 = vadd.f32 %v3909, %v3940
      %v3949 = vadd.f32 %v3910, %v3940
      %v3950 = vadd.f32 %v3911, %v3940
      %v3951 = vadd.f32 %v3912, %v3940
      %v3952 = vadd.f32 %v3913, %v3940
      %v3953 = vadd.f32 %v3914, %v3940
      %v3954 = vadd.f32 %v3915, %v3940
      %v3955 = vadd.f32 %v3916, %v3940
      %v3956 = vadd.f32 %v3917, %v3940
      %v3957 = vadd.f32 %v3918, %v3940
      %v3958 = vadd.f32 %v3919, %v3940
      %v3959 = vadd.f32 %v3920, %v3940
      %v3960 = vadd.f32 %v3921, %v3940
      %v3961 = vadd.f32 %v3922, %v3940
      %v3962 = vadd.f32 %v3923, %v3940
      %v3963 = vadd.f32 %v3924, %v3940
      %v3964 = vadd.f32 %v3925, %v3940
      %v3965 = vadd.f32 %v3926, %v3940
      %v3966 = vadd.f32 %v3927, %v3940
      %v3967 = vadd.f32 %v3928, %v3940
      %v3968 = vadd.f32 %v3929, %v3940
      %v3969 = vadd.f32 %v3930, %v3940
      %v3970 = vadd.f32 %v3931, %v3940
      %v3971 = vadd.f32 %v3932, %v3940
      %v3972 = vadd.f32 %v3933, %v3940
      %v3973 = vadd.f32 %v3934, %v3940
      %3974 = vst [vmem:[%s336] sm:$0xff] %v3942
      %3975 = vst [vmem:[%s336 + $0x8] sm:$0xff] %v3943
      %3976 = vst [vmem:[%s336 + $0x10] sm:$0xff] %v3944
      %3977 = vst [vmem:[%s336 + $0x18] sm:$0xff] %v3945
      %3978 = vst [vmem:[%s336 + $0x20] sm:$0xff] %v3946
      %3979 = vst [vmem:[%s336 + $0x28] sm:$0xff] %v3947
      %3980 = vst [vmem:[%s336 + $0x30] sm:$0xff] %v3948
      %3981 = vst [vmem:[%s336 + $0x38] sm:$0xff] %v3949
      %3982 = vst [vmem:[%s336 + $0x40] sm:$0xff] %v3950
      %3983 = vst [vmem:[%s336 + $0x48] sm:$0xff] %v3951
      %3984 = vst [vmem:[%s336 + $0x50] sm:$0xff] %v3952
      %3985 = vst [vmem:[%s336 + $0x58] sm:$0xff] %v3953
      %3986 = vst [vmem:[%s336 + $0x60] sm:$0xff] %v3954
      %3987 = vst [vmem:[%s336 + $0x68] sm:$0xff] %v3955
      %3988 = vst [vmem:[%s336 + $0x70] sm:$0xff] %v3956
      %3989 = vst [vmem:[%s336 + $0x78] sm:$0xff] %v3957
      %3990 = vst [vmem:[%s336 + $0x80] sm:$0xff] %v3958
      %3991 = vst [vmem:[%s336 + $0x88] sm:$0xff] %v3959
      %3992 = vst [vmem:[%s336 + $0x90] sm:$0xff] %v3960
      %3993 = vst [vmem:[%s336 + $0x98] sm:$0xff] %v3961
      %3994 = vst [vmem:[%s336 + $0xa0] sm:$0xff] %v3962
      %3995 = vst [vmem:[%s336 + $0xa8] sm:$0xff] %v3963
      %3996 = vst [vmem:[%s336 + $0xb0] sm:$0xff] %v3964
      %3997 = vst [vmem:[%s336 + $0xb8] sm:$0xff] %v3965
      %3998 = vst [vmem:[%s336 + $0xc0] sm:$0xff] %v3966
      %3999 = vst [vmem:[%s336 + $0xc8] sm:$0xff] %v3967
      %4000 = vst [vmem:[%s336 + $0xd0] sm:$0xff] %v3968
      %4001 = vst [vmem:[%s336 + $0xd8] sm:$0xff] %v3969
      %4002 = vst [vmem:[%s336 + $0xe0] sm:$0xff] %v3970
      %4003 = vst [vmem:[%s336 + $0xe8] sm:$0xff] %v3971
      %4004 = vst [vmem:[%s336 + $0xf0] sm:$0xff] %v3972
      %4005 = vst [vmem:[%s336 + $0xf8] sm:$0xff] %v3973
      %v4006 = vadd.f32 %v3942, %v3943
      %v4007 = vadd.f32 %v4006, %v3944
      %v4008 = vadd.f32 %v4007, %v3945
      %v4009 = vadd.f32 %v4008, %v3946
      %v4010 = vadd.f32 %v4009, %v3947
      %v4011 = vadd.f32 %v4010, %v3948
      %v4012 = vadd.f32 %v4011, %v3949
      %v4013 = vadd.f32 %v4012, %v3950
      %v4014 = vadd.f32 %v4013, %v3951
      %v4015 = vadd.f32 %v4014, %v3952
      %v4016 = vadd.f32 %v4015, %v3953
      %v4017 = vadd.f32 %v4016, %v3954
      %v4018 = vadd.f32 %v4017, %v3955
      %v4019 = vadd.f32 %v4018, %v3956
      %v4020 = vadd.f32 %v4019, %v3957
      %v4021 = vadd.f32 %v4020, %v3958
      %v4022 = vadd.f32 %v4021, %v3959
      %v4023 = vadd.f32 %v4022, %v3960
      %v4024 = vadd.f32 %v4023, %v3961
      %v4025 = vadd.f32 %v4024, %v3962
      %v4026 = vadd.f32 %v4025, %v3963
      %v4027 = vadd.f32 %v4026, %v3964
      %v4028 = vadd.f32 %v4027, %v3965
      %v4029 = vadd.f32 %v4028, %v3966
      %v4030 = vadd.f32 %v4029, %v3967
      %v4031 = vadd.f32 %v4030, %v3968
      %v4032 = vadd.f32 %v4031, %v3969
      %v4033 = vadd.f32 %v4032, %v3970
      %v4034 = vadd.f32 %v4033, %v3971
      %v4035 = vadd.f32 %v4034, %v3972
      %v4036 = vadd.f32 %v4035, %v3973
      %v4037 = vrot.slane %v4036, 4
      %v4038 = vadd.f32 %v4036, %v4037
      %v4039 = vrot.slane %v4038, 2
      %v4040 = vadd.f32 %v4038, %v4039
      %v4041 = vrot.slane %v4040, 1
      %v4042 = vadd.f32 %v4040, %v4041
      %4043 = vst [vmem:[%s339] sm:$0x1] %v4042
      %v4044 = vmul.f32 %v3942, %v3942
      %v4045 = vmul.f32 %v3943, %v3943
      %v4046 = vmul.f32 %v3944, %v3944
      %v4047 = vmul.f32 %v3945, %v3945
      %v4048 = vmul.f32 %v3946, %v3946
      %v4049 = vmul.f32 %v3947, %v3947
      %v4050 = vmul.f32 %v3948, %v3948
      %v4051 = vmul.f32 %v3949, %v3949
      %v4052 = vmul.f32 %v3950, %v3950
      %v4053 = vmul.f32 %v3951, %v3951
      %v4054 = vmul.f32 %v3952, %v3952
      %v4055 = vmul.f32 %v3953, %v3953
      %v4056 = vmul.f32 %v3954, %v3954
      %v4057 = vmul.f32 %v3955, %v3955
      %v4058 = vmul.f32 %v3956, %v3956
      %v4059 = vmul.f32 %v3957, %v3957
      %v4060 = vmul.f32 %v3958, %v3958
      %v4061 = vmul.f32 %v3959, %v3959
      %v4062 = vmul.f32 %v3960, %v3960
      %v4063 = vmul.f32 %v3961, %v3961
      %v4064 = vmul.f32 %v3962, %v3962
      %v4065 = vmul.f32 %v3963, %v3963
      %v4066 = vmul.f32 %v3964, %v3964
      %v4067 = vmul.f32 %v3965, %v3965
      %v4068 = vmul.f32 %v3966, %v3966
      %v4069 = vmul.f32 %v3967, %v3967
      %v4070 = vmul.f32 %v3968, %v3968
      %v4071 = vmul.f32 %v3969, %v3969
      %v4072 = vmul.f32 %v3970, %v3970
      %v4073 = vmul.f32 %v3971, %v3971
      %v4074 = vmul.f32 %v3972, %v3972
      %v4075 = vmul.f32 %v3973, %v3973
      %v4076 = vadd.f32 %v4044, %v4045
      %v4077 = vadd.f32 %v4076, %v4046
      %v4078 = vadd.f32 %v4077, %v4047
      %v4079 = vadd.f32 %v4078, %v4048
      %v4080 = vadd.f32 %v4079, %v4049
      %v4081 = vadd.f32 %v4080, %v4050
      %v4082 = vadd.f32 %v4081, %v4051
      %v4083 = vadd.f32 %v4082, %v4052
      %v4084 = vadd.f32 %v4083, %v4053
      %v4085 = vadd.f32 %v4084, %v4054
      %v4086 = vadd.f32 %v4085, %v4055
      %v4087 = vadd.f32 %v4086, %v4056
      %v4088 = vadd.f32 %v4087, %v4057
      %v4089 = vadd.f32 %v4088, %v4058
      %v4090 = vadd.f32 %v4089, %v4059
      %v4091 = vadd.f32 %v4090, %v4060
      %v4092 = vadd.f32 %v4091, %v4061
      %v4093 = vadd.f32 %v4092, %v4062
      %v4094 = vadd.f32 %v4093, %v4063
      %v4095 = vadd.f32 %v4094, %v4064
      %v4096 = vadd.f32 %v4095, %v4065
      %v4097 = vadd.f32 %v4096, %v4066
      %v4098 = vadd.f32 %v4097, %v4067
      %v4099 = vadd.f32 %v4098, %v4068
      %v4100 = vadd.f32 %v4099, %v4069
      %v4101 = vadd.f32 %v4100, %v4070
      %v4102 = vadd.f32 %v4101, %v4071
      %v4103 = vadd.f32 %v4102, %v4072
      %v4104 = vadd.f32 %v4103, %v4073
      %v4105 = vadd.f32 %v4104, %v4074
      %v4106 = vadd.f32 %v4105, %v4075
      %v4107 = vrot.slane %v4106, 4
      %v4108 = vadd.f32 %v4106, %v4107
      %v4109 = vrot.slane %v4108, 2
      %v4110 = vadd.f32 %v4108, %v4109
      %v4111 = vrot.slane %v4110, 1
      %v4112 = vadd.f32 %v4110, %v4111
      %4113 = vst [vmem:[%s342] sm:$0x1] %v4112
      %p4114 = scmp.lt.s32.totalorder %s20, 1
      %s4115 = scalar_select %p4114, %s20, 1
      %s4116 = smul.addr %s4115, 32
      %s4117 = smul.addr %s4116, 8
      %s4118 = scalar_lea.vmem %s6, %s4117
      %p4119 = scmp.lt.s32.totalorder %s20, 1
      %s4120 = scalar_select %p4119, %s20, 1
      %s4121 = scalar_lea.vmem %s7, %s4120
      %p4122 = scmp.lt.s32.totalorder %s20, 1
      %s4123 = scalar_select %p4122, %s20, 1
      %s4124 = scalar_lea.vmem %s8, %s4123
      // Predicated region
      $region45: #{recurrent_block_forward.5} parent=43 // pred_check
        %p4125 = pneg %p174
      $region46: #{recurrent_block_forward.5} parent=43 // pred_check_branch
        %4127 = sbr.rel (%p4125) target = $region48
      $region47: #{recurrent_block_forward.5} parent=43 // pred_region
        _
      $region48: #{recurrent_block_forward.5} parent=43 // pred_fallthru
        _
      // Predicated region
      $region49: #{recurrent_block_forward.5} parent=43 // pred_check
        %p4128 = pneg %p200
      $region50: #{recurrent_block_forward.5} parent=43 // pred_check_branch
        %4130 = sbr.rel (%p4128) target = $region52
      $region51: #{recurrent_block_forward.5} parent=43 // pred_region
        _
      $region52: #{recurrent_block_forward.5} parent=43 // pred_fallthru
        _
      // Predicated region
      $region53: #{recurrent_block_forward.5} parent=43 // pred_check
        %p4131 = pneg %p226
      $region54: #{recurrent_block_forward.5} parent=43 // pred_check_branch
        %4133 = sbr.rel (%p4131) target = $region56
      $region55: #{recurrent_block_forward.5} parent=43 // pred_region
        _
      $region56: #{recurrent_block_forward.5} parent=43 // pred_fallthru
        _
    $region44: #{recurrent_block_forward.5} parent=5 // pred_fallthru
      _
    %p4134 = scmp.le.s32.totalorder 2, %s15
    // Predicated region
    $region57: #{recurrent_block_forward.5} parent=5 // pred_check
      %p4135 = pneg %p4134
    $region58: #{recurrent_block_forward.5} parent=5 // pred_check_branch
      %4137 = sbr.rel (%p4135) target = $region60
    $region59: #{recurrent_block_forward.5} parent=5 // pred_region
      %s4138 = ssub.s32 %s15, 2
      // Predicated region
      $region61: #{recurrent_block_forward.5} parent=59 // pred_check
        %p4139 = pneg %p180
      $region62: #{recurrent_block_forward.5} parent=59 // pred_check_branch
        %4141 = sbr.rel (%p4139) target = $region64
      $region63: #{recurrent_block_forward.5} parent=59 // pred_region
        %p4142 = scmp.lt.s32.totalorder %s21, 1
        %s4143 = scalar_select %p4142, %s21, 1
        %s4144 = smul.addr %s4143, 32
        %s4145 = smul.addr %s4144, 8
        %s4146 = scalar_lea.vmem %s6, %s4145
      $region64: #{recurrent_block_forward.5} parent=59 // pred_fallthru
        _
      // Predicated region
      $region65: #{recurrent_block_forward.5} parent=59 // pred_check
        %p4147 = pneg %p206
      $region66: #{recurrent_block_forward.5} parent=59 // pred_check_branch
        %4149 = sbr.rel (%p4147) target = $region68
      $region67: #{recurrent_block_forward.5} parent=59 // pred_region
        %p4150 = scmp.lt.s32.totalorder %s21, 1
        %s4151 = scalar_select %p4150, %s21, 1
        %s4152 = scalar_lea.vmem %s7, %s4151
      $region68: #{recurrent_block_forward.5} parent=59 // pred_fallthru
        _
      // Predicated region
      $region69: #{recurrent_block_forward.5} parent=59 // pred_check
        %p4153 = pneg %p232
      $region70: #{recurrent_block_forward.5} parent=59 // pred_check_branch
        %4155 = sbr.rel (%p4153) target = $region72
      $region71: #{recurrent_block_forward.5} parent=59 // pred_region
        %p4156 = scmp.lt.s32.totalorder %s21, 1
        %s4157 = scalar_select %p4156, %s21, 1
        %s4158 = scalar_lea.vmem %s8, %s4157
      $region72: #{recurrent_block_forward.5} parent=59 // pred_fallthru
        _
    $region60: #{recurrent_block_forward.5} parent=5 // pred_fallthru
      _
  $region6: #{recurrent_block_forward.5} parent=0 // loop_footer
    %s19 = sadd.s32 1, %s15
  $region7: #{recurrent_block_forward.5} parent=0 // loop_footer_branch
    %14 = sbr.rel target = $region3
  $region8: #{recurrent_block_forward.5} parent=0 // loop_exit
    _

</llo_original>
